<compile_context>
chip_gen: v6e
topology: v6e:2x2x1
jax: 0.10.0
libtpu: 0.0.40
codegen_flags: <defaults>
</compile_context>

<pallas_src>
import jax
import jax.numpy as jnp
from jax.experimental import pallas as pl
from jax.experimental.pallas import tpu as pltpu

_EPS = 1e-5


# --------------------------------------------------------------------------- #
# In-kernel helpers (traced inline).
# --------------------------------------------------------------------------- #
def _stage_with_zero_halo(dst_ref, interior):
    """Write `interior` (N,H,W,C) into dst_ref (N,H+2,W+2,C); zero only the halo."""
    N, Hp, Wp, C = dst_ref.shape
    H, W = Hp - 2, Wp - 2
    zrow = jnp.zeros((N, 1, Wp, C), dst_ref.dtype)
    zcol = jnp.zeros((N, Hp, 1, C), dst_ref.dtype)
    dst_ref[:, pl.ds(0, 1), :, :] = zrow
    dst_ref[:, pl.ds(Hp - 1, 1), :, :] = zrow
    dst_ref[:, :, pl.ds(0, 1), :] = zcol
    dst_ref[:, :, pl.ds(Wp - 1, 1), :] = zcol
    dst_ref[:, pl.ds(1, H), pl.ds(1, W), :] = interior


def _conv3x3(src_pad_ref, w_ref):
    """3x3 / stride-1 conv as 9 shifted bf16 matmuls with f32 accumulation.

    src_pad_ref : (N, H+2, W+2, Cin) f32 scratch with a zero halo
    w_ref       : (3, 3, Cin, Cout)  bf16 weights
    returns     : (N*H*W, Cout) f32 accumulator (lane-dense when Cout>=128)
    """
    N, Hp, Wp, Cin = src_pad_ref.shape
    H, W = Hp - 2, Wp - 2
    Cout = w_ref.shape[-1]
    M = N * H * W
    acc = jnp.zeros((M, Cout), jnp.float32)
    for ky in range(3):
        for kx in range(3):
            patch = src_pad_ref[:, pl.ds(ky, H), pl.ds(kx, W), :]   # (N,H,W,Cin)
            acc = acc + jnp.dot(
                patch.reshape(M, Cin).astype(jnp.bfloat16),
                w_ref[ky, kx],                                      # (Cin, Cout) bf16
                preferred_element_type=jnp.float32)
    return acc


def _batchnorm_train(acc, gamma, beta, inv_m):
    """One-pass batch-norm (training-mode batch stats, biased var), affine folded."""
    mean = jnp.sum(acc, axis=0, keepdims=True) * inv_m              # (1, C)
    var = jnp.sum(acc * acc, axis=0, keepdims=True) * inv_m - mean * mean
    scale = gamma * jax.lax.rsqrt(var + _EPS)                       # (1, C)
    shift = beta - mean * scale                                     # (1, C)
    return acc * scale + shift


# --------------------------------------------------------------------------- #
# Kernel.
# --------------------------------------------------------------------------- #
def _basic_block_kernel(x_ref, w1_ref, g1_ref, b1_ref, w2_ref, g2_ref, b2_ref,
                        o_ref, xpad_ref, midpad_ref):
    """Whole BasicBlock forward, fully resident in VMEM.

    x_ref     : (N, H, W, Cin)     f32 input (also the residual branch)
    w1_ref    : (3, 3, Cin, C)     bf16 conv1 weights
    w2_ref    : (3, 3, C,   C)     bf16 conv2 weights
    g*/b*     : (1, C)             f32 BN affine params
    o_ref     : (N, H, W, C)       f32 output
    xpad_ref  : (N, H+2, W+2, Cin) f32 scratch (conv1 input, zero halo)
    midpad_ref: (N, H+2, W+2, C)   f32 scratch (conv2 input, zero halo)
    """
    N, H, W, _ = x_ref.shape
    C = o_ref.shape[-1]
    M = N * H * W
    inv_m = 1.0 / M

    x = x_ref[...]                                   # residual, loaded once

    # conv1 -> bn1 -> relu
    _stage_with_zero_halo(xpad_ref, x)
    acc1 = _conv3x3(xpad_ref, w1_ref)
    h1 = jnp.maximum(_batchnorm_train(acc1, g1_ref[...], b1_ref[...], inv_m), 0.0)

    # conv2 -> bn2
    _stage_with_zero_halo(midpad_ref, h1.reshape(N, H, W, C))
    acc2 = _conv3x3(midpad_ref, w2_ref)
    h2 = _batchnorm_train(acc2, g2_ref[...], b2_ref[...], inv_m)

    # residual add + relu (lane-dense store, last dim = C)
    o_ref[...] = jnp.maximum(h2.reshape(N, H, W, C) + x, 0.0)


# --------------------------------------------------------------------------- #
# Wrapper.
# --------------------------------------------------------------------------- #
@jax.jit
def basic_block_forward(x_nchw, w1, g1, b1, w2, g2, b2):
    """x_nchw: (N, C, H, W) float32 — PyTorch layout.  Returns (N, C, H, W)."""
    x = jnp.transpose(x_nchw, (0, 2, 3, 1)).astype(jnp.float32)      # NHWC
    N, H, W, Cin = x.shape
    C = w1.shape[0]

    # Weights in bf16 for the MXU; (3, 3, Cin, Cout) layout.
    w1t = jnp.transpose(w1, (2, 3, 1, 0)).astype(jnp.bfloat16)
    w2t = jnp.transpose(w2, (2, 3, 1, 0)).astype(jnp.bfloat16)
    g1r = g1.reshape(1, C).astype(jnp.float32)
    b1r = b1.reshape(1, C).astype(jnp.float32)
    g2r = g2.reshape(1, C).astype(jnp.float32)
    b2r = b2.reshape(1, C).astype(jnp.float32)

    flops = 2 * N * H * W * 9 * (Cin * C + C * C)                    # two 3x3 convs
    bytes_accessed = (x.size * 4 + w1t.size * 2 + w2t.size * 2 +
                      (g1r.size + b1r.size + g2r.size + b2r.size) * 4 +
                      N * H * W * C * 4)

    full = lambda shape: pl.BlockSpec(shape, lambda i: (0,) * len(shape))

    out_nhwc = pl.pallas_call(
        _basic_block_kernel,
        out_shape=jax.ShapeDtypeStruct((N, H, W, C), jnp.float32),
        grid_spec=pltpu.PrefetchScalarGridSpec(
            num_scalar_prefetch=0,
            grid=(1,),
            in_specs=[
                full(x.shape),
                full(w1t.shape),
                full(g1r.shape),
                full(b1r.shape),
                full(w2t.shape),
                full(g2r.shape),
                full(b2r.shape),
            ],
            out_specs=full((N, H, W, C)),
            scratch_shapes=[
                pltpu.VMEM((N, H + 2, W + 2, Cin), jnp.float32),
                pltpu.VMEM((N, H + 2, W + 2, C), jnp.float32),
            ],
        ),
        compiler_params=pltpu.CompilerParams(
            dimension_semantics=("arbitrary",),
            vmem_limit_bytes=32 * 1024 * 1024,
        ),
        cost_estimate=pl.CostEstimate(
            flops=flops, transcendentals=0, bytes_accessed=bytes_accessed),
    )(x, w1t, g1r, b1r, w2t, g2r, b2r)

    return jnp.transpose(out_nhwc, (0, 3, 1, 2))                     # back to NCHW


# --------------------------------------------------------------------------- #
# Pure-JAX reference (f32 end-to-end), for a loose correctness check.
# --------------------------------------------------------------------------- #
def _reference(x_nchw, w1, g1, b1, w2, g2, b2):
    x = jnp.transpose(x_nchw, (0, 2, 3, 1)).astype(jnp.float32)

    def conv(h, w):                                   # w: (Cout, Cin, 3, 3)
        w_hwio = jnp.transpose(w, (2, 3, 1, 0)).astype(jnp.float32)
        return jax.lax.conv_general_dilated(
            h, w_hwio, window_strides=(1, 1), padding="SAME",
            dimension_numbers=("NHWC", "HWIO", "NHWC"))

    def bn(h, g, b):
        mean = jnp.mean(h, axis=(0, 1, 2), keepdims=True)
        var = jnp.mean((h - mean) ** 2, axis=(0, 1, 2), keepdims=True)
        return (h - mean) * jax.lax.rsqrt(var + _EPS) * g + b

    h = jax.nn.relu(bn(conv(x, w1), g1, b1))
    h = bn(conv(h, w2), g2, b2)
    out = jax.nn.relu(h + x)
    return jnp.transpose(out, (0, 3, 1, 2))


if __name__ == "__main__":
    # Lane-dense channel count (C multiple of 128) consistent with
    # BasicBlock(inplanes=128, planes=128, stride=1); small batch/spatial.
    N, C, H, W = 2, 128, 16, 16
    key = jax.random.PRNGKey(0)
    kx_, k1, k2 = jax.random.split(key, 3)

    x = jax.random.normal(kx_, (N, C, H, W), dtype=jnp.float32)

    # conv weights, PyTorch layout (Cout, Cin, 3, 3), bias=False
    w1 = 0.05 * jax.random.normal(k1, (C, C, 3, 3), dtype=jnp.float32)
    w2 = 0.05 * jax.random.normal(k2, (C, C, 3, 3), dtype=jnp.float32)
    # BatchNorm2d default init: weight=1, bias=0
    g1 = jnp.ones((C,), jnp.float32)
    b1 = jnp.zeros((C,), jnp.float32)
    g2 = jnp.ones((C,), jnp.float32)
    b2 = jnp.zeros((C,), jnp.float32)

    out = basic_block_forward(x, w1, g1, b1, w2, g2, b2)
    jax.block_until_ready(out)

    assert out.shape == (N, C, H, W), out.shape
    assert bool(jnp.all(jnp.isfinite(out)))
    assert bool(jnp.all(out >= 0.0))                 # final ReLU

    # Loose tolerance: kernel uses bf16 MXU operands, reference is f32.
    ref = _reference(x, w1, g1, b1, w2, g2, b2)
    max_err = float(jnp.max(jnp.abs(out - ref)))
    assert max_err < 0.2, f"max abs err vs f32 reference: {max_err}"

    print("KERNEL_OK")
</pallas_src>

<mosaic_0001>
module attributes {stable_mosaic.version = 11 : i64} {
  func.func @_basic_block_kernel(%arg0: i32, %arg1: memref<2x16x16x128xf32, #tpu.memory_space<vmem>>, %arg2: memref<3x3x128x128xbf16, #tpu.memory_space<vmem>>, %arg3: memref<1x128xf32, #tpu.memory_space<vmem>>, %arg4: memref<1x128xf32, #tpu.memory_space<vmem>>, %arg5: memref<3x3x128x128xbf16, #tpu.memory_space<vmem>>, %arg6: memref<1x128xf32, #tpu.memory_space<vmem>>, %arg7: memref<1x128xf32, #tpu.memory_space<vmem>>, %arg8: memref<2x16x16x128xf32, #tpu.memory_space<vmem>>, %arg9: memref<2x18x18x128xf32, #tpu.memory_space<vmem>>, %arg10: memref<2x18x18x128xf32, #tpu.memory_space<vmem>>) attributes {dimension_semantics = [#tpu.dimension_semantics<arbitrary>], iteration_bounds = array<i64: 1>, scalar_prefetch = 0 : i64, scratch_operands = 2 : i64, tpu.core_type = #tpu.core_type<tc>, window_params = [{pipeline_mode = #tpu.pipeline_mode<synchronous>, transform_indices = @transform_0, window_bounds = array<i64: 2, 16, 16, 128>}, {pipeline_mode = #tpu.pipeline_mode<synchronous>, transform_indices = @transform_1, window_bounds = array<i64: 3, 3, 128, 128>}, {pipeline_mode = #tpu.pipeline_mode<synchronous>, transform_indices = @transform_2, window_bounds = array<i64: 1, 128>}, {pipeline_mode = #tpu.pipeline_mode<synchronous>, transform_indices = @transform_3, window_bounds = array<i64: 1, 128>}, {pipeline_mode = #tpu.pipeline_mode<synchronous>, transform_indices = @transform_4, window_bounds = array<i64: 3, 3, 128, 128>}, {pipeline_mode = #tpu.pipeline_mode<synchronous>, transform_indices = @transform_5, window_bounds = array<i64: 1, 128>}, {pipeline_mode = #tpu.pipeline_mode<synchronous>, transform_indices = @transform_6, window_bounds = array<i64: 1, 128>}, {pipeline_mode = #tpu.pipeline_mode<synchronous>, transform_indices = @transform_7, window_bounds = array<i64: 2, 16, 16, 128>}]} {
    %c0 = arith.constant 0 : index
    %c0_0 = arith.constant 0 : index
    %c0_1 = arith.constant 0 : index
    %c0_2 = arith.constant 0 : index
    %0 = vector.load %arg1[%c0, %c0_0, %c0_1, %c0_2] : memref<2x16x16x128xf32, #tpu.memory_space<vmem>>, vector<2x16x16x128xf32>
    %cst = arith.constant 0.000000e+00 : f32
    %1 = vector.broadcast %cst : f32 to vector<2x1x18x128xf32>
    %cst_3 = arith.constant 0.000000e+00 : f32
    %2 = vector.broadcast %cst_3 : f32 to vector<2x18x1x128xf32>
    %c0_4 = arith.constant 0 : index
    %c0_5 = arith.constant 0 : index
    %c0_6 = arith.constant 0 : index
    %c0_7 = arith.constant 0 : index
    %3 = vector.load %arg9[%c0_4, %c0_5, %c0_6, %c0_7] : memref<2x18x18x128xf32, #tpu.memory_space<vmem>>, vector<2x1x18x128xf32>
    tpu.vector_store %arg9[%c0_4, %c0_5, %c0_6, %c0_7], %1 {strides = array<i32>} : memref<2x18x18x128xf32, #tpu.memory_space<vmem>>, vector<2x1x18x128xf32>,
    %c0_8 = arith.constant 0 : index
    %c17 = arith.constant 17 : index
    %c0_9 = arith.constant 0 : index
    %c0_10 = arith.constant 0 : index
    %4 = vector.load %arg9[%c0_8, %c17, %c0_9, %c0_10] : memref<2x18x18x128xf32, #tpu.memory_space<vmem>>, vector<2x1x18x128xf32>
    tpu.vector_store %arg9[%c0_8, %c17, %c0_9, %c0_10], %1 {strides = array<i32>} : memref<2x18x18x128xf32, #tpu.memory_space<vmem>>, vector<2x1x18x128xf32>,
    %c0_11 = arith.constant 0 : index
    %c0_12 = arith.constant 0 : index
    %c0_13 = arith.constant 0 : index
    %c0_14 = arith.constant 0 : index
    %5 = vector.load %arg9[%c0_11, %c0_12, %c0_13, %c0_14] : memref<2x18x18x128xf32, #tpu.memory_space<vmem>>, vector<2x18x1x128xf32>
    tpu.vector_store %arg9[%c0_11, %c0_12, %c0_13, %c0_14], %2 {strides = array<i32>} : memref<2x18x18x128xf32, #tpu.memory_space<vmem>>, vector<2x18x1x128xf32>,
    %c0_15 = arith.constant 0 : index
    %c0_16 = arith.constant 0 : index
    %c17_17 = arith.constant 17 : index
    %c0_18 = arith.constant 0 : index
    %6 = vector.load %arg9[%c0_15, %c0_16, %c17_17, %c0_18] : memref<2x18x18x128xf32, #tpu.memory_space<vmem>>, vector<2x18x1x128xf32>
    tpu.vector_store %arg9[%c0_15, %c0_16, %c17_17, %c0_18], %2 {strides = array<i32>} : memref<2x18x18x128xf32, #tpu.memory_space<vmem>>, vector<2x18x1x128xf32>,
    %c0_19 = arith.constant 0 : index
    %c1 = arith.constant 1 : index
    %c1_20 = arith.constant 1 : index
    %c0_21 = arith.constant 0 : index
    %7 = vector.load %arg9[%c0_19, %c1, %c1_20, %c0_21] : memref<2x18x18x128xf32, #tpu.memory_space<vmem>>, vector<2x16x16x128xf32>
    tpu.vector_store %arg9[%c0_19, %c1, %c1_20, %c0_21], %0 {strides = array<i32>} : memref<2x18x18x128xf32, #tpu.memory_space<vmem>>, vector<2x16x16x128xf32>,
    %cst_22 = arith.constant 0.000000e+00 : f32
    %8 = vector.broadcast %cst_22 : f32 to vector<512x128xf32>
    %c0_23 = arith.constant 0 : index
    %c0_24 = arith.constant 0 : index
    %c0_25 = arith.constant 0 : index
    %c0_26 = arith.constant 0 : index
    %9 = vector.load %arg9[%c0_23, %c0_24, %c0_25, %c0_26] : memref<2x18x18x128xf32, #tpu.memory_space<vmem>>, vector<2x16x16x128xf32>
    %10 = vector.shape_cast %9 : vector<2x16x16x128xf32> to vector<512x128xf32>
    %11 = arith.truncf %10 : vector<512x128xf32> to vector<512x128xbf16>
    %c0_27 = arith.constant 0 : index
    %c0_28 = arith.constant 0 : index
    %c0_29 = arith.constant 0 : index
    %c0_30 = arith.constant 0 : index
    %12 = vector.load %arg2[%c0_27, %c0_28, %c0_29, %c0_30] : memref<3x3x128x128xbf16, #tpu.memory_space<vmem>>, vector<1x1x128x128xbf16>
    %13 = vector.shape_cast %12 : vector<1x1x128x128xbf16> to vector<128x128xbf16>
    %cst_31 = arith.constant dense<0.000000e+00> : vector<512x128xf32>
    %14 = tpu.matmul %11, %13, %cst_31 {dimension_numbers = #tpu.dot_dimension_numbers<[1], [0], [0], [1], [0, 0, 1, 1], [], []>} : vector<512x128xbf16>, vector<128x128xbf16>, vector<512x128xf32> -> vector<512x128xf32>
    %15 = arith.addf %8, %14 : vector<512x128xf32>
    %c0_32 = arith.constant 0 : index
    %c0_33 = arith.constant 0 : index
    %c1_34 = arith.constant 1 : index
    %c0_35 = arith.constant 0 : index
    %16 = vector.load %arg9[%c0_32, %c0_33, %c1_34, %c0_35] : memref<2x18x18x128xf32, #tpu.memory_space<vmem>>, vector<2x16x16x128xf32>
    %17 = vector.shape_cast %16 : vector<2x16x16x128xf32> to vector<512x128xf32>
    %18 = arith.truncf %17 : vector<512x128xf32> to vector<512x128xbf16>
    %c0_36 = arith.constant 0 : index
    %c1_37 = arith.constant 1 : index
    %c0_38 = arith.constant 0 : index
    %c0_39 = arith.constant 0 : index
    %19 = vector.load %arg2[%c0_36, %c1_37, %c0_38, %c0_39] : memref<3x3x128x128xbf16, #tpu.memory_space<vmem>>, vector<1x1x128x128xbf16>
    %20 = vector.shape_cast %19 : vector<1x1x128x128xbf16> to vector<128x128xbf16>
    %cst_40 = arith.constant dense<0.000000e+00> : vector<512x128xf32>
    %21 = tpu.matmul %18, %20, %cst_40 {dimension_numbers = #tpu.dot_dimension_numbers<[1], [0], [0], [1], [0, 0, 1, 1], [], []>} : vector<512x128xbf16>, vector<128x128xbf16>, vector<512x128xf32> -> vector<512x128xf32>
    %22 = arith.addf %15, %21 : vector<512x128xf32>
    %c0_41 = arith.constant 0 : index
    %c0_42 = arith.constant 0 : index
    %c2 = arith.constant 2 : index
    %c0_43 = arith.constant 0 : index
    %23 = vector.load %arg9[%c0_41, %c0_42, %c2, %c0_43] : memref<2x18x18x128xf32, #tpu.memory_space<vmem>>, vector<2x16x16x128xf32>
    %24 = vector.shape_cast %23 : vector<2x16x16x128xf32> to vector<512x128xf32>
    %25 = arith.truncf %24 : vector<512x128xf32> to vector<512x128xbf16>
    %c0_44 = arith.constant 0 : index
    %c2_45 = arith.constant 2 : index
    %c0_46 = arith.constant 0 : index
    %c0_47 = arith.constant 0 : index
    %26 = vector.load %arg2[%c0_44, %c2_45, %c0_46, %c0_47] : memref<3x3x128x128xbf16, #tpu.memory_space<vmem>>, vector<1x1x128x128xbf16>
    %27 = vector.shape_cast %26 : vector<1x1x128x128xbf16> to vector<128x128xbf16>
    %cst_48 = arith.constant dense<0.000000e+00> : vector<512x128xf32>
    %28 = tpu.matmul %25, %27, %cst_48 {dimension_numbers = #tpu.dot_dimension_numbers<[1], [0], [0], [1], [0, 0, 1, 1], [], []>} : vector<512x128xbf16>, vector<128x128xbf16>, vector<512x128xf32> -> vector<512x128xf32>
    %29 = arith.addf %22, %28 : vector<512x128xf32>
    %c0_49 = arith.constant 0 : index
    %c1_50 = arith.constant 1 : index
    %c0_51 = arith.constant 0 : index
    %c0_52 = arith.constant 0 : index
    %30 = vector.load %arg9[%c0_49, %c1_50, %c0_51, %c0_52] : memref<2x18x18x128xf32, #tpu.memory_space<vmem>>, vector<2x16x16x128xf32>
    %31 = vector.shape_cast %30 : vector<2x16x16x128xf32> to vector<512x128xf32>
    %32 = arith.truncf %31 : vector<512x128xf32> to vector<512x128xbf16>
    %c1_53 = arith.constant 1 : index
    %c0_54 = arith.constant 0 : index
    %c0_55 = arith.constant 0 : index
    %c0_56 = arith.constant 0 : index
    %33 = vector.load %arg2[%c1_53, %c0_54, %c0_55, %c0_56] : memref<3x3x128x128xbf16, #tpu.memory_space<vmem>>, vector<1x1x128x128xbf16>
    %34 = vector.shape_cast %33 : vector<1x1x128x128xbf16> to vector<128x128xbf16>
    %cst_57 = arith.constant dense<0.000000e+00> : vector<512x128xf32>
    %35 = tpu.matmul %32, %34, %cst_57 {dimension_numbers = #tpu.dot_dimension_numbers<[1], [0], [0], [1], [0, 0, 1, 1], [], []>} : vector<512x128xbf16>, vector<128x128xbf16>, vector<512x128xf32> -> vector<512x128xf32>
    %36 = arith.addf %29, %35 : vector<512x128xf32>
    %c0_58 = arith.constant 0 : index
    %c1_59 = arith.constant 1 : index
    %c1_60 = arith.constant 1 : index
    %c0_61 = arith.constant 0 : index
    %37 = vector.load %arg9[%c0_58, %c1_59, %c1_60, %c0_61] : memref<2x18x18x128xf32, #tpu.memory_space<vmem>>, vector<2x16x16x128xf32>
    %38 = vector.shape_cast %37 : vector<2x16x16x128xf32> to vector<512x128xf32>
    %39 = arith.truncf %38 : vector<512x128xf32> to vector<512x128xbf16>
    %c1_62 = arith.constant 1 : index
    %c1_63 = arith.constant 1 : index
    %c0_64 = arith.constant 0 : index
    %c0_65 = arith.constant 0 : index
    %40 = vector.load %arg2[%c1_62, %c1_63, %c0_64, %c0_65] : memref<3x3x128x128xbf16, #tpu.memory_space<vmem>>, vector<1x1x128x128xbf16>
    %41 = vector.shape_cast %40 : vector<1x1x128x128xbf16> to vector<128x128xbf16>
    %cst_66 = arith.constant dense<0.000000e+00> : vector<512x128xf32>
    %42 = tpu.matmul %39, %41, %cst_66 {dimension_numbers = #tpu.dot_dimension_numbers<[1], [0], [0], [1], [0, 0, 1, 1], [], []>} : vector<512x128xbf16>, vector<128x128xbf16>, vector<512x128xf32> -> vector<512x128xf32>
    %43 = arith.addf %36, %42 : vector<512x128xf32>
    %c0_67 = arith.constant 0 : index
    %c1_68 = arith.constant 1 : index
    %c2_69 = arith.constant 2 : index
    %c0_70 = arith.constant 0 : index
    %44 = vector.load %arg9[%c0_67, %c1_68, %c2_69, %c0_70] : memref<2x18x18x128xf32, #tpu.memory_space<vmem>>, vector<2x16x16x128xf32>
    %45 = vector.shape_cast %44 : vector<2x16x16x128xf32> to vector<512x128xf32>
    %46 = arith.truncf %45 : vector<512x128xf32> to vector<512x128xbf16>
    %c1_71 = arith.constant 1 : index
    %c2_72 = arith.constant 2 : index
    %c0_73 = arith.constant 0 : index
    %c0_74 = arith.constant 0 : index
    %47 = vector.load %arg2[%c1_71, %c2_72, %c0_73, %c0_74] : memref<3x3x128x128xbf16, #tpu.memory_space<vmem>>, vector<1x1x128x128xbf16>
    %48 = vector.shape_cast %47 : vector<1x1x128x128xbf16> to vector<128x128xbf16>
    %cst_75 = arith.constant dense<0.000000e+00> : vector<512x128xf32>
    %49 = tpu.matmul %46, %48, %cst_75 {dimension_numbers = #tpu.dot_dimension_numbers<[1], [0], [0], [1], [0, 0, 1, 1], [], []>} : vector<512x128xbf16>, vector<128x128xbf16>, vector<512x128xf32> -> vector<512x128xf32>
    %50 = arith.addf %43, %49 : vector<512x128xf32>
    %c0_76 = arith.constant 0 : index
    %c2_77 = arith.constant 2 : index
    %c0_78 = arith.constant 0 : index
    %c0_79 = arith.constant 0 : index
    %51 = vector.load %arg9[%c0_76, %c2_77, %c0_78, %c0_79] : memref<2x18x18x128xf32, #tpu.memory_space<vmem>>, vector<2x16x16x128xf32>
    %52 = vector.shape_cast %51 : vector<2x16x16x128xf32> to vector<512x128xf32>
    %53 = arith.truncf %52 : vector<512x128xf32> to vector<512x128xbf16>
    %c2_80 = arith.constant 2 : index
    %c0_81 = arith.constant 0 : index
    %c0_82 = arith.constant 0 : index
    %c0_83 = arith.constant 0 : index
    %54 = vector.load %arg2[%c2_80, %c0_81, %c0_82, %c0_83] : memref<3x3x128x128xbf16, #tpu.memory_space<vmem>>, vector<1x1x128x128xbf16>
    %55 = vector.shape_cast %54 : vector<1x1x128x128xbf16> to vector<128x128xbf16>
    %cst_84 = arith.constant dense<0.000000e+00> : vector<512x128xf32>
    %56 = tpu.matmul %53, %55, %cst_84 {dimension_numbers = #tpu.dot_dimension_numbers<[1], [0], [0], [1], [0, 0, 1, 1], [], []>} : vector<512x128xbf16>, vector<128x128xbf16>, vector<512x128xf32> -> vector<512x128xf32>
    %57 = arith.addf %50, %56 : vector<512x128xf32>
    %c0_85 = arith.constant 0 : index
    %c2_86 = arith.constant 2 : index
    %c1_87 = arith.constant 1 : index
    %c0_88 = arith.constant 0 : index
    %58 = vector.load %arg9[%c0_85, %c2_86, %c1_87, %c0_88] : memref<2x18x18x128xf32, #tpu.memory_space<vmem>>, vector<2x16x16x128xf32>
    %59 = vector.shape_cast %58 : vector<2x16x16x128xf32> to vector<512x128xf32>
    %60 = arith.truncf %59 : vector<512x128xf32> to vector<512x128xbf16>
    %c2_89 = arith.constant 2 : index
    %c1_90 = arith.constant 1 : index
    %c0_91 = arith.constant 0 : index
    %c0_92 = arith.constant 0 : index
    %61 = vector.load %arg2[%c2_89, %c1_90, %c0_91, %c0_92] : memref<3x3x128x128xbf16, #tpu.memory_space<vmem>>, vector<1x1x128x128xbf16>
    %62 = vector.shape_cast %61 : vector<1x1x128x128xbf16> to vector<128x128xbf16>
    %cst_93 = arith.constant dense<0.000000e+00> : vector<512x128xf32>
    %63 = tpu.matmul %60, %62, %cst_93 {dimension_numbers = #tpu.dot_dimension_numbers<[1], [0], [0], [1], [0, 0, 1, 1], [], []>} : vector<512x128xbf16>, vector<128x128xbf16>, vector<512x128xf32> -> vector<512x128xf32>
    %64 = arith.addf %57, %63 : vector<512x128xf32>
    %c0_94 = arith.constant 0 : index
    %c2_95 = arith.constant 2 : index
    %c2_96 = arith.constant 2 : index
    %c0_97 = arith.constant 0 : index
    %65 = vector.load %arg9[%c0_94, %c2_95, %c2_96, %c0_97] : memref<2x18x18x128xf32, #tpu.memory_space<vmem>>, vector<2x16x16x128xf32>
    %66 = vector.shape_cast %65 : vector<2x16x16x128xf32> to vector<512x128xf32>
    %67 = arith.truncf %66 : vector<512x128xf32> to vector<512x128xbf16>
    %c2_98 = arith.constant 2 : index
    %c2_99 = arith.constant 2 : index
    %c0_100 = arith.constant 0 : index
    %c0_101 = arith.constant 0 : index
    %68 = vector.load %arg2[%c2_98, %c2_99, %c0_100, %c0_101] : memref<3x3x128x128xbf16, #tpu.memory_space<vmem>>, vector<1x1x128x128xbf16>
    %69 = vector.shape_cast %68 : vector<1x1x128x128xbf16> to vector<128x128xbf16>
    %cst_102 = arith.constant dense<0.000000e+00> : vector<512x128xf32>
    %70 = tpu.matmul %67, %69, %cst_102 {dimension_numbers = #tpu.dot_dimension_numbers<[1], [0], [0], [1], [0, 0, 1, 1], [], []>} : vector<512x128xbf16>, vector<128x128xbf16>, vector<512x128xf32> -> vector<512x128xf32>
    %71 = arith.addf %64, %70 : vector<512x128xf32>
    %c0_103 = arith.constant 0 : index
    %c0_104 = arith.constant 0 : index
    %72 = vector.load %arg3[%c0_103, %c0_104] : memref<1x128xf32, #tpu.memory_space<vmem>>, vector<1x128xf32>
    %c0_105 = arith.constant 0 : index
    %c0_106 = arith.constant 0 : index
    %73 = vector.load %arg4[%c0_105, %c0_106] : memref<1x128xf32, #tpu.memory_space<vmem>>, vector<1x128xf32>
    %cst_107 = arith.constant dense<0.000000e+00> : vector<128xf32>
    %74 = vector.multi_reduction <add>, %71, %cst_107 [0] : vector<512x128xf32> to vector<128xf32>
    %75 = vector.shape_cast %74 : vector<128xf32> to vector<1x128xf32>
    %cst_108 = arith.constant 0.001953125 : f32
    %76 = vector.broadcast %cst_108 : f32 to vector<1x128xf32>
    %77 = arith.mulf %75, %76 : vector<1x128xf32>
    %78 = arith.mulf %71, %71 : vector<512x128xf32>
    %cst_109 = arith.constant dense<0.000000e+00> : vector<128xf32>
    %79 = vector.multi_reduction <add>, %78, %cst_109 [0] : vector<512x128xf32> to vector<128xf32>
    %80 = vector.shape_cast %79 : vector<128xf32> to vector<1x128xf32>
    %cst_110 = arith.constant 0.001953125 : f32
    %81 = vector.broadcast %cst_110 : f32 to vector<1x128xf32>
    %82 = arith.mulf %80, %81 : vector<1x128xf32>
    %83 = arith.mulf %77, %77 : vector<1x128xf32>
    %84 = arith.subf %82, %83 : vector<1x128xf32>
    %cst_111 = arith.constant 9.99999974E-6 : f32
    %85 = vector.broadcast %cst_111 : f32 to vector<1x128xf32>
    %86 = arith.addf %84, %85 : vector<1x128xf32>
    %87 = math.rsqrt %86 : vector<1x128xf32>
    %88 = arith.mulf %72, %87 : vector<1x128xf32>
    %89 = arith.mulf %77, %88 : vector<1x128xf32>
    %90 = arith.subf %73, %89 : vector<1x128xf32>
    %91 = vector.broadcast %88 : vector<1x128xf32> to vector<512x128xf32>
    %92 = arith.mulf %71, %91 : vector<512x128xf32>
    %93 = vector.broadcast %90 : vector<1x128xf32> to vector<512x128xf32>
    %94 = arith.addf %92, %93 : vector<512x128xf32>
    %cst_112 = arith.constant 0.000000e+00 : f32
    %95 = vector.broadcast %cst_112 : f32 to vector<512x128xf32>
    %96 = arith.maximumf %94, %95 : vector<512x128xf32>
    %97 = vector.shape_cast %96 : vector<512x128xf32> to vector<2x16x16x128xf32>
    %cst_113 = arith.constant 0.000000e+00 : f32
    %98 = vector.broadcast %cst_113 : f32 to vector<2x1x18x128xf32>
    %cst_114 = arith.constant 0.000000e+00 : f32
    %99 = vector.broadcast %cst_114 : f32 to vector<2x18x1x128xf32>
    %c0_115 = arith.constant 0 : index
    %c0_116 = arith.constant 0 : index
    %c0_117 = arith.constant 0 : index
    %c0_118 = arith.constant 0 : index
    %100 = vector.load %arg10[%c0_115, %c0_116, %c0_117, %c0_118] : memref<2x18x18x128xf32, #tpu.memory_space<vmem>>, vector<2x1x18x128xf32>
    tpu.vector_store %arg10[%c0_115, %c0_116, %c0_117, %c0_118], %98 {strides = array<i32>} : memref<2x18x18x128xf32, #tpu.memory_space<vmem>>, vector<2x1x18x128xf32>,
    %c0_119 = arith.constant 0 : index
    %c17_120 = arith.constant 17 : index
    %c0_121 = arith.constant 0 : index
    %c0_122 = arith.constant 0 : index
    %101 = vector.load %arg10[%c0_119, %c17_120, %c0_121, %c0_122] : memref<2x18x18x128xf32, #tpu.memory_space<vmem>>, vector<2x1x18x128xf32>
    tpu.vector_store %arg10[%c0_119, %c17_120, %c0_121, %c0_122], %98 {strides = array<i32>} : memref<2x18x18x128xf32, #tpu.memory_space<vmem>>, vector<2x1x18x128xf32>,
    %c0_123 = arith.constant 0 : index
    %c0_124 = arith.constant 0 : index
    %c0_125 = arith.constant 0 : index
    %c0_126 = arith.constant 0 : index
    %102 = vector.load %arg10[%c0_123, %c0_124, %c0_125, %c0_126] : memref<2x18x18x128xf32, #tpu.memory_space<vmem>>, vector<2x18x1x128xf32>
    tpu.vector_store %arg10[%c0_123, %c0_124, %c0_125, %c0_126], %99 {strides = array<i32>} : memref<2x18x18x128xf32, #tpu.memory_space<vmem>>, vector<2x18x1x128xf32>,
    %c0_127 = arith.constant 0 : index
    %c0_128 = arith.constant 0 : index
    %c17_129 = arith.constant 17 : index
    %c0_130 = arith.constant 0 : index
    %103 = vector.load %arg10[%c0_127, %c0_128, %c17_129, %c0_130] : memref<2x18x18x128xf32, #tpu.memory_space<vmem>>, vector<2x18x1x128xf32>
    tpu.vector_store %arg10[%c0_127, %c0_128, %c17_129, %c0_130], %99 {strides = array<i32>} : memref<2x18x18x128xf32, #tpu.memory_space<vmem>>, vector<2x18x1x128xf32>,
    %c0_131 = arith.constant 0 : index
    %c1_132 = arith.constant 1 : index
    %c1_133 = arith.constant 1 : index
    %c0_134 = arith.constant 0 : index
    %104 = vector.load %arg10[%c0_131, %c1_132, %c1_133, %c0_134] : memref<2x18x18x128xf32, #tpu.memory_space<vmem>>, vector<2x16x16x128xf32>
    tpu.vector_store %arg10[%c0_131, %c1_132, %c1_133, %c0_134], %97 {strides = array<i32>} : memref<2x18x18x128xf32, #tpu.memory_space<vmem>>, vector<2x16x16x128xf32>,
    %cst_135 = arith.constant 0.000000e+00 : f32
    %105 = vector.broadcast %cst_135 : f32 to vector<512x128xf32>
    %c0_136 = arith.constant 0 : index
    %c0_137 = arith.constant 0 : index
    %c0_138 = arith.constant 0 : index
    %c0_139 = arith.constant 0 : index
    %106 = vector.load %arg10[%c0_136, %c0_137, %c0_138, %c0_139] : memref<2x18x18x128xf32, #tpu.memory_space<vmem>>, vector<2x16x16x128xf32>
    %107 = vector.shape_cast %106 : vector<2x16x16x128xf32> to vector<512x128xf32>
    %108 = arith.truncf %107 : vector<512x128xf32> to vector<512x128xbf16>
    %c0_140 = arith.constant 0 : index
    %c0_141 = arith.constant 0 : index
    %c0_142 = arith.constant 0 : index
    %c0_143 = arith.constant 0 : index
    %109 = vector.load %arg5[%c0_140, %c0_141, %c0_142, %c0_143] : memref<3x3x128x128xbf16, #tpu.memory_space<vmem>>, vector<1x1x128x128xbf16>
    %110 = vector.shape_cast %109 : vector<1x1x128x128xbf16> to vector<128x128xbf16>
    %cst_144 = arith.constant dense<0.000000e+00> : vector<512x128xf32>
    %111 = tpu.matmul %108, %110, %cst_144 {dimension_numbers = #tpu.dot_dimension_numbers<[1], [0], [0], [1], [0, 0, 1, 1], [], []>} : vector<512x128xbf16>, vector<128x128xbf16>, vector<512x128xf32> -> vector<512x128xf32>
    %112 = arith.addf %105, %111 : vector<512x128xf32>
    %c0_145 = arith.constant 0 : index
    %c0_146 = arith.constant 0 : index
    %c1_147 = arith.constant 1 : index
    %c0_148 = arith.constant 0 : index
    %113 = vector.load %arg10[%c0_145, %c0_146, %c1_147, %c0_148] : memref<2x18x18x128xf32, #tpu.memory_space<vmem>>, vector<2x16x16x128xf32>
    %114 = vector.shape_cast %113 : vector<2x16x16x128xf32> to vector<512x128xf32>
    %115 = arith.truncf %114 : vector<512x128xf32> to vector<512x128xbf16>
    %c0_149 = arith.constant 0 : index
    %c1_150 = arith.constant 1 : index
    %c0_151 = arith.constant 0 : index
    %c0_152 = arith.constant 0 : index
    %116 = vector.load %arg5[%c0_149, %c1_150, %c0_151, %c0_152] : memref<3x3x128x128xbf16, #tpu.memory_space<vmem>>, vector<1x1x128x128xbf16>
    %117 = vector.shape_cast %116 : vector<1x1x128x128xbf16> to vector<128x128xbf16>
    %cst_153 = arith.constant dense<0.000000e+00> : vector<512x128xf32>
    %118 = tpu.matmul %115, %117, %cst_153 {dimension_numbers = #tpu.dot_dimension_numbers<[1], [0], [0], [1], [0, 0, 1, 1], [], []>} : vector<512x128xbf16>, vector<128x128xbf16>, vector<512x128xf32> -> vector<512x128xf32>
    %119 = arith.addf %112, %118 : vector<512x128xf32>
    %c0_154 = arith.constant 0 : index
    %c0_155 = arith.constant 0 : index
    %c2_156 = arith.constant 2 : index
    %c0_157 = arith.constant 0 : index
    %120 = vector.load %arg10[%c0_154, %c0_155, %c2_156, %c0_157] : memref<2x18x18x128xf32, #tpu.memory_space<vmem>>, vector<2x16x16x128xf32>
    %121 = vector.shape_cast %120 : vector<2x16x16x128xf32> to vector<512x128xf32>
    %122 = arith.truncf %121 : vector<512x128xf32> to vector<512x128xbf16>
    %c0_158 = arith.constant 0 : index
    %c2_159 = arith.constant 2 : index
    %c0_160 = arith.constant 0 : index
    %c0_161 = arith.constant 0 : index
    %123 = vector.load %arg5[%c0_158, %c2_159, %c0_160, %c0_161] : memref<3x3x128x128xbf16, #tpu.memory_space<vmem>>, vector<1x1x128x128xbf16>
    %124 = vector.shape_cast %123 : vector<1x1x128x128xbf16> to vector<128x128xbf16>
    %cst_162 = arith.constant dense<0.000000e+00> : vector<512x128xf32>
    %125 = tpu.matmul %122, %124, %cst_162 {dimension_numbers = #tpu.dot_dimension_numbers<[1], [0], [0], [1], [0, 0, 1, 1], [], []>} : vector<512x128xbf16>, vector<128x128xbf16>, vector<512x128xf32> -> vector<512x128xf32>
    %126 = arith.addf %119, %125 : vector<512x128xf32>
    %c0_163 = arith.constant 0 : index
    %c1_164 = arith.constant 1 : index
    %c0_165 = arith.constant 0 : index
    %c0_166 = arith.constant 0 : index
    %127 = vector.load %arg10[%c0_163, %c1_164, %c0_165, %c0_166] : memref<2x18x18x128xf32, #tpu.memory_space<vmem>>, vector<2x16x16x128xf32>
    %128 = vector.shape_cast %127 : vector<2x16x16x128xf32> to vector<512x128xf32>
    %129 = arith.truncf %128 : vector<512x128xf32> to vector<512x128xbf16>
    %c1_167 = arith.constant 1 : index
    %c0_168 = arith.constant 0 : index
    %c0_169 = arith.constant 0 : index
    %c0_170 = arith.constant 0 : index
    %130 = vector.load %arg5[%c1_167, %c0_168, %c0_169, %c0_170] : memref<3x3x128x128xbf16, #tpu.memory_space<vmem>>, vector<1x1x128x128xbf16>
    %131 = vector.shape_cast %130 : vector<1x1x128x128xbf16> to vector<128x128xbf16>
    %cst_171 = arith.constant dense<0.000000e+00> : vector<512x128xf32>
    %132 = tpu.matmul %129, %131, %cst_171 {dimension_numbers = #tpu.dot_dimension_numbers<[1], [0], [0], [1], [0, 0, 1, 1], [], []>} : vector<512x128xbf16>, vector<128x128xbf16>, vector<512x128xf32> -> vector<512x128xf32>
    %133 = arith.addf %126, %132 : vector<512x128xf32>
    %c0_172 = arith.constant 0 : index
    %c1_173 = arith.constant 1 : index
    %c1_174 = arith.constant 1 : index
    %c0_175 = arith.constant 0 : index
    %134 = vector.load %arg10[%c0_172, %c1_173, %c1_174, %c0_175] : memref<2x18x18x128xf32, #tpu.memory_space<vmem>>, vector<2x16x16x128xf32>
    %135 = vector.shape_cast %134 : vector<2x16x16x128xf32> to vector<512x128xf32>
    %136 = arith.truncf %135 : vector<512x128xf32> to vector<512x128xbf16>
    %c1_176 = arith.constant 1 : index
    %c1_177 = arith.constant 1 : index
    %c0_178 = arith.constant 0 : index
    %c0_179 = arith.constant 0 : index
    %137 = vector.load %arg5[%c1_176, %c1_177, %c0_178, %c0_179] : memref<3x3x128x128xbf16, #tpu.memory_space<vmem>>, vector<1x1x128x128xbf16>
    %138 = vector.shape_cast %137 : vector<1x1x128x128xbf16> to vector<128x128xbf16>
    %cst_180 = arith.constant dense<0.000000e+00> : vector<512x128xf32>
    %139 = tpu.matmul %136, %138, %cst_180 {dimension_numbers = #tpu.dot_dimension_numbers<[1], [0], [0], [1], [0, 0, 1, 1], [], []>} : vector<512x128xbf16>, vector<128x128xbf16>, vector<512x128xf32> -> vector<512x128xf32>
    %140 = arith.addf %133, %139 : vector<512x128xf32>
    %c0_181 = arith.constant 0 : index
    %c1_182 = arith.constant 1 : index
    %c2_183 = arith.constant 2 : index
    %c0_184 = arith.constant 0 : index
    %141 = vector.load %arg10[%c0_181, %c1_182, %c2_183, %c0_184] : memref<2x18x18x128xf32, #tpu.memory_space<vmem>>, vector<2x16x16x128xf32>
    %142 = vector.shape_cast %141 : vector<2x16x16x128xf32> to vector<512x128xf32>
    %143 = arith.truncf %142 : vector<512x128xf32> to vector<512x128xbf16>
    %c1_185 = arith.constant 1 : index
    %c2_186 = arith.constant 2 : index
    %c0_187 = arith.constant 0 : index
    %c0_188 = arith.constant 0 : index
    %144 = vector.load %arg5[%c1_185, %c2_186, %c0_187, %c0_188] : memref<3x3x128x128xbf16, #tpu.memory_space<vmem>>, vector<1x1x128x128xbf16>
    %145 = vector.shape_cast %144 : vector<1x1x128x128xbf16> to vector<128x128xbf16>
    %cst_189 = arith.constant dense<0.000000e+00> : vector<512x128xf32>
    %146 = tpu.matmul %143, %145, %cst_189 {dimension_numbers = #tpu.dot_dimension_numbers<[1], [0], [0], [1], [0, 0, 1, 1], [], []>} : vector<512x128xbf16>, vector<128x128xbf16>, vector<512x128xf32> -> vector<512x128xf32>
    %147 = arith.addf %140, %146 : vector<512x128xf32>
    %c0_190 = arith.constant 0 : index
    %c2_191 = arith.constant 2 : index
    %c0_192 = arith.constant 0 : index
    %c0_193 = arith.constant 0 : index
    %148 = vector.load %arg10[%c0_190, %c2_191, %c0_192, %c0_193] : memref<2x18x18x128xf32, #tpu.memory_space<vmem>>, vector<2x16x16x128xf32>
    %149 = vector.shape_cast %148 : vector<2x16x16x128xf32> to vector<512x128xf32>
    %150 = arith.truncf %149 : vector<512x128xf32> to vector<512x128xbf16>
    %c2_194 = arith.constant 2 : index
    %c0_195 = arith.constant 0 : index
    %c0_196 = arith.constant 0 : index
    %c0_197 = arith.constant 0 : index
    %151 = vector.load %arg5[%c2_194, %c0_195, %c0_196, %c0_197] : memref<3x3x128x128xbf16, #tpu.memory_space<vmem>>, vector<1x1x128x128xbf16>
    %152 = vector.shape_cast %151 : vector<1x1x128x128xbf16> to vector<128x128xbf16>
    %cst_198 = arith.constant dense<0.000000e+00> : vector<512x128xf32>
    %153 = tpu.matmul %150, %152, %cst_198 {dimension_numbers = #tpu.dot_dimension_numbers<[1], [0], [0], [1], [0, 0, 1, 1], [], []>} : vector<512x128xbf16>, vector<128x128xbf16>, vector<512x128xf32> -> vector<512x128xf32>
    %154 = arith.addf %147, %153 : vector<512x128xf32>
    %c0_199 = arith.constant 0 : index
    %c2_200 = arith.constant 2 : index
    %c1_201 = arith.constant 1 : index
    %c0_202 = arith.constant 0 : index
    %155 = vector.load %arg10[%c0_199, %c2_200, %c1_201, %c0_202] : memref<2x18x18x128xf32, #tpu.memory_space<vmem>>, vector<2x16x16x128xf32>
    %156 = vector.shape_cast %155 : vector<2x16x16x128xf32> to vector<512x128xf32>
    %157 = arith.truncf %156 : vector<512x128xf32> to vector<512x128xbf16>
    %c2_203 = arith.constant 2 : index
    %c1_204 = arith.constant 1 : index
    %c0_205 = arith.constant 0 : index
    %c0_206 = arith.constant 0 : index
    %158 = vector.load %arg5[%c2_203, %c1_204, %c0_205, %c0_206] : memref<3x3x128x128xbf16, #tpu.memory_space<vmem>>, vector<1x1x128x128xbf16>
    %159 = vector.shape_cast %158 : vector<1x1x128x128xbf16> to vector<128x128xbf16>
    %cst_207 = arith.constant dense<0.000000e+00> : vector<512x128xf32>
    %160 = tpu.matmul %157, %159, %cst_207 {dimension_numbers = #tpu.dot_dimension_numbers<[1], [0], [0], [1], [0, 0, 1, 1], [], []>} : vector<512x128xbf16>, vector<128x128xbf16>, vector<512x128xf32> -> vector<512x128xf32>
    %161 = arith.addf %154, %160 : vector<512x128xf32>
    %c0_208 = arith.constant 0 : index
    %c2_209 = arith.constant 2 : index
    %c2_210 = arith.constant 2 : index
    %c0_211 = arith.constant 0 : index
    %162 = vector.load %arg10[%c0_208, %c2_209, %c2_210, %c0_211] : memref<2x18x18x128xf32, #tpu.memory_space<vmem>>, vector<2x16x16x128xf32>
    %163 = vector.shape_cast %162 : vector<2x16x16x128xf32> to vector<512x128xf32>
    %164 = arith.truncf %163 : vector<512x128xf32> to vector<512x128xbf16>
    %c2_212 = arith.constant 2 : index
    %c2_213 = arith.constant 2 : index
    %c0_214 = arith.constant 0 : index
    %c0_215 = arith.constant 0 : index
    %165 = vector.load %arg5[%c2_212, %c2_213, %c0_214, %c0_215] : memref<3x3x128x128xbf16, #tpu.memory_space<vmem>>, vector<1x1x128x128xbf16>
    %166 = vector.shape_cast %165 : vector<1x1x128x128xbf16> to vector<128x128xbf16>
    %cst_216 = arith.constant dense<0.000000e+00> : vector<512x128xf32>
    %167 = tpu.matmul %164, %166, %cst_216 {dimension_numbers = #tpu.dot_dimension_numbers<[1], [0], [0], [1], [0, 0, 1, 1], [], []>} : vector<512x128xbf16>, vector<128x128xbf16>, vector<512x128xf32> -> vector<512x128xf32>
    %168 = arith.addf %161, %167 : vector<512x128xf32>
    %c0_217 = arith.constant 0 : index
    %c0_218 = arith.constant 0 : index
    %169 = vector.load %arg6[%c0_217, %c0_218] : memref<1x128xf32, #tpu.memory_space<vmem>>, vector<1x128xf32>
    %c0_219 = arith.constant 0 : index
    %c0_220 = arith.constant 0 : index
    %170 = vector.load %arg7[%c0_219, %c0_220] : memref<1x128xf32, #tpu.memory_space<vmem>>, vector<1x128xf32>
    %cst_221 = arith.constant dense<0.000000e+00> : vector<128xf32>
    %171 = vector.multi_reduction <add>, %168, %cst_221 [0] : vector<512x128xf32> to vector<128xf32>
    %172 = vector.shape_cast %171 : vector<128xf32> to vector<1x128xf32>
    %cst_222 = arith.constant 0.001953125 : f32
    %173 = vector.broadcast %cst_222 : f32 to vector<1x128xf32>
    %174 = arith.mulf %172, %173 : vector<1x128xf32>
    %175 = arith.mulf %168, %168 : vector<512x128xf32>
    %cst_223 = arith.constant dense<0.000000e+00> : vector<128xf32>
    %176 = vector.multi_reduction <add>, %175, %cst_223 [0] : vector<512x128xf32> to vector<128xf32>
    %177 = vector.shape_cast %176 : vector<128xf32> to vector<1x128xf32>
    %cst_224 = arith.constant 0.001953125 : f32
    %178 = vector.broadcast %cst_224 : f32 to vector<1x128xf32>
    %179 = arith.mulf %177, %178 : vector<1x128xf32>
    %180 = arith.mulf %174, %174 : vector<1x128xf32>
    %181 = arith.subf %179, %180 : vector<1x128xf32>
    %cst_225 = arith.constant 9.99999974E-6 : f32
    %182 = vector.broadcast %cst_225 : f32 to vector<1x128xf32>
    %183 = arith.addf %181, %182 : vector<1x128xf32>
    %184 = math.rsqrt %183 : vector<1x128xf32>
    %185 = arith.mulf %169, %184 : vector<1x128xf32>
    %186 = arith.mulf %174, %185 : vector<1x128xf32>
    %187 = arith.subf %170, %186 : vector<1x128xf32>
    %188 = vector.broadcast %185 : vector<1x128xf32> to vector<512x128xf32>
    %189 = arith.mulf %168, %188 : vector<512x128xf32>
    %190 = vector.broadcast %187 : vector<1x128xf32> to vector<512x128xf32>
    %191 = arith.addf %189, %190 : vector<512x128xf32>
    %192 = vector.shape_cast %191 : vector<512x128xf32> to vector<2x16x16x128xf32>
    %193 = arith.addf %192, %0 : vector<2x16x16x128xf32>
    %cst_226 = arith.constant 0.000000e+00 : f32
    %194 = vector.broadcast %cst_226 : f32 to vector<2x16x16x128xf32>
    %195 = arith.maximumf %193, %194 : vector<2x16x16x128xf32>
    %c0_227 = arith.constant 0 : index
    %c0_228 = arith.constant 0 : index
    %c0_229 = arith.constant 0 : index
    %c0_230 = arith.constant 0 : index
    %196 = vector.load %arg8[%c0_227, %c0_228, %c0_229, %c0_230] : memref<2x16x16x128xf32, #tpu.memory_space<vmem>>, vector<2x16x16x128xf32>
    tpu.vector_store %arg8[%c0_227, %c0_228, %c0_229, %c0_230], %195 {strides = array<i32>} : memref<2x16x16x128xf32, #tpu.memory_space<vmem>>, vector<2x16x16x128xf32>,
    return
  }
  func.func @transform_0(%arg0: i32) -> (i32, i32, i32, i32) {
    %c0_i32 = arith.constant 0 : i32
    %c0_i32_0 = arith.constant 0 : i32
    %c0_i32_1 = arith.constant 0 : i32
    %c0_i32_2 = arith.constant 0 : i32
    %c0_i32_3 = arith.constant 0 : i32
    return %c0_i32, %c0_i32_0, %c0_i32_1, %c0_i32_2 : i32, i32, i32, i32
  }
  func.func @transform_1(%arg0: i32) -> (i32, i32, i32, i32) {
    %c0_i32 = arith.constant 0 : i32
    %c0_i32_0 = arith.constant 0 : i32
    %c0_i32_1 = arith.constant 0 : i32
    %c0_i32_2 = arith.constant 0 : i32
    %c0_i32_3 = arith.constant 0 : i32
    return %c0_i32, %c0_i32_0, %c0_i32_1, %c0_i32_2 : i32, i32, i32, i32
  }
  func.func @transform_2(%arg0: i32) -> (i32, i32) {
    %c0_i32 = arith.constant 0 : i32
    %c0_i32_0 = arith.constant 0 : i32
    %c0_i32_1 = arith.constant 0 : i32
    return %c0_i32, %c0_i32_0 : i32, i32
  }
  func.func @transform_3(%arg0: i32) -> (i32, i32) {
    %c0_i32 = arith.constant 0 : i32
    %c0_i32_0 = arith.constant 0 : i32
    %c0_i32_1 = arith.constant 0 : i32
    return %c0_i32, %c0_i32_0 : i32, i32
  }
  func.func @transform_4(%arg0: i32) -> (i32, i32, i32, i32) {
    %c0_i32 = arith.constant 0 : i32
    %c0_i32_0 = arith.constant 0 : i32
    %c0_i32_1 = arith.constant 0 : i32
    %c0_i32_2 = arith.constant 0 : i32
    %c0_i32_3 = arith.constant 0 : i32
    return %c0_i32, %c0_i32_0, %c0_i32_1, %c0_i32_2 : i32, i32, i32, i32
  }
  func.func @transform_5(%arg0: i32) -> (i32, i32) {
    %c0_i32 = arith.constant 0 : i32
    %c0_i32_0 = arith.constant 0 : i32
    %c0_i32_1 = arith.constant 0 : i32
    return %c0_i32, %c0_i32_0 : i32, i32
  }
  func.func @transform_6(%arg0: i32) -> (i32, i32) {
    %c0_i32 = arith.constant 0 : i32
    %c0_i32_0 = arith.constant 0 : i32
    %c0_i32_1 = arith.constant 0 : i32
    return %c0_i32, %c0_i32_0 : i32, i32
  }
  func.func @transform_7(%arg0: i32) -> (i32, i32, i32, i32) {
    %c0_i32 = arith.constant 0 : i32
    %c0_i32_0 = arith.constant 0 : i32
    %c0_i32_1 = arith.constant 0 : i32
    %c0_i32_2 = arith.constant 0 : i32
    %c0_i32_3 = arith.constant 0 : i32
    return %c0_i32, %c0_i32_0, %c0_i32_1, %c0_i32_2 : i32, i32, i32, i32
  }
}

</mosaic_0001>

<llo_original>
// kernel: basic_block_forward.1
$region0: #{basic_block_forward.1}
  #allocation0 [shape = 'u32[]', space=smem, size = 0x4, offset = 0x4, fixed_abs, tag = 'smem constant byte address 0x4 - core index']
  #allocation1 [shape = 'u32[144,128]{1,0:T(1,128)}', space=vmem, size = 0x12000, scoped, tag = 'internal scratch']
  #allocation2 [shape = 'f32[2,18,18,128]{3,2,1,0:T(8,128)}', space=vmem, size = 0x6c000, scoped, tag = 'scratch operand']
  #allocation3 [shape = 'f32[2,18,18,128]{3,2,1,0:T(8,128)}', space=vmem, size = 0x6c000, scoped, tag = 'scratch operand']
  %s0 = inlined_call_operand.vmem [shape: f32[2,16,16,128], index: 0, kind: input, shape index: {}]
  %s1 = inlined_call_operand.vmem [shape: bf16[3,3,128,128], index: 1, kind: input, shape index: {}]
  %s2 = inlined_call_operand.vmem [shape: f32[1,128], index: 2, kind: input, shape index: {}]
  %s3 = inlined_call_operand.vmem [shape: f32[1,128], index: 3, kind: input, shape index: {}]
  %s4 = inlined_call_operand.vmem [shape: bf16[3,3,128,128], index: 4, kind: input, shape index: {}]
  %s5 = inlined_call_operand.vmem [shape: f32[1,128], index: 5, kind: input, shape index: {}]
  %s6 = inlined_call_operand.vmem [shape: f32[1,128], index: 6, kind: input, shape index: {}]
  %s7 = inlined_call_operand.hbm [shape: f32[2,16,16,128], index: 7, kind: output, shape index: {}]
  %s8 = sld [smem:[#allocation0]]
  $region38: #{basic_block_forward.1} parent=0
    _
  %s10 = ssub.s32 1, %s8
  %s11 = scalar_select 0, %s10, %s8
  $region1: #{basic_block_forward.1} parent=0
    #allocation4 [shape = 'u8[262144]{0}', space=vmem, size = 0x40000, scoped, tag = 'output window, operand 0, single buffered']
    #allocation5 [shape = 's32[1]{0}', space=sflag, size = 0x4, scoped, tag = 'scoped memory for basic_block_forward.1']
    %12 = vsyncpa [#allocation5], 0
    // Predicated region
    $region2: #{basic_block_forward.1} parent=1 // pred_check
      _
    $region3: #{basic_block_forward.1} parent=1 // pred_check_branch
      %14 = sbr.rel (0) target = $region5
    $region4: #{basic_block_forward.1} parent=1 // pred_region
      _
    $region5: #{basic_block_forward.1} parent=1 // pred_fallthru
      _
    // Predicated region
    $region6: #{basic_block_forward.1} parent=1 // pred_check
      _
    $region7: #{basic_block_forward.1} parent=1 // pred_check_branch
      %16 = sbr.rel (0) target = $region9
    $region8: #{basic_block_forward.1} parent=1 // pred_region
      _
    $region9: #{basic_block_forward.1} parent=1 // pred_fallthru
      _
    // Predicated region
    $region10: #{basic_block_forward.1} parent=1 // pred_check
      _
    $region11: #{basic_block_forward.1} parent=1 // pred_check_branch
      %18 = sbr.rel (0) target = $region13
    $region12: #{basic_block_forward.1} parent=1 // pred_region
      _
    $region13: #{basic_block_forward.1} parent=1 // pred_fallthru
      _
    // Predicated region
    $region14: #{basic_block_forward.1} parent=1 // pred_check
      _
    $region15: #{basic_block_forward.1} parent=1 // pred_check_branch
      %20 = sbr.rel (0) target = $region17
    $region16: #{basic_block_forward.1} parent=1 // pred_region
      _
    $region17: #{basic_block_forward.1} parent=1 // pred_fallthru
      _
    // Predicated region
    $region18: #{basic_block_forward.1} parent=1 // pred_check
      _
    $region19: #{basic_block_forward.1} parent=1 // pred_check_branch
      %22 = sbr.rel (0) target = $region21
    $region20: #{basic_block_forward.1} parent=1 // pred_region
      _
    $region21: #{basic_block_forward.1} parent=1 // pred_fallthru
      _
    // Predicated region
    $region22: #{basic_block_forward.1} parent=1 // pred_check
      _
    $region23: #{basic_block_forward.1} parent=1 // pred_check_branch
      %24 = sbr.rel (0) target = $region25
    $region24: #{basic_block_forward.1} parent=1 // pred_region
      _
    $region25: #{basic_block_forward.1} parent=1 // pred_fallthru
      _
    // Predicated region
    $region26: #{basic_block_forward.1} parent=1 // pred_check
      _
    $region27: #{basic_block_forward.1} parent=1 // pred_check_branch
      %26 = sbr.rel (0) target = $region29
    $region28: #{basic_block_forward.1} parent=1 // pred_region
      _
    $region29: #{basic_block_forward.1} parent=1 // pred_fallthru
      _
    %v28 = vld [vmem:[%s0] sm:$0xff]
    %v29 = vld [vmem:[%s0 + $0x8] sm:$0xff]
    %v30 = vld [vmem:[%s0 + $0x10] sm:$0xff]
    %v31 = vld [vmem:[%s0 + $0x18] sm:$0xff]
    %v32 = vld [vmem:[%s0 + $0x20] sm:$0xff]
    %v33 = vld [vmem:[%s0 + $0x28] sm:$0xff]
    %v34 = vld [vmem:[%s0 + $0x30] sm:$0xff]
    %v35 = vld [vmem:[%s0 + $0x38] sm:$0xff]
    %v36 = vld [vmem:[%s0 + $0x40] sm:$0xff]
    %v37 = vld [vmem:[%s0 + $0x48] sm:$0xff]
    %v38 = vld [vmem:[%s0 + $0x50] sm:$0xff]
    %v39 = vld [vmem:[%s0 + $0x58] sm:$0xff]
    %v40 = vld [vmem:[%s0 + $0x60] sm:$0xff]
    %v41 = vld [vmem:[%s0 + $0x68] sm:$0xff]
    %v42 = vld [vmem:[%s0 + $0x70] sm:$0xff]
    %v43 = vld [vmem:[%s0 + $0x78] sm:$0xff]
    %v44 = vld [vmem:[%s0 + $0x80] sm:$0xff]
    %v45 = vld [vmem:[%s0 + $0x88] sm:$0xff]
    %v46 = vld [vmem:[%s0 + $0x90] sm:$0xff]
    %v47 = vld [vmem:[%s0 + $0x98] sm:$0xff]
    %v48 = vld [vmem:[%s0 + $0xa0] sm:$0xff]
    %v49 = vld [vmem:[%s0 + $0xa8] sm:$0xff]
    %v50 = vld [vmem:[%s0 + $0xb0] sm:$0xff]
    %v51 = vld [vmem:[%s0 + $0xb8] sm:$0xff]
    %v52 = vld [vmem:[%s0 + $0xc0] sm:$0xff]
    %v53 = vld [vmem:[%s0 + $0xc8] sm:$0xff]
    %v54 = vld [vmem:[%s0 + $0xd0] sm:$0xff]
    %v55 = vld [vmem:[%s0 + $0xd8] sm:$0xff]
    %v56 = vld [vmem:[%s0 + $0xe0] sm:$0xff]
    %v57 = vld [vmem:[%s0 + $0xe8] sm:$0xff]
    %v58 = vld [vmem:[%s0 + $0xf0] sm:$0xff]
    %v59 = vld [vmem:[%s0 + $0xf8] sm:$0xff]
    %v60 = vld [vmem:[%s0 + $0x100] sm:$0xff]
    %v61 = vld [vmem:[%s0 + $0x108] sm:$0xff]
    %v62 = vld [vmem:[%s0 + $0x110] sm:$0xff]
    %v63 = vld [vmem:[%s0 + $0x118] sm:$0xff]
    %v64 = vld [vmem:[%s0 + $0x120] sm:$0xff]
    %v65 = vld [vmem:[%s0 + $0x128] sm:$0xff]
    %v66 = vld [vmem:[%s0 + $0x130] sm:$0xff]
    %v67 = vld [vmem:[%s0 + $0x138] sm:$0xff]
    %v68 = vld [vmem:[%s0 + $0x140] sm:$0xff]
    %v69 = vld [vmem:[%s0 + $0x148] sm:$0xff]
    %v70 = vld [vmem:[%s0 + $0x150] sm:$0xff]
    %v71 = vld [vmem:[%s0 + $0x158] sm:$0xff]
    %v72 = vld [vmem:[%s0 + $0x160] sm:$0xff]
    %v73 = vld [vmem:[%s0 + $0x168] sm:$0xff]
    %v74 = vld [vmem:[%s0 + $0x170] sm:$0xff]
    %v75 = vld [vmem:[%s0 + $0x178] sm:$0xff]
    %v76 = vld [vmem:[%s0 + $0x180] sm:$0xff]
    %v77 = vld [vmem:[%s0 + $0x188] sm:$0xff]
    %v78 = vld [vmem:[%s0 + $0x190] sm:$0xff]
    %v79 = vld [vmem:[%s0 + $0x198] sm:$0xff]
    %v80 = vld [vmem:[%s0 + $0x1a0] sm:$0xff]
    %v81 = vld [vmem:[%s0 + $0x1a8] sm:$0xff]
    %v82 = vld [vmem:[%s0 + $0x1b0] sm:$0xff]
    %v83 = vld [vmem:[%s0 + $0x1b8] sm:$0xff]
    %v84 = vld [vmem:[%s0 + $0x1c0] sm:$0xff]
    %v85 = vld [vmem:[%s0 + $0x1c8] sm:$0xff]
    %v86 = vld [vmem:[%s0 + $0x1d0] sm:$0xff]
    %v87 = vld [vmem:[%s0 + $0x1d8] sm:$0xff]
    %v88 = vld [vmem:[%s0 + $0x1e0] sm:$0xff]
    %v89 = vld [vmem:[%s0 + $0x1e8] sm:$0xff]
    %v90 = vld [vmem:[%s0 + $0x1f0] sm:$0xff]
    %v91 = vld [vmem:[%s0 + $0x1f8] sm:$0xff]
    %92 = vst [vmem:[#allocation2] sm:$0xff] 0.0
    %93 = vst [vmem:[#allocation2 + $0x8] sm:$0xff] 0.0
    %94 = vst [vmem:[#allocation2 + $0x10] sm:$0x3] 0.0
    %95 = vst [vmem:[#allocation2 + $0x1b0] sm:$0xff] 0.0
    %96 = vst [vmem:[#allocation2 + $0x1b8] sm:$0xff] 0.0
    %97 = vst [vmem:[#allocation2 + $0x1c0] sm:$0x3] 0.0
    %s98 = scalar_lea.vmem [#allocation2], 408
    %99 = vst [vmem:[%s98] sm:$0xff] 0.0
    %100 = vst [vmem:[%s98 + $0x8] sm:$0xff] 0.0
    %101 = vst [vmem:[%s98 + $0x10] sm:$0x3] 0.0
    %102 = vst [vmem:[%s98 + $0x1b0] sm:$0xff] 0.0
    %103 = vst [vmem:[%s98 + $0x1b8] sm:$0xff] 0.0
    %104 = vst [vmem:[%s98 + $0x1c0] sm:$0x3] 0.0
    %105 = vst [vmem:[#allocation2] sm:$0x1] 0.0
    %106 = vst [vmem:[#allocation2 + $0x18] sm:$0x1] 0.0
    %107 = vst [vmem:[#allocation2 + $0x30] sm:$0x1] 0.0
    %108 = vst [vmem:[#allocation2 + $0x48] sm:$0x1] 0.0
    %109 = vst [vmem:[#allocation2 + $0x60] sm:$0x1] 0.0
    %110 = vst [vmem:[#allocation2 + $0x78] sm:$0x1] 0.0
    %111 = vst [vmem:[#allocation2 + $0x90] sm:$0x1] 0.0
    %112 = vst [vmem:[#allocation2 + $0xa8] sm:$0x1] 0.0
    %113 = vst [vmem:[#allocation2 + $0xc0] sm:$0x1] 0.0
    %114 = vst [vmem:[#allocation2 + $0xd8] sm:$0x1] 0.0
    %115 = vst [vmem:[#allocation2 + $0xf0] sm:$0x1] 0.0
    %116 = vst [vmem:[#allocation2 + $0x108] sm:$0x1] 0.0
    %117 = vst [vmem:[#allocation2 + $0x120] sm:$0x1] 0.0
    %118 = vst [vmem:[#allocation2 + $0x138] sm:$0x1] 0.0
    %119 = vst [vmem:[#allocation2 + $0x150] sm:$0x1] 0.0
    %120 = vst [vmem:[#allocation2 + $0x168] sm:$0x1] 0.0
    %121 = vst [vmem:[#allocation2 + $0x180] sm:$0x1] 0.0
    %122 = vst [vmem:[#allocation2 + $0x198] sm:$0x1] 0.0
    %123 = vst [vmem:[#allocation2 + $0x1b0] sm:$0x1] 0.0
    %124 = vst [vmem:[#allocation2 + $0x1c8] sm:$0x1] 0.0
    %125 = vst [vmem:[#allocation2 + $0x1e0] sm:$0x1] 0.0
    %126 = vst [vmem:[#allocation2 + $0x1f8] sm:$0x1] 0.0
    %127 = vst [vmem:[#allocation2 + $0x210] sm:$0x1] 0.0
    %128 = vst [vmem:[#allocation2 + $0x228] sm:$0x1] 0.0
    %129 = vst [vmem:[#allocation2 + $0x240] sm:$0x1] 0.0
    %130 = vst [vmem:[#allocation2 + $0x258] sm:$0x1] 0.0
    %131 = vst [vmem:[#allocation2 + $0x270] sm:$0x1] 0.0
    %132 = vst [vmem:[#allocation2 + $0x288] sm:$0x1] 0.0
    %133 = vst [vmem:[#allocation2 + $0x2a0] sm:$0x1] 0.0
    %134 = vst [vmem:[#allocation2 + $0x2b8] sm:$0x1] 0.0
    %135 = vst [vmem:[#allocation2 + $0x2d0] sm:$0x1] 0.0
    %136 = vst [vmem:[#allocation2 + $0x2e8] sm:$0x1] 0.0
    %137 = vst [vmem:[#allocation2 + $0x300] sm:$0x1] 0.0
    %138 = vst [vmem:[#allocation2 + $0x318] sm:$0x1] 0.0
    %139 = vst [vmem:[#allocation2 + $0x330] sm:$0x1] 0.0
    %140 = vst [vmem:[#allocation2 + $0x348] sm:$0x1] 0.0
    %141 = vst [vmem:[#allocation2 + $0x11] sm:$0x1] 0.0
    %142 = vst [vmem:[#allocation2 + $0x29] sm:$0x1] 0.0
    %143 = vst [vmem:[#allocation2 + $0x41] sm:$0x1] 0.0
    %144 = vst [vmem:[#allocation2 + $0x59] sm:$0x1] 0.0
    %145 = vst [vmem:[#allocation2 + $0x71] sm:$0x1] 0.0
    %146 = vst [vmem:[#allocation2 + $0x89] sm:$0x1] 0.0
    %147 = vst [vmem:[#allocation2 + $0xa1] sm:$0x1] 0.0
    %148 = vst [vmem:[#allocation2 + $0xb9] sm:$0x1] 0.0
    %149 = vst [vmem:[#allocation2 + $0xd1] sm:$0x1] 0.0
    %150 = vst [vmem:[#allocation2 + $0xe9] sm:$0x1] 0.0
    %151 = vst [vmem:[#allocation2 + $0x101] sm:$0x1] 0.0
    %152 = vst [vmem:[#allocation2 + $0x119] sm:$0x1] 0.0
    %153 = vst [vmem:[#allocation2 + $0x131] sm:$0x1] 0.0
    %154 = vst [vmem:[#allocation2 + $0x149] sm:$0x1] 0.0
    %155 = vst [vmem:[#allocation2 + $0x161] sm:$0x1] 0.0
    %156 = vst [vmem:[#allocation2 + $0x179] sm:$0x1] 0.0
    %157 = vst [vmem:[#allocation2 + $0x191] sm:$0x1] 0.0
    %158 = vst [vmem:[#allocation2 + $0x1a9] sm:$0x1] 0.0
    %159 = vst [vmem:[#allocation2 + $0x1c1] sm:$0x1] 0.0
    %160 = vst [vmem:[#allocation2 + $0x1d9] sm:$0x1] 0.0
    %161 = vst [vmem:[#allocation2 + $0x1f1] sm:$0x1] 0.0
    %162 = vst [vmem:[#allocation2 + $0x209] sm:$0x1] 0.0
    %163 = vst [vmem:[#allocation2 + $0x221] sm:$0x1] 0.0
    %164 = vst [vmem:[#allocation2 + $0x239] sm:$0x1] 0.0
    %165 = vst [vmem:[#allocation2 + $0x251] sm:$0x1] 0.0
    %166 = vst [vmem:[#allocation2 + $0x269] sm:$0x1] 0.0
    %167 = vst [vmem:[#allocation2 + $0x281] sm:$0x1] 0.0
    %168 = vst [vmem:[#allocation2 + $0x299] sm:$0x1] 0.0
    %169 = vst [vmem:[#allocation2 + $0x2b1] sm:$0x1] 0.0
    %170 = vst [vmem:[#allocation2 + $0x2c9] sm:$0x1] 0.0
    %171 = vst [vmem:[#allocation2 + $0x2e1] sm:$0x1] 0.0
    %172 = vst [vmem:[#allocation2 + $0x2f9] sm:$0x1] 0.0
    %173 = vst [vmem:[#allocation2 + $0x311] sm:$0x1] 0.0
    %174 = vst [vmem:[#allocation2 + $0x329] sm:$0x1] 0.0
    %175 = vst [vmem:[#allocation2 + $0x341] sm:$0x1] 0.0
    %176 = vst [vmem:[#allocation2 + $0x359] sm:$0x1] 0.0
    %s177 = scalar_lea.vmem [#allocation2], 24
    %178 = vst [vmem:[%s177 + $0x1] sm:$0xff] %v28
    %179 = vst [vmem:[%s177 + $0x9] sm:$0xff] %v29
    %180 = vst [vmem:[%s177 + $0x19] sm:$0xff] %v30
    %181 = vst [vmem:[%s177 + $0x21] sm:$0xff] %v31
    %182 = vst [vmem:[%s177 + $0x31] sm:$0xff] %v32
    %183 = vst [vmem:[%s177 + $0x39] sm:$0xff] %v33
    %184 = vst [vmem:[%s177 + $0x49] sm:$0xff] %v34
    %185 = vst [vmem:[%s177 + $0x51] sm:$0xff] %v35
    %186 = vst [vmem:[%s177 + $0x61] sm:$0xff] %v36
    %187 = vst [vmem:[%s177 + $0x69] sm:$0xff] %v37
    %188 = vst [vmem:[%s177 + $0x79] sm:$0xff] %v38
    %189 = vst [vmem:[%s177 + $0x81] sm:$0xff] %v39
    %190 = vst [vmem:[%s177 + $0x91] sm:$0xff] %v40
    %191 = vst [vmem:[%s177 + $0x99] sm:$0xff] %v41
    %192 = vst [vmem:[%s177 + $0xa9] sm:$0xff] %v42
    %193 = vst [vmem:[%s177 + $0xb1] sm:$0xff] %v43
    %194 = vst [vmem:[%s177 + $0xc1] sm:$0xff] %v44
    %195 = vst [vmem:[%s177 + $0xc9] sm:$0xff] %v45
    %196 = vst [vmem:[%s177 + $0xd9] sm:$0xff] %v46
    %197 = vst [vmem:[%s177 + $0xe1] sm:$0xff] %v47
    %198 = vst [vmem:[%s177 + $0xf1] sm:$0xff] %v48
    %199 = vst [vmem:[%s177 + $0xf9] sm:$0xff] %v49
    %200 = vst [vmem:[%s177 + $0x109] sm:$0xff] %v50
    %201 = vst [vmem:[%s177 + $0x111] sm:$0xff] %v51
    %202 = vst [vmem:[%s177 + $0x121] sm:$0xff] %v52
    %203 = vst [vmem:[%s177 + $0x129] sm:$0xff] %v53
    %204 = vst [vmem:[%s177 + $0x139] sm:$0xff] %v54
    %205 = vst [vmem:[%s177 + $0x141] sm:$0xff] %v55
    %206 = vst [vmem:[%s177 + $0x151] sm:$0xff] %v56
    %207 = vst [vmem:[%s177 + $0x159] sm:$0xff] %v57
    %208 = vst [vmem:[%s177 + $0x169] sm:$0xff] %v58
    %209 = vst [vmem:[%s177 + $0x171] sm:$0xff] %v59
    %210 = vst [vmem:[%s177 + $0x1b1] sm:$0xff] %v60
    %211 = vst [vmem:[%s177 + $0x1b9] sm:$0xff] %v61
    %212 = vst [vmem:[%s177 + $0x1c9] sm:$0xff] %v62
    %213 = vst [vmem:[%s177 + $0x1d1] sm:$0xff] %v63
    %214 = vst [vmem:[%s177 + $0x1e1] sm:$0xff] %v64
    %215 = vst [vmem:[%s177 + $0x1e9] sm:$0xff] %v65
    %216 = vst [vmem:[%s177 + $0x1f9] sm:$0xff] %v66
    %217 = vst [vmem:[%s177 + $0x201] sm:$0xff] %v67
    %218 = vst [vmem:[%s177 + $0x211] sm:$0xff] %v68
    %219 = vst [vmem:[%s177 + $0x219] sm:$0xff] %v69
    %220 = vst [vmem:[%s177 + $0x229] sm:$0xff] %v70
    %221 = vst [vmem:[%s177 + $0x231] sm:$0xff] %v71
    %222 = vst [vmem:[%s177 + $0x241] sm:$0xff] %v72
    %223 = vst [vmem:[%s177 + $0x249] sm:$0xff] %v73
    %224 = vst [vmem:[%s177 + $0x259] sm:$0xff] %v74
    %225 = vst [vmem:[%s177 + $0x261] sm:$0xff] %v75
    %226 = vst [vmem:[%s177 + $0x271] sm:$0xff] %v76
    %227 = vst [vmem:[%s177 + $0x279] sm:$0xff] %v77
    %228 = vst [vmem:[%s177 + $0x289] sm:$0xff] %v78
    %229 = vst [vmem:[%s177 + $0x291] sm:$0xff] %v79
    %230 = vst [vmem:[%s177 + $0x2a1] sm:$0xff] %v80
    %231 = vst [vmem:[%s177 + $0x2a9] sm:$0xff] %v81
    %232 = vst [vmem:[%s177 + $0x2b9] sm:$0xff] %v82
    %233 = vst [vmem:[%s177 + $0x2c1] sm:$0xff] %v83
    %234 = vst [vmem:[%s177 + $0x2d1] sm:$0xff] %v84
    %235 = vst [vmem:[%s177 + $0x2d9] sm:$0xff] %v85
    %236 = vst [vmem:[%s177 + $0x2e9] sm:$0xff] %v86
    %237 = vst [vmem:[%s177 + $0x2f1] sm:$0xff] %v87
    %238 = vst [vmem:[%s177 + $0x301] sm:$0xff] %v88
    %239 = vst [vmem:[%s177 + $0x309] sm:$0xff] %v89
    %240 = vst [vmem:[%s177 + $0x319] sm:$0xff] %v90
    %241 = vst [vmem:[%s177 + $0x321] sm:$0xff] %v91
    %v242 = vld [vmem:[#allocation2] sm:$0xff]
    %v243 = vld [vmem:[#allocation2 + $0x8] sm:$0xff]
    %v244 = vld [vmem:[#allocation2 + $0x18] sm:$0xff]
    %v245 = vld [vmem:[#allocation2 + $0x20] sm:$0xff]
    %v246 = vld [vmem:[#allocation2 + $0x30] sm:$0xff]
    %v247 = vld [vmem:[#allocation2 + $0x38] sm:$0xff]
    %v248 = vld [vmem:[#allocation2 + $0x48] sm:$0xff]
    %v249 = vld [vmem:[#allocation2 + $0x50] sm:$0xff]
    %v250 = vld [vmem:[#allocation2 + $0x60] sm:$0xff]
    %v251 = vld [vmem:[#allocation2 + $0x68] sm:$0xff]
    %v252 = vld [vmem:[#allocation2 + $0x78] sm:$0xff]
    %v253 = vld [vmem:[#allocation2 + $0x80] sm:$0xff]
    %v254 = vld [vmem:[#allocation2 + $0x90] sm:$0xff]
    %v255 = vld [vmem:[#allocation2 + $0x98] sm:$0xff]
    %v256 = vld [vmem:[#allocation2 + $0xa8] sm:$0xff]
    %v257 = vld [vmem:[#allocation2 + $0xb0] sm:$0xff]
    %v258 = vld [vmem:[#allocation2 + $0xc0] sm:$0xff]
    %v259 = vld [vmem:[#allocation2 + $0xc8] sm:$0xff]
    %v260 = vld [vmem:[#allocation2 + $0xd8] sm:$0xff]
    %v261 = vld [vmem:[#allocation2 + $0xe0] sm:$0xff]
    %v262 = vld [vmem:[#allocation2 + $0xf0] sm:$0xff]
    %v263 = vld [vmem:[#allocation2 + $0xf8] sm:$0xff]
    %v264 = vld [vmem:[#allocation2 + $0x108] sm:$0xff]
    %v265 = vld [vmem:[#allocation2 + $0x110] sm:$0xff]
    %v266 = vld [vmem:[#allocation2 + $0x120] sm:$0xff]
    %v267 = vld [vmem:[#allocation2 + $0x128] sm:$0xff]
    %v268 = vld [vmem:[#allocation2 + $0x138] sm:$0xff]
    %v269 = vld [vmem:[#allocation2 + $0x140] sm:$0xff]
    %v270 = vld [vmem:[#allocation2 + $0x150] sm:$0xff]
    %v271 = vld [vmem:[#allocation2 + $0x158] sm:$0xff]
    %v272 = vld [vmem:[#allocation2 + $0x168] sm:$0xff]
    %v273 = vld [vmem:[#allocation2 + $0x170] sm:$0xff]
    %v274 = vld [vmem:[#allocation2 + $0x1b0] sm:$0xff]
    %v275 = vld [vmem:[#allocation2 + $0x1b8] sm:$0xff]
    %v276 = vld [vmem:[#allocation2 + $0x1c8] sm:$0xff]
    %v277 = vld [vmem:[#allocation2 + $0x1d0] sm:$0xff]
    %v278 = vld [vmem:[#allocation2 + $0x1e0] sm:$0xff]
    %v279 = vld [vmem:[#allocation2 + $0x1e8] sm:$0xff]
    %v280 = vld [vmem:[#allocation2 + $0x1f8] sm:$0xff]
    %v281 = vld [vmem:[#allocation2 + $0x200] sm:$0xff]
    %v282 = vld [vmem:[#allocation2 + $0x210] sm:$0xff]
    %v283 = vld [vmem:[#allocation2 + $0x218] sm:$0xff]
    %v284 = vld [vmem:[#allocation2 + $0x228] sm:$0xff]
    %v285 = vld [vmem:[#allocation2 + $0x230] sm:$0xff]
    %v286 = vld [vmem:[#allocation2 + $0x240] sm:$0xff]
    %v287 = vld [vmem:[#allocation2 + $0x248] sm:$0xff]
    %v288 = vld [vmem:[#allocation2 + $0x258] sm:$0xff]
    %v289 = vld [vmem:[#allocation2 + $0x260] sm:$0xff]
    %v290 = vld [vmem:[#allocation2 + $0x270] sm:$0xff]
    %v291 = vld [vmem:[#allocation2 + $0x278] sm:$0xff]
    %v292 = vld [vmem:[#allocation2 + $0x288] sm:$0xff]
    %v293 = vld [vmem:[#allocation2 + $0x290] sm:$0xff]
    %v294 = vld [vmem:[#allocation2 + $0x2a0] sm:$0xff]
    %v295 = vld [vmem:[#allocation2 + $0x2a8] sm:$0xff]
    %v296 = vld [vmem:[#allocation2 + $0x2b8] sm:$0xff]
    %v297 = vld [vmem:[#allocation2 + $0x2c0] sm:$0xff]
    %v298 = vld [vmem:[#allocation2 + $0x2d0] sm:$0xff]
    %v299 = vld [vmem:[#allocation2 + $0x2d8] sm:$0xff]
    %v300 = vld [vmem:[#allocation2 + $0x2e8] sm:$0xff]
    %v301 = vld [vmem:[#allocation2 + $0x2f0] sm:$0xff]
    %v302 = vld [vmem:[#allocation2 + $0x300] sm:$0xff]
    %v303 = vld [vmem:[#allocation2 + $0x308] sm:$0xff]
    %v304 = vld [vmem:[#allocation2 + $0x318] sm:$0xff]
    %v305 = vld [vmem:[#allocation2 + $0x320] sm:$0xff]
    %v306 = vpack.c.bf16 %v243, %v242
    %v307 = vpack.c.bf16 %v245, %v244
    %v308 = vpack.c.bf16 %v247, %v246
    %v309 = vpack.c.bf16 %v249, %v248
    %v310 = vpack.c.bf16 %v251, %v250
    %v311 = vpack.c.bf16 %v253, %v252
    %v312 = vpack.c.bf16 %v255, %v254
    %v313 = vpack.c.bf16 %v257, %v256
    %v314 = vpack.c.bf16 %v259, %v258
    %v315 = vpack.c.bf16 %v261, %v260
    %v316 = vpack.c.bf16 %v263, %v262
    %v317 = vpack.c.bf16 %v265, %v264
    %v318 = vpack.c.bf16 %v267, %v266
    %v319 = vpack.c.bf16 %v269, %v268
    %v320 = vpack.c.bf16 %v271, %v270
    %v321 = vpack.c.bf16 %v273, %v272
    %v322 = vpack.c.bf16 %v275, %v274
    %v323 = vpack.c.bf16 %v277, %v276
    %v324 = vpack.c.bf16 %v279, %v278
    %v325 = vpack.c.bf16 %v281, %v280
    %v326 = vpack.c.bf16 %v283, %v282
    %v327 = vpack.c.bf16 %v285, %v284
    %v328 = vpack.c.bf16 %v287, %v286
    %v329 = vpack.c.bf16 %v289, %v288
    %v330 = vpack.c.bf16 %v291, %v290
    %v331 = vpack.c.bf16 %v293, %v292
    %v332 = vpack.c.bf16 %v295, %v294
    %v333 = vpack.c.bf16 %v297, %v296
    %v334 = vpack.c.bf16 %v299, %v298
    %v335 = vpack.c.bf16 %v301, %v300
    %v336 = vpack.c.bf16 %v303, %v302
    %v337 = vpack.c.bf16 %v305, %v304
    %v338 = vld [vmem:[%s1] sm:$0xf]
    %v339 = vld [vmem:[%s1 + $0x4] sm:$0xf]
    %v340 = vld [vmem:[%s1 + $0x8] sm:$0xf]
    %v341 = vld [vmem:[%s1 + $0xc] sm:$0xf]
    %v342 = vld [vmem:[%s1 + $0x10] sm:$0xf]
    %v343 = vld [vmem:[%s1 + $0x14] sm:$0xf]
    %v344 = vld [vmem:[%s1 + $0x18] sm:$0xf]
    %v345 = vld [vmem:[%s1 + $0x1c] sm:$0xf]
    %v346 = vld [vmem:[%s1 + $0x20] sm:$0xf]
    %v347 = vld [vmem:[%s1 + $0x24] sm:$0xf]
    %v348 = vld [vmem:[%s1 + $0x28] sm:$0xf]
    %v349 = vld [vmem:[%s1 + $0x2c] sm:$0xf]
    %v350 = vld [vmem:[%s1 + $0x30] sm:$0xf]
    %v351 = vld [vmem:[%s1 + $0x34] sm:$0xf]
    %v352 = vld [vmem:[%s1 + $0x38] sm:$0xf]
    %v353 = vld [vmem:[%s1 + $0x3c] sm:$0xf]
    %v354 = vld [vmem:[#allocation2 + $0x1] sm:$0xff]
    %v355 = vld [vmem:[#allocation2 + $0x9] sm:$0xff]
    %v356 = vld [vmem:[#allocation2 + $0x19] sm:$0xff]
    %v357 = vld [vmem:[#allocation2 + $0x21] sm:$0xff]
    %v358 = vld [vmem:[#allocation2 + $0x31] sm:$0xff]
    %v359 = vld [vmem:[#allocation2 + $0x39] sm:$0xff]
    %v360 = vld [vmem:[#allocation2 + $0x49] sm:$0xff]
    %v361 = vld [vmem:[#allocation2 + $0x51] sm:$0xff]
    %v362 = vld [vmem:[#allocation2 + $0x61] sm:$0xff]
    %v363 = vld [vmem:[#allocation2 + $0x69] sm:$0xff]
    %v364 = vld [vmem:[#allocation2 + $0x79] sm:$0xff]
    %v365 = vld [vmem:[#allocation2 + $0x81] sm:$0xff]
    %v366 = vld [vmem:[#allocation2 + $0x91] sm:$0xff]
    %v367 = vld [vmem:[#allocation2 + $0x99] sm:$0xff]
    %v368 = vld [vmem:[#allocation2 + $0xa9] sm:$0xff]
    %v369 = vld [vmem:[#allocation2 + $0xb1] sm:$0xff]
    %v370 = vld [vmem:[#allocation2 + $0xc1] sm:$0xff]
    %v371 = vld [vmem:[#allocation2 + $0xc9] sm:$0xff]
    %v372 = vld [vmem:[#allocation2 + $0xd9] sm:$0xff]
    %v373 = vld [vmem:[#allocation2 + $0xe1] sm:$0xff]
    %v374 = vld [vmem:[#allocation2 + $0xf1] sm:$0xff]
    %v375 = vld [vmem:[#allocation2 + $0xf9] sm:$0xff]
    %v376 = vld [vmem:[#allocation2 + $0x109] sm:$0xff]
    %v377 = vld [vmem:[#allocation2 + $0x111] sm:$0xff]
    %v378 = vld [vmem:[#allocation2 + $0x121] sm:$0xff]
    %v379 = vld [vmem:[#allocation2 + $0x129] sm:$0xff]
    %v380 = vld [vmem:[#allocation2 + $0x139] sm:$0xff]
    %v381 = vld [vmem:[#allocation2 + $0x141] sm:$0xff]
    %v382 = vld [vmem:[#allocation2 + $0x151] sm:$0xff]
    %v383 = vld [vmem:[#allocation2 + $0x159] sm:$0xff]
    %v384 = vld [vmem:[#allocation2 + $0x169] sm:$0xff]
    %v385 = vld [vmem:[#allocation2 + $0x171] sm:$0xff]
    %v386 = vld [vmem:[#allocation2 + $0x1b1] sm:$0xff]
    %v387 = vld [vmem:[#allocation2 + $0x1b9] sm:$0xff]
    %v388 = vld [vmem:[#allocation2 + $0x1c9] sm:$0xff]
    %v389 = vld [vmem:[#allocation2 + $0x1d1] sm:$0xff]
    %v390 = vld [vmem:[#allocation2 + $0x1e1] sm:$0xff]
    %v391 = vld [vmem:[#allocation2 + $0x1e9] sm:$0xff]
    %v392 = vld [vmem:[#allocation2 + $0x1f9] sm:$0xff]
    %v393 = vld [vmem:[#allocation2 + $0x201] sm:$0xff]
    %v394 = vld [vmem:[#allocation2 + $0x211] sm:$0xff]
    %v395 = vld [vmem:[#allocation2 + $0x219] sm:$0xff]
    %v396 = vld [vmem:[#allocation2 + $0x229] sm:$0xff]
    %v397 = vld [vmem:[#allocation2 + $0x231] sm:$0xff]
    %v398 = vld [vmem:[#allocation2 + $0x241] sm:$0xff]
    %v399 = vld [vmem:[#allocation2 + $0x249] sm:$0xff]
    %v400 = vld [vmem:[#allocation2 + $0x259] sm:$0xff]
    %v401 = vld [vmem:[#allocation2 + $0x261] sm:$0xff]
    %v402 = vld [vmem:[#allocation2 + $0x271] sm:$0xff]
    %v403 = vld [vmem:[#allocation2 + $0x279] sm:$0xff]
    %v404 = vld [vmem:[#allocation2 + $0x289] sm:$0xff]
    %v405 = vld [vmem:[#allocation2 + $0x291] sm:$0xff]
    %v406 = vld [vmem:[#allocation2 + $0x2a1] sm:$0xff]
    %v407 = vld [vmem:[#allocation2 + $0x2a9] sm:$0xff]
    %v408 = vld [vmem:[#allocation2 + $0x2b9] sm:$0xff]
    %v409 = vld [vmem:[#allocation2 + $0x2c1] sm:$0xff]
    %v410 = vld [vmem:[#allocation2 + $0x2d1] sm:$0xff]
    %v411 = vld [vmem:[#allocation2 + $0x2d9] sm:$0xff]
    %v412 = vld [vmem:[#allocation2 + $0x2e9] sm:$0xff]
    %v413 = vld [vmem:[#allocation2 + $0x2f1] sm:$0xff]
    %v414 = vld [vmem:[#allocation2 + $0x301] sm:$0xff]
    %v415 = vld [vmem:[#allocation2 + $0x309] sm:$0xff]
    %v416 = vld [vmem:[#allocation2 + $0x319] sm:$0xff]
    %v417 = vld [vmem:[#allocation2 + $0x321] sm:$0xff]
    %v418 = vpack.c.bf16 %v355, %v354
    %v419 = vpack.c.bf16 %v357, %v356
    %v420 = vpack.c.bf16 %v359, %v358
    %v421 = vpack.c.bf16 %v361, %v360
    %v422 = vpack.c.bf16 %v363, %v362
    %v423 = vpack.c.bf16 %v365, %v364
    %v424 = vpack.c.bf16 %v367, %v366
    %v425 = vpack.c.bf16 %v369, %v368
    %v426 = vpack.c.bf16 %v371, %v370
    %v427 = vpack.c.bf16 %v373, %v372
    %v428 = vpack.c.bf16 %v375, %v374
    %v429 = vpack.c.bf16 %v377, %v376
    %v430 = vpack.c.bf16 %v379, %v378
    %v431 = vpack.c.bf16 %v381, %v380
    %v432 = vpack.c.bf16 %v383, %v382
    %v433 = vpack.c.bf16 %v385, %v384
    %v434 = vpack.c.bf16 %v387, %v386
    %v435 = vpack.c.bf16 %v389, %v388
    %v436 = vpack.c.bf16 %v391, %v390
    %v437 = vpack.c.bf16 %v393, %v392
    %v438 = vpack.c.bf16 %v395, %v394
    %v439 = vpack.c.bf16 %v397, %v396
    %v440 = vpack.c.bf16 %v399, %v398
    %v441 = vpack.c.bf16 %v401, %v400
    %v442 = vpack.c.bf16 %v403, %v402
    %v443 = vpack.c.bf16 %v405, %v404
    %v444 = vpack.c.bf16 %v407, %v406
    %v445 = vpack.c.bf16 %v409, %v408
    %v446 = vpack.c.bf16 %v411, %v410
    %v447 = vpack.c.bf16 %v413, %v412
    %v448 = vpack.c.bf16 %v415, %v414
    %v449 = vpack.c.bf16 %v417, %v416
    %s450 = scalar_lea.vmem %s1, 64
    %v451 = vld [vmem:[%s450] sm:$0xf]
    %v452 = vld [vmem:[%s450 + $0x4] sm:$0xf]
    %v453 = vld [vmem:[%s450 + $0x8] sm:$0xf]
    %v454 = vld [vmem:[%s450 + $0xc] sm:$0xf]
    %v455 = vld [vmem:[%s450 + $0x10] sm:$0xf]
    %v456 = vld [vmem:[%s450 + $0x14] sm:$0xf]
    %v457 = vld [vmem:[%s450 + $0x18] sm:$0xf]
    %v458 = vld [vmem:[%s450 + $0x1c] sm:$0xf]
    %v459 = vld [vmem:[%s450 + $0x20] sm:$0xf]
    %v460 = vld [vmem:[%s450 + $0x24] sm:$0xf]
    %v461 = vld [vmem:[%s450 + $0x28] sm:$0xf]
    %v462 = vld [vmem:[%s450 + $0x2c] sm:$0xf]
    %v463 = vld [vmem:[%s450 + $0x30] sm:$0xf]
    %v464 = vld [vmem:[%s450 + $0x34] sm:$0xf]
    %v465 = vld [vmem:[%s450 + $0x38] sm:$0xf]
    %v466 = vld [vmem:[%s450 + $0x3c] sm:$0xf]
    %v483 = vunpack.c.l.b16 %v451
    %v484 = vunpack.c.l.b16 %v452
    %v485 = vunpack.c.l.b16 %v453
    %v486 = vunpack.c.l.b16 %v454
    %v487 = vunpack.c.l.b16 %v455
    %v488 = vunpack.c.l.b16 %v456
    %v489 = vunpack.c.l.b16 %v457
    %v490 = vunpack.c.l.b16 %v458
    %v491 = vunpack.c.l.b16 %v459
    %v492 = vunpack.c.l.b16 %v460
    %v493 = vunpack.c.l.b16 %v461
    %v494 = vunpack.c.l.b16 %v462
    %v495 = vunpack.c.l.b16 %v463
    %v496 = vunpack.c.l.b16 %v464
    %v497 = vunpack.c.l.b16 %v465
    %v498 = vunpack.c.l.b16 %v466
    %v499 = vpack.c.b16 %v484, %v483
    %v500 = vpack.c.b16 %v486, %v485
    %v501 = vpack.c.b16 %v488, %v487
    %v502 = vpack.c.b16 %v490, %v489
    %v503 = vpack.c.b16 %v492, %v491
    %v504 = vpack.c.b16 %v494, %v493
    %v505 = vpack.c.b16 %v496, %v495
    %v506 = vpack.c.b16 %v498, %v497
    %515 = vmatprep.subr.bf16.mxu0 0
    %516 = vmatpush1.bf16.msra.mxu0 %v506
    %517 = vmatprep.subr.bf16.mxu0 0
    %518 = vmatpush1.bf16.msra.mxu0 %v505
    %519 = vmatprep.subr.bf16.mxu0 0
    %520 = vmatpush1.bf16.msra.mxu0 %v504
    %521 = vmatprep.subr.bf16.mxu0 0
    %522 = vmatpush1.bf16.msra.mxu0 %v503
    %523 = vmatprep.subr.bf16.mxu0 0
    %524 = vmatpush1.bf16.msra.mxu0 %v502
    %525 = vmatprep.subr.bf16.mxu0 0
    %526 = vmatpush1.bf16.msra.mxu0 %v501
    %527 = vmatprep.subr.bf16.mxu0 0
    %528 = vmatpush1.bf16.msra.mxu0 %v500
    %529 = vmatprep.subr.bf16.mxu0 0
    %530 = vmatpush1.bf16.msra.mxu0 %v499
    %531 = vmatprep.subr.bf16.mxu0 0
    %532 = vmatpush2.bf16.msra.mxu0 0
    %533 = vmatprep.subr.bf16.mxu0 0
    %534 = vmatpush2.bf16.msra.mxu0 0
    %535 = vmatprep.subr.bf16.mxu0 0
    %536 = vmatpush2.bf16.msra.mxu0 0
    %537 = vmatprep.subr.bf16.mxu0 0
    %538 = vmatpush2.bf16.msra.mxu0 0
    %539 = vmatprep.subr.bf16.mxu0 0
    %540 = vmatpush2.bf16.msra.mxu0 0
    %541 = vmatprep.subr.bf16.mxu0 0
    %542 = vmatpush2.bf16.msra.mxu0 0
    %543 = vmatprep.subr.bf16.mxu0 0
    %544 = vmatpush2.bf16.msra.mxu0 0
    %545 = vmatprep.subr.bf16.mxu0 0
    %546 = vmatpush2.bf16.msra.mxu0 0
    %547 = vmatprep.mubr.bf16.mxu0 0
    %548 = vmatmul.mubr.bf16.gmra.mxu0 %v418
    %v549 = vpop.f32.mrf.mxu0
    %v550 = vadd.f32 0.0, %v549
    %v551 = vpop.f32.mrf.mxu0
    %v552 = vpop.f32.mrf.mxu0
    %v553 = vadd.f32 0.0, %v552
    %v554 = vpop.f32.mrf.mxu0
    %555 = vmatprep.mubr.bf16.mxu0 0
    %556 = vmatmul.mubr.bf16.gmra.mxu0 %v419
    %v557 = vpop.f32.mrf.mxu0
    %v558 = vadd.f32 0.0, %v557
    %v559 = vpop.f32.mrf.mxu0
    %v560 = vpop.f32.mrf.mxu0
    %v561 = vadd.f32 0.0, %v560
    %v562 = vpop.f32.mrf.mxu0
    %563 = vmatprep.mubr.bf16.mxu0 0
    %564 = vmatmul.mubr.bf16.gmra.mxu0 %v420
    %v565 = vpop.f32.mrf.mxu0
    %v566 = vadd.f32 0.0, %v565
    %v567 = vpop.f32.mrf.mxu0
    %v568 = vpop.f32.mrf.mxu0
    %v569 = vadd.f32 0.0, %v568
    %v570 = vpop.f32.mrf.mxu0
    %571 = vmatprep.mubr.bf16.mxu0 0
    %572 = vmatmul.mubr.bf16.gmra.mxu0 %v421
    %v573 = vpop.f32.mrf.mxu0
    %v574 = vadd.f32 0.0, %v573
    %v575 = vpop.f32.mrf.mxu0
    %v576 = vpop.f32.mrf.mxu0
    %v577 = vadd.f32 0.0, %v576
    %v578 = vpop.f32.mrf.mxu0
    %579 = vmatprep.mubr.bf16.mxu0 0
    %580 = vmatmul.mubr.bf16.gmra.mxu0 %v422
    %v581 = vpop.f32.mrf.mxu0
    %v582 = vadd.f32 0.0, %v581
    %v583 = vpop.f32.mrf.mxu0
    %v584 = vpop.f32.mrf.mxu0
    %v585 = vadd.f32 0.0, %v584
    %v586 = vpop.f32.mrf.mxu0
    %587 = vmatprep.mubr.bf16.mxu0 0
    %588 = vmatmul.mubr.bf16.gmra.mxu0 %v423
    %v589 = vpop.f32.mrf.mxu0
    %v590 = vadd.f32 0.0, %v589
    %v591 = vpop.f32.mrf.mxu0
    %v592 = vpop.f32.mrf.mxu0
    %v593 = vadd.f32 0.0, %v592
    %v594 = vpop.f32.mrf.mxu0
    %595 = vmatprep.mubr.bf16.mxu0 0
    %596 = vmatmul.mubr.bf16.gmra.mxu0 %v424
    %v597 = vpop.f32.mrf.mxu0
    %v598 = vadd.f32 0.0, %v597
    %v599 = vpop.f32.mrf.mxu0
    %v600 = vpop.f32.mrf.mxu0
    %v601 = vadd.f32 0.0, %v600
    %v602 = vpop.f32.mrf.mxu0
    %603 = vmatprep.mubr.bf16.mxu0 0
    %604 = vmatmul.mubr.bf16.gmra.mxu0 %v425
    %v605 = vpop.f32.mrf.mxu0
    %v606 = vadd.f32 0.0, %v605
    %v607 = vpop.f32.mrf.mxu0
    %v608 = vpop.f32.mrf.mxu0
    %v609 = vadd.f32 0.0, %v608
    %v610 = vpop.f32.mrf.mxu0
    %611 = vmatprep.mubr.bf16.mxu0 0
    %612 = vmatmul.mubr.bf16.gmra.mxu0 %v426
    %v613 = vpop.f32.mrf.mxu0
    %v614 = vadd.f32 0.0, %v613
    %v615 = vpop.f32.mrf.mxu0
    %v616 = vpop.f32.mrf.mxu0
    %v617 = vadd.f32 0.0, %v616
    %v618 = vpop.f32.mrf.mxu0
    %619 = vmatprep.mubr.bf16.mxu0 0
    %620 = vmatmul.mubr.bf16.gmra.mxu0 %v427
    %v621 = vpop.f32.mrf.mxu0
    %v622 = vadd.f32 0.0, %v621
    %v623 = vpop.f32.mrf.mxu0
    %v624 = vpop.f32.mrf.mxu0
    %v625 = vadd.f32 0.0, %v624
    %v626 = vpop.f32.mrf.mxu0
    %627 = vmatprep.mubr.bf16.mxu0 0
    %628 = vmatmul.mubr.bf16.gmra.mxu0 %v428
    %v629 = vpop.f32.mrf.mxu0
    %v630 = vadd.f32 0.0, %v629
    %v631 = vpop.f32.mrf.mxu0
    %v632 = vpop.f32.mrf.mxu0
    %v633 = vadd.f32 0.0, %v632
    %v634 = vpop.f32.mrf.mxu0
    %635 = vmatprep.mubr.bf16.mxu0 0
    %636 = vmatmul.mubr.bf16.gmra.mxu0 %v429
    %v637 = vpop.f32.mrf.mxu0
    %v638 = vadd.f32 0.0, %v637
    %v639 = vpop.f32.mrf.mxu0
    %v640 = vpop.f32.mrf.mxu0
    %v641 = vadd.f32 0.0, %v640
    %v642 = vpop.f32.mrf.mxu0
    %643 = vmatprep.mubr.bf16.mxu0 0
    %644 = vmatmul.mubr.bf16.gmra.mxu0 %v430
    %v645 = vpop.f32.mrf.mxu0
    %v646 = vadd.f32 0.0, %v645
    %v647 = vpop.f32.mrf.mxu0
    %v648 = vpop.f32.mrf.mxu0
    %v649 = vadd.f32 0.0, %v648
    %v650 = vpop.f32.mrf.mxu0
    %651 = vmatprep.mubr.bf16.mxu0 0
    %652 = vmatmul.mubr.bf16.gmra.mxu0 %v431
    %v653 = vpop.f32.mrf.mxu0
    %v654 = vadd.f32 0.0, %v653
    %v655 = vpop.f32.mrf.mxu0
    %v656 = vpop.f32.mrf.mxu0
    %v657 = vadd.f32 0.0, %v656
    %v658 = vpop.f32.mrf.mxu0
    %659 = vmatprep.mubr.bf16.mxu0 0
    %660 = vmatmul.mubr.bf16.gmra.mxu0 %v432
    %v661 = vpop.f32.mrf.mxu0
    %v662 = vadd.f32 0.0, %v661
    %v663 = vpop.f32.mrf.mxu0
    %v664 = vpop.f32.mrf.mxu0
    %v665 = vadd.f32 0.0, %v664
    %v666 = vpop.f32.mrf.mxu0
    %667 = vmatprep.mubr.bf16.mxu0 0
    %668 = vmatmul.mubr.bf16.gmra.mxu0 %v433
    %v669 = vpop.f32.mrf.mxu0
    %v670 = vadd.f32 0.0, %v669
    %v671 = vpop.f32.mrf.mxu0
    %v672 = vpop.f32.mrf.mxu0
    %v673 = vadd.f32 0.0, %v672
    %v674 = vpop.f32.mrf.mxu0
    %675 = vmatprep.mubr.bf16.mxu0 0
    %676 = vmatmul.mubr.bf16.gmra.mxu0 %v434
    %v677 = vpop.f32.mrf.mxu0
    %v678 = vadd.f32 0.0, %v677
    %v679 = vpop.f32.mrf.mxu0
    %v680 = vpop.f32.mrf.mxu0
    %v681 = vadd.f32 0.0, %v680
    %v682 = vpop.f32.mrf.mxu0
    %683 = vmatprep.mubr.bf16.mxu0 0
    %684 = vmatmul.mubr.bf16.gmra.mxu0 %v435
    %v685 = vpop.f32.mrf.mxu0
    %v686 = vadd.f32 0.0, %v685
    %v687 = vpop.f32.mrf.mxu0
    %v688 = vpop.f32.mrf.mxu0
    %v689 = vadd.f32 0.0, %v688
    %v690 = vpop.f32.mrf.mxu0
    %691 = vmatprep.mubr.bf16.mxu0 0
    %692 = vmatmul.mubr.bf16.gmra.mxu0 %v436
    %v693 = vpop.f32.mrf.mxu0
    %v694 = vadd.f32 0.0, %v693
    %v695 = vpop.f32.mrf.mxu0
    %v696 = vpop.f32.mrf.mxu0
    %v697 = vadd.f32 0.0, %v696
    %v698 = vpop.f32.mrf.mxu0
    %699 = vmatprep.mubr.bf16.mxu0 0
    %700 = vmatmul.mubr.bf16.gmra.mxu0 %v437
    %v701 = vpop.f32.mrf.mxu0
    %v702 = vadd.f32 0.0, %v701
    %v703 = vpop.f32.mrf.mxu0
    %v704 = vpop.f32.mrf.mxu0
    %v705 = vadd.f32 0.0, %v704
    %v706 = vpop.f32.mrf.mxu0
    %707 = vmatprep.mubr.bf16.mxu0 0
    %708 = vmatmul.mubr.bf16.gmra.mxu0 %v438
    %v709 = vpop.f32.mrf.mxu0
    %v710 = vadd.f32 0.0, %v709
    %v711 = vpop.f32.mrf.mxu0
    %v712 = vpop.f32.mrf.mxu0
    %v713 = vadd.f32 0.0, %v712
    %v714 = vpop.f32.mrf.mxu0
    %715 = vmatprep.mubr.bf16.mxu0 0
    %716 = vmatmul.mubr.bf16.gmra.mxu0 %v439
    %v717 = vpop.f32.mrf.mxu0
    %v718 = vadd.f32 0.0, %v717
    %v719 = vpop.f32.mrf.mxu0
    %v720 = vpop.f32.mrf.mxu0
    %v721 = vadd.f32 0.0, %v720
    %v722 = vpop.f32.mrf.mxu0
    %723 = vmatprep.mubr.bf16.mxu0 0
    %724 = vmatmul.mubr.bf16.gmra.mxu0 %v440
    %v725 = vpop.f32.mrf.mxu0
    %v726 = vadd.f32 0.0, %v725
    %v727 = vpop.f32.mrf.mxu0
    %v728 = vpop.f32.mrf.mxu0
    %v729 = vadd.f32 0.0, %v728
    %v730 = vpop.f32.mrf.mxu0
    %731 = vmatprep.mubr.bf16.mxu0 0
    %732 = vmatmul.mubr.bf16.gmra.mxu0 %v441
    %v733 = vpop.f32.mrf.mxu0
    %v734 = vadd.f32 0.0, %v733
    %v735 = vpop.f32.mrf.mxu0
    %v736 = vpop.f32.mrf.mxu0
    %v737 = vadd.f32 0.0, %v736
    %v738 = vpop.f32.mrf.mxu0
    %739 = vmatprep.mubr.bf16.mxu0 0
    %740 = vmatmul.mubr.bf16.gmra.mxu0 %v442
    %v741 = vpop.f32.mrf.mxu0
    %v742 = vadd.f32 0.0, %v741
    %v743 = vpop.f32.mrf.mxu0
    %v744 = vpop.f32.mrf.mxu0
    %v745 = vadd.f32 0.0, %v744
    %v746 = vpop.f32.mrf.mxu0
    %747 = vmatprep.mubr.bf16.mxu0 0
    %748 = vmatmul.mubr.bf16.gmra.mxu0 %v443
    %v749 = vpop.f32.mrf.mxu0
    %v750 = vadd.f32 0.0, %v749
    %v751 = vpop.f32.mrf.mxu0
    %v752 = vpop.f32.mrf.mxu0
    %v753 = vadd.f32 0.0, %v752
    %v754 = vpop.f32.mrf.mxu0
    %755 = vmatprep.mubr.bf16.mxu0 0
    %756 = vmatmul.mubr.bf16.gmra.mxu0 %v444
    %v757 = vpop.f32.mrf.mxu0
    %v758 = vadd.f32 0.0, %v757
    %v759 = vpop.f32.mrf.mxu0
    %v760 = vpop.f32.mrf.mxu0
    %v761 = vadd.f32 0.0, %v760
    %v762 = vpop.f32.mrf.mxu0
    %763 = vmatprep.mubr.bf16.mxu0 0
    %764 = vmatmul.mubr.bf16.gmra.mxu0 %v445
    %v765 = vpop.f32.mrf.mxu0
    %v766 = vadd.f32 0.0, %v765
    %v767 = vpop.f32.mrf.mxu0
    %v768 = vpop.f32.mrf.mxu0
    %v769 = vadd.f32 0.0, %v768
    %v770 = vpop.f32.mrf.mxu0
    %771 = vmatprep.mubr.bf16.mxu0 0
    %772 = vmatmul.mubr.bf16.gmra.mxu0 %v446
    %v773 = vpop.f32.mrf.mxu0
    %v774 = vadd.f32 0.0, %v773
    %v775 = vpop.f32.mrf.mxu0
    %v776 = vpop.f32.mrf.mxu0
    %v777 = vadd.f32 0.0, %v776
    %v778 = vpop.f32.mrf.mxu0
    %779 = vmatprep.mubr.bf16.mxu0 0
    %780 = vmatmul.mubr.bf16.gmra.mxu0 %v447
    %v781 = vpop.f32.mrf.mxu0
    %v782 = vadd.f32 0.0, %v781
    %v783 = vpop.f32.mrf.mxu0
    %v784 = vpop.f32.mrf.mxu0
    %v785 = vadd.f32 0.0, %v784
    %v786 = vpop.f32.mrf.mxu0
    %787 = vmatprep.mubr.bf16.mxu0 0
    %788 = vmatmul.mubr.bf16.gmra.mxu0 %v448
    %v789 = vpop.f32.mrf.mxu0
    %v790 = vadd.f32 0.0, %v789
    %v791 = vpop.f32.mrf.mxu0
    %v792 = vpop.f32.mrf.mxu0
    %v793 = vadd.f32 0.0, %v792
    %v794 = vpop.f32.mrf.mxu0
    %795 = vmatprep.mubr.bf16.mxu0 0
    %796 = vmatmul.mubr.bf16.gmra.mxu0 %v449
    %v797 = vpop.f32.mrf.mxu0
    %v798 = vadd.f32 0.0, %v797
    %v799 = vpop.f32.mrf.mxu0
    %v800 = vpop.f32.mrf.mxu0
    %v801 = vadd.f32 0.0, %v800
    %v802 = vpop.f32.mrf.mxu0
    %803 = vdwg.mxu0
    %v820 = vunpack.c.l.b16 %v338
    %v821 = vunpack.c.l.b16 %v339
    %v822 = vunpack.c.l.b16 %v340
    %v823 = vunpack.c.l.b16 %v341
    %v824 = vunpack.c.l.b16 %v342
    %v825 = vunpack.c.l.b16 %v343
    %v826 = vunpack.c.l.b16 %v344
    %v827 = vunpack.c.l.b16 %v345
    %v828 = vunpack.c.l.b16 %v346
    %v829 = vunpack.c.l.b16 %v347
    %v830 = vunpack.c.l.b16 %v348
    %v831 = vunpack.c.l.b16 %v349
    %v832 = vunpack.c.l.b16 %v350
    %v833 = vunpack.c.l.b16 %v351
    %v834 = vunpack.c.l.b16 %v352
    %v835 = vunpack.c.l.b16 %v353
    %v836 = vpack.c.b16 %v821, %v820
    %v837 = vpack.c.b16 %v823, %v822
    %v838 = vpack.c.b16 %v825, %v824
    %v839 = vpack.c.b16 %v827, %v826
    %v840 = vpack.c.b16 %v829, %v828
    %v841 = vpack.c.b16 %v831, %v830
    %v842 = vpack.c.b16 %v833, %v832
    %v843 = vpack.c.b16 %v835, %v834
    %852 = vmatprep.subr.bf16.mxu0 0
    %853 = vmatpush1.bf16.msra.mxu0 %v843
    %854 = vmatprep.subr.bf16.mxu0 0
    %855 = vmatpush1.bf16.msra.mxu0 %v842
    %856 = vmatprep.subr.bf16.mxu0 0
    %857 = vmatpush1.bf16.msra.mxu0 %v841
    %858 = vmatprep.subr.bf16.mxu0 0
    %859 = vmatpush1.bf16.msra.mxu0 %v840
    %860 = vmatprep.subr.bf16.mxu0 0
    %861 = vmatpush1.bf16.msra.mxu0 %v839
    %862 = vmatprep.subr.bf16.mxu0 0
    %863 = vmatpush1.bf16.msra.mxu0 %v838
    %864 = vmatprep.subr.bf16.mxu0 0
    %865 = vmatpush1.bf16.msra.mxu0 %v837
    %866 = vmatprep.subr.bf16.mxu0 0
    %867 = vmatpush1.bf16.msra.mxu0 %v836
    %868 = vmatprep.subr.bf16.mxu0 0
    %869 = vmatpush2.bf16.msra.mxu0 0
    %870 = vmatprep.subr.bf16.mxu0 0
    %871 = vmatpush2.bf16.msra.mxu0 0
    %872 = vmatprep.subr.bf16.mxu0 0
    %873 = vmatpush2.bf16.msra.mxu0 0
    %874 = vmatprep.subr.bf16.mxu0 0
    %875 = vmatpush2.bf16.msra.mxu0 0
    %876 = vmatprep.subr.bf16.mxu0 0
    %877 = vmatpush2.bf16.msra.mxu0 0
    %878 = vmatprep.subr.bf16.mxu0 0
    %879 = vmatpush2.bf16.msra.mxu0 0
    %880 = vmatprep.subr.bf16.mxu0 0
    %881 = vmatpush2.bf16.msra.mxu0 0
    %882 = vmatprep.subr.bf16.mxu0 0
    %883 = vmatpush2.bf16.msra.mxu0 0
    %884 = vmatprep.mubr.bf16.mxu0 0
    %885 = vmatmul.mubr.bf16.gmra.mxu0 %v306
    %v886 = vpop.f32.mrf.mxu0
    %v887 = vadd.f32 %v550, %v886
    %v888 = vpop.f32.mrf.mxu0
    %v889 = vpop.f32.mrf.mxu0
    %v890 = vadd.f32 %v553, %v889
    %v891 = vpop.f32.mrf.mxu0
    %892 = vmatprep.mubr.bf16.mxu0 0
    %893 = vmatmul.mubr.bf16.gmra.mxu0 %v307
    %v894 = vpop.f32.mrf.mxu0
    %v895 = vadd.f32 %v558, %v894
    %v896 = vpop.f32.mrf.mxu0
    %v897 = vpop.f32.mrf.mxu0
    %v898 = vadd.f32 %v561, %v897
    %v899 = vpop.f32.mrf.mxu0
    %900 = vmatprep.mubr.bf16.mxu0 0
    %901 = vmatmul.mubr.bf16.gmra.mxu0 %v308
    %v902 = vpop.f32.mrf.mxu0
    %v903 = vadd.f32 %v566, %v902
    %v904 = vpop.f32.mrf.mxu0
    %v905 = vpop.f32.mrf.mxu0
    %v906 = vadd.f32 %v569, %v905
    %v907 = vpop.f32.mrf.mxu0
    %908 = vmatprep.mubr.bf16.mxu0 0
    %909 = vmatmul.mubr.bf16.gmra.mxu0 %v309
    %v910 = vpop.f32.mrf.mxu0
    %v911 = vadd.f32 %v574, %v910
    %v912 = vpop.f32.mrf.mxu0
    %v913 = vpop.f32.mrf.mxu0
    %v914 = vadd.f32 %v577, %v913
    %v915 = vpop.f32.mrf.mxu0
    %916 = vmatprep.mubr.bf16.mxu0 0
    %917 = vmatmul.mubr.bf16.gmra.mxu0 %v310
    %v918 = vpop.f32.mrf.mxu0
    %v919 = vadd.f32 %v582, %v918
    %v920 = vpop.f32.mrf.mxu0
    %v921 = vpop.f32.mrf.mxu0
    %v922 = vadd.f32 %v585, %v921
    %v923 = vpop.f32.mrf.mxu0
    %924 = vmatprep.mubr.bf16.mxu0 0
    %925 = vmatmul.mubr.bf16.gmra.mxu0 %v311
    %v926 = vpop.f32.mrf.mxu0
    %v927 = vadd.f32 %v590, %v926
    %v928 = vpop.f32.mrf.mxu0
    %v929 = vpop.f32.mrf.mxu0
    %v930 = vadd.f32 %v593, %v929
    %v931 = vpop.f32.mrf.mxu0
    %932 = vmatprep.mubr.bf16.mxu0 0
    %933 = vmatmul.mubr.bf16.gmra.mxu0 %v312
    %v934 = vpop.f32.mrf.mxu0
    %v935 = vadd.f32 %v598, %v934
    %v936 = vpop.f32.mrf.mxu0
    %v937 = vpop.f32.mrf.mxu0
    %v938 = vadd.f32 %v601, %v937
    %v939 = vpop.f32.mrf.mxu0
    %940 = vmatprep.mubr.bf16.mxu0 0
    %941 = vmatmul.mubr.bf16.gmra.mxu0 %v313
    %v942 = vpop.f32.mrf.mxu0
    %v943 = vadd.f32 %v606, %v942
    %v944 = vpop.f32.mrf.mxu0
    %v945 = vpop.f32.mrf.mxu0
    %v946 = vadd.f32 %v609, %v945
    %v947 = vpop.f32.mrf.mxu0
    %948 = vmatprep.mubr.bf16.mxu0 0
    %949 = vmatmul.mubr.bf16.gmra.mxu0 %v314
    %v950 = vpop.f32.mrf.mxu0
    %v951 = vadd.f32 %v614, %v950
    %v952 = vpop.f32.mrf.mxu0
    %v953 = vpop.f32.mrf.mxu0
    %v954 = vadd.f32 %v617, %v953
    %v955 = vpop.f32.mrf.mxu0
    %956 = vmatprep.mubr.bf16.mxu0 0
    %957 = vmatmul.mubr.bf16.gmra.mxu0 %v315
    %v958 = vpop.f32.mrf.mxu0
    %v959 = vadd.f32 %v622, %v958
    %v960 = vpop.f32.mrf.mxu0
    %v961 = vpop.f32.mrf.mxu0
    %v962 = vadd.f32 %v625, %v961
    %v963 = vpop.f32.mrf.mxu0
    %964 = vmatprep.mubr.bf16.mxu0 0
    %965 = vmatmul.mubr.bf16.gmra.mxu0 %v316
    %v966 = vpop.f32.mrf.mxu0
    %v967 = vadd.f32 %v630, %v966
    %v968 = vpop.f32.mrf.mxu0
    %v969 = vpop.f32.mrf.mxu0
    %v970 = vadd.f32 %v633, %v969
    %v971 = vpop.f32.mrf.mxu0
    %972 = vmatprep.mubr.bf16.mxu0 0
    %973 = vmatmul.mubr.bf16.gmra.mxu0 %v317
    %v974 = vpop.f32.mrf.mxu0
    %v975 = vadd.f32 %v638, %v974
    %v976 = vpop.f32.mrf.mxu0
    %v977 = vpop.f32.mrf.mxu0
    %v978 = vadd.f32 %v641, %v977
    %v979 = vpop.f32.mrf.mxu0
    %980 = vmatprep.mubr.bf16.mxu0 0
    %981 = vmatmul.mubr.bf16.gmra.mxu0 %v318
    %v982 = vpop.f32.mrf.mxu0
    %v983 = vadd.f32 %v646, %v982
    %v984 = vpop.f32.mrf.mxu0
    %v985 = vpop.f32.mrf.mxu0
    %v986 = vadd.f32 %v649, %v985
    %v987 = vpop.f32.mrf.mxu0
    %988 = vmatprep.mubr.bf16.mxu0 0
    %989 = vmatmul.mubr.bf16.gmra.mxu0 %v319
    %v990 = vpop.f32.mrf.mxu0
    %v991 = vadd.f32 %v654, %v990
    %v992 = vpop.f32.mrf.mxu0
    %v993 = vpop.f32.mrf.mxu0
    %v994 = vadd.f32 %v657, %v993
    %v995 = vpop.f32.mrf.mxu0
    %996 = vmatprep.mubr.bf16.mxu0 0
    %997 = vmatmul.mubr.bf16.gmra.mxu0 %v320
    %v998 = vpop.f32.mrf.mxu0
    %v999 = vadd.f32 %v662, %v998
    %v1000 = vpop.f32.mrf.mxu0
    %v1001 = vpop.f32.mrf.mxu0
    %v1002 = vadd.f32 %v665, %v1001
    %v1003 = vpop.f32.mrf.mxu0
    %1004 = vmatprep.mubr.bf16.mxu0 0
    %1005 = vmatmul.mubr.bf16.gmra.mxu0 %v321
    %v1006 = vpop.f32.mrf.mxu0
    %v1007 = vadd.f32 %v670, %v1006
    %v1008 = vpop.f32.mrf.mxu0
    %v1009 = vpop.f32.mrf.mxu0
    %v1010 = vadd.f32 %v673, %v1009
    %v1011 = vpop.f32.mrf.mxu0
    %1012 = vmatprep.mubr.bf16.mxu0 0
    %1013 = vmatmul.mubr.bf16.gmra.mxu0 %v322
    %v1014 = vpop.f32.mrf.mxu0
    %v1015 = vadd.f32 %v678, %v1014
    %v1016 = vpop.f32.mrf.mxu0
    %v1017 = vpop.f32.mrf.mxu0
    %v1018 = vadd.f32 %v681, %v1017
    %v1019 = vpop.f32.mrf.mxu0
    %1020 = vmatprep.mubr.bf16.mxu0 0
    %1021 = vmatmul.mubr.bf16.gmra.mxu0 %v323
    %v1022 = vpop.f32.mrf.mxu0
    %v1023 = vadd.f32 %v686, %v1022
    %v1024 = vpop.f32.mrf.mxu0
    %v1025 = vpop.f32.mrf.mxu0
    %v1026 = vadd.f32 %v689, %v1025
    %v1027 = vpop.f32.mrf.mxu0
    %1028 = vmatprep.mubr.bf16.mxu0 0
    %1029 = vmatmul.mubr.bf16.gmra.mxu0 %v324
    %v1030 = vpop.f32.mrf.mxu0
    %v1031 = vadd.f32 %v694, %v1030
    %v1032 = vpop.f32.mrf.mxu0
    %v1033 = vpop.f32.mrf.mxu0
    %v1034 = vadd.f32 %v697, %v1033
    %v1035 = vpop.f32.mrf.mxu0
    %1036 = vmatprep.mubr.bf16.mxu0 0
    %1037 = vmatmul.mubr.bf16.gmra.mxu0 %v325
    %v1038 = vpop.f32.mrf.mxu0
    %v1039 = vadd.f32 %v702, %v1038
    %v1040 = vpop.f32.mrf.mxu0
    %v1041 = vpop.f32.mrf.mxu0
    %v1042 = vadd.f32 %v705, %v1041
    %v1043 = vpop.f32.mrf.mxu0
    %1044 = vmatprep.mubr.bf16.mxu0 0
    %1045 = vmatmul.mubr.bf16.gmra.mxu0 %v326
    %v1046 = vpop.f32.mrf.mxu0
    %v1047 = vadd.f32 %v710, %v1046
    %v1048 = vpop.f32.mrf.mxu0
    %v1049 = vpop.f32.mrf.mxu0
    %v1050 = vadd.f32 %v713, %v1049
    %v1051 = vpop.f32.mrf.mxu0
    %1052 = vmatprep.mubr.bf16.mxu0 0
    %1053 = vmatmul.mubr.bf16.gmra.mxu0 %v327
    %v1054 = vpop.f32.mrf.mxu0
    %v1055 = vadd.f32 %v718, %v1054
    %v1056 = vpop.f32.mrf.mxu0
    %v1057 = vpop.f32.mrf.mxu0
    %v1058 = vadd.f32 %v721, %v1057
    %v1059 = vpop.f32.mrf.mxu0
    %1060 = vmatprep.mubr.bf16.mxu0 0
    %1061 = vmatmul.mubr.bf16.gmra.mxu0 %v328
    %v1062 = vpop.f32.mrf.mxu0
    %v1063 = vadd.f32 %v726, %v1062
    %v1064 = vpop.f32.mrf.mxu0
    %v1065 = vpop.f32.mrf.mxu0
    %v1066 = vadd.f32 %v729, %v1065
    %v1067 = vpop.f32.mrf.mxu0
    %1068 = vmatprep.mubr.bf16.mxu0 0
    %1069 = vmatmul.mubr.bf16.gmra.mxu0 %v329
    %v1070 = vpop.f32.mrf.mxu0
    %v1071 = vadd.f32 %v734, %v1070
    %v1072 = vpop.f32.mrf.mxu0
    %v1073 = vpop.f32.mrf.mxu0
    %v1074 = vadd.f32 %v737, %v1073
    %v1075 = vpop.f32.mrf.mxu0
    %1076 = vmatprep.mubr.bf16.mxu0 0
    %1077 = vmatmul.mubr.bf16.gmra.mxu0 %v330
    %v1078 = vpop.f32.mrf.mxu0
    %v1079 = vadd.f32 %v742, %v1078
    %v1080 = vpop.f32.mrf.mxu0
    %v1081 = vpop.f32.mrf.mxu0
    %v1082 = vadd.f32 %v745, %v1081
    %v1083 = vpop.f32.mrf.mxu0
    %1084 = vmatprep.mubr.bf16.mxu0 0
    %1085 = vmatmul.mubr.bf16.gmra.mxu0 %v331
    %v1086 = vpop.f32.mrf.mxu0
    %v1087 = vadd.f32 %v750, %v1086
    %v1088 = vpop.f32.mrf.mxu0
    %v1089 = vpop.f32.mrf.mxu0
    %v1090 = vadd.f32 %v753, %v1089
    %v1091 = vpop.f32.mrf.mxu0
    %1092 = vmatprep.mubr.bf16.mxu0 0
    %1093 = vmatmul.mubr.bf16.gmra.mxu0 %v332
    %v1094 = vpop.f32.mrf.mxu0
    %v1095 = vadd.f32 %v758, %v1094
    %v1096 = vpop.f32.mrf.mxu0
    %v1097 = vpop.f32.mrf.mxu0
    %v1098 = vadd.f32 %v761, %v1097
    %v1099 = vpop.f32.mrf.mxu0
    %1100 = vmatprep.mubr.bf16.mxu0 0
    %1101 = vmatmul.mubr.bf16.gmra.mxu0 %v333
    %v1102 = vpop.f32.mrf.mxu0
    %v1103 = vadd.f32 %v766, %v1102
    %v1104 = vpop.f32.mrf.mxu0
    %v1105 = vpop.f32.mrf.mxu0
    %v1106 = vadd.f32 %v769, %v1105
    %v1107 = vpop.f32.mrf.mxu0
    %1108 = vmatprep.mubr.bf16.mxu0 0
    %1109 = vmatmul.mubr.bf16.gmra.mxu0 %v334
    %v1110 = vpop.f32.mrf.mxu0
    %v1111 = vadd.f32 %v774, %v1110
    %v1112 = vpop.f32.mrf.mxu0
    %v1113 = vpop.f32.mrf.mxu0
    %v1114 = vadd.f32 %v777, %v1113
    %v1115 = vpop.f32.mrf.mxu0
    %1116 = vmatprep.mubr.bf16.mxu0 0
    %1117 = vmatmul.mubr.bf16.gmra.mxu0 %v335
    %v1118 = vpop.f32.mrf.mxu0
    %v1119 = vadd.f32 %v782, %v1118
    %v1120 = vpop.f32.mrf.mxu0
    %v1121 = vpop.f32.mrf.mxu0
    %v1122 = vadd.f32 %v785, %v1121
    %v1123 = vpop.f32.mrf.mxu0
    %1124 = vmatprep.mubr.bf16.mxu0 0
    %1125 = vmatmul.mubr.bf16.gmra.mxu0 %v336
    %v1126 = vpop.f32.mrf.mxu0
    %v1127 = vadd.f32 %v790, %v1126
    %v1128 = vpop.f32.mrf.mxu0
    %v1129 = vpop.f32.mrf.mxu0
    %v1130 = vadd.f32 %v793, %v1129
    %v1131 = vpop.f32.mrf.mxu0
    %1132 = vmatprep.mubr.bf16.mxu0 0
    %1133 = vmatmul.mubr.bf16.gmra.mxu0 %v337
    %v1134 = vpop.f32.mrf.mxu0
    %v1135 = vadd.f32 %v798, %v1134
    %v1136 = vpop.f32.mrf.mxu0
    %v1137 = vpop.f32.mrf.mxu0
    %v1138 = vadd.f32 %v801, %v1137
    %v1139 = vpop.f32.mrf.mxu0
    %1140 = vdwg.mxu0
    %v1141 = vld [vmem:[#allocation2 + $0x2] sm:$0xff]
    %v1142 = vld [vmem:[#allocation2 + $0xa] sm:$0xff]
    %v1143 = vld [vmem:[#allocation2 + $0x1a] sm:$0xff]
    %v1144 = vld [vmem:[#allocation2 + $0x22] sm:$0xff]
    %v1145 = vld [vmem:[#allocation2 + $0x32] sm:$0xff]
    %v1146 = vld [vmem:[#allocation2 + $0x3a] sm:$0xff]
    %v1147 = vld [vmem:[#allocation2 + $0x4a] sm:$0xff]
    %v1148 = vld [vmem:[#allocation2 + $0x52] sm:$0xff]
    %v1149 = vld [vmem:[#allocation2 + $0x62] sm:$0xff]
    %v1150 = vld [vmem:[#allocation2 + $0x6a] sm:$0xff]
    %v1151 = vld [vmem:[#allocation2 + $0x7a] sm:$0xff]
    %v1152 = vld [vmem:[#allocation2 + $0x82] sm:$0xff]
    %v1153 = vld [vmem:[#allocation2 + $0x92] sm:$0xff]
    %v1154 = vld [vmem:[#allocation2 + $0x9a] sm:$0xff]
    %v1155 = vld [vmem:[#allocation2 + $0xaa] sm:$0xff]
    %v1156 = vld [vmem:[#allocation2 + $0xb2] sm:$0xff]
    %v1157 = vld [vmem:[#allocation2 + $0xc2] sm:$0xff]
    %v1158 = vld [vmem:[#allocation2 + $0xca] sm:$0xff]
    %v1159 = vld [vmem:[#allocation2 + $0xda] sm:$0xff]
    %v1160 = vld [vmem:[#allocation2 + $0xe2] sm:$0xff]
    %v1161 = vld [vmem:[#allocation2 + $0xf2] sm:$0xff]
    %v1162 = vld [vmem:[#allocation2 + $0xfa] sm:$0xff]
    %v1163 = vld [vmem:[#allocation2 + $0x10a] sm:$0xff]
    %v1164 = vld [vmem:[#allocation2 + $0x112] sm:$0xff]
    %v1165 = vld [vmem:[#allocation2 + $0x122] sm:$0xff]
    %v1166 = vld [vmem:[#allocation2 + $0x12a] sm:$0xff]
    %v1167 = vld [vmem:[#allocation2 + $0x13a] sm:$0xff]
    %v1168 = vld [vmem:[#allocation2 + $0x142] sm:$0xff]
    %v1169 = vld [vmem:[#allocation2 + $0x152] sm:$0xff]
    %v1170 = vld [vmem:[#allocation2 + $0x15a] sm:$0xff]
    %v1171 = vld [vmem:[#allocation2 + $0x16a] sm:$0xff]
    %v1172 = vld [vmem:[#allocation2 + $0x172] sm:$0xff]
    %v1173 = vld [vmem:[#allocation2 + $0x1b2] sm:$0xff]
    %v1174 = vld [vmem:[#allocation2 + $0x1ba] sm:$0xff]
    %v1175 = vld [vmem:[#allocation2 + $0x1ca] sm:$0xff]
    %v1176 = vld [vmem:[#allocation2 + $0x1d2] sm:$0xff]
    %v1177 = vld [vmem:[#allocation2 + $0x1e2] sm:$0xff]
    %v1178 = vld [vmem:[#allocation2 + $0x1ea] sm:$0xff]
    %v1179 = vld [vmem:[#allocation2 + $0x1fa] sm:$0xff]
    %v1180 = vld [vmem:[#allocation2 + $0x202] sm:$0xff]
    %v1181 = vld [vmem:[#allocation2 + $0x212] sm:$0xff]
    %v1182 = vld [vmem:[#allocation2 + $0x21a] sm:$0xff]
    %v1183 = vld [vmem:[#allocation2 + $0x22a] sm:$0xff]
    %v1184 = vld [vmem:[#allocation2 + $0x232] sm:$0xff]
    %v1185 = vld [vmem:[#allocation2 + $0x242] sm:$0xff]
    %v1186 = vld [vmem:[#allocation2 + $0x24a] sm:$0xff]
    %v1187 = vld [vmem:[#allocation2 + $0x25a] sm:$0xff]
    %v1188 = vld [vmem:[#allocation2 + $0x262] sm:$0xff]
    %v1189 = vld [vmem:[#allocation2 + $0x272] sm:$0xff]
    %v1190 = vld [vmem:[#allocation2 + $0x27a] sm:$0xff]
    %v1191 = vld [vmem:[#allocation2 + $0x28a] sm:$0xff]
    %v1192 = vld [vmem:[#allocation2 + $0x292] sm:$0xff]
    %v1193 = vld [vmem:[#allocation2 + $0x2a2] sm:$0xff]
    %v1194 = vld [vmem:[#allocation2 + $0x2aa] sm:$0xff]
    %v1195 = vld [vmem:[#allocation2 + $0x2ba] sm:$0xff]
    %v1196 = vld [vmem:[#allocation2 + $0x2c2] sm:$0xff]
    %v1197 = vld [vmem:[#allocation2 + $0x2d2] sm:$0xff]
    %v1198 = vld [vmem:[#allocation2 + $0x2da] sm:$0xff]
    %v1199 = vld [vmem:[#allocation2 + $0x2ea] sm:$0xff]
    %v1200 = vld [vmem:[#allocation2 + $0x2f2] sm:$0xff]
    %v1201 = vld [vmem:[#allocation2 + $0x302] sm:$0xff]
    %v1202 = vld [vmem:[#allocation2 + $0x30a] sm:$0xff]
    %v1203 = vld [vmem:[#allocation2 + $0x31a] sm:$0xff]
    %v1204 = vld [vmem:[#allocation2 + $0x322] sm:$0xff]
    %v1205 = vpack.c.bf16 %v1142, %v1141
    %v1206 = vpack.c.bf16 %v1144, %v1143
    %v1207 = vpack.c.bf16 %v1146, %v1145
    %v1208 = vpack.c.bf16 %v1148, %v1147
    %v1209 = vpack.c.bf16 %v1150, %v1149
    %v1210 = vpack.c.bf16 %v1152, %v1151
    %v1211 = vpack.c.bf16 %v1154, %v1153
    %v1212 = vpack.c.bf16 %v1156, %v1155
    %v1213 = vpack.c.bf16 %v1158, %v1157
    %v1214 = vpack.c.bf16 %v1160, %v1159
    %v1215 = vpack.c.bf16 %v1162, %v1161
    %v1216 = vpack.c.bf16 %v1164, %v1163
    %v1217 = vpack.c.bf16 %v1166, %v1165
    %v1218 = vpack.c.bf16 %v1168, %v1167
    %v1219 = vpack.c.bf16 %v1170, %v1169
    %v1220 = vpack.c.bf16 %v1172, %v1171
    %v1221 = vpack.c.bf16 %v1174, %v1173
    %v1222 = vpack.c.bf16 %v1176, %v1175
    %v1223 = vpack.c.bf16 %v1178, %v1177
    %v1224 = vpack.c.bf16 %v1180, %v1179
    %v1225 = vpack.c.bf16 %v1182, %v1181
    %v1226 = vpack.c.bf16 %v1184, %v1183
    %v1227 = vpack.c.bf16 %v1186, %v1185
    %v1228 = vpack.c.bf16 %v1188, %v1187
    %v1229 = vpack.c.bf16 %v1190, %v1189
    %v1230 = vpack.c.bf16 %v1192, %v1191
    %v1231 = vpack.c.bf16 %v1194, %v1193
    %v1232 = vpack.c.bf16 %v1196, %v1195
    %v1233 = vpack.c.bf16 %v1198, %v1197
    %v1234 = vpack.c.bf16 %v1200, %v1199
    %v1235 = vpack.c.bf16 %v1202, %v1201
    %v1236 = vpack.c.bf16 %v1204, %v1203
    %s1237 = scalar_lea.vmem %s1, 128
    %v1238 = vld [vmem:[%s1237] sm:$0xf]
    %v1239 = vld [vmem:[%s1237 + $0x4] sm:$0xf]
    %v1240 = vld [vmem:[%s1237 + $0x8] sm:$0xf]
    %v1241 = vld [vmem:[%s1237 + $0xc] sm:$0xf]
    %v1242 = vld [vmem:[%s1237 + $0x10] sm:$0xf]
    %v1243 = vld [vmem:[%s1237 + $0x14] sm:$0xf]
    %v1244 = vld [vmem:[%s1237 + $0x18] sm:$0xf]
    %v1245 = vld [vmem:[%s1237 + $0x1c] sm:$0xf]
    %v1246 = vld [vmem:[%s1237 + $0x20] sm:$0xf]
    %v1247 = vld [vmem:[%s1237 + $0x24] sm:$0xf]
    %v1248 = vld [vmem:[%s1237 + $0x28] sm:$0xf]
    %v1249 = vld [vmem:[%s1237 + $0x2c] sm:$0xf]
    %v1250 = vld [vmem:[%s1237 + $0x30] sm:$0xf]
    %v1251 = vld [vmem:[%s1237 + $0x34] sm:$0xf]
    %v1252 = vld [vmem:[%s1237 + $0x38] sm:$0xf]
    %v1253 = vld [vmem:[%s1237 + $0x3c] sm:$0xf]
    %v1270 = vunpack.c.l.b16 %v1238
    %v1271 = vunpack.c.l.b16 %v1239
    %v1272 = vunpack.c.l.b16 %v1240
    %v1273 = vunpack.c.l.b16 %v1241
    %v1274 = vunpack.c.l.b16 %v1242
    %v1275 = vunpack.c.l.b16 %v1243
    %v1276 = vunpack.c.l.b16 %v1244
    %v1277 = vunpack.c.l.b16 %v1245
    %v1278 = vunpack.c.l.b16 %v1246
    %v1279 = vunpack.c.l.b16 %v1247
    %v1280 = vunpack.c.l.b16 %v1248
    %v1281 = vunpack.c.l.b16 %v1249
    %v1282 = vunpack.c.l.b16 %v1250
    %v1283 = vunpack.c.l.b16 %v1251
    %v1284 = vunpack.c.l.b16 %v1252
    %v1285 = vunpack.c.l.b16 %v1253
    %v1286 = vpack.c.b16 %v1271, %v1270
    %v1287 = vpack.c.b16 %v1273, %v1272
    %v1288 = vpack.c.b16 %v1275, %v1274
    %v1289 = vpack.c.b16 %v1277, %v1276
    %v1290 = vpack.c.b16 %v1279, %v1278
    %v1291 = vpack.c.b16 %v1281, %v1280
    %v1292 = vpack.c.b16 %v1283, %v1282
    %v1293 = vpack.c.b16 %v1285, %v1284
    %1302 = vmatprep.subr.bf16.mxu0 0
    %1303 = vmatpush1.bf16.msra.mxu0 %v1293
    %1304 = vmatprep.subr.bf16.mxu0 0
    %1305 = vmatpush1.bf16.msra.mxu0 %v1292
    %1306 = vmatprep.subr.bf16.mxu0 0
    %1307 = vmatpush1.bf16.msra.mxu0 %v1291
    %1308 = vmatprep.subr.bf16.mxu0 0
    %1309 = vmatpush1.bf16.msra.mxu0 %v1290
    %1310 = vmatprep.subr.bf16.mxu0 0
    %1311 = vmatpush1.bf16.msra.mxu0 %v1289
    %1312 = vmatprep.subr.bf16.mxu0 0
    %1313 = vmatpush1.bf16.msra.mxu0 %v1288
    %1314 = vmatprep.subr.bf16.mxu0 0
    %1315 = vmatpush1.bf16.msra.mxu0 %v1287
    %1316 = vmatprep.subr.bf16.mxu0 0
    %1317 = vmatpush1.bf16.msra.mxu0 %v1286
    %1318 = vmatprep.subr.bf16.mxu0 0
    %1319 = vmatpush2.bf16.msra.mxu0 0
    %1320 = vmatprep.subr.bf16.mxu0 0
    %1321 = vmatpush2.bf16.msra.mxu0 0
    %1322 = vmatprep.subr.bf16.mxu0 0
    %1323 = vmatpush2.bf16.msra.mxu0 0
    %1324 = vmatprep.subr.bf16.mxu0 0
    %1325 = vmatpush2.bf16.msra.mxu0 0
    %1326 = vmatprep.subr.bf16.mxu0 0
    %1327 = vmatpush2.bf16.msra.mxu0 0
    %1328 = vmatprep.subr.bf16.mxu0 0
    %1329 = vmatpush2.bf16.msra.mxu0 0
    %1330 = vmatprep.subr.bf16.mxu0 0
    %1331 = vmatpush2.bf16.msra.mxu0 0
    %1332 = vmatprep.subr.bf16.mxu0 0
    %1333 = vmatpush2.bf16.msra.mxu0 0
    %1334 = vmatprep.mubr.bf16.mxu0 0
    %1335 = vmatmul.mubr.bf16.gmra.mxu0 %v1205
    %v1336 = vpop.f32.mrf.mxu0
    %v1337 = vadd.f32 0.0, %v1336
    %v1338 = vpop.f32.mrf.mxu0
    %v1339 = vpop.f32.mrf.mxu0
    %v1340 = vadd.f32 0.0, %v1339
    %v1341 = vpop.f32.mrf.mxu0
    %1342 = vmatprep.mubr.bf16.mxu0 0
    %1343 = vmatmul.mubr.bf16.gmra.mxu0 %v1206
    %v1344 = vpop.f32.mrf.mxu0
    %v1345 = vadd.f32 0.0, %v1344
    %v1346 = vpop.f32.mrf.mxu0
    %v1347 = vpop.f32.mrf.mxu0
    %v1348 = vadd.f32 0.0, %v1347
    %v1349 = vpop.f32.mrf.mxu0
    %1350 = vmatprep.mubr.bf16.mxu0 0
    %1351 = vmatmul.mubr.bf16.gmra.mxu0 %v1207
    %v1352 = vpop.f32.mrf.mxu0
    %v1353 = vadd.f32 0.0, %v1352
    %v1354 = vpop.f32.mrf.mxu0
    %v1355 = vpop.f32.mrf.mxu0
    %v1356 = vadd.f32 0.0, %v1355
    %v1357 = vpop.f32.mrf.mxu0
    %1358 = vmatprep.mubr.bf16.mxu0 0
    %1359 = vmatmul.mubr.bf16.gmra.mxu0 %v1208
    %v1360 = vpop.f32.mrf.mxu0
    %v1361 = vadd.f32 0.0, %v1360
    %v1362 = vpop.f32.mrf.mxu0
    %v1363 = vpop.f32.mrf.mxu0
    %v1364 = vadd.f32 0.0, %v1363
    %v1365 = vpop.f32.mrf.mxu0
    %1366 = vmatprep.mubr.bf16.mxu0 0
    %1367 = vmatmul.mubr.bf16.gmra.mxu0 %v1209
    %v1368 = vpop.f32.mrf.mxu0
    %v1369 = vadd.f32 0.0, %v1368
    %v1370 = vpop.f32.mrf.mxu0
    %v1371 = vpop.f32.mrf.mxu0
    %v1372 = vadd.f32 0.0, %v1371
    %v1373 = vpop.f32.mrf.mxu0
    %1374 = vmatprep.mubr.bf16.mxu0 0
    %1375 = vmatmul.mubr.bf16.gmra.mxu0 %v1210
    %v1376 = vpop.f32.mrf.mxu0
    %v1377 = vadd.f32 0.0, %v1376
    %v1378 = vpop.f32.mrf.mxu0
    %v1379 = vpop.f32.mrf.mxu0
    %v1380 = vadd.f32 0.0, %v1379
    %v1381 = vpop.f32.mrf.mxu0
    %1382 = vmatprep.mubr.bf16.mxu0 0
    %1383 = vmatmul.mubr.bf16.gmra.mxu0 %v1211
    %v1384 = vpop.f32.mrf.mxu0
    %v1385 = vadd.f32 0.0, %v1384
    %v1386 = vpop.f32.mrf.mxu0
    %v1387 = vpop.f32.mrf.mxu0
    %v1388 = vadd.f32 0.0, %v1387
    %v1389 = vpop.f32.mrf.mxu0
    %1390 = vmatprep.mubr.bf16.mxu0 0
    %1391 = vmatmul.mubr.bf16.gmra.mxu0 %v1212
    %v1392 = vpop.f32.mrf.mxu0
    %v1393 = vadd.f32 0.0, %v1392
    %v1394 = vpop.f32.mrf.mxu0
    %v1395 = vpop.f32.mrf.mxu0
    %v1396 = vadd.f32 0.0, %v1395
    %v1397 = vpop.f32.mrf.mxu0
    %1398 = vmatprep.mubr.bf16.mxu0 0
    %1399 = vmatmul.mubr.bf16.gmra.mxu0 %v1213
    %v1400 = vpop.f32.mrf.mxu0
    %v1401 = vadd.f32 0.0, %v1400
    %v1402 = vpop.f32.mrf.mxu0
    %v1403 = vpop.f32.mrf.mxu0
    %v1404 = vadd.f32 0.0, %v1403
    %v1405 = vpop.f32.mrf.mxu0
    %1406 = vmatprep.mubr.bf16.mxu0 0
    %1407 = vmatmul.mubr.bf16.gmra.mxu0 %v1214
    %v1408 = vpop.f32.mrf.mxu0
    %v1409 = vadd.f32 0.0, %v1408
    %v1410 = vpop.f32.mrf.mxu0
    %v1411 = vpop.f32.mrf.mxu0
    %v1412 = vadd.f32 0.0, %v1411
    %v1413 = vpop.f32.mrf.mxu0
    %1414 = vmatprep.mubr.bf16.mxu0 0
    %1415 = vmatmul.mubr.bf16.gmra.mxu0 %v1215
    %v1416 = vpop.f32.mrf.mxu0
    %v1417 = vadd.f32 0.0, %v1416
    %v1418 = vpop.f32.mrf.mxu0
    %v1419 = vpop.f32.mrf.mxu0
    %v1420 = vadd.f32 0.0, %v1419
    %v1421 = vpop.f32.mrf.mxu0
    %1422 = vmatprep.mubr.bf16.mxu0 0
    %1423 = vmatmul.mubr.bf16.gmra.mxu0 %v1216
    %v1424 = vpop.f32.mrf.mxu0
    %v1425 = vadd.f32 0.0, %v1424
    %v1426 = vpop.f32.mrf.mxu0
    %v1427 = vpop.f32.mrf.mxu0
    %v1428 = vadd.f32 0.0, %v1427
    %v1429 = vpop.f32.mrf.mxu0
    %1430 = vmatprep.mubr.bf16.mxu0 0
    %1431 = vmatmul.mubr.bf16.gmra.mxu0 %v1217
    %v1432 = vpop.f32.mrf.mxu0
    %v1433 = vadd.f32 0.0, %v1432
    %v1434 = vpop.f32.mrf.mxu0
    %v1435 = vpop.f32.mrf.mxu0
    %v1436 = vadd.f32 0.0, %v1435
    %v1437 = vpop.f32.mrf.mxu0
    %1438 = vmatprep.mubr.bf16.mxu0 0
    %1439 = vmatmul.mubr.bf16.gmra.mxu0 %v1218
    %v1440 = vpop.f32.mrf.mxu0
    %v1441 = vadd.f32 0.0, %v1440
    %v1442 = vpop.f32.mrf.mxu0
    %v1443 = vpop.f32.mrf.mxu0
    %v1444 = vadd.f32 0.0, %v1443
    %v1445 = vpop.f32.mrf.mxu0
    %1446 = vmatprep.mubr.bf16.mxu0 0
    %1447 = vmatmul.mubr.bf16.gmra.mxu0 %v1219
    %v1448 = vpop.f32.mrf.mxu0
    %v1449 = vadd.f32 0.0, %v1448
    %v1450 = vpop.f32.mrf.mxu0
    %v1451 = vpop.f32.mrf.mxu0
    %v1452 = vadd.f32 0.0, %v1451
    %v1453 = vpop.f32.mrf.mxu0
    %1454 = vmatprep.mubr.bf16.mxu0 0
    %1455 = vmatmul.mubr.bf16.gmra.mxu0 %v1220
    %v1456 = vpop.f32.mrf.mxu0
    %v1457 = vadd.f32 0.0, %v1456
    %v1458 = vpop.f32.mrf.mxu0
    %v1459 = vpop.f32.mrf.mxu0
    %v1460 = vadd.f32 0.0, %v1459
    %v1461 = vpop.f32.mrf.mxu0
    %1462 = vmatprep.mubr.bf16.mxu0 0
    %1463 = vmatmul.mubr.bf16.gmra.mxu0 %v1221
    %v1464 = vpop.f32.mrf.mxu0
    %v1465 = vadd.f32 0.0, %v1464
    %v1466 = vpop.f32.mrf.mxu0
    %v1467 = vpop.f32.mrf.mxu0
    %v1468 = vadd.f32 0.0, %v1467
    %v1469 = vpop.f32.mrf.mxu0
    %1470 = vmatprep.mubr.bf16.mxu0 0
    %1471 = vmatmul.mubr.bf16.gmra.mxu0 %v1222
    %v1472 = vpop.f32.mrf.mxu0
    %v1473 = vadd.f32 0.0, %v1472
    %v1474 = vpop.f32.mrf.mxu0
    %v1475 = vpop.f32.mrf.mxu0
    %v1476 = vadd.f32 0.0, %v1475
    %v1477 = vpop.f32.mrf.mxu0
    %1478 = vmatprep.mubr.bf16.mxu0 0
    %1479 = vmatmul.mubr.bf16.gmra.mxu0 %v1223
    %v1480 = vpop.f32.mrf.mxu0
    %v1481 = vadd.f32 0.0, %v1480
    %v1482 = vpop.f32.mrf.mxu0
    %v1483 = vpop.f32.mrf.mxu0
    %v1484 = vadd.f32 0.0, %v1483
    %v1485 = vpop.f32.mrf.mxu0
    %1486 = vmatprep.mubr.bf16.mxu0 0
    %1487 = vmatmul.mubr.bf16.gmra.mxu0 %v1224
    %v1488 = vpop.f32.mrf.mxu0
    %v1489 = vadd.f32 0.0, %v1488
    %v1490 = vpop.f32.mrf.mxu0
    %v1491 = vpop.f32.mrf.mxu0
    %v1492 = vadd.f32 0.0, %v1491
    %v1493 = vpop.f32.mrf.mxu0
    %1494 = vmatprep.mubr.bf16.mxu0 0
    %1495 = vmatmul.mubr.bf16.gmra.mxu0 %v1225
    %v1496 = vpop.f32.mrf.mxu0
    %v1497 = vadd.f32 0.0, %v1496
    %v1498 = vpop.f32.mrf.mxu0
    %v1499 = vpop.f32.mrf.mxu0
    %v1500 = vadd.f32 0.0, %v1499
    %v1501 = vpop.f32.mrf.mxu0
    %1502 = vmatprep.mubr.bf16.mxu0 0
    %1503 = vmatmul.mubr.bf16.gmra.mxu0 %v1226
    %v1504 = vpop.f32.mrf.mxu0
    %v1505 = vadd.f32 0.0, %v1504
    %v1506 = vpop.f32.mrf.mxu0
    %v1507 = vpop.f32.mrf.mxu0
    %v1508 = vadd.f32 0.0, %v1507
    %v1509 = vpop.f32.mrf.mxu0
    %1510 = vmatprep.mubr.bf16.mxu0 0
    %1511 = vmatmul.mubr.bf16.gmra.mxu0 %v1227
    %v1512 = vpop.f32.mrf.mxu0
    %v1513 = vadd.f32 0.0, %v1512
    %v1514 = vpop.f32.mrf.mxu0
    %v1515 = vpop.f32.mrf.mxu0
    %v1516 = vadd.f32 0.0, %v1515
    %v1517 = vpop.f32.mrf.mxu0
    %1518 = vmatprep.mubr.bf16.mxu0 0
    %1519 = vmatmul.mubr.bf16.gmra.mxu0 %v1228
    %v1520 = vpop.f32.mrf.mxu0
    %v1521 = vadd.f32 0.0, %v1520
    %v1522 = vpop.f32.mrf.mxu0
    %v1523 = vpop.f32.mrf.mxu0
    %v1524 = vadd.f32 0.0, %v1523
    %v1525 = vpop.f32.mrf.mxu0
    %1526 = vmatprep.mubr.bf16.mxu0 0
    %1527 = vmatmul.mubr.bf16.gmra.mxu0 %v1229
    %v1528 = vpop.f32.mrf.mxu0
    %v1529 = vadd.f32 0.0, %v1528
    %v1530 = vpop.f32.mrf.mxu0
    %v1531 = vpop.f32.mrf.mxu0
    %v1532 = vadd.f32 0.0, %v1531
    %v1533 = vpop.f32.mrf.mxu0
    %1534 = vmatprep.mubr.bf16.mxu0 0
    %1535 = vmatmul.mubr.bf16.gmra.mxu0 %v1230
    %v1536 = vpop.f32.mrf.mxu0
    %v1537 = vadd.f32 0.0, %v1536
    %v1538 = vpop.f32.mrf.mxu0
    %v1539 = vpop.f32.mrf.mxu0
    %v1540 = vadd.f32 0.0, %v1539
    %v1541 = vpop.f32.mrf.mxu0
    %1542 = vmatprep.mubr.bf16.mxu0 0
    %1543 = vmatmul.mubr.bf16.gmra.mxu0 %v1231
    %v1544 = vpop.f32.mrf.mxu0
    %v1545 = vadd.f32 0.0, %v1544
    %v1546 = vpop.f32.mrf.mxu0
    %v1547 = vpop.f32.mrf.mxu0
    %v1548 = vadd.f32 0.0, %v1547
    %v1549 = vpop.f32.mrf.mxu0
    %1550 = vmatprep.mubr.bf16.mxu0 0
    %1551 = vmatmul.mubr.bf16.gmra.mxu0 %v1232
    %v1552 = vpop.f32.mrf.mxu0
    %v1553 = vadd.f32 0.0, %v1552
    %v1554 = vpop.f32.mrf.mxu0
    %v1555 = vpop.f32.mrf.mxu0
    %v1556 = vadd.f32 0.0, %v1555
    %v1557 = vpop.f32.mrf.mxu0
    %1558 = vmatprep.mubr.bf16.mxu0 0
    %1559 = vmatmul.mubr.bf16.gmra.mxu0 %v1233
    %v1560 = vpop.f32.mrf.mxu0
    %v1561 = vadd.f32 0.0, %v1560
    %v1562 = vpop.f32.mrf.mxu0
    %v1563 = vpop.f32.mrf.mxu0
    %v1564 = vadd.f32 0.0, %v1563
    %v1565 = vpop.f32.mrf.mxu0
    %1566 = vmatprep.mubr.bf16.mxu0 0
    %1567 = vmatmul.mubr.bf16.gmra.mxu0 %v1234
    %v1568 = vpop.f32.mrf.mxu0
    %v1569 = vadd.f32 0.0, %v1568
    %v1570 = vpop.f32.mrf.mxu0
    %v1571 = vpop.f32.mrf.mxu0
    %v1572 = vadd.f32 0.0, %v1571
    %v1573 = vpop.f32.mrf.mxu0
    %1574 = vmatprep.mubr.bf16.mxu0 0
    %1575 = vmatmul.mubr.bf16.gmra.mxu0 %v1235
    %v1576 = vpop.f32.mrf.mxu0
    %v1577 = vadd.f32 0.0, %v1576
    %v1578 = vpop.f32.mrf.mxu0
    %v1579 = vpop.f32.mrf.mxu0
    %v1580 = vadd.f32 0.0, %v1579
    %v1581 = vpop.f32.mrf.mxu0
    %1582 = vmatprep.mubr.bf16.mxu0 0
    %1583 = vmatmul.mubr.bf16.gmra.mxu0 %v1236
    %v1584 = vpop.f32.mrf.mxu0
    %v1585 = vadd.f32 0.0, %v1584
    %v1586 = vpop.f32.mrf.mxu0
    %v1587 = vpop.f32.mrf.mxu0
    %v1588 = vadd.f32 0.0, %v1587
    %v1589 = vpop.f32.mrf.mxu0
    %1590 = vdwg.mxu0
    %v1591 = vadd.f32 %v887, %v1337
    %v1592 = vadd.f32 %v890, %v1340
    %v1593 = vadd.f32 %v895, %v1345
    %v1594 = vadd.f32 %v898, %v1348
    %v1595 = vadd.f32 %v903, %v1353
    %v1596 = vadd.f32 %v906, %v1356
    %v1597 = vadd.f32 %v911, %v1361
    %v1598 = vadd.f32 %v914, %v1364
    %v1599 = vadd.f32 %v919, %v1369
    %v1600 = vadd.f32 %v922, %v1372
    %v1601 = vadd.f32 %v927, %v1377
    %v1602 = vadd.f32 %v930, %v1380
    %v1603 = vadd.f32 %v935, %v1385
    %v1604 = vadd.f32 %v938, %v1388
    %v1605 = vadd.f32 %v943, %v1393
    %v1606 = vadd.f32 %v946, %v1396
    %v1607 = vadd.f32 %v951, %v1401
    %v1608 = vadd.f32 %v954, %v1404
    %v1609 = vadd.f32 %v959, %v1409
    %v1610 = vadd.f32 %v962, %v1412
    %v1611 = vadd.f32 %v967, %v1417
    %v1612 = vadd.f32 %v970, %v1420
    %v1613 = vadd.f32 %v975, %v1425
    %v1614 = vadd.f32 %v978, %v1428
    %v1615 = vadd.f32 %v983, %v1433
    %v1616 = vadd.f32 %v986, %v1436
    %v1617 = vadd.f32 %v991, %v1441
    %v1618 = vadd.f32 %v994, %v1444
    %v1619 = vadd.f32 %v999, %v1449
    %v1620 = vadd.f32 %v1002, %v1452
    %v1621 = vadd.f32 %v1007, %v1457
    %v1622 = vadd.f32 %v1010, %v1460
    %v1623 = vadd.f32 %v1015, %v1465
    %v1624 = vadd.f32 %v1018, %v1468
    %v1625 = vadd.f32 %v1023, %v1473
    %v1626 = vadd.f32 %v1026, %v1476
    %v1627 = vadd.f32 %v1031, %v1481
    %v1628 = vadd.f32 %v1034, %v1484
    %v1629 = vadd.f32 %v1039, %v1489
    %v1630 = vadd.f32 %v1042, %v1492
    %v1631 = vadd.f32 %v1047, %v1497
    %v1632 = vadd.f32 %v1050, %v1500
    %v1633 = vadd.f32 %v1055, %v1505
    %v1634 = vadd.f32 %v1058, %v1508
    %v1635 = vadd.f32 %v1063, %v1513
    %v1636 = vadd.f32 %v1066, %v1516
    %v1637 = vadd.f32 %v1071, %v1521
    %v1638 = vadd.f32 %v1074, %v1524
    %v1639 = vadd.f32 %v1079, %v1529
    %v1640 = vadd.f32 %v1082, %v1532
    %v1641 = vadd.f32 %v1087, %v1537
    %v1642 = vadd.f32 %v1090, %v1540
    %v1643 = vadd.f32 %v1095, %v1545
    %v1644 = vadd.f32 %v1098, %v1548
    %v1645 = vadd.f32 %v1103, %v1553
    %v1646 = vadd.f32 %v1106, %v1556
    %v1647 = vadd.f32 %v1111, %v1561
    %v1648 = vadd.f32 %v1114, %v1564
    %v1649 = vadd.f32 %v1119, %v1569
    %v1650 = vadd.f32 %v1122, %v1572
    %v1651 = vadd.f32 %v1127, %v1577
    %v1652 = vadd.f32 %v1130, %v1580
    %v1653 = vadd.f32 %v1135, %v1585
    %v1654 = vadd.f32 %v1138, %v1588
    %v1655 = vld [vmem:[%s177] sm:$0xff]
    %v1656 = vld [vmem:[%s177 + $0x8] sm:$0xff]
    %v1657 = vld [vmem:[%s177 + $0x18] sm:$0xff]
    %v1658 = vld [vmem:[%s177 + $0x20] sm:$0xff]
    %v1659 = vld [vmem:[%s177 + $0x30] sm:$0xff]
    %v1660 = vld [vmem:[%s177 + $0x38] sm:$0xff]
    %v1661 = vld [vmem:[%s177 + $0x48] sm:$0xff]
    %v1662 = vld [vmem:[%s177 + $0x50] sm:$0xff]
    %v1663 = vld [vmem:[%s177 + $0x60] sm:$0xff]
    %v1664 = vld [vmem:[%s177 + $0x68] sm:$0xff]
    %v1665 = vld [vmem:[%s177 + $0x78] sm:$0xff]
    %v1666 = vld [vmem:[%s177 + $0x80] sm:$0xff]
    %v1667 = vld [vmem:[%s177 + $0x90] sm:$0xff]
    %v1668 = vld [vmem:[%s177 + $0x98] sm:$0xff]
    %v1669 = vld [vmem:[%s177 + $0xa8] sm:$0xff]
    %v1670 = vld [vmem:[%s177 + $0xb0] sm:$0xff]
    %v1671 = vld [vmem:[%s177 + $0xc0] sm:$0xff]
    %v1672 = vld [vmem:[%s177 + $0xc8] sm:$0xff]
    %v1673 = vld [vmem:[%s177 + $0xd8] sm:$0xff]
    %v1674 = vld [vmem:[%s177 + $0xe0] sm:$0xff]
    %v1675 = vld [vmem:[%s177 + $0xf0] sm:$0xff]
    %v1676 = vld [vmem:[%s177 + $0xf8] sm:$0xff]
    %v1677 = vld [vmem:[%s177 + $0x108] sm:$0xff]
    %v1678 = vld [vmem:[%s177 + $0x110] sm:$0xff]
    %v1679 = vld [vmem:[%s177 + $0x120] sm:$0xff]
    %v1680 = vld [vmem:[%s177 + $0x128] sm:$0xff]
    %v1681 = vld [vmem:[%s177 + $0x138] sm:$0xff]
    %v1682 = vld [vmem:[%s177 + $0x140] sm:$0xff]
    %v1683 = vld [vmem:[%s177 + $0x150] sm:$0xff]
    %v1684 = vld [vmem:[%s177 + $0x158] sm:$0xff]
    %v1685 = vld [vmem:[%s177 + $0x168] sm:$0xff]
    %v1686 = vld [vmem:[%s177 + $0x170] sm:$0xff]
    %v1687 = vld [vmem:[%s177 + $0x1b0] sm:$0xff]
    %v1688 = vld [vmem:[%s177 + $0x1b8] sm:$0xff]
    %v1689 = vld [vmem:[%s177 + $0x1c8] sm:$0xff]
    %v1690 = vld [vmem:[%s177 + $0x1d0] sm:$0xff]
    %v1691 = vld [vmem:[%s177 + $0x1e0] sm:$0xff]
    %v1692 = vld [vmem:[%s177 + $0x1e8] sm:$0xff]
    %v1693 = vld [vmem:[%s177 + $0x1f8] sm:$0xff]
    %v1694 = vld [vmem:[%s177 + $0x200] sm:$0xff]
    %v1695 = vld [vmem:[%s177 + $0x210] sm:$0xff]
    %v1696 = vld [vmem:[%s177 + $0x218] sm:$0xff]
    %v1697 = vld [vmem:[%s177 + $0x228] sm:$0xff]
    %v1698 = vld [vmem:[%s177 + $0x230] sm:$0xff]
    %v1699 = vld [vmem:[%s177 + $0x240] sm:$0xff]
    %v1700 = vld [vmem:[%s177 + $0x248] sm:$0xff]
    %v1701 = vld [vmem:[%s177 + $0x258] sm:$0xff]
    %v1702 = vld [vmem:[%s177 + $0x260] sm:$0xff]
    %v1703 = vld [vmem:[%s177 + $0x270] sm:$0xff]
    %v1704 = vld [vmem:[%s177 + $0x278] sm:$0xff]
    %v1705 = vld [vmem:[%s177 + $0x288] sm:$0xff]
    %v1706 = vld [vmem:[%s177 + $0x290] sm:$0xff]
    %v1707 = vld [vmem:[%s177 + $0x2a0] sm:$0xff]
    %v1708 = vld [vmem:[%s177 + $0x2a8] sm:$0xff]
    %v1709 = vld [vmem:[%s177 + $0x2b8] sm:$0xff]
    %v1710 = vld [vmem:[%s177 + $0x2c0] sm:$0xff]
    %v1711 = vld [vmem:[%s177 + $0x2d0] sm:$0xff]
    %v1712 = vld [vmem:[%s177 + $0x2d8] sm:$0xff]
    %v1713 = vld [vmem:[%s177 + $0x2e8] sm:$0xff]
    %v1714 = vld [vmem:[%s177 + $0x2f0] sm:$0xff]
    %v1715 = vld [vmem:[%s177 + $0x300] sm:$0xff]
    %v1716 = vld [vmem:[%s177 + $0x308] sm:$0xff]
    %v1717 = vld [vmem:[%s177 + $0x318] sm:$0xff]
    %v1718 = vld [vmem:[%s177 + $0x320] sm:$0xff]
    %v1719 = vpack.c.bf16 %v1656, %v1655
    %v1720 = vpack.c.bf16 %v1658, %v1657
    %v1721 = vpack.c.bf16 %v1660, %v1659
    %v1722 = vpack.c.bf16 %v1662, %v1661
    %v1723 = vpack.c.bf16 %v1664, %v1663
    %v1724 = vpack.c.bf16 %v1666, %v1665
    %v1725 = vpack.c.bf16 %v1668, %v1667
    %v1726 = vpack.c.bf16 %v1670, %v1669
    %v1727 = vpack.c.bf16 %v1672, %v1671
    %v1728 = vpack.c.bf16 %v1674, %v1673
    %v1729 = vpack.c.bf16 %v1676, %v1675
    %v1730 = vpack.c.bf16 %v1678, %v1677
    %v1731 = vpack.c.bf16 %v1680, %v1679
    %v1732 = vpack.c.bf16 %v1682, %v1681
    %v1733 = vpack.c.bf16 %v1684, %v1683
    %v1734 = vpack.c.bf16 %v1686, %v1685
    %v1735 = vpack.c.bf16 %v1688, %v1687
    %v1736 = vpack.c.bf16 %v1690, %v1689
    %v1737 = vpack.c.bf16 %v1692, %v1691
    %v1738 = vpack.c.bf16 %v1694, %v1693
    %v1739 = vpack.c.bf16 %v1696, %v1695
    %v1740 = vpack.c.bf16 %v1698, %v1697
    %v1741 = vpack.c.bf16 %v1700, %v1699
    %v1742 = vpack.c.bf16 %v1702, %v1701
    %v1743 = vpack.c.bf16 %v1704, %v1703
    %v1744 = vpack.c.bf16 %v1706, %v1705
    %v1745 = vpack.c.bf16 %v1708, %v1707
    %v1746 = vpack.c.bf16 %v1710, %v1709
    %v1747 = vpack.c.bf16 %v1712, %v1711
    %v1748 = vpack.c.bf16 %v1714, %v1713
    %v1749 = vpack.c.bf16 %v1716, %v1715
    %v1750 = vpack.c.bf16 %v1718, %v1717
    %s1751 = scalar_lea.vmem %s1, 192
    %v1752 = vld [vmem:[%s1751] sm:$0xf]
    %v1753 = vld [vmem:[%s1751 + $0x4] sm:$0xf]
    %v1754 = vld [vmem:[%s1751 + $0x8] sm:$0xf]
    %v1755 = vld [vmem:[%s1751 + $0xc] sm:$0xf]
    %v1756 = vld [vmem:[%s1751 + $0x10] sm:$0xf]
    %v1757 = vld [vmem:[%s1751 + $0x14] sm:$0xf]
    %v1758 = vld [vmem:[%s1751 + $0x18] sm:$0xf]
    %v1759 = vld [vmem:[%s1751 + $0x1c] sm:$0xf]
    %v1760 = vld [vmem:[%s1751 + $0x20] sm:$0xf]
    %v1761 = vld [vmem:[%s1751 + $0x24] sm:$0xf]
    %v1762 = vld [vmem:[%s1751 + $0x28] sm:$0xf]
    %v1763 = vld [vmem:[%s1751 + $0x2c] sm:$0xf]
    %v1764 = vld [vmem:[%s1751 + $0x30] sm:$0xf]
    %v1765 = vld [vmem:[%s1751 + $0x34] sm:$0xf]
    %v1766 = vld [vmem:[%s1751 + $0x38] sm:$0xf]
    %v1767 = vld [vmem:[%s1751 + $0x3c] sm:$0xf]
    %v1784 = vunpack.c.l.b16 %v1752
    %v1785 = vunpack.c.l.b16 %v1753
    %v1786 = vunpack.c.l.b16 %v1754
    %v1787 = vunpack.c.l.b16 %v1755
    %v1788 = vunpack.c.l.b16 %v1756
    %v1789 = vunpack.c.l.b16 %v1757
    %v1790 = vunpack.c.l.b16 %v1758
    %v1791 = vunpack.c.l.b16 %v1759
    %v1792 = vunpack.c.l.b16 %v1760
    %v1793 = vunpack.c.l.b16 %v1761
    %v1794 = vunpack.c.l.b16 %v1762
    %v1795 = vunpack.c.l.b16 %v1763
    %v1796 = vunpack.c.l.b16 %v1764
    %v1797 = vunpack.c.l.b16 %v1765
    %v1798 = vunpack.c.l.b16 %v1766
    %v1799 = vunpack.c.l.b16 %v1767
    %v1800 = vpack.c.b16 %v1785, %v1784
    %v1801 = vpack.c.b16 %v1787, %v1786
    %v1802 = vpack.c.b16 %v1789, %v1788
    %v1803 = vpack.c.b16 %v1791, %v1790
    %v1804 = vpack.c.b16 %v1793, %v1792
    %v1805 = vpack.c.b16 %v1795, %v1794
    %v1806 = vpack.c.b16 %v1797, %v1796
    %v1807 = vpack.c.b16 %v1799, %v1798
    %1816 = vmatprep.subr.bf16.mxu0 0
    %1817 = vmatpush1.bf16.msra.mxu0 %v1807
    %1818 = vmatprep.subr.bf16.mxu0 0
    %1819 = vmatpush1.bf16.msra.mxu0 %v1806
    %1820 = vmatprep.subr.bf16.mxu0 0
    %1821 = vmatpush1.bf16.msra.mxu0 %v1805
    %1822 = vmatprep.subr.bf16.mxu0 0
    %1823 = vmatpush1.bf16.msra.mxu0 %v1804
    %1824 = vmatprep.subr.bf16.mxu0 0
    %1825 = vmatpush1.bf16.msra.mxu0 %v1803
    %1826 = vmatprep.subr.bf16.mxu0 0
    %1827 = vmatpush1.bf16.msra.mxu0 %v1802
    %1828 = vmatprep.subr.bf16.mxu0 0
    %1829 = vmatpush1.bf16.msra.mxu0 %v1801
    %1830 = vmatprep.subr.bf16.mxu0 0
    %1831 = vmatpush1.bf16.msra.mxu0 %v1800
    %1832 = vmatprep.subr.bf16.mxu0 0
    %1833 = vmatpush2.bf16.msra.mxu0 0
    %1834 = vmatprep.subr.bf16.mxu0 0
    %1835 = vmatpush2.bf16.msra.mxu0 0
    %1836 = vmatprep.subr.bf16.mxu0 0
    %1837 = vmatpush2.bf16.msra.mxu0 0
    %1838 = vmatprep.subr.bf16.mxu0 0
    %1839 = vmatpush2.bf16.msra.mxu0 0
    %1840 = vmatprep.subr.bf16.mxu0 0
    %1841 = vmatpush2.bf16.msra.mxu0 0
    %1842 = vmatprep.subr.bf16.mxu0 0
    %1843 = vmatpush2.bf16.msra.mxu0 0
    %1844 = vmatprep.subr.bf16.mxu0 0
    %1845 = vmatpush2.bf16.msra.mxu0 0
    %1846 = vmatprep.subr.bf16.mxu0 0
    %1847 = vmatpush2.bf16.msra.mxu0 0
    %1848 = vmatprep.mubr.bf16.mxu0 0
    %1849 = vmatmul.mubr.bf16.gmra.mxu0 %v1719
    %v1850 = vpop.f32.mrf.mxu0
    %v1851 = vadd.f32 0.0, %v1850
    %v1852 = vpop.f32.mrf.mxu0
    %v1853 = vpop.f32.mrf.mxu0
    %v1854 = vadd.f32 0.0, %v1853
    %v1855 = vpop.f32.mrf.mxu0
    %1856 = vmatprep.mubr.bf16.mxu0 0
    %1857 = vmatmul.mubr.bf16.gmra.mxu0 %v1720
    %v1858 = vpop.f32.mrf.mxu0
    %v1859 = vadd.f32 0.0, %v1858
    %v1860 = vpop.f32.mrf.mxu0
    %v1861 = vpop.f32.mrf.mxu0
    %v1862 = vadd.f32 0.0, %v1861
    %v1863 = vpop.f32.mrf.mxu0
    %1864 = vmatprep.mubr.bf16.mxu0 0
    %1865 = vmatmul.mubr.bf16.gmra.mxu0 %v1721
    %v1866 = vpop.f32.mrf.mxu0
    %v1867 = vadd.f32 0.0, %v1866
    %v1868 = vpop.f32.mrf.mxu0
    %v1869 = vpop.f32.mrf.mxu0
    %v1870 = vadd.f32 0.0, %v1869
    %v1871 = vpop.f32.mrf.mxu0
    %1872 = vmatprep.mubr.bf16.mxu0 0
    %1873 = vmatmul.mubr.bf16.gmra.mxu0 %v1722
    %v1874 = vpop.f32.mrf.mxu0
    %v1875 = vadd.f32 0.0, %v1874
    %v1876 = vpop.f32.mrf.mxu0
    %v1877 = vpop.f32.mrf.mxu0
    %v1878 = vadd.f32 0.0, %v1877
    %v1879 = vpop.f32.mrf.mxu0
    %1880 = vmatprep.mubr.bf16.mxu0 0
    %1881 = vmatmul.mubr.bf16.gmra.mxu0 %v1723
    %v1882 = vpop.f32.mrf.mxu0
    %v1883 = vadd.f32 0.0, %v1882
    %v1884 = vpop.f32.mrf.mxu0
    %v1885 = vpop.f32.mrf.mxu0
    %v1886 = vadd.f32 0.0, %v1885
    %v1887 = vpop.f32.mrf.mxu0
    %1888 = vmatprep.mubr.bf16.mxu0 0
    %1889 = vmatmul.mubr.bf16.gmra.mxu0 %v1724
    %v1890 = vpop.f32.mrf.mxu0
    %v1891 = vadd.f32 0.0, %v1890
    %v1892 = vpop.f32.mrf.mxu0
    %v1893 = vpop.f32.mrf.mxu0
    %v1894 = vadd.f32 0.0, %v1893
    %v1895 = vpop.f32.mrf.mxu0
    %1896 = vmatprep.mubr.bf16.mxu0 0
    %1897 = vmatmul.mubr.bf16.gmra.mxu0 %v1725
    %v1898 = vpop.f32.mrf.mxu0
    %v1899 = vadd.f32 0.0, %v1898
    %v1900 = vpop.f32.mrf.mxu0
    %v1901 = vpop.f32.mrf.mxu0
    %v1902 = vadd.f32 0.0, %v1901
    %v1903 = vpop.f32.mrf.mxu0
    %1904 = vmatprep.mubr.bf16.mxu0 0
    %1905 = vmatmul.mubr.bf16.gmra.mxu0 %v1726
    %v1906 = vpop.f32.mrf.mxu0
    %v1907 = vadd.f32 0.0, %v1906
    %v1908 = vpop.f32.mrf.mxu0
    %v1909 = vpop.f32.mrf.mxu0
    %v1910 = vadd.f32 0.0, %v1909
    %v1911 = vpop.f32.mrf.mxu0
    %1912 = vmatprep.mubr.bf16.mxu0 0
    %1913 = vmatmul.mubr.bf16.gmra.mxu0 %v1727
    %v1914 = vpop.f32.mrf.mxu0
    %v1915 = vadd.f32 0.0, %v1914
    %v1916 = vpop.f32.mrf.mxu0
    %v1917 = vpop.f32.mrf.mxu0
    %v1918 = vadd.f32 0.0, %v1917
    %v1919 = vpop.f32.mrf.mxu0
    %1920 = vmatprep.mubr.bf16.mxu0 0
    %1921 = vmatmul.mubr.bf16.gmra.mxu0 %v1728
    %v1922 = vpop.f32.mrf.mxu0
    %v1923 = vadd.f32 0.0, %v1922
    %v1924 = vpop.f32.mrf.mxu0
    %v1925 = vpop.f32.mrf.mxu0
    %v1926 = vadd.f32 0.0, %v1925
    %v1927 = vpop.f32.mrf.mxu0
    %1928 = vmatprep.mubr.bf16.mxu0 0
    %1929 = vmatmul.mubr.bf16.gmra.mxu0 %v1729
    %v1930 = vpop.f32.mrf.mxu0
    %v1931 = vadd.f32 0.0, %v1930
    %v1932 = vpop.f32.mrf.mxu0
    %v1933 = vpop.f32.mrf.mxu0
    %v1934 = vadd.f32 0.0, %v1933
    %v1935 = vpop.f32.mrf.mxu0
    %1936 = vmatprep.mubr.bf16.mxu0 0
    %1937 = vmatmul.mubr.bf16.gmra.mxu0 %v1730
    %v1938 = vpop.f32.mrf.mxu0
    %v1939 = vadd.f32 0.0, %v1938
    %v1940 = vpop.f32.mrf.mxu0
    %v1941 = vpop.f32.mrf.mxu0
    %v1942 = vadd.f32 0.0, %v1941
    %v1943 = vpop.f32.mrf.mxu0
    %1944 = vmatprep.mubr.bf16.mxu0 0
    %1945 = vmatmul.mubr.bf16.gmra.mxu0 %v1731
    %v1946 = vpop.f32.mrf.mxu0
    %v1947 = vadd.f32 0.0, %v1946
    %v1948 = vpop.f32.mrf.mxu0
    %v1949 = vpop.f32.mrf.mxu0
    %v1950 = vadd.f32 0.0, %v1949
    %v1951 = vpop.f32.mrf.mxu0
    %1952 = vmatprep.mubr.bf16.mxu0 0
    %1953 = vmatmul.mubr.bf16.gmra.mxu0 %v1732
    %v1954 = vpop.f32.mrf.mxu0
    %v1955 = vadd.f32 0.0, %v1954
    %v1956 = vpop.f32.mrf.mxu0
    %v1957 = vpop.f32.mrf.mxu0
    %v1958 = vadd.f32 0.0, %v1957
    %v1959 = vpop.f32.mrf.mxu0
    %1960 = vmatprep.mubr.bf16.mxu0 0
    %1961 = vmatmul.mubr.bf16.gmra.mxu0 %v1733
    %v1962 = vpop.f32.mrf.mxu0
    %v1963 = vadd.f32 0.0, %v1962
    %v1964 = vpop.f32.mrf.mxu0
    %v1965 = vpop.f32.mrf.mxu0
    %v1966 = vadd.f32 0.0, %v1965
    %v1967 = vpop.f32.mrf.mxu0
    %1968 = vmatprep.mubr.bf16.mxu0 0
    %1969 = vmatmul.mubr.bf16.gmra.mxu0 %v1734
    %v1970 = vpop.f32.mrf.mxu0
    %v1971 = vadd.f32 0.0, %v1970
    %v1972 = vpop.f32.mrf.mxu0
    %v1973 = vpop.f32.mrf.mxu0
    %v1974 = vadd.f32 0.0, %v1973
    %v1975 = vpop.f32.mrf.mxu0
    %1976 = vmatprep.mubr.bf16.mxu0 0
    %1977 = vmatmul.mubr.bf16.gmra.mxu0 %v1735
    %v1978 = vpop.f32.mrf.mxu0
    %v1979 = vadd.f32 0.0, %v1978
    %v1980 = vpop.f32.mrf.mxu0
    %v1981 = vpop.f32.mrf.mxu0
    %v1982 = vadd.f32 0.0, %v1981
    %v1983 = vpop.f32.mrf.mxu0
    %1984 = vmatprep.mubr.bf16.mxu0 0
    %1985 = vmatmul.mubr.bf16.gmra.mxu0 %v1736
    %v1986 = vpop.f32.mrf.mxu0
    %v1987 = vadd.f32 0.0, %v1986
    %v1988 = vpop.f32.mrf.mxu0
    %v1989 = vpop.f32.mrf.mxu0
    %v1990 = vadd.f32 0.0, %v1989
    %v1991 = vpop.f32.mrf.mxu0
    %1992 = vmatprep.mubr.bf16.mxu0 0
    %1993 = vmatmul.mubr.bf16.gmra.mxu0 %v1737
    %v1994 = vpop.f32.mrf.mxu0
    %v1995 = vadd.f32 0.0, %v1994
    %v1996 = vpop.f32.mrf.mxu0
    %v1997 = vpop.f32.mrf.mxu0
    %v1998 = vadd.f32 0.0, %v1997
    %v1999 = vpop.f32.mrf.mxu0
    %2000 = vmatprep.mubr.bf16.mxu0 0
    %2001 = vmatmul.mubr.bf16.gmra.mxu0 %v1738
    %v2002 = vpop.f32.mrf.mxu0
    %v2003 = vadd.f32 0.0, %v2002
    %v2004 = vpop.f32.mrf.mxu0
    %v2005 = vpop.f32.mrf.mxu0
    %v2006 = vadd.f32 0.0, %v2005
    %v2007 = vpop.f32.mrf.mxu0
    %2008 = vmatprep.mubr.bf16.mxu0 0
    %2009 = vmatmul.mubr.bf16.gmra.mxu0 %v1739
    %v2010 = vpop.f32.mrf.mxu0
    %v2011 = vadd.f32 0.0, %v2010
    %v2012 = vpop.f32.mrf.mxu0
    %v2013 = vpop.f32.mrf.mxu0
    %v2014 = vadd.f32 0.0, %v2013
    %v2015 = vpop.f32.mrf.mxu0
    %2016 = vmatprep.mubr.bf16.mxu0 0
    %2017 = vmatmul.mubr.bf16.gmra.mxu0 %v1740
    %v2018 = vpop.f32.mrf.mxu0
    %v2019 = vadd.f32 0.0, %v2018
    %v2020 = vpop.f32.mrf.mxu0
    %v2021 = vpop.f32.mrf.mxu0
    %v2022 = vadd.f32 0.0, %v2021
    %v2023 = vpop.f32.mrf.mxu0
    %2024 = vmatprep.mubr.bf16.mxu0 0
    %2025 = vmatmul.mubr.bf16.gmra.mxu0 %v1741
    %v2026 = vpop.f32.mrf.mxu0
    %v2027 = vadd.f32 0.0, %v2026
    %v2028 = vpop.f32.mrf.mxu0
    %v2029 = vpop.f32.mrf.mxu0
    %v2030 = vadd.f32 0.0, %v2029
    %v2031 = vpop.f32.mrf.mxu0
    %2032 = vmatprep.mubr.bf16.mxu0 0
    %2033 = vmatmul.mubr.bf16.gmra.mxu0 %v1742
    %v2034 = vpop.f32.mrf.mxu0
    %v2035 = vadd.f32 0.0, %v2034
    %v2036 = vpop.f32.mrf.mxu0
    %v2037 = vpop.f32.mrf.mxu0
    %v2038 = vadd.f32 0.0, %v2037
    %v2039 = vpop.f32.mrf.mxu0
    %2040 = vmatprep.mubr.bf16.mxu0 0
    %2041 = vmatmul.mubr.bf16.gmra.mxu0 %v1743
    %v2042 = vpop.f32.mrf.mxu0
    %v2043 = vadd.f32 0.0, %v2042
    %v2044 = vpop.f32.mrf.mxu0
    %v2045 = vpop.f32.mrf.mxu0
    %v2046 = vadd.f32 0.0, %v2045
    %v2047 = vpop.f32.mrf.mxu0
    %2048 = vmatprep.mubr.bf16.mxu0 0
    %2049 = vmatmul.mubr.bf16.gmra.mxu0 %v1744
    %v2050 = vpop.f32.mrf.mxu0
    %v2051 = vadd.f32 0.0, %v2050
    %v2052 = vpop.f32.mrf.mxu0
    %v2053 = vpop.f32.mrf.mxu0
    %v2054 = vadd.f32 0.0, %v2053
    %v2055 = vpop.f32.mrf.mxu0
    %2056 = vmatprep.mubr.bf16.mxu0 0
    %2057 = vmatmul.mubr.bf16.gmra.mxu0 %v1745
    %v2058 = vpop.f32.mrf.mxu0
    %v2059 = vadd.f32 0.0, %v2058
    %v2060 = vpop.f32.mrf.mxu0
    %v2061 = vpop.f32.mrf.mxu0
    %v2062 = vadd.f32 0.0, %v2061
    %v2063 = vpop.f32.mrf.mxu0
    %2064 = vmatprep.mubr.bf16.mxu0 0
    %2065 = vmatmul.mubr.bf16.gmra.mxu0 %v1746
    %v2066 = vpop.f32.mrf.mxu0
    %v2067 = vadd.f32 0.0, %v2066
    %v2068 = vpop.f32.mrf.mxu0
    %v2069 = vpop.f32.mrf.mxu0
    %v2070 = vadd.f32 0.0, %v2069
    %v2071 = vpop.f32.mrf.mxu0
    %2072 = vmatprep.mubr.bf16.mxu0 0
    %2073 = vmatmul.mubr.bf16.gmra.mxu0 %v1747
    %v2074 = vpop.f32.mrf.mxu0
    %v2075 = vadd.f32 0.0, %v2074
    %v2076 = vpop.f32.mrf.mxu0
    %v2077 = vpop.f32.mrf.mxu0
    %v2078 = vadd.f32 0.0, %v2077
    %v2079 = vpop.f32.mrf.mxu0
    %2080 = vmatprep.mubr.bf16.mxu0 0
    %2081 = vmatmul.mubr.bf16.gmra.mxu0 %v1748
    %v2082 = vpop.f32.mrf.mxu0
    %v2083 = vadd.f32 0.0, %v2082
    %v2084 = vpop.f32.mrf.mxu0
    %v2085 = vpop.f32.mrf.mxu0
    %v2086 = vadd.f32 0.0, %v2085
    %v2087 = vpop.f32.mrf.mxu0
    %2088 = vmatprep.mubr.bf16.mxu0 0
    %2089 = vmatmul.mubr.bf16.gmra.mxu0 %v1749
    %v2090 = vpop.f32.mrf.mxu0
    %v2091 = vadd.f32 0.0, %v2090
    %v2092 = vpop.f32.mrf.mxu0
    %v2093 = vpop.f32.mrf.mxu0
    %v2094 = vadd.f32 0.0, %v2093
    %v2095 = vpop.f32.mrf.mxu0
    %2096 = vmatprep.mubr.bf16.mxu0 0
    %2097 = vmatmul.mubr.bf16.gmra.mxu0 %v1750
    %v2098 = vpop.f32.mrf.mxu0
    %v2099 = vadd.f32 0.0, %v2098
    %v2100 = vpop.f32.mrf.mxu0
    %v2101 = vpop.f32.mrf.mxu0
    %v2102 = vadd.f32 0.0, %v2101
    %v2103 = vpop.f32.mrf.mxu0
    %2104 = vdwg.mxu0
    %v2105 = vadd.f32 %v1591, %v1851
    %v2106 = vadd.f32 %v1592, %v1854
    %v2107 = vadd.f32 %v1593, %v1859
    %v2108 = vadd.f32 %v1594, %v1862
    %v2109 = vadd.f32 %v1595, %v1867
    %v2110 = vadd.f32 %v1596, %v1870
    %v2111 = vadd.f32 %v1597, %v1875
    %v2112 = vadd.f32 %v1598, %v1878
    %v2113 = vadd.f32 %v1599, %v1883
    %v2114 = vadd.f32 %v1600, %v1886
    %v2115 = vadd.f32 %v1601, %v1891
    %v2116 = vadd.f32 %v1602, %v1894
    %v2117 = vadd.f32 %v1603, %v1899
    %v2118 = vadd.f32 %v1604, %v1902
    %v2119 = vadd.f32 %v1605, %v1907
    %v2120 = vadd.f32 %v1606, %v1910
    %v2121 = vadd.f32 %v1607, %v1915
    %v2122 = vadd.f32 %v1608, %v1918
    %v2123 = vadd.f32 %v1609, %v1923
    %v2124 = vadd.f32 %v1610, %v1926
    %v2125 = vadd.f32 %v1611, %v1931
    %v2126 = vadd.f32 %v1612, %v1934
    %v2127 = vadd.f32 %v1613, %v1939
    %v2128 = vadd.f32 %v1614, %v1942
    %v2129 = vadd.f32 %v1615, %v1947
    %v2130 = vadd.f32 %v1616, %v1950
    %v2131 = vadd.f32 %v1617, %v1955
    %v2132 = vadd.f32 %v1618, %v1958
    %v2133 = vadd.f32 %v1619, %v1963
    %v2134 = vadd.f32 %v1620, %v1966
    %v2135 = vadd.f32 %v1621, %v1971
    %v2136 = vadd.f32 %v1622, %v1974
    %v2137 = vadd.f32 %v1623, %v1979
    %v2138 = vadd.f32 %v1624, %v1982
    %v2139 = vadd.f32 %v1625, %v1987
    %v2140 = vadd.f32 %v1626, %v1990
    %v2141 = vadd.f32 %v1627, %v1995
    %v2142 = vadd.f32 %v1628, %v1998
    %v2143 = vadd.f32 %v1629, %v2003
    %v2144 = vadd.f32 %v1630, %v2006
    %v2145 = vadd.f32 %v1631, %v2011
    %v2146 = vadd.f32 %v1632, %v2014
    %v2147 = vadd.f32 %v1633, %v2019
    %v2148 = vadd.f32 %v1634, %v2022
    %v2149 = vadd.f32 %v1635, %v2027
    %v2150 = vadd.f32 %v1636, %v2030
    %v2151 = vadd.f32 %v1637, %v2035
    %v2152 = vadd.f32 %v1638, %v2038
    %v2153 = vadd.f32 %v1639, %v2043
    %v2154 = vadd.f32 %v1640, %v2046
    %v2155 = vadd.f32 %v1641, %v2051
    %v2156 = vadd.f32 %v1642, %v2054
    %v2157 = vadd.f32 %v1643, %v2059
    %v2158 = vadd.f32 %v1644, %v2062
    %v2159 = vadd.f32 %v1645, %v2067
    %v2160 = vadd.f32 %v1646, %v2070
    %v2161 = vadd.f32 %v1647, %v2075
    %v2162 = vadd.f32 %v1648, %v2078
    %v2163 = vadd.f32 %v1649, %v2083
    %v2164 = vadd.f32 %v1650, %v2086
    %v2165 = vadd.f32 %v1651, %v2091
    %v2166 = vadd.f32 %v1652, %v2094
    %v2167 = vadd.f32 %v1653, %v2099
    %v2168 = vadd.f32 %v1654, %v2102
    %v2169 = vld [vmem:[%s177 + $0x1] sm:$0xff]
    %v2170 = vld [vmem:[%s177 + $0x9] sm:$0xff]
    %v2171 = vld [vmem:[%s177 + $0x19] sm:$0xff]
    %v2172 = vld [vmem:[%s177 + $0x21] sm:$0xff]
    %v2173 = vld [vmem:[%s177 + $0x31] sm:$0xff]
    %v2174 = vld [vmem:[%s177 + $0x39] sm:$0xff]
    %v2175 = vld [vmem:[%s177 + $0x49] sm:$0xff]
    %v2176 = vld [vmem:[%s177 + $0x51] sm:$0xff]
    %v2177 = vld [vmem:[%s177 + $0x61] sm:$0xff]
    %v2178 = vld [vmem:[%s177 + $0x69] sm:$0xff]
    %v2179 = vld [vmem:[%s177 + $0x79] sm:$0xff]
    %v2180 = vld [vmem:[%s177 + $0x81] sm:$0xff]
    %v2181 = vld [vmem:[%s177 + $0x91] sm:$0xff]
    %v2182 = vld [vmem:[%s177 + $0x99] sm:$0xff]
    %v2183 = vld [vmem:[%s177 + $0xa9] sm:$0xff]
    %v2184 = vld [vmem:[%s177 + $0xb1] sm:$0xff]
    %v2185 = vld [vmem:[%s177 + $0xc1] sm:$0xff]
    %v2186 = vld [vmem:[%s177 + $0xc9] sm:$0xff]
    %v2187 = vld [vmem:[%s177 + $0xd9] sm:$0xff]
    %v2188 = vld [vmem:[%s177 + $0xe1] sm:$0xff]
    %v2189 = vld [vmem:[%s177 + $0xf1] sm:$0xff]
    %v2190 = vld [vmem:[%s177 + $0xf9] sm:$0xff]
    %v2191 = vld [vmem:[%s177 + $0x109] sm:$0xff]
    %v2192 = vld [vmem:[%s177 + $0x111] sm:$0xff]
    %v2193 = vld [vmem:[%s177 + $0x121] sm:$0xff]
    %v2194 = vld [vmem:[%s177 + $0x129] sm:$0xff]
    %v2195 = vld [vmem:[%s177 + $0x139] sm:$0xff]
    %v2196 = vld [vmem:[%s177 + $0x141] sm:$0xff]
    %v2197 = vld [vmem:[%s177 + $0x151] sm:$0xff]
    %v2198 = vld [vmem:[%s177 + $0x159] sm:$0xff]
    %v2199 = vld [vmem:[%s177 + $0x169] sm:$0xff]
    %v2200 = vld [vmem:[%s177 + $0x171] sm:$0xff]
    %v2201 = vld [vmem:[%s177 + $0x1b1] sm:$0xff]
    %v2202 = vld [vmem:[%s177 + $0x1b9] sm:$0xff]
    %v2203 = vld [vmem:[%s177 + $0x1c9] sm:$0xff]
    %v2204 = vld [vmem:[%s177 + $0x1d1] sm:$0xff]
    %v2205 = vld [vmem:[%s177 + $0x1e1] sm:$0xff]
    %v2206 = vld [vmem:[%s177 + $0x1e9] sm:$0xff]
    %v2207 = vld [vmem:[%s177 + $0x1f9] sm:$0xff]
    %v2208 = vld [vmem:[%s177 + $0x201] sm:$0xff]
    %v2209 = vld [vmem:[%s177 + $0x211] sm:$0xff]
    %v2210 = vld [vmem:[%s177 + $0x219] sm:$0xff]
    %v2211 = vld [vmem:[%s177 + $0x229] sm:$0xff]
    %v2212 = vld [vmem:[%s177 + $0x231] sm:$0xff]
    %v2213 = vld [vmem:[%s177 + $0x241] sm:$0xff]
    %v2214 = vld [vmem:[%s177 + $0x249] sm:$0xff]
    %v2215 = vld [vmem:[%s177 + $0x259] sm:$0xff]
    %v2216 = vld [vmem:[%s177 + $0x261] sm:$0xff]
    %v2217 = vld [vmem:[%s177 + $0x271] sm:$0xff]
    %v2218 = vld [vmem:[%s177 + $0x279] sm:$0xff]
    %v2219 = vld [vmem:[%s177 + $0x289] sm:$0xff]
    %v2220 = vld [vmem:[%s177 + $0x291] sm:$0xff]
    %v2221 = vld [vmem:[%s177 + $0x2a1] sm:$0xff]
    %v2222 = vld [vmem:[%s177 + $0x2a9] sm:$0xff]
    %v2223 = vld [vmem:[%s177 + $0x2b9] sm:$0xff]
    %v2224 = vld [vmem:[%s177 + $0x2c1] sm:$0xff]
    %v2225 = vld [vmem:[%s177 + $0x2d1] sm:$0xff]
    %v2226 = vld [vmem:[%s177 + $0x2d9] sm:$0xff]
    %v2227 = vld [vmem:[%s177 + $0x2e9] sm:$0xff]
    %v2228 = vld [vmem:[%s177 + $0x2f1] sm:$0xff]
    %v2229 = vld [vmem:[%s177 + $0x301] sm:$0xff]
    %v2230 = vld [vmem:[%s177 + $0x309] sm:$0xff]
    %v2231 = vld [vmem:[%s177 + $0x319] sm:$0xff]
    %v2232 = vld [vmem:[%s177 + $0x321] sm:$0xff]
    %v2233 = vpack.c.bf16 %v2170, %v2169
    %v2234 = vpack.c.bf16 %v2172, %v2171
    %v2235 = vpack.c.bf16 %v2174, %v2173
    %v2236 = vpack.c.bf16 %v2176, %v2175
    %v2237 = vpack.c.bf16 %v2178, %v2177
    %v2238 = vpack.c.bf16 %v2180, %v2179
    %v2239 = vpack.c.bf16 %v2182, %v2181
    %v2240 = vpack.c.bf16 %v2184, %v2183
    %v2241 = vpack.c.bf16 %v2186, %v2185
    %v2242 = vpack.c.bf16 %v2188, %v2187
    %v2243 = vpack.c.bf16 %v2190, %v2189
    %v2244 = vpack.c.bf16 %v2192, %v2191
    %v2245 = vpack.c.bf16 %v2194, %v2193
    %v2246 = vpack.c.bf16 %v2196, %v2195
    %v2247 = vpack.c.bf16 %v2198, %v2197
    %v2248 = vpack.c.bf16 %v2200, %v2199
    %v2249 = vpack.c.bf16 %v2202, %v2201
    %v2250 = vpack.c.bf16 %v2204, %v2203
    %v2251 = vpack.c.bf16 %v2206, %v2205
    %v2252 = vpack.c.bf16 %v2208, %v2207
    %v2253 = vpack.c.bf16 %v2210, %v2209
    %v2254 = vpack.c.bf16 %v2212, %v2211
    %v2255 = vpack.c.bf16 %v2214, %v2213
    %v2256 = vpack.c.bf16 %v2216, %v2215
    %v2257 = vpack.c.bf16 %v2218, %v2217
    %v2258 = vpack.c.bf16 %v2220, %v2219
    %v2259 = vpack.c.bf16 %v2222, %v2221
    %v2260 = vpack.c.bf16 %v2224, %v2223
    %v2261 = vpack.c.bf16 %v2226, %v2225
    %v2262 = vpack.c.bf16 %v2228, %v2227
    %v2263 = vpack.c.bf16 %v2230, %v2229
    %v2264 = vpack.c.bf16 %v2232, %v2231
    %s2265 = scalar_lea.vmem %s1, 256
    %v2266 = vld [vmem:[%s2265] sm:$0xf]
    %v2267 = vld [vmem:[%s2265 + $0x4] sm:$0xf]
    %v2268 = vld [vmem:[%s2265 + $0x8] sm:$0xf]
    %v2269 = vld [vmem:[%s2265 + $0xc] sm:$0xf]
    %v2270 = vld [vmem:[%s2265 + $0x10] sm:$0xf]
    %v2271 = vld [vmem:[%s2265 + $0x14] sm:$0xf]
    %v2272 = vld [vmem:[%s2265 + $0x18] sm:$0xf]
    %v2273 = vld [vmem:[%s2265 + $0x1c] sm:$0xf]
    %v2274 = vld [vmem:[%s2265 + $0x20] sm:$0xf]
    %v2275 = vld [vmem:[%s2265 + $0x24] sm:$0xf]
    %v2276 = vld [vmem:[%s2265 + $0x28] sm:$0xf]
    %v2277 = vld [vmem:[%s2265 + $0x2c] sm:$0xf]
    %v2278 = vld [vmem:[%s2265 + $0x30] sm:$0xf]
    %v2279 = vld [vmem:[%s2265 + $0x34] sm:$0xf]
    %v2280 = vld [vmem:[%s2265 + $0x38] sm:$0xf]
    %v2281 = vld [vmem:[%s2265 + $0x3c] sm:$0xf]
    %v2298 = vunpack.c.l.b16 %v2266
    %v2299 = vunpack.c.l.b16 %v2267
    %v2300 = vunpack.c.l.b16 %v2268
    %v2301 = vunpack.c.l.b16 %v2269
    %v2302 = vunpack.c.l.b16 %v2270
    %v2303 = vunpack.c.l.b16 %v2271
    %v2304 = vunpack.c.l.b16 %v2272
    %v2305 = vunpack.c.l.b16 %v2273
    %v2306 = vunpack.c.l.b16 %v2274
    %v2307 = vunpack.c.l.b16 %v2275
    %v2308 = vunpack.c.l.b16 %v2276
    %v2309 = vunpack.c.l.b16 %v2277
    %v2310 = vunpack.c.l.b16 %v2278
    %v2311 = vunpack.c.l.b16 %v2279
    %v2312 = vunpack.c.l.b16 %v2280
    %v2313 = vunpack.c.l.b16 %v2281
    %v2314 = vpack.c.b16 %v2299, %v2298
    %v2315 = vpack.c.b16 %v2301, %v2300
    %v2316 = vpack.c.b16 %v2303, %v2302
    %v2317 = vpack.c.b16 %v2305, %v2304
    %v2318 = vpack.c.b16 %v2307, %v2306
    %v2319 = vpack.c.b16 %v2309, %v2308
    %v2320 = vpack.c.b16 %v2311, %v2310
    %v2321 = vpack.c.b16 %v2313, %v2312
    %2330 = vmatprep.subr.bf16.mxu0 0
    %2331 = vmatpush1.bf16.msra.mxu0 %v2321
    %2332 = vmatprep.subr.bf16.mxu0 0
    %2333 = vmatpush1.bf16.msra.mxu0 %v2320
    %2334 = vmatprep.subr.bf16.mxu0 0
    %2335 = vmatpush1.bf16.msra.mxu0 %v2319
    %2336 = vmatprep.subr.bf16.mxu0 0
    %2337 = vmatpush1.bf16.msra.mxu0 %v2318
    %2338 = vmatprep.subr.bf16.mxu0 0
    %2339 = vmatpush1.bf16.msra.mxu0 %v2317
    %2340 = vmatprep.subr.bf16.mxu0 0
    %2341 = vmatpush1.bf16.msra.mxu0 %v2316
    %2342 = vmatprep.subr.bf16.mxu0 0
    %2343 = vmatpush1.bf16.msra.mxu0 %v2315
    %2344 = vmatprep.subr.bf16.mxu0 0
    %2345 = vmatpush1.bf16.msra.mxu0 %v2314
    %2346 = vmatprep.subr.bf16.mxu0 0
    %2347 = vmatpush2.bf16.msra.mxu0 0
    %2348 = vmatprep.subr.bf16.mxu0 0
    %2349 = vmatpush2.bf16.msra.mxu0 0
    %2350 = vmatprep.subr.bf16.mxu0 0
    %2351 = vmatpush2.bf16.msra.mxu0 0
    %2352 = vmatprep.subr.bf16.mxu0 0
    %2353 = vmatpush2.bf16.msra.mxu0 0
    %2354 = vmatprep.subr.bf16.mxu0 0
    %2355 = vmatpush2.bf16.msra.mxu0 0
    %2356 = vmatprep.subr.bf16.mxu0 0
    %2357 = vmatpush2.bf16.msra.mxu0 0
    %2358 = vmatprep.subr.bf16.mxu0 0
    %2359 = vmatpush2.bf16.msra.mxu0 0
    %2360 = vmatprep.subr.bf16.mxu0 0
    %2361 = vmatpush2.bf16.msra.mxu0 0
    %2362 = vmatprep.mubr.bf16.mxu0 0
    %2363 = vmatmul.mubr.bf16.gmra.mxu0 %v2233
    %v2364 = vpop.f32.mrf.mxu0
    %v2365 = vadd.f32 0.0, %v2364
    %v2366 = vpop.f32.mrf.mxu0
    %v2367 = vpop.f32.mrf.mxu0
    %v2368 = vadd.f32 0.0, %v2367
    %v2369 = vpop.f32.mrf.mxu0
    %2370 = vmatprep.mubr.bf16.mxu0 0
    %2371 = vmatmul.mubr.bf16.gmra.mxu0 %v2234
    %v2372 = vpop.f32.mrf.mxu0
    %v2373 = vadd.f32 0.0, %v2372
    %v2374 = vpop.f32.mrf.mxu0
    %v2375 = vpop.f32.mrf.mxu0
    %v2376 = vadd.f32 0.0, %v2375
    %v2377 = vpop.f32.mrf.mxu0
    %2378 = vmatprep.mubr.bf16.mxu0 0
    %2379 = vmatmul.mubr.bf16.gmra.mxu0 %v2235
    %v2380 = vpop.f32.mrf.mxu0
    %v2381 = vadd.f32 0.0, %v2380
    %v2382 = vpop.f32.mrf.mxu0
    %v2383 = vpop.f32.mrf.mxu0
    %v2384 = vadd.f32 0.0, %v2383
    %v2385 = vpop.f32.mrf.mxu0
    %2386 = vmatprep.mubr.bf16.mxu0 0
    %2387 = vmatmul.mubr.bf16.gmra.mxu0 %v2236
    %v2388 = vpop.f32.mrf.mxu0
    %v2389 = vadd.f32 0.0, %v2388
    %v2390 = vpop.f32.mrf.mxu0
    %v2391 = vpop.f32.mrf.mxu0
    %v2392 = vadd.f32 0.0, %v2391
    %v2393 = vpop.f32.mrf.mxu0
    %2394 = vmatprep.mubr.bf16.mxu0 0
    %2395 = vmatmul.mubr.bf16.gmra.mxu0 %v2237
    %v2396 = vpop.f32.mrf.mxu0
    %v2397 = vadd.f32 0.0, %v2396
    %v2398 = vpop.f32.mrf.mxu0
    %v2399 = vpop.f32.mrf.mxu0
    %v2400 = vadd.f32 0.0, %v2399
    %v2401 = vpop.f32.mrf.mxu0
    %2402 = vmatprep.mubr.bf16.mxu0 0
    %2403 = vmatmul.mubr.bf16.gmra.mxu0 %v2238
    %v2404 = vpop.f32.mrf.mxu0
    %v2405 = vadd.f32 0.0, %v2404
    %v2406 = vpop.f32.mrf.mxu0
    %v2407 = vpop.f32.mrf.mxu0
    %v2408 = vadd.f32 0.0, %v2407
    %v2409 = vpop.f32.mrf.mxu0
    %2410 = vmatprep.mubr.bf16.mxu0 0
    %2411 = vmatmul.mubr.bf16.gmra.mxu0 %v2239
    %v2412 = vpop.f32.mrf.mxu0
    %v2413 = vadd.f32 0.0, %v2412
    %v2414 = vpop.f32.mrf.mxu0
    %v2415 = vpop.f32.mrf.mxu0
    %v2416 = vadd.f32 0.0, %v2415
    %v2417 = vpop.f32.mrf.mxu0
    %2418 = vmatprep.mubr.bf16.mxu0 0
    %2419 = vmatmul.mubr.bf16.gmra.mxu0 %v2240
    %v2420 = vpop.f32.mrf.mxu0
    %v2421 = vadd.f32 0.0, %v2420
    %v2422 = vpop.f32.mrf.mxu0
    %v2423 = vpop.f32.mrf.mxu0
    %v2424 = vadd.f32 0.0, %v2423
    %v2425 = vpop.f32.mrf.mxu0
    %2426 = vmatprep.mubr.bf16.mxu0 0
    %2427 = vmatmul.mubr.bf16.gmra.mxu0 %v2241
    %v2428 = vpop.f32.mrf.mxu0
    %v2429 = vadd.f32 0.0, %v2428
    %v2430 = vpop.f32.mrf.mxu0
    %v2431 = vpop.f32.mrf.mxu0
    %v2432 = vadd.f32 0.0, %v2431
    %v2433 = vpop.f32.mrf.mxu0
    %2434 = vmatprep.mubr.bf16.mxu0 0
    %2435 = vmatmul.mubr.bf16.gmra.mxu0 %v2242
    %v2436 = vpop.f32.mrf.mxu0
    %v2437 = vadd.f32 0.0, %v2436
    %v2438 = vpop.f32.mrf.mxu0
    %v2439 = vpop.f32.mrf.mxu0
    %v2440 = vadd.f32 0.0, %v2439
    %v2441 = vpop.f32.mrf.mxu0
    %2442 = vmatprep.mubr.bf16.mxu0 0
    %2443 = vmatmul.mubr.bf16.gmra.mxu0 %v2243
    %v2444 = vpop.f32.mrf.mxu0
    %v2445 = vadd.f32 0.0, %v2444
    %v2446 = vpop.f32.mrf.mxu0
    %v2447 = vpop.f32.mrf.mxu0
    %v2448 = vadd.f32 0.0, %v2447
    %v2449 = vpop.f32.mrf.mxu0
    %2450 = vmatprep.mubr.bf16.mxu0 0
    %2451 = vmatmul.mubr.bf16.gmra.mxu0 %v2244
    %v2452 = vpop.f32.mrf.mxu0
    %v2453 = vadd.f32 0.0, %v2452
    %v2454 = vpop.f32.mrf.mxu0
    %v2455 = vpop.f32.mrf.mxu0
    %v2456 = vadd.f32 0.0, %v2455
    %v2457 = vpop.f32.mrf.mxu0
    %2458 = vmatprep.mubr.bf16.mxu0 0
    %2459 = vmatmul.mubr.bf16.gmra.mxu0 %v2245
    %v2460 = vpop.f32.mrf.mxu0
    %v2461 = vadd.f32 0.0, %v2460
    %v2462 = vpop.f32.mrf.mxu0
    %v2463 = vpop.f32.mrf.mxu0
    %v2464 = vadd.f32 0.0, %v2463
    %v2465 = vpop.f32.mrf.mxu0
    %2466 = vmatprep.mubr.bf16.mxu0 0
    %2467 = vmatmul.mubr.bf16.gmra.mxu0 %v2246
    %v2468 = vpop.f32.mrf.mxu0
    %v2469 = vadd.f32 0.0, %v2468
    %v2470 = vpop.f32.mrf.mxu0
    %v2471 = vpop.f32.mrf.mxu0
    %v2472 = vadd.f32 0.0, %v2471
    %v2473 = vpop.f32.mrf.mxu0
    %2474 = vmatprep.mubr.bf16.mxu0 0
    %2475 = vmatmul.mubr.bf16.gmra.mxu0 %v2247
    %v2476 = vpop.f32.mrf.mxu0
    %v2477 = vadd.f32 0.0, %v2476
    %v2478 = vpop.f32.mrf.mxu0
    %v2479 = vpop.f32.mrf.mxu0
    %v2480 = vadd.f32 0.0, %v2479
    %v2481 = vpop.f32.mrf.mxu0
    %2482 = vmatprep.mubr.bf16.mxu0 0
    %2483 = vmatmul.mubr.bf16.gmra.mxu0 %v2248
    %v2484 = vpop.f32.mrf.mxu0
    %v2485 = vadd.f32 0.0, %v2484
    %v2486 = vpop.f32.mrf.mxu0
    %v2487 = vpop.f32.mrf.mxu0
    %v2488 = vadd.f32 0.0, %v2487
    %v2489 = vpop.f32.mrf.mxu0
    %2490 = vmatprep.mubr.bf16.mxu0 0
    %2491 = vmatmul.mubr.bf16.gmra.mxu0 %v2249
    %v2492 = vpop.f32.mrf.mxu0
    %v2493 = vadd.f32 0.0, %v2492
    %v2494 = vpop.f32.mrf.mxu0
    %v2495 = vpop.f32.mrf.mxu0
    %v2496 = vadd.f32 0.0, %v2495
    %v2497 = vpop.f32.mrf.mxu0
    %2498 = vmatprep.mubr.bf16.mxu0 0
    %2499 = vmatmul.mubr.bf16.gmra.mxu0 %v2250
    %v2500 = vpop.f32.mrf.mxu0
    %v2501 = vadd.f32 0.0, %v2500
    %v2502 = vpop.f32.mrf.mxu0
    %v2503 = vpop.f32.mrf.mxu0
    %v2504 = vadd.f32 0.0, %v2503
    %v2505 = vpop.f32.mrf.mxu0
    %2506 = vmatprep.mubr.bf16.mxu0 0
    %2507 = vmatmul.mubr.bf16.gmra.mxu0 %v2251
    %v2508 = vpop.f32.mrf.mxu0
    %v2509 = vadd.f32 0.0, %v2508
    %v2510 = vpop.f32.mrf.mxu0
    %v2511 = vpop.f32.mrf.mxu0
    %v2512 = vadd.f32 0.0, %v2511
    %v2513 = vpop.f32.mrf.mxu0
    %2514 = vmatprep.mubr.bf16.mxu0 0
    %2515 = vmatmul.mubr.bf16.gmra.mxu0 %v2252
    %v2516 = vpop.f32.mrf.mxu0
    %v2517 = vadd.f32 0.0, %v2516
    %v2518 = vpop.f32.mrf.mxu0
    %v2519 = vpop.f32.mrf.mxu0
    %v2520 = vadd.f32 0.0, %v2519
    %v2521 = vpop.f32.mrf.mxu0
    %2522 = vmatprep.mubr.bf16.mxu0 0
    %2523 = vmatmul.mubr.bf16.gmra.mxu0 %v2253
    %v2524 = vpop.f32.mrf.mxu0
    %v2525 = vadd.f32 0.0, %v2524
    %v2526 = vpop.f32.mrf.mxu0
    %v2527 = vpop.f32.mrf.mxu0
    %v2528 = vadd.f32 0.0, %v2527
    %v2529 = vpop.f32.mrf.mxu0
    %2530 = vmatprep.mubr.bf16.mxu0 0
    %2531 = vmatmul.mubr.bf16.gmra.mxu0 %v2254
    %v2532 = vpop.f32.mrf.mxu0
    %v2533 = vadd.f32 0.0, %v2532
    %v2534 = vpop.f32.mrf.mxu0
    %v2535 = vpop.f32.mrf.mxu0
    %v2536 = vadd.f32 0.0, %v2535
    %v2537 = vpop.f32.mrf.mxu0
    %2538 = vmatprep.mubr.bf16.mxu0 0
    %2539 = vmatmul.mubr.bf16.gmra.mxu0 %v2255
    %v2540 = vpop.f32.mrf.mxu0
    %v2541 = vadd.f32 0.0, %v2540
    %v2542 = vpop.f32.mrf.mxu0
    %v2543 = vpop.f32.mrf.mxu0
    %v2544 = vadd.f32 0.0, %v2543
    %v2545 = vpop.f32.mrf.mxu0
    %2546 = vmatprep.mubr.bf16.mxu0 0
    %2547 = vmatmul.mubr.bf16.gmra.mxu0 %v2256
    %v2548 = vpop.f32.mrf.mxu0
    %v2549 = vadd.f32 0.0, %v2548
    %v2550 = vpop.f32.mrf.mxu0
    %v2551 = vpop.f32.mrf.mxu0
    %v2552 = vadd.f32 0.0, %v2551
    %v2553 = vpop.f32.mrf.mxu0
    %2554 = vmatprep.mubr.bf16.mxu0 0
    %2555 = vmatmul.mubr.bf16.gmra.mxu0 %v2257
    %v2556 = vpop.f32.mrf.mxu0
    %v2557 = vadd.f32 0.0, %v2556
    %v2558 = vpop.f32.mrf.mxu0
    %v2559 = vpop.f32.mrf.mxu0
    %v2560 = vadd.f32 0.0, %v2559
    %v2561 = vpop.f32.mrf.mxu0
    %2562 = vmatprep.mubr.bf16.mxu0 0
    %2563 = vmatmul.mubr.bf16.gmra.mxu0 %v2258
    %v2564 = vpop.f32.mrf.mxu0
    %v2565 = vadd.f32 0.0, %v2564
    %v2566 = vpop.f32.mrf.mxu0
    %v2567 = vpop.f32.mrf.mxu0
    %v2568 = vadd.f32 0.0, %v2567
    %v2569 = vpop.f32.mrf.mxu0
    %2570 = vmatprep.mubr.bf16.mxu0 0
    %2571 = vmatmul.mubr.bf16.gmra.mxu0 %v2259
    %v2572 = vpop.f32.mrf.mxu0
    %v2573 = vadd.f32 0.0, %v2572
    %v2574 = vpop.f32.mrf.mxu0
    %v2575 = vpop.f32.mrf.mxu0
    %v2576 = vadd.f32 0.0, %v2575
    %v2577 = vpop.f32.mrf.mxu0
    %2578 = vmatprep.mubr.bf16.mxu0 0
    %2579 = vmatmul.mubr.bf16.gmra.mxu0 %v2260
    %v2580 = vpop.f32.mrf.mxu0
    %v2581 = vadd.f32 0.0, %v2580
    %v2582 = vpop.f32.mrf.mxu0
    %v2583 = vpop.f32.mrf.mxu0
    %v2584 = vadd.f32 0.0, %v2583
    %v2585 = vpop.f32.mrf.mxu0
    %2586 = vmatprep.mubr.bf16.mxu0 0
    %2587 = vmatmul.mubr.bf16.gmra.mxu0 %v2261
    %v2588 = vpop.f32.mrf.mxu0
    %v2589 = vadd.f32 0.0, %v2588
    %v2590 = vpop.f32.mrf.mxu0
    %v2591 = vpop.f32.mrf.mxu0
    %v2592 = vadd.f32 0.0, %v2591
    %v2593 = vpop.f32.mrf.mxu0
    %2594 = vmatprep.mubr.bf16.mxu0 0
    %2595 = vmatmul.mubr.bf16.gmra.mxu0 %v2262
    %v2596 = vpop.f32.mrf.mxu0
    %v2597 = vadd.f32 0.0, %v2596
    %v2598 = vpop.f32.mrf.mxu0
    %v2599 = vpop.f32.mrf.mxu0
    %v2600 = vadd.f32 0.0, %v2599
    %v2601 = vpop.f32.mrf.mxu0
    %2602 = vmatprep.mubr.bf16.mxu0 0
    %2603 = vmatmul.mubr.bf16.gmra.mxu0 %v2263
    %v2604 = vpop.f32.mrf.mxu0
    %v2605 = vadd.f32 0.0, %v2604
    %v2606 = vpop.f32.mrf.mxu0
    %v2607 = vpop.f32.mrf.mxu0
    %v2608 = vadd.f32 0.0, %v2607
    %v2609 = vpop.f32.mrf.mxu0
    %2610 = vmatprep.mubr.bf16.mxu0 0
    %2611 = vmatmul.mubr.bf16.gmra.mxu0 %v2264
    %v2612 = vpop.f32.mrf.mxu0
    %v2613 = vadd.f32 0.0, %v2612
    %v2614 = vpop.f32.mrf.mxu0
    %v2615 = vpop.f32.mrf.mxu0
    %v2616 = vadd.f32 0.0, %v2615
    %v2617 = vpop.f32.mrf.mxu0
    %2618 = vdwg.mxu0
    %v2619 = vadd.f32 %v2105, %v2365
    %v2620 = vadd.f32 %v2106, %v2368
    %v2621 = vadd.f32 %v2107, %v2373
    %v2622 = vadd.f32 %v2108, %v2376
    %v2623 = vadd.f32 %v2109, %v2381
    %v2624 = vadd.f32 %v2110, %v2384
    %v2625 = vadd.f32 %v2111, %v2389
    %v2626 = vadd.f32 %v2112, %v2392
    %v2627 = vadd.f32 %v2113, %v2397
    %v2628 = vadd.f32 %v2114, %v2400
    %v2629 = vadd.f32 %v2115, %v2405
    %v2630 = vadd.f32 %v2116, %v2408
    %v2631 = vadd.f32 %v2117, %v2413
    %v2632 = vadd.f32 %v2118, %v2416
    %v2633 = vadd.f32 %v2119, %v2421
    %v2634 = vadd.f32 %v2120, %v2424
    %v2635 = vadd.f32 %v2121, %v2429
    %v2636 = vadd.f32 %v2122, %v2432
    %v2637 = vadd.f32 %v2123, %v2437
    %v2638 = vadd.f32 %v2124, %v2440
    %v2639 = vadd.f32 %v2125, %v2445
    %v2640 = vadd.f32 %v2126, %v2448
    %v2641 = vadd.f32 %v2127, %v2453
    %v2642 = vadd.f32 %v2128, %v2456
    %v2643 = vadd.f32 %v2129, %v2461
    %v2644 = vadd.f32 %v2130, %v2464
    %v2645 = vadd.f32 %v2131, %v2469
    %v2646 = vadd.f32 %v2132, %v2472
    %v2647 = vadd.f32 %v2133, %v2477
    %v2648 = vadd.f32 %v2134, %v2480
    %v2649 = vadd.f32 %v2135, %v2485
    %v2650 = vadd.f32 %v2136, %v2488
    %v2651 = vadd.f32 %v2137, %v2493
    %v2652 = vadd.f32 %v2138, %v2496
    %v2653 = vadd.f32 %v2139, %v2501
    %v2654 = vadd.f32 %v2140, %v2504
    %v2655 = vadd.f32 %v2141, %v2509
    %v2656 = vadd.f32 %v2142, %v2512
    %v2657 = vadd.f32 %v2143, %v2517
    %v2658 = vadd.f32 %v2144, %v2520
    %v2659 = vadd.f32 %v2145, %v2525
    %v2660 = vadd.f32 %v2146, %v2528
    %v2661 = vadd.f32 %v2147, %v2533
    %v2662 = vadd.f32 %v2148, %v2536
    %v2663 = vadd.f32 %v2149, %v2541
    %v2664 = vadd.f32 %v2150, %v2544
    %v2665 = vadd.f32 %v2151, %v2549
    %v2666 = vadd.f32 %v2152, %v2552
    %v2667 = vadd.f32 %v2153, %v2557
    %v2668 = vadd.f32 %v2154, %v2560
    %v2669 = vadd.f32 %v2155, %v2565
    %v2670 = vadd.f32 %v2156, %v2568
    %v2671 = vadd.f32 %v2157, %v2573
    %v2672 = vadd.f32 %v2158, %v2576
    %v2673 = vadd.f32 %v2159, %v2581
    %v2674 = vadd.f32 %v2160, %v2584
    %v2675 = vadd.f32 %v2161, %v2589
    %v2676 = vadd.f32 %v2162, %v2592
    %v2677 = vadd.f32 %v2163, %v2597
    %v2678 = vadd.f32 %v2164, %v2600
    %v2679 = vadd.f32 %v2165, %v2605
    %v2680 = vadd.f32 %v2166, %v2608
    %v2681 = vadd.f32 %v2167, %v2613
    %v2682 = vadd.f32 %v2168, %v2616
    %v2683 = vld [vmem:[%s177 + $0x2] sm:$0xff]
    %v2684 = vld [vmem:[%s177 + $0xa] sm:$0xff]
    %v2685 = vld [vmem:[%s177 + $0x1a] sm:$0xff]
    %v2686 = vld [vmem:[%s177 + $0x22] sm:$0xff]
    %v2687 = vld [vmem:[%s177 + $0x32] sm:$0xff]
    %v2688 = vld [vmem:[%s177 + $0x3a] sm:$0xff]
    %v2689 = vld [vmem:[%s177 + $0x4a] sm:$0xff]
    %v2690 = vld [vmem:[%s177 + $0x52] sm:$0xff]
    %v2691 = vld [vmem:[%s177 + $0x62] sm:$0xff]
    %v2692 = vld [vmem:[%s177 + $0x6a] sm:$0xff]
    %v2693 = vld [vmem:[%s177 + $0x7a] sm:$0xff]
    %v2694 = vld [vmem:[%s177 + $0x82] sm:$0xff]
    %v2695 = vld [vmem:[%s177 + $0x92] sm:$0xff]
    %v2696 = vld [vmem:[%s177 + $0x9a] sm:$0xff]
    %v2697 = vld [vmem:[%s177 + $0xaa] sm:$0xff]
    %v2698 = vld [vmem:[%s177 + $0xb2] sm:$0xff]
    %v2699 = vld [vmem:[%s177 + $0xc2] sm:$0xff]
    %v2700 = vld [vmem:[%s177 + $0xca] sm:$0xff]
    %v2701 = vld [vmem:[%s177 + $0xda] sm:$0xff]
    %v2702 = vld [vmem:[%s177 + $0xe2] sm:$0xff]
    %v2703 = vld [vmem:[%s177 + $0xf2] sm:$0xff]
    %v2704 = vld [vmem:[%s177 + $0xfa] sm:$0xff]
    %v2705 = vld [vmem:[%s177 + $0x10a] sm:$0xff]
    %v2706 = vld [vmem:[%s177 + $0x112] sm:$0xff]
    %v2707 = vld [vmem:[%s177 + $0x122] sm:$0xff]
    %v2708 = vld [vmem:[%s177 + $0x12a] sm:$0xff]
    %v2709 = vld [vmem:[%s177 + $0x13a] sm:$0xff]
    %v2710 = vld [vmem:[%s177 + $0x142] sm:$0xff]
    %v2711 = vld [vmem:[%s177 + $0x152] sm:$0xff]
    %v2712 = vld [vmem:[%s177 + $0x15a] sm:$0xff]
    %v2713 = vld [vmem:[%s177 + $0x16a] sm:$0xff]
    %v2714 = vld [vmem:[%s177 + $0x172] sm:$0xff]
    %v2715 = vld [vmem:[%s177 + $0x1b2] sm:$0xff]
    %v2716 = vld [vmem:[%s177 + $0x1ba] sm:$0xff]
    %v2717 = vld [vmem:[%s177 + $0x1ca] sm:$0xff]
    %v2718 = vld [vmem:[%s177 + $0x1d2] sm:$0xff]
    %v2719 = vld [vmem:[%s177 + $0x1e2] sm:$0xff]
    %v2720 = vld [vmem:[%s177 + $0x1ea] sm:$0xff]
    %v2721 = vld [vmem:[%s177 + $0x1fa] sm:$0xff]
    %v2722 = vld [vmem:[%s177 + $0x202] sm:$0xff]
    %v2723 = vld [vmem:[%s177 + $0x212] sm:$0xff]
    %v2724 = vld [vmem:[%s177 + $0x21a] sm:$0xff]
    %v2725 = vld [vmem:[%s177 + $0x22a] sm:$0xff]
    %v2726 = vld [vmem:[%s177 + $0x232] sm:$0xff]
    %v2727 = vld [vmem:[%s177 + $0x242] sm:$0xff]
    %v2728 = vld [vmem:[%s177 + $0x24a] sm:$0xff]
    %v2729 = vld [vmem:[%s177 + $0x25a] sm:$0xff]
    %v2730 = vld [vmem:[%s177 + $0x262] sm:$0xff]
    %v2731 = vld [vmem:[%s177 + $0x272] sm:$0xff]
    %v2732 = vld [vmem:[%s177 + $0x27a] sm:$0xff]
    %v2733 = vld [vmem:[%s177 + $0x28a] sm:$0xff]
    %v2734 = vld [vmem:[%s177 + $0x292] sm:$0xff]
    %v2735 = vld [vmem:[%s177 + $0x2a2] sm:$0xff]
    %v2736 = vld [vmem:[%s177 + $0x2aa] sm:$0xff]
    %v2737 = vld [vmem:[%s177 + $0x2ba] sm:$0xff]
    %v2738 = vld [vmem:[%s177 + $0x2c2] sm:$0xff]
    %v2739 = vld [vmem:[%s177 + $0x2d2] sm:$0xff]
    %v2740 = vld [vmem:[%s177 + $0x2da] sm:$0xff]
    %v2741 = vld [vmem:[%s177 + $0x2ea] sm:$0xff]
    %v2742 = vld [vmem:[%s177 + $0x2f2] sm:$0xff]
    %v2743 = vld [vmem:[%s177 + $0x302] sm:$0xff]
    %v2744 = vld [vmem:[%s177 + $0x30a] sm:$0xff]
    %v2745 = vld [vmem:[%s177 + $0x31a] sm:$0xff]
    %v2746 = vld [vmem:[%s177 + $0x322] sm:$0xff]
    %v2747 = vpack.c.bf16 %v2684, %v2683
    %v2748 = vpack.c.bf16 %v2686, %v2685
    %v2749 = vpack.c.bf16 %v2688, %v2687
    %v2750 = vpack.c.bf16 %v2690, %v2689
    %v2751 = vpack.c.bf16 %v2692, %v2691
    %v2752 = vpack.c.bf16 %v2694, %v2693
    %v2753 = vpack.c.bf16 %v2696, %v2695
    %v2754 = vpack.c.bf16 %v2698, %v2697
    %v2755 = vpack.c.bf16 %v2700, %v2699
    %v2756 = vpack.c.bf16 %v2702, %v2701
    %v2757 = vpack.c.bf16 %v2704, %v2703
    %v2758 = vpack.c.bf16 %v2706, %v2705
    %v2759 = vpack.c.bf16 %v2708, %v2707
    %v2760 = vpack.c.bf16 %v2710, %v2709
    %v2761 = vpack.c.bf16 %v2712, %v2711
    %v2762 = vpack.c.bf16 %v2714, %v2713
    %v2763 = vpack.c.bf16 %v2716, %v2715
    %v2764 = vpack.c.bf16 %v2718, %v2717
    %v2765 = vpack.c.bf16 %v2720, %v2719
    %v2766 = vpack.c.bf16 %v2722, %v2721
    %v2767 = vpack.c.bf16 %v2724, %v2723
    %v2768 = vpack.c.bf16 %v2726, %v2725
    %v2769 = vpack.c.bf16 %v2728, %v2727
    %v2770 = vpack.c.bf16 %v2730, %v2729
    %v2771 = vpack.c.bf16 %v2732, %v2731
    %v2772 = vpack.c.bf16 %v2734, %v2733
    %v2773 = vpack.c.bf16 %v2736, %v2735
    %v2774 = vpack.c.bf16 %v2738, %v2737
    %v2775 = vpack.c.bf16 %v2740, %v2739
    %v2776 = vpack.c.bf16 %v2742, %v2741
    %v2777 = vpack.c.bf16 %v2744, %v2743
    %v2778 = vpack.c.bf16 %v2746, %v2745
    %s2779 = scalar_lea.vmem %s1, 320
    %v2780 = vld [vmem:[%s2779] sm:$0xf]
    %v2781 = vld [vmem:[%s2779 + $0x4] sm:$0xf]
    %v2782 = vld [vmem:[%s2779 + $0x8] sm:$0xf]
    %v2783 = vld [vmem:[%s2779 + $0xc] sm:$0xf]
    %v2784 = vld [vmem:[%s2779 + $0x10] sm:$0xf]
    %v2785 = vld [vmem:[%s2779 + $0x14] sm:$0xf]
    %v2786 = vld [vmem:[%s2779 + $0x18] sm:$0xf]
    %v2787 = vld [vmem:[%s2779 + $0x1c] sm:$0xf]
    %v2788 = vld [vmem:[%s2779 + $0x20] sm:$0xf]
    %v2789 = vld [vmem:[%s2779 + $0x24] sm:$0xf]
    %v2790 = vld [vmem:[%s2779 + $0x28] sm:$0xf]
    %v2791 = vld [vmem:[%s2779 + $0x2c] sm:$0xf]
    %v2792 = vld [vmem:[%s2779 + $0x30] sm:$0xf]
    %v2793 = vld [vmem:[%s2779 + $0x34] sm:$0xf]
    %v2794 = vld [vmem:[%s2779 + $0x38] sm:$0xf]
    %v2795 = vld [vmem:[%s2779 + $0x3c] sm:$0xf]
    %v2812 = vunpack.c.l.b16 %v2780
    %v2813 = vunpack.c.l.b16 %v2781
    %v2814 = vunpack.c.l.b16 %v2782
    %v2815 = vunpack.c.l.b16 %v2783
    %v2816 = vunpack.c.l.b16 %v2784
    %v2817 = vunpack.c.l.b16 %v2785
    %v2818 = vunpack.c.l.b16 %v2786
    %v2819 = vunpack.c.l.b16 %v2787
    %v2820 = vunpack.c.l.b16 %v2788
    %v2821 = vunpack.c.l.b16 %v2789
    %v2822 = vunpack.c.l.b16 %v2790
    %v2823 = vunpack.c.l.b16 %v2791
    %v2824 = vunpack.c.l.b16 %v2792
    %v2825 = vunpack.c.l.b16 %v2793
    %v2826 = vunpack.c.l.b16 %v2794
    %v2827 = vunpack.c.l.b16 %v2795
    %v2828 = vpack.c.b16 %v2813, %v2812
    %v2829 = vpack.c.b16 %v2815, %v2814
    %v2830 = vpack.c.b16 %v2817, %v2816
    %v2831 = vpack.c.b16 %v2819, %v2818
    %v2832 = vpack.c.b16 %v2821, %v2820
    %v2833 = vpack.c.b16 %v2823, %v2822
    %v2834 = vpack.c.b16 %v2825, %v2824
    %v2835 = vpack.c.b16 %v2827, %v2826
    %2844 = vmatprep.subr.bf16.mxu0 0
    %2845 = vmatpush1.bf16.msra.mxu0 %v2835
    %2846 = vmatprep.subr.bf16.mxu0 0
    %2847 = vmatpush1.bf16.msra.mxu0 %v2834
    %2848 = vmatprep.subr.bf16.mxu0 0
    %2849 = vmatpush1.bf16.msra.mxu0 %v2833
    %2850 = vmatprep.subr.bf16.mxu0 0
    %2851 = vmatpush1.bf16.msra.mxu0 %v2832
    %2852 = vmatprep.subr.bf16.mxu0 0
    %2853 = vmatpush1.bf16.msra.mxu0 %v2831
    %2854 = vmatprep.subr.bf16.mxu0 0
    %2855 = vmatpush1.bf16.msra.mxu0 %v2830
    %2856 = vmatprep.subr.bf16.mxu0 0
    %2857 = vmatpush1.bf16.msra.mxu0 %v2829
    %2858 = vmatprep.subr.bf16.mxu0 0
    %2859 = vmatpush1.bf16.msra.mxu0 %v2828
    %2860 = vmatprep.subr.bf16.mxu0 0
    %2861 = vmatpush2.bf16.msra.mxu0 0
    %2862 = vmatprep.subr.bf16.mxu0 0
    %2863 = vmatpush2.bf16.msra.mxu0 0
    %2864 = vmatprep.subr.bf16.mxu0 0
    %2865 = vmatpush2.bf16.msra.mxu0 0
    %2866 = vmatprep.subr.bf16.mxu0 0
    %2867 = vmatpush2.bf16.msra.mxu0 0
    %2868 = vmatprep.subr.bf16.mxu0 0
    %2869 = vmatpush2.bf16.msra.mxu0 0
    %2870 = vmatprep.subr.bf16.mxu0 0
    %2871 = vmatpush2.bf16.msra.mxu0 0
    %2872 = vmatprep.subr.bf16.mxu0 0
    %2873 = vmatpush2.bf16.msra.mxu0 0
    %2874 = vmatprep.subr.bf16.mxu0 0
    %2875 = vmatpush2.bf16.msra.mxu0 0
    %2876 = vmatprep.mubr.bf16.mxu0 0
    %2877 = vmatmul.mubr.bf16.gmra.mxu0 %v2747
    %v2878 = vpop.f32.mrf.mxu0
    %v2879 = vadd.f32 0.0, %v2878
    %v2880 = vpop.f32.mrf.mxu0
    %v2881 = vpop.f32.mrf.mxu0
    %v2882 = vadd.f32 0.0, %v2881
    %v2883 = vpop.f32.mrf.mxu0
    %2884 = vmatprep.mubr.bf16.mxu0 0
    %2885 = vmatmul.mubr.bf16.gmra.mxu0 %v2748
    %v2886 = vpop.f32.mrf.mxu0
    %v2887 = vadd.f32 0.0, %v2886
    %v2888 = vpop.f32.mrf.mxu0
    %v2889 = vpop.f32.mrf.mxu0
    %v2890 = vadd.f32 0.0, %v2889
    %v2891 = vpop.f32.mrf.mxu0
    %2892 = vmatprep.mubr.bf16.mxu0 0
    %2893 = vmatmul.mubr.bf16.gmra.mxu0 %v2749
    %v2894 = vpop.f32.mrf.mxu0
    %v2895 = vadd.f32 0.0, %v2894
    %v2896 = vpop.f32.mrf.mxu0
    %v2897 = vpop.f32.mrf.mxu0
    %v2898 = vadd.f32 0.0, %v2897
    %v2899 = vpop.f32.mrf.mxu0
    %2900 = vmatprep.mubr.bf16.mxu0 0
    %2901 = vmatmul.mubr.bf16.gmra.mxu0 %v2750
    %v2902 = vpop.f32.mrf.mxu0
    %v2903 = vadd.f32 0.0, %v2902
    %v2904 = vpop.f32.mrf.mxu0
    %v2905 = vpop.f32.mrf.mxu0
    %v2906 = vadd.f32 0.0, %v2905
    %v2907 = vpop.f32.mrf.mxu0
    %2908 = vmatprep.mubr.bf16.mxu0 0
    %2909 = vmatmul.mubr.bf16.gmra.mxu0 %v2751
    %v2910 = vpop.f32.mrf.mxu0
    %v2911 = vadd.f32 0.0, %v2910
    %v2912 = vpop.f32.mrf.mxu0
    %v2913 = vpop.f32.mrf.mxu0
    %v2914 = vadd.f32 0.0, %v2913
    %v2915 = vpop.f32.mrf.mxu0
    %2916 = vmatprep.mubr.bf16.mxu0 0
    %2917 = vmatmul.mubr.bf16.gmra.mxu0 %v2752
    %v2918 = vpop.f32.mrf.mxu0
    %v2919 = vadd.f32 0.0, %v2918
    %v2920 = vpop.f32.mrf.mxu0
    %v2921 = vpop.f32.mrf.mxu0
    %v2922 = vadd.f32 0.0, %v2921
    %v2923 = vpop.f32.mrf.mxu0
    %2924 = vmatprep.mubr.bf16.mxu0 0
    %2925 = vmatmul.mubr.bf16.gmra.mxu0 %v2753
    %v2926 = vpop.f32.mrf.mxu0
    %v2927 = vadd.f32 0.0, %v2926
    %v2928 = vpop.f32.mrf.mxu0
    %v2929 = vpop.f32.mrf.mxu0
    %v2930 = vadd.f32 0.0, %v2929
    %v2931 = vpop.f32.mrf.mxu0
    %2932 = vmatprep.mubr.bf16.mxu0 0
    %2933 = vmatmul.mubr.bf16.gmra.mxu0 %v2754
    %v2934 = vpop.f32.mrf.mxu0
    %v2935 = vadd.f32 0.0, %v2934
    %v2936 = vpop.f32.mrf.mxu0
    %v2937 = vpop.f32.mrf.mxu0
    %v2938 = vadd.f32 0.0, %v2937
    %v2939 = vpop.f32.mrf.mxu0
    %2940 = vmatprep.mubr.bf16.mxu0 0
    %2941 = vmatmul.mubr.bf16.gmra.mxu0 %v2755
    %v2942 = vpop.f32.mrf.mxu0
    %v2943 = vadd.f32 0.0, %v2942
    %v2944 = vpop.f32.mrf.mxu0
    %v2945 = vpop.f32.mrf.mxu0
    %v2946 = vadd.f32 0.0, %v2945
    %v2947 = vpop.f32.mrf.mxu0
    %2948 = vmatprep.mubr.bf16.mxu0 0
    %2949 = vmatmul.mubr.bf16.gmra.mxu0 %v2756
    %v2950 = vpop.f32.mrf.mxu0
    %v2951 = vadd.f32 0.0, %v2950
    %v2952 = vpop.f32.mrf.mxu0
    %v2953 = vpop.f32.mrf.mxu0
    %v2954 = vadd.f32 0.0, %v2953
    %v2955 = vpop.f32.mrf.mxu0
    %2956 = vmatprep.mubr.bf16.mxu0 0
    %2957 = vmatmul.mubr.bf16.gmra.mxu0 %v2757
    %v2958 = vpop.f32.mrf.mxu0
    %v2959 = vadd.f32 0.0, %v2958
    %v2960 = vpop.f32.mrf.mxu0
    %v2961 = vpop.f32.mrf.mxu0
    %v2962 = vadd.f32 0.0, %v2961
    %v2963 = vpop.f32.mrf.mxu0
    %2964 = vmatprep.mubr.bf16.mxu0 0
    %2965 = vmatmul.mubr.bf16.gmra.mxu0 %v2758
    %v2966 = vpop.f32.mrf.mxu0
    %v2967 = vadd.f32 0.0, %v2966
    %v2968 = vpop.f32.mrf.mxu0
    %v2969 = vpop.f32.mrf.mxu0
    %v2970 = vadd.f32 0.0, %v2969
    %v2971 = vpop.f32.mrf.mxu0
    %2972 = vmatprep.mubr.bf16.mxu0 0
    %2973 = vmatmul.mubr.bf16.gmra.mxu0 %v2759
    %v2974 = vpop.f32.mrf.mxu0
    %v2975 = vadd.f32 0.0, %v2974
    %v2976 = vpop.f32.mrf.mxu0
    %v2977 = vpop.f32.mrf.mxu0
    %v2978 = vadd.f32 0.0, %v2977
    %v2979 = vpop.f32.mrf.mxu0
    %2980 = vmatprep.mubr.bf16.mxu0 0
    %2981 = vmatmul.mubr.bf16.gmra.mxu0 %v2760
    %v2982 = vpop.f32.mrf.mxu0
    %v2983 = vadd.f32 0.0, %v2982
    %v2984 = vpop.f32.mrf.mxu0
    %v2985 = vpop.f32.mrf.mxu0
    %v2986 = vadd.f32 0.0, %v2985
    %v2987 = vpop.f32.mrf.mxu0
    %2988 = vmatprep.mubr.bf16.mxu0 0
    %2989 = vmatmul.mubr.bf16.gmra.mxu0 %v2761
    %v2990 = vpop.f32.mrf.mxu0
    %v2991 = vadd.f32 0.0, %v2990
    %v2992 = vpop.f32.mrf.mxu0
    %v2993 = vpop.f32.mrf.mxu0
    %v2994 = vadd.f32 0.0, %v2993
    %v2995 = vpop.f32.mrf.mxu0
    %2996 = vmatprep.mubr.bf16.mxu0 0
    %2997 = vmatmul.mubr.bf16.gmra.mxu0 %v2762
    %v2998 = vpop.f32.mrf.mxu0
    %v2999 = vadd.f32 0.0, %v2998
    %v3000 = vpop.f32.mrf.mxu0
    %v3001 = vpop.f32.mrf.mxu0
    %v3002 = vadd.f32 0.0, %v3001
    %v3003 = vpop.f32.mrf.mxu0
    %3004 = vmatprep.mubr.bf16.mxu0 0
    %3005 = vmatmul.mubr.bf16.gmra.mxu0 %v2763
    %v3006 = vpop.f32.mrf.mxu0
    %v3007 = vadd.f32 0.0, %v3006
    %v3008 = vpop.f32.mrf.mxu0
    %v3009 = vpop.f32.mrf.mxu0
    %v3010 = vadd.f32 0.0, %v3009
    %v3011 = vpop.f32.mrf.mxu0
    %3012 = vmatprep.mubr.bf16.mxu0 0
    %3013 = vmatmul.mubr.bf16.gmra.mxu0 %v2764
    %v3014 = vpop.f32.mrf.mxu0
    %v3015 = vadd.f32 0.0, %v3014
    %v3016 = vpop.f32.mrf.mxu0
    %v3017 = vpop.f32.mrf.mxu0
    %v3018 = vadd.f32 0.0, %v3017
    %v3019 = vpop.f32.mrf.mxu0
    %3020 = vmatprep.mubr.bf16.mxu0 0
    %3021 = vmatmul.mubr.bf16.gmra.mxu0 %v2765
    %v3022 = vpop.f32.mrf.mxu0
    %v3023 = vadd.f32 0.0, %v3022
    %v3024 = vpop.f32.mrf.mxu0
    %v3025 = vpop.f32.mrf.mxu0
    %v3026 = vadd.f32 0.0, %v3025
    %v3027 = vpop.f32.mrf.mxu0
    %3028 = vmatprep.mubr.bf16.mxu0 0
    %3029 = vmatmul.mubr.bf16.gmra.mxu0 %v2766
    %v3030 = vpop.f32.mrf.mxu0
    %v3031 = vadd.f32 0.0, %v3030
    %v3032 = vpop.f32.mrf.mxu0
    %v3033 = vpop.f32.mrf.mxu0
    %v3034 = vadd.f32 0.0, %v3033
    %v3035 = vpop.f32.mrf.mxu0
    %3036 = vmatprep.mubr.bf16.mxu0 0
    %3037 = vmatmul.mubr.bf16.gmra.mxu0 %v2767
    %v3038 = vpop.f32.mrf.mxu0
    %v3039 = vadd.f32 0.0, %v3038
    %v3040 = vpop.f32.mrf.mxu0
    %v3041 = vpop.f32.mrf.mxu0
    %v3042 = vadd.f32 0.0, %v3041
    %v3043 = vpop.f32.mrf.mxu0
    %3044 = vmatprep.mubr.bf16.mxu0 0
    %3045 = vmatmul.mubr.bf16.gmra.mxu0 %v2768
    %v3046 = vpop.f32.mrf.mxu0
    %v3047 = vadd.f32 0.0, %v3046
    %v3048 = vpop.f32.mrf.mxu0
    %v3049 = vpop.f32.mrf.mxu0
    %v3050 = vadd.f32 0.0, %v3049
    %v3051 = vpop.f32.mrf.mxu0
    %3052 = vmatprep.mubr.bf16.mxu0 0
    %3053 = vmatmul.mubr.bf16.gmra.mxu0 %v2769
    %v3054 = vpop.f32.mrf.mxu0
    %v3055 = vadd.f32 0.0, %v3054
    %v3056 = vpop.f32.mrf.mxu0
    %v3057 = vpop.f32.mrf.mxu0
    %v3058 = vadd.f32 0.0, %v3057
    %v3059 = vpop.f32.mrf.mxu0
    %3060 = vmatprep.mubr.bf16.mxu0 0
    %3061 = vmatmul.mubr.bf16.gmra.mxu0 %v2770
    %v3062 = vpop.f32.mrf.mxu0
    %v3063 = vadd.f32 0.0, %v3062
    %v3064 = vpop.f32.mrf.mxu0
    %v3065 = vpop.f32.mrf.mxu0
    %v3066 = vadd.f32 0.0, %v3065
    %v3067 = vpop.f32.mrf.mxu0
    %3068 = vmatprep.mubr.bf16.mxu0 0
    %3069 = vmatmul.mubr.bf16.gmra.mxu0 %v2771
    %v3070 = vpop.f32.mrf.mxu0
    %v3071 = vadd.f32 0.0, %v3070
    %v3072 = vpop.f32.mrf.mxu0
    %v3073 = vpop.f32.mrf.mxu0
    %v3074 = vadd.f32 0.0, %v3073
    %v3075 = vpop.f32.mrf.mxu0
    %3076 = vmatprep.mubr.bf16.mxu0 0
    %3077 = vmatmul.mubr.bf16.gmra.mxu0 %v2772
    %v3078 = vpop.f32.mrf.mxu0
    %v3079 = vadd.f32 0.0, %v3078
    %v3080 = vpop.f32.mrf.mxu0
    %v3081 = vpop.f32.mrf.mxu0
    %v3082 = vadd.f32 0.0, %v3081
    %v3083 = vpop.f32.mrf.mxu0
    %3084 = vmatprep.mubr.bf16.mxu0 0
    %3085 = vmatmul.mubr.bf16.gmra.mxu0 %v2773
    %v3086 = vpop.f32.mrf.mxu0
    %v3087 = vadd.f32 0.0, %v3086
    %v3088 = vpop.f32.mrf.mxu0
    %v3089 = vpop.f32.mrf.mxu0
    %v3090 = vadd.f32 0.0, %v3089
    %v3091 = vpop.f32.mrf.mxu0
    %3092 = vmatprep.mubr.bf16.mxu0 0
    %3093 = vmatmul.mubr.bf16.gmra.mxu0 %v2774
    %v3094 = vpop.f32.mrf.mxu0
    %v3095 = vadd.f32 0.0, %v3094
    %v3096 = vpop.f32.mrf.mxu0
    %v3097 = vpop.f32.mrf.mxu0
    %v3098 = vadd.f32 0.0, %v3097
    %v3099 = vpop.f32.mrf.mxu0
    %3100 = vmatprep.mubr.bf16.mxu0 0
    %3101 = vmatmul.mubr.bf16.gmra.mxu0 %v2775
    %v3102 = vpop.f32.mrf.mxu0
    %v3103 = vadd.f32 0.0, %v3102
    %v3104 = vpop.f32.mrf.mxu0
    %v3105 = vpop.f32.mrf.mxu0
    %v3106 = vadd.f32 0.0, %v3105
    %v3107 = vpop.f32.mrf.mxu0
    %3108 = vmatprep.mubr.bf16.mxu0 0
    %3109 = vmatmul.mubr.bf16.gmra.mxu0 %v2776
    %v3110 = vpop.f32.mrf.mxu0
    %v3111 = vadd.f32 0.0, %v3110
    %v3112 = vpop.f32.mrf.mxu0
    %v3113 = vpop.f32.mrf.mxu0
    %v3114 = vadd.f32 0.0, %v3113
    %v3115 = vpop.f32.mrf.mxu0
    %3116 = vmatprep.mubr.bf16.mxu0 0
    %3117 = vmatmul.mubr.bf16.gmra.mxu0 %v2777
    %v3118 = vpop.f32.mrf.mxu0
    %v3119 = vadd.f32 0.0, %v3118
    %v3120 = vpop.f32.mrf.mxu0
    %v3121 = vpop.f32.mrf.mxu0
    %v3122 = vadd.f32 0.0, %v3121
    %v3123 = vpop.f32.mrf.mxu0
    %3124 = vmatprep.mubr.bf16.mxu0 0
    %3125 = vmatmul.mubr.bf16.gmra.mxu0 %v2778
    %v3126 = vpop.f32.mrf.mxu0
    %v3127 = vadd.f32 0.0, %v3126
    %v3128 = vpop.f32.mrf.mxu0
    %v3129 = vpop.f32.mrf.mxu0
    %v3130 = vadd.f32 0.0, %v3129
    %v3131 = vpop.f32.mrf.mxu0
    %3132 = vdwg.mxu0
    %v3133 = vadd.f32 %v2619, %v2879
    %v3134 = vadd.f32 %v2620, %v2882
    %v3135 = vadd.f32 %v2621, %v2887
    %v3136 = vadd.f32 %v2622, %v2890
    %v3137 = vadd.f32 %v2623, %v2895
    %v3138 = vadd.f32 %v2624, %v2898
    %v3139 = vadd.f32 %v2625, %v2903
    %v3140 = vadd.f32 %v2626, %v2906
    %v3141 = vadd.f32 %v2627, %v2911
    %v3142 = vadd.f32 %v2628, %v2914
    %v3143 = vadd.f32 %v2629, %v2919
    %v3144 = vadd.f32 %v2630, %v2922
    %v3145 = vadd.f32 %v2631, %v2927
    %v3146 = vadd.f32 %v2632, %v2930
    %v3147 = vadd.f32 %v2633, %v2935
    %v3148 = vadd.f32 %v2634, %v2938
    %v3149 = vadd.f32 %v2635, %v2943
    %v3150 = vadd.f32 %v2636, %v2946
    %v3151 = vadd.f32 %v2637, %v2951
    %v3152 = vadd.f32 %v2638, %v2954
    %v3153 = vadd.f32 %v2639, %v2959
    %v3154 = vadd.f32 %v2640, %v2962
    %v3155 = vadd.f32 %v2641, %v2967
    %v3156 = vadd.f32 %v2642, %v2970
    %v3157 = vadd.f32 %v2643, %v2975
    %v3158 = vadd.f32 %v2644, %v2978
    %v3159 = vadd.f32 %v2645, %v2983
    %v3160 = vadd.f32 %v2646, %v2986
    %v3161 = vadd.f32 %v2647, %v2991
    %v3162 = vadd.f32 %v2648, %v2994
    %v3163 = vadd.f32 %v2649, %v2999
    %v3164 = vadd.f32 %v2650, %v3002
    %v3165 = vadd.f32 %v2651, %v3007
    %v3166 = vadd.f32 %v2652, %v3010
    %v3167 = vadd.f32 %v2653, %v3015
    %v3168 = vadd.f32 %v2654, %v3018
    %v3169 = vadd.f32 %v2655, %v3023
    %v3170 = vadd.f32 %v2656, %v3026
    %v3171 = vadd.f32 %v2657, %v3031
    %v3172 = vadd.f32 %v2658, %v3034
    %v3173 = vadd.f32 %v2659, %v3039
    %v3174 = vadd.f32 %v2660, %v3042
    %v3175 = vadd.f32 %v2661, %v3047
    %v3176 = vadd.f32 %v2662, %v3050
    %v3177 = vadd.f32 %v2663, %v3055
    %v3178 = vadd.f32 %v2664, %v3058
    %v3179 = vadd.f32 %v2665, %v3063
    %v3180 = vadd.f32 %v2666, %v3066
    %v3181 = vadd.f32 %v2667, %v3071
    %v3182 = vadd.f32 %v2668, %v3074
    %v3183 = vadd.f32 %v2669, %v3079
    %v3184 = vadd.f32 %v2670, %v3082
    %v3185 = vadd.f32 %v2671, %v3087
    %v3186 = vadd.f32 %v2672, %v3090
    %v3187 = vadd.f32 %v2673, %v3095
    %v3188 = vadd.f32 %v2674, %v3098
    %v3189 = vadd.f32 %v2675, %v3103
    %v3190 = vadd.f32 %v2676, %v3106
    %v3191 = vadd.f32 %v2677, %v3111
    %v3192 = vadd.f32 %v2678, %v3114
    %v3193 = vadd.f32 %v2679, %v3119
    %v3194 = vadd.f32 %v2680, %v3122
    %v3195 = vadd.f32 %v2681, %v3127
    %v3196 = vadd.f32 %v2682, %v3130
    %s3197 = scalar_lea.vmem [#allocation2], 48
    %v3198 = vld [vmem:[%s3197] sm:$0xff]
    %v3199 = vld [vmem:[%s3197 + $0x8] sm:$0xff]
    %v3200 = vld [vmem:[%s3197 + $0x18] sm:$0xff]
    %v3201 = vld [vmem:[%s3197 + $0x20] sm:$0xff]
    %v3202 = vld [vmem:[%s3197 + $0x30] sm:$0xff]
    %v3203 = vld [vmem:[%s3197 + $0x38] sm:$0xff]
    %v3204 = vld [vmem:[%s3197 + $0x48] sm:$0xff]
    %v3205 = vld [vmem:[%s3197 + $0x50] sm:$0xff]
    %v3206 = vld [vmem:[%s3197 + $0x60] sm:$0xff]
    %v3207 = vld [vmem:[%s3197 + $0x68] sm:$0xff]
    %v3208 = vld [vmem:[%s3197 + $0x78] sm:$0xff]
    %v3209 = vld [vmem:[%s3197 + $0x80] sm:$0xff]
    %v3210 = vld [vmem:[%s3197 + $0x90] sm:$0xff]
    %v3211 = vld [vmem:[%s3197 + $0x98] sm:$0xff]
    %v3212 = vld [vmem:[%s3197 + $0xa8] sm:$0xff]
    %v3213 = vld [vmem:[%s3197 + $0xb0] sm:$0xff]
    %v3214 = vld [vmem:[%s3197 + $0xc0] sm:$0xff]
    %v3215 = vld [vmem:[%s3197 + $0xc8] sm:$0xff]
    %v3216 = vld [vmem:[%s3197 + $0xd8] sm:$0xff]
    %v3217 = vld [vmem:[%s3197 + $0xe0] sm:$0xff]
    %v3218 = vld [vmem:[%s3197 + $0xf0] sm:$0xff]
    %v3219 = vld [vmem:[%s3197 + $0xf8] sm:$0xff]
    %v3220 = vld [vmem:[%s3197 + $0x108] sm:$0xff]
    %v3221 = vld [vmem:[%s3197 + $0x110] sm:$0xff]
    %v3222 = vld [vmem:[%s3197 + $0x120] sm:$0xff]
    %v3223 = vld [vmem:[%s3197 + $0x128] sm:$0xff]
    %v3224 = vld [vmem:[%s3197 + $0x138] sm:$0xff]
    %v3225 = vld [vmem:[%s3197 + $0x140] sm:$0xff]
    %v3226 = vld [vmem:[%s3197 + $0x150] sm:$0xff]
    %v3227 = vld [vmem:[%s3197 + $0x158] sm:$0xff]
    %v3228 = vld [vmem:[%s3197 + $0x168] sm:$0xff]
    %v3229 = vld [vmem:[%s3197 + $0x170] sm:$0xff]
    %v3230 = vld [vmem:[%s3197 + $0x1b0] sm:$0xff]
    %v3231 = vld [vmem:[%s3197 + $0x1b8] sm:$0xff]
    %v3232 = vld [vmem:[%s3197 + $0x1c8] sm:$0xff]
    %v3233 = vld [vmem:[%s3197 + $0x1d0] sm:$0xff]
    %v3234 = vld [vmem:[%s3197 + $0x1e0] sm:$0xff]
    %v3235 = vld [vmem:[%s3197 + $0x1e8] sm:$0xff]
    %v3236 = vld [vmem:[%s3197 + $0x1f8] sm:$0xff]
    %v3237 = vld [vmem:[%s3197 + $0x200] sm:$0xff]
    %v3238 = vld [vmem:[%s3197 + $0x210] sm:$0xff]
    %v3239 = vld [vmem:[%s3197 + $0x218] sm:$0xff]
    %v3240 = vld [vmem:[%s3197 + $0x228] sm:$0xff]
    %v3241 = vld [vmem:[%s3197 + $0x230] sm:$0xff]
    %v3242 = vld [vmem:[%s3197 + $0x240] sm:$0xff]
    %v3243 = vld [vmem:[%s3197 + $0x248] sm:$0xff]
    %v3244 = vld [vmem:[%s3197 + $0x258] sm:$0xff]
    %v3245 = vld [vmem:[%s3197 + $0x260] sm:$0xff]
    %v3246 = vld [vmem:[%s3197 + $0x270] sm:$0xff]
    %v3247 = vld [vmem:[%s3197 + $0x278] sm:$0xff]
    %v3248 = vld [vmem:[%s3197 + $0x288] sm:$0xff]
    %v3249 = vld [vmem:[%s3197 + $0x290] sm:$0xff]
    %v3250 = vld [vmem:[%s3197 + $0x2a0] sm:$0xff]
    %v3251 = vld [vmem:[%s3197 + $0x2a8] sm:$0xff]
    %v3252 = vld [vmem:[%s3197 + $0x2b8] sm:$0xff]
    %v3253 = vld [vmem:[%s3197 + $0x2c0] sm:$0xff]
    %v3254 = vld [vmem:[%s3197 + $0x2d0] sm:$0xff]
    %v3255 = vld [vmem:[%s3197 + $0x2d8] sm:$0xff]
    %v3256 = vld [vmem:[%s3197 + $0x2e8] sm:$0xff]
    %v3257 = vld [vmem:[%s3197 + $0x2f0] sm:$0xff]
    %v3258 = vld [vmem:[%s3197 + $0x300] sm:$0xff]
    %v3259 = vld [vmem:[%s3197 + $0x308] sm:$0xff]
    %v3260 = vld [vmem:[%s3197 + $0x318] sm:$0xff]
    %v3261 = vld [vmem:[%s3197 + $0x320] sm:$0xff]
    %v3262 = vpack.c.bf16 %v3199, %v3198
    %v3263 = vpack.c.bf16 %v3201, %v3200
    %v3264 = vpack.c.bf16 %v3203, %v3202
    %v3265 = vpack.c.bf16 %v3205, %v3204
    %v3266 = vpack.c.bf16 %v3207, %v3206
    %v3267 = vpack.c.bf16 %v3209, %v3208
    %v3268 = vpack.c.bf16 %v3211, %v3210
    %v3269 = vpack.c.bf16 %v3213, %v3212
    %v3270 = vpack.c.bf16 %v3215, %v3214
    %v3271 = vpack.c.bf16 %v3217, %v3216
    %v3272 = vpack.c.bf16 %v3219, %v3218
    %v3273 = vpack.c.bf16 %v3221, %v3220
    %v3274 = vpack.c.bf16 %v3223, %v3222
    %v3275 = vpack.c.bf16 %v3225, %v3224
    %v3276 = vpack.c.bf16 %v3227, %v3226
    %v3277 = vpack.c.bf16 %v3229, %v3228
    %v3278 = vpack.c.bf16 %v3231, %v3230
    %v3279 = vpack.c.bf16 %v3233, %v3232
    %v3280 = vpack.c.bf16 %v3235, %v3234
    %v3281 = vpack.c.bf16 %v3237, %v3236
    %v3282 = vpack.c.bf16 %v3239, %v3238
    %v3283 = vpack.c.bf16 %v3241, %v3240
    %v3284 = vpack.c.bf16 %v3243, %v3242
    %v3285 = vpack.c.bf16 %v3245, %v3244
    %v3286 = vpack.c.bf16 %v3247, %v3246
    %v3287 = vpack.c.bf16 %v3249, %v3248
    %v3288 = vpack.c.bf16 %v3251, %v3250
    %v3289 = vpack.c.bf16 %v3253, %v3252
    %v3290 = vpack.c.bf16 %v3255, %v3254
    %v3291 = vpack.c.bf16 %v3257, %v3256
    %v3292 = vpack.c.bf16 %v3259, %v3258
    %v3293 = vpack.c.bf16 %v3261, %v3260
    %s3294 = scalar_lea.vmem %s1, 384
    %v3295 = vld [vmem:[%s3294] sm:$0xf]
    %v3296 = vld [vmem:[%s3294 + $0x4] sm:$0xf]
    %v3297 = vld [vmem:[%s3294 + $0x8] sm:$0xf]
    %v3298 = vld [vmem:[%s3294 + $0xc] sm:$0xf]
    %v3299 = vld [vmem:[%s3294 + $0x10] sm:$0xf]
    %v3300 = vld [vmem:[%s3294 + $0x14] sm:$0xf]
    %v3301 = vld [vmem:[%s3294 + $0x18] sm:$0xf]
    %v3302 = vld [vmem:[%s3294 + $0x1c] sm:$0xf]
    %v3303 = vld [vmem:[%s3294 + $0x20] sm:$0xf]
    %v3304 = vld [vmem:[%s3294 + $0x24] sm:$0xf]
    %v3305 = vld [vmem:[%s3294 + $0x28] sm:$0xf]
    %v3306 = vld [vmem:[%s3294 + $0x2c] sm:$0xf]
    %v3307 = vld [vmem:[%s3294 + $0x30] sm:$0xf]
    %v3308 = vld [vmem:[%s3294 + $0x34] sm:$0xf]
    %v3309 = vld [vmem:[%s3294 + $0x38] sm:$0xf]
    %v3310 = vld [vmem:[%s3294 + $0x3c] sm:$0xf]
    %v3327 = vunpack.c.l.b16 %v3295
    %v3328 = vunpack.c.l.b16 %v3296
    %v3329 = vunpack.c.l.b16 %v3297
    %v3330 = vunpack.c.l.b16 %v3298
    %v3331 = vunpack.c.l.b16 %v3299
    %v3332 = vunpack.c.l.b16 %v3300
    %v3333 = vunpack.c.l.b16 %v3301
    %v3334 = vunpack.c.l.b16 %v3302
    %v3335 = vunpack.c.l.b16 %v3303
    %v3336 = vunpack.c.l.b16 %v3304
    %v3337 = vunpack.c.l.b16 %v3305
    %v3338 = vunpack.c.l.b16 %v3306
    %v3339 = vunpack.c.l.b16 %v3307
    %v3340 = vunpack.c.l.b16 %v3308
    %v3341 = vunpack.c.l.b16 %v3309
    %v3342 = vunpack.c.l.b16 %v3310
    %v3343 = vpack.c.b16 %v3328, %v3327
    %v3344 = vpack.c.b16 %v3330, %v3329
    %v3345 = vpack.c.b16 %v3332, %v3331
    %v3346 = vpack.c.b16 %v3334, %v3333
    %v3347 = vpack.c.b16 %v3336, %v3335
    %v3348 = vpack.c.b16 %v3338, %v3337
    %v3349 = vpack.c.b16 %v3340, %v3339
    %v3350 = vpack.c.b16 %v3342, %v3341
    %3359 = vmatprep.subr.bf16.mxu0 0
    %3360 = vmatpush1.bf16.msra.mxu0 %v3350
    %3361 = vmatprep.subr.bf16.mxu0 0
    %3362 = vmatpush1.bf16.msra.mxu0 %v3349
    %3363 = vmatprep.subr.bf16.mxu0 0
    %3364 = vmatpush1.bf16.msra.mxu0 %v3348
    %3365 = vmatprep.subr.bf16.mxu0 0
    %3366 = vmatpush1.bf16.msra.mxu0 %v3347
    %3367 = vmatprep.subr.bf16.mxu0 0
    %3368 = vmatpush1.bf16.msra.mxu0 %v3346
    %3369 = vmatprep.subr.bf16.mxu0 0
    %3370 = vmatpush1.bf16.msra.mxu0 %v3345
    %3371 = vmatprep.subr.bf16.mxu0 0
    %3372 = vmatpush1.bf16.msra.mxu0 %v3344
    %3373 = vmatprep.subr.bf16.mxu0 0
    %3374 = vmatpush1.bf16.msra.mxu0 %v3343
    %3375 = vmatprep.subr.bf16.mxu0 0
    %3376 = vmatpush2.bf16.msra.mxu0 0
    %3377 = vmatprep.subr.bf16.mxu0 0
    %3378 = vmatpush2.bf16.msra.mxu0 0
    %3379 = vmatprep.subr.bf16.mxu0 0
    %3380 = vmatpush2.bf16.msra.mxu0 0
    %3381 = vmatprep.subr.bf16.mxu0 0
    %3382 = vmatpush2.bf16.msra.mxu0 0
    %3383 = vmatprep.subr.bf16.mxu0 0
    %3384 = vmatpush2.bf16.msra.mxu0 0
    %3385 = vmatprep.subr.bf16.mxu0 0
    %3386 = vmatpush2.bf16.msra.mxu0 0
    %3387 = vmatprep.subr.bf16.mxu0 0
    %3388 = vmatpush2.bf16.msra.mxu0 0
    %3389 = vmatprep.subr.bf16.mxu0 0
    %3390 = vmatpush2.bf16.msra.mxu0 0
    %3391 = vmatprep.mubr.bf16.mxu0 0
    %3392 = vmatmul.mubr.bf16.gmra.mxu0 %v3262
    %v3393 = vpop.f32.mrf.mxu0
    %v3394 = vadd.f32 0.0, %v3393
    %v3395 = vpop.f32.mrf.mxu0
    %v3396 = vpop.f32.mrf.mxu0
    %v3397 = vadd.f32 0.0, %v3396
    %v3398 = vpop.f32.mrf.mxu0
    %3399 = vmatprep.mubr.bf16.mxu0 0
    %3400 = vmatmul.mubr.bf16.gmra.mxu0 %v3263
    %v3401 = vpop.f32.mrf.mxu0
    %v3402 = vadd.f32 0.0, %v3401
    %v3403 = vpop.f32.mrf.mxu0
    %v3404 = vpop.f32.mrf.mxu0
    %v3405 = vadd.f32 0.0, %v3404
    %v3406 = vpop.f32.mrf.mxu0
    %3407 = vmatprep.mubr.bf16.mxu0 0
    %3408 = vmatmul.mubr.bf16.gmra.mxu0 %v3264
    %v3409 = vpop.f32.mrf.mxu0
    %v3410 = vadd.f32 0.0, %v3409
    %v3411 = vpop.f32.mrf.mxu0
    %v3412 = vpop.f32.mrf.mxu0
    %v3413 = vadd.f32 0.0, %v3412
    %v3414 = vpop.f32.mrf.mxu0
    %3415 = vmatprep.mubr.bf16.mxu0 0
    %3416 = vmatmul.mubr.bf16.gmra.mxu0 %v3265
    %v3417 = vpop.f32.mrf.mxu0
    %v3418 = vadd.f32 0.0, %v3417
    %v3419 = vpop.f32.mrf.mxu0
    %v3420 = vpop.f32.mrf.mxu0
    %v3421 = vadd.f32 0.0, %v3420
    %v3422 = vpop.f32.mrf.mxu0
    %3423 = vmatprep.mubr.bf16.mxu0 0
    %3424 = vmatmul.mubr.bf16.gmra.mxu0 %v3266
    %v3425 = vpop.f32.mrf.mxu0
    %v3426 = vadd.f32 0.0, %v3425
    %v3427 = vpop.f32.mrf.mxu0
    %v3428 = vpop.f32.mrf.mxu0
    %v3429 = vadd.f32 0.0, %v3428
    %v3430 = vpop.f32.mrf.mxu0
    %3431 = vmatprep.mubr.bf16.mxu0 0
    %3432 = vmatmul.mubr.bf16.gmra.mxu0 %v3267
    %v3433 = vpop.f32.mrf.mxu0
    %v3434 = vadd.f32 0.0, %v3433
    %v3435 = vpop.f32.mrf.mxu0
    %v3436 = vpop.f32.mrf.mxu0
    %v3437 = vadd.f32 0.0, %v3436
    %v3438 = vpop.f32.mrf.mxu0
    %3439 = vmatprep.mubr.bf16.mxu0 0
    %3440 = vmatmul.mubr.bf16.gmra.mxu0 %v3268
    %v3441 = vpop.f32.mrf.mxu0
    %v3442 = vadd.f32 0.0, %v3441
    %v3443 = vpop.f32.mrf.mxu0
    %v3444 = vpop.f32.mrf.mxu0
    %v3445 = vadd.f32 0.0, %v3444
    %v3446 = vpop.f32.mrf.mxu0
    %3447 = vmatprep.mubr.bf16.mxu0 0
    %3448 = vmatmul.mubr.bf16.gmra.mxu0 %v3269
    %v3449 = vpop.f32.mrf.mxu0
    %v3450 = vadd.f32 0.0, %v3449
    %v3451 = vpop.f32.mrf.mxu0
    %v3452 = vpop.f32.mrf.mxu0
    %v3453 = vadd.f32 0.0, %v3452
    %v3454 = vpop.f32.mrf.mxu0
    %3455 = vmatprep.mubr.bf16.mxu0 0
    %3456 = vmatmul.mubr.bf16.gmra.mxu0 %v3270
    %v3457 = vpop.f32.mrf.mxu0
    %v3458 = vadd.f32 0.0, %v3457
    %v3459 = vpop.f32.mrf.mxu0
    %v3460 = vpop.f32.mrf.mxu0
    %v3461 = vadd.f32 0.0, %v3460
    %v3462 = vpop.f32.mrf.mxu0
    %3463 = vmatprep.mubr.bf16.mxu0 0
    %3464 = vmatmul.mubr.bf16.gmra.mxu0 %v3271
    %v3465 = vpop.f32.mrf.mxu0
    %v3466 = vadd.f32 0.0, %v3465
    %v3467 = vpop.f32.mrf.mxu0
    %v3468 = vpop.f32.mrf.mxu0
    %v3469 = vadd.f32 0.0, %v3468
    %v3470 = vpop.f32.mrf.mxu0
    %3471 = vmatprep.mubr.bf16.mxu0 0
    %3472 = vmatmul.mubr.bf16.gmra.mxu0 %v3272
    %v3473 = vpop.f32.mrf.mxu0
    %v3474 = vadd.f32 0.0, %v3473
    %v3475 = vpop.f32.mrf.mxu0
    %v3476 = vpop.f32.mrf.mxu0
    %v3477 = vadd.f32 0.0, %v3476
    %v3478 = vpop.f32.mrf.mxu0
    %3479 = vmatprep.mubr.bf16.mxu0 0
    %3480 = vmatmul.mubr.bf16.gmra.mxu0 %v3273
    %v3481 = vpop.f32.mrf.mxu0
    %v3482 = vadd.f32 0.0, %v3481
    %v3483 = vpop.f32.mrf.mxu0
    %v3484 = vpop.f32.mrf.mxu0
    %v3485 = vadd.f32 0.0, %v3484
    %v3486 = vpop.f32.mrf.mxu0
    %3487 = vmatprep.mubr.bf16.mxu0 0
    %3488 = vmatmul.mubr.bf16.gmra.mxu0 %v3274
    %v3489 = vpop.f32.mrf.mxu0
    %v3490 = vadd.f32 0.0, %v3489
    %v3491 = vpop.f32.mrf.mxu0
    %v3492 = vpop.f32.mrf.mxu0
    %v3493 = vadd.f32 0.0, %v3492
    %v3494 = vpop.f32.mrf.mxu0
    %3495 = vmatprep.mubr.bf16.mxu0 0
    %3496 = vmatmul.mubr.bf16.gmra.mxu0 %v3275
    %v3497 = vpop.f32.mrf.mxu0
    %v3498 = vadd.f32 0.0, %v3497
    %v3499 = vpop.f32.mrf.mxu0
    %v3500 = vpop.f32.mrf.mxu0
    %v3501 = vadd.f32 0.0, %v3500
    %v3502 = vpop.f32.mrf.mxu0
    %3503 = vmatprep.mubr.bf16.mxu0 0
    %3504 = vmatmul.mubr.bf16.gmra.mxu0 %v3276
    %v3505 = vpop.f32.mrf.mxu0
    %v3506 = vadd.f32 0.0, %v3505
    %v3507 = vpop.f32.mrf.mxu0
    %v3508 = vpop.f32.mrf.mxu0
    %v3509 = vadd.f32 0.0, %v3508
    %v3510 = vpop.f32.mrf.mxu0
    %3511 = vmatprep.mubr.bf16.mxu0 0
    %3512 = vmatmul.mubr.bf16.gmra.mxu0 %v3277
    %v3513 = vpop.f32.mrf.mxu0
    %v3514 = vadd.f32 0.0, %v3513
    %v3515 = vpop.f32.mrf.mxu0
    %v3516 = vpop.f32.mrf.mxu0
    %v3517 = vadd.f32 0.0, %v3516
    %v3518 = vpop.f32.mrf.mxu0
    %3519 = vmatprep.mubr.bf16.mxu0 0
    %3520 = vmatmul.mubr.bf16.gmra.mxu0 %v3278
    %v3521 = vpop.f32.mrf.mxu0
    %v3522 = vadd.f32 0.0, %v3521
    %v3523 = vpop.f32.mrf.mxu0
    %v3524 = vpop.f32.mrf.mxu0
    %v3525 = vadd.f32 0.0, %v3524
    %v3526 = vpop.f32.mrf.mxu0
    %3527 = vmatprep.mubr.bf16.mxu0 0
    %3528 = vmatmul.mubr.bf16.gmra.mxu0 %v3279
    %v3529 = vpop.f32.mrf.mxu0
    %v3530 = vadd.f32 0.0, %v3529
    %v3531 = vpop.f32.mrf.mxu0
    %v3532 = vpop.f32.mrf.mxu0
    %v3533 = vadd.f32 0.0, %v3532
    %v3534 = vpop.f32.mrf.mxu0
    %3535 = vmatprep.mubr.bf16.mxu0 0
    %3536 = vmatmul.mubr.bf16.gmra.mxu0 %v3280
    %v3537 = vpop.f32.mrf.mxu0
    %v3538 = vadd.f32 0.0, %v3537
    %v3539 = vpop.f32.mrf.mxu0
    %v3540 = vpop.f32.mrf.mxu0
    %v3541 = vadd.f32 0.0, %v3540
    %v3542 = vpop.f32.mrf.mxu0
    %3543 = vmatprep.mubr.bf16.mxu0 0
    %3544 = vmatmul.mubr.bf16.gmra.mxu0 %v3281
    %v3545 = vpop.f32.mrf.mxu0
    %v3546 = vadd.f32 0.0, %v3545
    %v3547 = vpop.f32.mrf.mxu0
    %v3548 = vpop.f32.mrf.mxu0
    %v3549 = vadd.f32 0.0, %v3548
    %v3550 = vpop.f32.mrf.mxu0
    %3551 = vmatprep.mubr.bf16.mxu0 0
    %3552 = vmatmul.mubr.bf16.gmra.mxu0 %v3282
    %v3553 = vpop.f32.mrf.mxu0
    %v3554 = vadd.f32 0.0, %v3553
    %v3555 = vpop.f32.mrf.mxu0
    %v3556 = vpop.f32.mrf.mxu0
    %v3557 = vadd.f32 0.0, %v3556
    %v3558 = vpop.f32.mrf.mxu0
    %3559 = vmatprep.mubr.bf16.mxu0 0
    %3560 = vmatmul.mubr.bf16.gmra.mxu0 %v3283
    %v3561 = vpop.f32.mrf.mxu0
    %v3562 = vadd.f32 0.0, %v3561
    %v3563 = vpop.f32.mrf.mxu0
    %v3564 = vpop.f32.mrf.mxu0
    %v3565 = vadd.f32 0.0, %v3564
    %v3566 = vpop.f32.mrf.mxu0
    %3567 = vmatprep.mubr.bf16.mxu0 0
    %3568 = vmatmul.mubr.bf16.gmra.mxu0 %v3284
    %v3569 = vpop.f32.mrf.mxu0
    %v3570 = vadd.f32 0.0, %v3569
    %v3571 = vpop.f32.mrf.mxu0
    %v3572 = vpop.f32.mrf.mxu0
    %v3573 = vadd.f32 0.0, %v3572
    %v3574 = vpop.f32.mrf.mxu0
    %3575 = vmatprep.mubr.bf16.mxu0 0
    %3576 = vmatmul.mubr.bf16.gmra.mxu0 %v3285
    %v3577 = vpop.f32.mrf.mxu0
    %v3578 = vadd.f32 0.0, %v3577
    %v3579 = vpop.f32.mrf.mxu0
    %v3580 = vpop.f32.mrf.mxu0
    %v3581 = vadd.f32 0.0, %v3580
    %v3582 = vpop.f32.mrf.mxu0
    %3583 = vmatprep.mubr.bf16.mxu0 0
    %3584 = vmatmul.mubr.bf16.gmra.mxu0 %v3286
    %v3585 = vpop.f32.mrf.mxu0
    %v3586 = vadd.f32 0.0, %v3585
    %v3587 = vpop.f32.mrf.mxu0
    %v3588 = vpop.f32.mrf.mxu0
    %v3589 = vadd.f32 0.0, %v3588
    %v3590 = vpop.f32.mrf.mxu0
    %3591 = vmatprep.mubr.bf16.mxu0 0
    %3592 = vmatmul.mubr.bf16.gmra.mxu0 %v3287
    %v3593 = vpop.f32.mrf.mxu0
    %v3594 = vadd.f32 0.0, %v3593
    %v3595 = vpop.f32.mrf.mxu0
    %v3596 = vpop.f32.mrf.mxu0
    %v3597 = vadd.f32 0.0, %v3596
    %v3598 = vpop.f32.mrf.mxu0
    %3599 = vmatprep.mubr.bf16.mxu0 0
    %3600 = vmatmul.mubr.bf16.gmra.mxu0 %v3288
    %v3601 = vpop.f32.mrf.mxu0
    %v3602 = vadd.f32 0.0, %v3601
    %v3603 = vpop.f32.mrf.mxu0
    %v3604 = vpop.f32.mrf.mxu0
    %v3605 = vadd.f32 0.0, %v3604
    %v3606 = vpop.f32.mrf.mxu0
    %3607 = vmatprep.mubr.bf16.mxu0 0
    %3608 = vmatmul.mubr.bf16.gmra.mxu0 %v3289
    %v3609 = vpop.f32.mrf.mxu0
    %v3610 = vadd.f32 0.0, %v3609
    %v3611 = vpop.f32.mrf.mxu0
    %v3612 = vpop.f32.mrf.mxu0
    %v3613 = vadd.f32 0.0, %v3612
    %v3614 = vpop.f32.mrf.mxu0
    %3615 = vmatprep.mubr.bf16.mxu0 0
    %3616 = vmatmul.mubr.bf16.gmra.mxu0 %v3290
    %v3617 = vpop.f32.mrf.mxu0
    %v3618 = vadd.f32 0.0, %v3617
    %v3619 = vpop.f32.mrf.mxu0
    %v3620 = vpop.f32.mrf.mxu0
    %v3621 = vadd.f32 0.0, %v3620
    %v3622 = vpop.f32.mrf.mxu0
    %3623 = vmatprep.mubr.bf16.mxu0 0
    %3624 = vmatmul.mubr.bf16.gmra.mxu0 %v3291
    %v3625 = vpop.f32.mrf.mxu0
    %v3626 = vadd.f32 0.0, %v3625
    %v3627 = vpop.f32.mrf.mxu0
    %v3628 = vpop.f32.mrf.mxu0
    %v3629 = vadd.f32 0.0, %v3628
    %v3630 = vpop.f32.mrf.mxu0
    %3631 = vmatprep.mubr.bf16.mxu0 0
    %3632 = vmatmul.mubr.bf16.gmra.mxu0 %v3292
    %v3633 = vpop.f32.mrf.mxu0
    %v3634 = vadd.f32 0.0, %v3633
    %v3635 = vpop.f32.mrf.mxu0
    %v3636 = vpop.f32.mrf.mxu0
    %v3637 = vadd.f32 0.0, %v3636
    %v3638 = vpop.f32.mrf.mxu0
    %3639 = vmatprep.mubr.bf16.mxu0 0
    %3640 = vmatmul.mubr.bf16.gmra.mxu0 %v3293
    %v3641 = vpop.f32.mrf.mxu0
    %v3642 = vadd.f32 0.0, %v3641
    %v3643 = vpop.f32.mrf.mxu0
    %v3644 = vpop.f32.mrf.mxu0
    %v3645 = vadd.f32 0.0, %v3644
    %v3646 = vpop.f32.mrf.mxu0
    %3647 = vdwg.mxu0
    %v3648 = vadd.f32 %v3133, %v3394
    %v3649 = vadd.f32 %v3134, %v3397
    %v3650 = vadd.f32 %v3135, %v3402
    %v3651 = vadd.f32 %v3136, %v3405
    %v3652 = vadd.f32 %v3137, %v3410
    %v3653 = vadd.f32 %v3138, %v3413
    %v3654 = vadd.f32 %v3139, %v3418
    %v3655 = vadd.f32 %v3140, %v3421
    %v3656 = vadd.f32 %v3141, %v3426
    %v3657 = vadd.f32 %v3142, %v3429
    %v3658 = vadd.f32 %v3143, %v3434
    %v3659 = vadd.f32 %v3144, %v3437
    %v3660 = vadd.f32 %v3145, %v3442
    %v3661 = vadd.f32 %v3146, %v3445
    %v3662 = vadd.f32 %v3147, %v3450
    %v3663 = vadd.f32 %v3148, %v3453
    %v3664 = vadd.f32 %v3149, %v3458
    %v3665 = vadd.f32 %v3150, %v3461
    %v3666 = vadd.f32 %v3151, %v3466
    %v3667 = vadd.f32 %v3152, %v3469
    %v3668 = vadd.f32 %v3153, %v3474
    %v3669 = vadd.f32 %v3154, %v3477
    %v3670 = vadd.f32 %v3155, %v3482
    %v3671 = vadd.f32 %v3156, %v3485
    %v3672 = vadd.f32 %v3157, %v3490
    %v3673 = vadd.f32 %v3158, %v3493
    %v3674 = vadd.f32 %v3159, %v3498
    %v3675 = vadd.f32 %v3160, %v3501
    %v3676 = vadd.f32 %v3161, %v3506
    %v3677 = vadd.f32 %v3162, %v3509
    %v3678 = vadd.f32 %v3163, %v3514
    %v3679 = vadd.f32 %v3164, %v3517
    %v3680 = vadd.f32 %v3165, %v3522
    %v3681 = vadd.f32 %v3166, %v3525
    %v3682 = vadd.f32 %v3167, %v3530
    %v3683 = vadd.f32 %v3168, %v3533
    %v3684 = vadd.f32 %v3169, %v3538
    %v3685 = vadd.f32 %v3170, %v3541
    %v3686 = vadd.f32 %v3171, %v3546
    %v3687 = vadd.f32 %v3172, %v3549
    %v3688 = vadd.f32 %v3173, %v3554
    %v3689 = vadd.f32 %v3174, %v3557
    %v3690 = vadd.f32 %v3175, %v3562
    %v3691 = vadd.f32 %v3176, %v3565
    %v3692 = vadd.f32 %v3177, %v3570
    %v3693 = vadd.f32 %v3178, %v3573
    %v3694 = vadd.f32 %v3179, %v3578
    %v3695 = vadd.f32 %v3180, %v3581
    %v3696 = vadd.f32 %v3181, %v3586
    %v3697 = vadd.f32 %v3182, %v3589
    %v3698 = vadd.f32 %v3183, %v3594
    %v3699 = vadd.f32 %v3184, %v3597
    %v3700 = vadd.f32 %v3185, %v3602
    %v3701 = vadd.f32 %v3186, %v3605
    %v3702 = vadd.f32 %v3187, %v3610
    %v3703 = vadd.f32 %v3188, %v3613
    %v3704 = vadd.f32 %v3189, %v3618
    %v3705 = vadd.f32 %v3190, %v3621
    %v3706 = vadd.f32 %v3191, %v3626
    %v3707 = vadd.f32 %v3192, %v3629
    %v3708 = vadd.f32 %v3193, %v3634
    %v3709 = vadd.f32 %v3194, %v3637
    %v3710 = vadd.f32 %v3195, %v3642
    %v3711 = vadd.f32 %v3196, %v3645
    %v3712 = vld [vmem:[%s3197 + $0x1] sm:$0xff]
    %v3713 = vld [vmem:[%s3197 + $0x9] sm:$0xff]
    %v3714 = vld [vmem:[%s3197 + $0x19] sm:$0xff]
    %v3715 = vld [vmem:[%s3197 + $0x21] sm:$0xff]
    %v3716 = vld [vmem:[%s3197 + $0x31] sm:$0xff]
    %v3717 = vld [vmem:[%s3197 + $0x39] sm:$0xff]
    %v3718 = vld [vmem:[%s3197 + $0x49] sm:$0xff]
    %v3719 = vld [vmem:[%s3197 + $0x51] sm:$0xff]
    %v3720 = vld [vmem:[%s3197 + $0x61] sm:$0xff]
    %v3721 = vld [vmem:[%s3197 + $0x69] sm:$0xff]
    %v3722 = vld [vmem:[%s3197 + $0x79] sm:$0xff]
    %v3723 = vld [vmem:[%s3197 + $0x81] sm:$0xff]
    %v3724 = vld [vmem:[%s3197 + $0x91] sm:$0xff]
    %v3725 = vld [vmem:[%s3197 + $0x99] sm:$0xff]
    %v3726 = vld [vmem:[%s3197 + $0xa9] sm:$0xff]
    %v3727 = vld [vmem:[%s3197 + $0xb1] sm:$0xff]
    %v3728 = vld [vmem:[%s3197 + $0xc1] sm:$0xff]
    %v3729 = vld [vmem:[%s3197 + $0xc9] sm:$0xff]
    %v3730 = vld [vmem:[%s3197 + $0xd9] sm:$0xff]
    %v3731 = vld [vmem:[%s3197 + $0xe1] sm:$0xff]
    %v3732 = vld [vmem:[%s3197 + $0xf1] sm:$0xff]
    %v3733 = vld [vmem:[%s3197 + $0xf9] sm:$0xff]
    %v3734 = vld [vmem:[%s3197 + $0x109] sm:$0xff]
    %v3735 = vld [vmem:[%s3197 + $0x111] sm:$0xff]
    %v3736 = vld [vmem:[%s3197 + $0x121] sm:$0xff]
    %v3737 = vld [vmem:[%s3197 + $0x129] sm:$0xff]
    %v3738 = vld [vmem:[%s3197 + $0x139] sm:$0xff]
    %v3739 = vld [vmem:[%s3197 + $0x141] sm:$0xff]
    %v3740 = vld [vmem:[%s3197 + $0x151] sm:$0xff]
    %v3741 = vld [vmem:[%s3197 + $0x159] sm:$0xff]
    %v3742 = vld [vmem:[%s3197 + $0x169] sm:$0xff]
    %v3743 = vld [vmem:[%s3197 + $0x171] sm:$0xff]
    %v3744 = vld [vmem:[%s3197 + $0x1b1] sm:$0xff]
    %v3745 = vld [vmem:[%s3197 + $0x1b9] sm:$0xff]
    %v3746 = vld [vmem:[%s3197 + $0x1c9] sm:$0xff]
    %v3747 = vld [vmem:[%s3197 + $0x1d1] sm:$0xff]
    %v3748 = vld [vmem:[%s3197 + $0x1e1] sm:$0xff]
    %v3749 = vld [vmem:[%s3197 + $0x1e9] sm:$0xff]
    %v3750 = vld [vmem:[%s3197 + $0x1f9] sm:$0xff]
    %v3751 = vld [vmem:[%s3197 + $0x201] sm:$0xff]
    %v3752 = vld [vmem:[%s3197 + $0x211] sm:$0xff]
    %v3753 = vld [vmem:[%s3197 + $0x219] sm:$0xff]
    %v3754 = vld [vmem:[%s3197 + $0x229] sm:$0xff]
    %v3755 = vld [vmem:[%s3197 + $0x231] sm:$0xff]
    %v3756 = vld [vmem:[%s3197 + $0x241] sm:$0xff]
    %v3757 = vld [vmem:[%s3197 + $0x249] sm:$0xff]
    %v3758 = vld [vmem:[%s3197 + $0x259] sm:$0xff]
    %v3759 = vld [vmem:[%s3197 + $0x261] sm:$0xff]
    %v3760 = vld [vmem:[%s3197 + $0x271] sm:$0xff]
    %v3761 = vld [vmem:[%s3197 + $0x279] sm:$0xff]
    %v3762 = vld [vmem:[%s3197 + $0x289] sm:$0xff]
    %v3763 = vld [vmem:[%s3197 + $0x291] sm:$0xff]
    %v3764 = vld [vmem:[%s3197 + $0x2a1] sm:$0xff]
    %v3765 = vld [vmem:[%s3197 + $0x2a9] sm:$0xff]
    %v3766 = vld [vmem:[%s3197 + $0x2b9] sm:$0xff]
    %v3767 = vld [vmem:[%s3197 + $0x2c1] sm:$0xff]
    %v3768 = vld [vmem:[%s3197 + $0x2d1] sm:$0xff]
    %v3769 = vld [vmem:[%s3197 + $0x2d9] sm:$0xff]
    %v3770 = vld [vmem:[%s3197 + $0x2e9] sm:$0xff]
    %v3771 = vld [vmem:[%s3197 + $0x2f1] sm:$0xff]
    %v3772 = vld [vmem:[%s3197 + $0x301] sm:$0xff]
    %v3773 = vld [vmem:[%s3197 + $0x309] sm:$0xff]
    %v3774 = vld [vmem:[%s3197 + $0x319] sm:$0xff]
    %v3775 = vld [vmem:[%s3197 + $0x321] sm:$0xff]
    %v3776 = vpack.c.bf16 %v3713, %v3712
    %v3777 = vpack.c.bf16 %v3715, %v3714
    %v3778 = vpack.c.bf16 %v3717, %v3716
    %v3779 = vpack.c.bf16 %v3719, %v3718
    %v3780 = vpack.c.bf16 %v3721, %v3720
    %v3781 = vpack.c.bf16 %v3723, %v3722
    %v3782 = vpack.c.bf16 %v3725, %v3724
    %v3783 = vpack.c.bf16 %v3727, %v3726
    %v3784 = vpack.c.bf16 %v3729, %v3728
    %v3785 = vpack.c.bf16 %v3731, %v3730
    %v3786 = vpack.c.bf16 %v3733, %v3732
    %v3787 = vpack.c.bf16 %v3735, %v3734
    %v3788 = vpack.c.bf16 %v3737, %v3736
    %v3789 = vpack.c.bf16 %v3739, %v3738
    %v3790 = vpack.c.bf16 %v3741, %v3740
    %v3791 = vpack.c.bf16 %v3743, %v3742
    %v3792 = vpack.c.bf16 %v3745, %v3744
    %v3793 = vpack.c.bf16 %v3747, %v3746
    %v3794 = vpack.c.bf16 %v3749, %v3748
    %v3795 = vpack.c.bf16 %v3751, %v3750
    %v3796 = vpack.c.bf16 %v3753, %v3752
    %v3797 = vpack.c.bf16 %v3755, %v3754
    %v3798 = vpack.c.bf16 %v3757, %v3756
    %v3799 = vpack.c.bf16 %v3759, %v3758
    %v3800 = vpack.c.bf16 %v3761, %v3760
    %v3801 = vpack.c.bf16 %v3763, %v3762
    %v3802 = vpack.c.bf16 %v3765, %v3764
    %v3803 = vpack.c.bf16 %v3767, %v3766
    %v3804 = vpack.c.bf16 %v3769, %v3768
    %v3805 = vpack.c.bf16 %v3771, %v3770
    %v3806 = vpack.c.bf16 %v3773, %v3772
    %v3807 = vpack.c.bf16 %v3775, %v3774
    %s3808 = scalar_lea.vmem %s1, 448
    %v3809 = vld [vmem:[%s3808] sm:$0xf]
    %v3810 = vld [vmem:[%s3808 + $0x4] sm:$0xf]
    %v3811 = vld [vmem:[%s3808 + $0x8] sm:$0xf]
    %v3812 = vld [vmem:[%s3808 + $0xc] sm:$0xf]
    %v3813 = vld [vmem:[%s3808 + $0x10] sm:$0xf]
    %v3814 = vld [vmem:[%s3808 + $0x14] sm:$0xf]
    %v3815 = vld [vmem:[%s3808 + $0x18] sm:$0xf]
    %v3816 = vld [vmem:[%s3808 + $0x1c] sm:$0xf]
    %v3817 = vld [vmem:[%s3808 + $0x20] sm:$0xf]
    %v3818 = vld [vmem:[%s3808 + $0x24] sm:$0xf]
    %v3819 = vld [vmem:[%s3808 + $0x28] sm:$0xf]
    %v3820 = vld [vmem:[%s3808 + $0x2c] sm:$0xf]
    %v3821 = vld [vmem:[%s3808 + $0x30] sm:$0xf]
    %v3822 = vld [vmem:[%s3808 + $0x34] sm:$0xf]
    %v3823 = vld [vmem:[%s3808 + $0x38] sm:$0xf]
    %v3824 = vld [vmem:[%s3808 + $0x3c] sm:$0xf]
    %v3841 = vunpack.c.l.b16 %v3809
    %v3842 = vunpack.c.l.b16 %v3810
    %v3843 = vunpack.c.l.b16 %v3811
    %v3844 = vunpack.c.l.b16 %v3812
    %v3845 = vunpack.c.l.b16 %v3813
    %v3846 = vunpack.c.l.b16 %v3814
    %v3847 = vunpack.c.l.b16 %v3815
    %v3848 = vunpack.c.l.b16 %v3816
    %v3849 = vunpack.c.l.b16 %v3817
    %v3850 = vunpack.c.l.b16 %v3818
    %v3851 = vunpack.c.l.b16 %v3819
    %v3852 = vunpack.c.l.b16 %v3820
    %v3853 = vunpack.c.l.b16 %v3821
    %v3854 = vunpack.c.l.b16 %v3822
    %v3855 = vunpack.c.l.b16 %v3823
    %v3856 = vunpack.c.l.b16 %v3824
    %v3857 = vpack.c.b16 %v3842, %v3841
    %v3858 = vpack.c.b16 %v3844, %v3843
    %v3859 = vpack.c.b16 %v3846, %v3845
    %v3860 = vpack.c.b16 %v3848, %v3847
    %v3861 = vpack.c.b16 %v3850, %v3849
    %v3862 = vpack.c.b16 %v3852, %v3851
    %v3863 = vpack.c.b16 %v3854, %v3853
    %v3864 = vpack.c.b16 %v3856, %v3855
    %3873 = vmatprep.subr.bf16.mxu0 0
    %3874 = vmatpush1.bf16.msra.mxu0 %v3864
    %3875 = vmatprep.subr.bf16.mxu0 0
    %3876 = vmatpush1.bf16.msra.mxu0 %v3863
    %3877 = vmatprep.subr.bf16.mxu0 0
    %3878 = vmatpush1.bf16.msra.mxu0 %v3862
    %3879 = vmatprep.subr.bf16.mxu0 0
    %3880 = vmatpush1.bf16.msra.mxu0 %v3861
    %3881 = vmatprep.subr.bf16.mxu0 0
    %3882 = vmatpush1.bf16.msra.mxu0 %v3860
    %3883 = vmatprep.subr.bf16.mxu0 0
    %3884 = vmatpush1.bf16.msra.mxu0 %v3859
    %3885 = vmatprep.subr.bf16.mxu0 0
    %3886 = vmatpush1.bf16.msra.mxu0 %v3858
    %3887 = vmatprep.subr.bf16.mxu0 0
    %3888 = vmatpush1.bf16.msra.mxu0 %v3857
    %3889 = vmatprep.subr.bf16.mxu0 0
    %3890 = vmatpush2.bf16.msra.mxu0 0
    %3891 = vmatprep.subr.bf16.mxu0 0
    %3892 = vmatpush2.bf16.msra.mxu0 0
    %3893 = vmatprep.subr.bf16.mxu0 0
    %3894 = vmatpush2.bf16.msra.mxu0 0
    %3895 = vmatprep.subr.bf16.mxu0 0
    %3896 = vmatpush2.bf16.msra.mxu0 0
    %3897 = vmatprep.subr.bf16.mxu0 0
    %3898 = vmatpush2.bf16.msra.mxu0 0
    %3899 = vmatprep.subr.bf16.mxu0 0
    %3900 = vmatpush2.bf16.msra.mxu0 0
    %3901 = vmatprep.subr.bf16.mxu0 0
    %3902 = vmatpush2.bf16.msra.mxu0 0
    %3903 = vmatprep.subr.bf16.mxu0 0
    %3904 = vmatpush2.bf16.msra.mxu0 0
    %3905 = vmatprep.mubr.bf16.mxu0 0
    %3906 = vmatmul.mubr.bf16.gmra.mxu0 %v3776
    %v3907 = vpop.f32.mrf.mxu0
    %v3908 = vadd.f32 0.0, %v3907
    %v3909 = vpop.f32.mrf.mxu0
    %v3910 = vpop.f32.mrf.mxu0
    %v3911 = vadd.f32 0.0, %v3910
    %v3912 = vpop.f32.mrf.mxu0
    %3913 = vmatprep.mubr.bf16.mxu0 0
    %3914 = vmatmul.mubr.bf16.gmra.mxu0 %v3777
    %v3915 = vpop.f32.mrf.mxu0
    %v3916 = vadd.f32 0.0, %v3915
    %v3917 = vpop.f32.mrf.mxu0
    %v3918 = vpop.f32.mrf.mxu0
    %v3919 = vadd.f32 0.0, %v3918
    %v3920 = vpop.f32.mrf.mxu0
    %3921 = vmatprep.mubr.bf16.mxu0 0
    %3922 = vmatmul.mubr.bf16.gmra.mxu0 %v3778
    %v3923 = vpop.f32.mrf.mxu0
    %v3924 = vadd.f32 0.0, %v3923
    %v3925 = vpop.f32.mrf.mxu0
    %v3926 = vpop.f32.mrf.mxu0
    %v3927 = vadd.f32 0.0, %v3926
    %v3928 = vpop.f32.mrf.mxu0
    %3929 = vmatprep.mubr.bf16.mxu0 0
    %3930 = vmatmul.mubr.bf16.gmra.mxu0 %v3779
    %v3931 = vpop.f32.mrf.mxu0
    %v3932 = vadd.f32 0.0, %v3931
    %v3933 = vpop.f32.mrf.mxu0
    %v3934 = vpop.f32.mrf.mxu0
    %v3935 = vadd.f32 0.0, %v3934
    %v3936 = vpop.f32.mrf.mxu0
    %3937 = vmatprep.mubr.bf16.mxu0 0
    %3938 = vmatmul.mubr.bf16.gmra.mxu0 %v3780
    %v3939 = vpop.f32.mrf.mxu0
    %v3940 = vadd.f32 0.0, %v3939
    %v3941 = vpop.f32.mrf.mxu0
    %v3942 = vpop.f32.mrf.mxu0
    %v3943 = vadd.f32 0.0, %v3942
    %v3944 = vpop.f32.mrf.mxu0
    %3945 = vmatprep.mubr.bf16.mxu0 0
    %3946 = vmatmul.mubr.bf16.gmra.mxu0 %v3781
    %v3947 = vpop.f32.mrf.mxu0
    %v3948 = vadd.f32 0.0, %v3947
    %v3949 = vpop.f32.mrf.mxu0
    %v3950 = vpop.f32.mrf.mxu0
    %v3951 = vadd.f32 0.0, %v3950
    %v3952 = vpop.f32.mrf.mxu0
    %3953 = vmatprep.mubr.bf16.mxu0 0
    %3954 = vmatmul.mubr.bf16.gmra.mxu0 %v3782
    %v3955 = vpop.f32.mrf.mxu0
    %v3956 = vadd.f32 0.0, %v3955
    %v3957 = vpop.f32.mrf.mxu0
    %v3958 = vpop.f32.mrf.mxu0
    %v3959 = vadd.f32 0.0, %v3958
    %v3960 = vpop.f32.mrf.mxu0
    %3961 = vmatprep.mubr.bf16.mxu0 0
    %3962 = vmatmul.mubr.bf16.gmra.mxu0 %v3783
    %v3963 = vpop.f32.mrf.mxu0
    %v3964 = vadd.f32 0.0, %v3963
    %v3965 = vpop.f32.mrf.mxu0
    %v3966 = vpop.f32.mrf.mxu0
    %v3967 = vadd.f32 0.0, %v3966
    %v3968 = vpop.f32.mrf.mxu0
    %3969 = vmatprep.mubr.bf16.mxu0 0
    %3970 = vmatmul.mubr.bf16.gmra.mxu0 %v3784
    %v3971 = vpop.f32.mrf.mxu0
    %v3972 = vadd.f32 0.0, %v3971
    %v3973 = vpop.f32.mrf.mxu0
    %v3974 = vpop.f32.mrf.mxu0
    %v3975 = vadd.f32 0.0, %v3974
    %v3976 = vpop.f32.mrf.mxu0
    %3977 = vmatprep.mubr.bf16.mxu0 0
    %3978 = vmatmul.mubr.bf16.gmra.mxu0 %v3785
    %v3979 = vpop.f32.mrf.mxu0
    %v3980 = vadd.f32 0.0, %v3979
    %v3981 = vpop.f32.mrf.mxu0
    %v3982 = vpop.f32.mrf.mxu0
    %v3983 = vadd.f32 0.0, %v3982
    %v3984 = vpop.f32.mrf.mxu0
    %3985 = vmatprep.mubr.bf16.mxu0 0
    %3986 = vmatmul.mubr.bf16.gmra.mxu0 %v3786
    %v3987 = vpop.f32.mrf.mxu0
    %v3988 = vadd.f32 0.0, %v3987
    %v3989 = vpop.f32.mrf.mxu0
    %v3990 = vpop.f32.mrf.mxu0
    %v3991 = vadd.f32 0.0, %v3990
    %v3992 = vpop.f32.mrf.mxu0
    %3993 = vmatprep.mubr.bf16.mxu0 0
    %3994 = vmatmul.mubr.bf16.gmra.mxu0 %v3787
    %v3995 = vpop.f32.mrf.mxu0
    %v3996 = vadd.f32 0.0, %v3995
    %v3997 = vpop.f32.mrf.mxu0
    %v3998 = vpop.f32.mrf.mxu0
    %v3999 = vadd.f32 0.0, %v3998
    %v4000 = vpop.f32.mrf.mxu0
    %4001 = vmatprep.mubr.bf16.mxu0 0
    %4002 = vmatmul.mubr.bf16.gmra.mxu0 %v3788
    %v4003 = vpop.f32.mrf.mxu0
    %v4004 = vadd.f32 0.0, %v4003
    %v4005 = vpop.f32.mrf.mxu0
    %v4006 = vpop.f32.mrf.mxu0
    %v4007 = vadd.f32 0.0, %v4006
    %v4008 = vpop.f32.mrf.mxu0
    %4009 = vmatprep.mubr.bf16.mxu0 0
    %4010 = vmatmul.mubr.bf16.gmra.mxu0 %v3789
    %v4011 = vpop.f32.mrf.mxu0
    %v4012 = vadd.f32 0.0, %v4011
    %v4013 = vpop.f32.mrf.mxu0
    %v4014 = vpop.f32.mrf.mxu0
    %v4015 = vadd.f32 0.0, %v4014
    %v4016 = vpop.f32.mrf.mxu0
    %4017 = vmatprep.mubr.bf16.mxu0 0
    %4018 = vmatmul.mubr.bf16.gmra.mxu0 %v3790
    %v4019 = vpop.f32.mrf.mxu0
    %v4020 = vadd.f32 0.0, %v4019
    %v4021 = vpop.f32.mrf.mxu0
    %v4022 = vpop.f32.mrf.mxu0
    %v4023 = vadd.f32 0.0, %v4022
    %v4024 = vpop.f32.mrf.mxu0
    %4025 = vmatprep.mubr.bf16.mxu0 0
    %4026 = vmatmul.mubr.bf16.gmra.mxu0 %v3791
    %v4027 = vpop.f32.mrf.mxu0
    %v4028 = vadd.f32 0.0, %v4027
    %v4029 = vpop.f32.mrf.mxu0
    %v4030 = vpop.f32.mrf.mxu0
    %v4031 = vadd.f32 0.0, %v4030
    %v4032 = vpop.f32.mrf.mxu0
    %4033 = vmatprep.mubr.bf16.mxu0 0
    %4034 = vmatmul.mubr.bf16.gmra.mxu0 %v3792
    %v4035 = vpop.f32.mrf.mxu0
    %v4036 = vadd.f32 0.0, %v4035
    %v4037 = vpop.f32.mrf.mxu0
    %v4038 = vpop.f32.mrf.mxu0
    %v4039 = vadd.f32 0.0, %v4038
    %v4040 = vpop.f32.mrf.mxu0
    %4041 = vmatprep.mubr.bf16.mxu0 0
    %4042 = vmatmul.mubr.bf16.gmra.mxu0 %v3793
    %v4043 = vpop.f32.mrf.mxu0
    %v4044 = vadd.f32 0.0, %v4043
    %v4045 = vpop.f32.mrf.mxu0
    %v4046 = vpop.f32.mrf.mxu0
    %v4047 = vadd.f32 0.0, %v4046
    %v4048 = vpop.f32.mrf.mxu0
    %4049 = vmatprep.mubr.bf16.mxu0 0
    %4050 = vmatmul.mubr.bf16.gmra.mxu0 %v3794
    %v4051 = vpop.f32.mrf.mxu0
    %v4052 = vadd.f32 0.0, %v4051
    %v4053 = vpop.f32.mrf.mxu0
    %v4054 = vpop.f32.mrf.mxu0
    %v4055 = vadd.f32 0.0, %v4054
    %v4056 = vpop.f32.mrf.mxu0
    %4057 = vmatprep.mubr.bf16.mxu0 0
    %4058 = vmatmul.mubr.bf16.gmra.mxu0 %v3795
    %v4059 = vpop.f32.mrf.mxu0
    %v4060 = vadd.f32 0.0, %v4059
    %v4061 = vpop.f32.mrf.mxu0
    %v4062 = vpop.f32.mrf.mxu0
    %v4063 = vadd.f32 0.0, %v4062
    %v4064 = vpop.f32.mrf.mxu0
    %4065 = vmatprep.mubr.bf16.mxu0 0
    %4066 = vmatmul.mubr.bf16.gmra.mxu0 %v3796
    %v4067 = vpop.f32.mrf.mxu0
    %v4068 = vadd.f32 0.0, %v4067
    %v4069 = vpop.f32.mrf.mxu0
    %v4070 = vpop.f32.mrf.mxu0
    %v4071 = vadd.f32 0.0, %v4070
    %v4072 = vpop.f32.mrf.mxu0
    %4073 = vmatprep.mubr.bf16.mxu0 0
    %4074 = vmatmul.mubr.bf16.gmra.mxu0 %v3797
    %v4075 = vpop.f32.mrf.mxu0
    %v4076 = vadd.f32 0.0, %v4075
    %v4077 = vpop.f32.mrf.mxu0
    %v4078 = vpop.f32.mrf.mxu0
    %v4079 = vadd.f32 0.0, %v4078
    %v4080 = vpop.f32.mrf.mxu0
    %4081 = vmatprep.mubr.bf16.mxu0 0
    %4082 = vmatmul.mubr.bf16.gmra.mxu0 %v3798
    %v4083 = vpop.f32.mrf.mxu0
    %v4084 = vadd.f32 0.0, %v4083
    %v4085 = vpop.f32.mrf.mxu0
    %v4086 = vpop.f32.mrf.mxu0
    %v4087 = vadd.f32 0.0, %v4086
    %v4088 = vpop.f32.mrf.mxu0
    %4089 = vmatprep.mubr.bf16.mxu0 0
    %4090 = vmatmul.mubr.bf16.gmra.mxu0 %v3799
    %v4091 = vpop.f32.mrf.mxu0
    %v4092 = vadd.f32 0.0, %v4091
    %v4093 = vpop.f32.mrf.mxu0
    %v4094 = vpop.f32.mrf.mxu0
    %v4095 = vadd.f32 0.0, %v4094
    %v4096 = vpop.f32.mrf.mxu0
    %4097 = vmatprep.mubr.bf16.mxu0 0
    %4098 = vmatmul.mubr.bf16.gmra.mxu0 %v3800
    %v4099 = vpop.f32.mrf.mxu0
    %v4100 = vadd.f32 0.0, %v4099
    %v4101 = vpop.f32.mrf.mxu0
    %v4102 = vpop.f32.mrf.mxu0
    %v4103 = vadd.f32 0.0, %v4102
    %v4104 = vpop.f32.mrf.mxu0
    %4105 = vmatprep.mubr.bf16.mxu0 0
    %4106 = vmatmul.mubr.bf16.gmra.mxu0 %v3801
    %v4107 = vpop.f32.mrf.mxu0
    %v4108 = vadd.f32 0.0, %v4107
    %v4109 = vpop.f32.mrf.mxu0
    %v4110 = vpop.f32.mrf.mxu0
    %v4111 = vadd.f32 0.0, %v4110
    %v4112 = vpop.f32.mrf.mxu0
    %4113 = vmatprep.mubr.bf16.mxu0 0
    %4114 = vmatmul.mubr.bf16.gmra.mxu0 %v3802
    %v4115 = vpop.f32.mrf.mxu0
    %v4116 = vadd.f32 0.0, %v4115
    %v4117 = vpop.f32.mrf.mxu0
    %v4118 = vpop.f32.mrf.mxu0
    %v4119 = vadd.f32 0.0, %v4118
    %v4120 = vpop.f32.mrf.mxu0
    %4121 = vmatprep.mubr.bf16.mxu0 0
    %4122 = vmatmul.mubr.bf16.gmra.mxu0 %v3803
    %v4123 = vpop.f32.mrf.mxu0
    %v4124 = vadd.f32 0.0, %v4123
    %v4125 = vpop.f32.mrf.mxu0
    %v4126 = vpop.f32.mrf.mxu0
    %v4127 = vadd.f32 0.0, %v4126
    %v4128 = vpop.f32.mrf.mxu0
    %4129 = vmatprep.mubr.bf16.mxu0 0
    %4130 = vmatmul.mubr.bf16.gmra.mxu0 %v3804
    %v4131 = vpop.f32.mrf.mxu0
    %v4132 = vadd.f32 0.0, %v4131
    %v4133 = vpop.f32.mrf.mxu0
    %v4134 = vpop.f32.mrf.mxu0
    %v4135 = vadd.f32 0.0, %v4134
    %v4136 = vpop.f32.mrf.mxu0
    %4137 = vmatprep.mubr.bf16.mxu0 0
    %4138 = vmatmul.mubr.bf16.gmra.mxu0 %v3805
    %v4139 = vpop.f32.mrf.mxu0
    %v4140 = vadd.f32 0.0, %v4139
    %v4141 = vpop.f32.mrf.mxu0
    %v4142 = vpop.f32.mrf.mxu0
    %v4143 = vadd.f32 0.0, %v4142
    %v4144 = vpop.f32.mrf.mxu0
    %4145 = vmatprep.mubr.bf16.mxu0 0
    %4146 = vmatmul.mubr.bf16.gmra.mxu0 %v3806
    %v4147 = vpop.f32.mrf.mxu0
    %v4148 = vadd.f32 0.0, %v4147
    %v4149 = vpop.f32.mrf.mxu0
    %v4150 = vpop.f32.mrf.mxu0
    %v4151 = vadd.f32 0.0, %v4150
    %v4152 = vpop.f32.mrf.mxu0
    %4153 = vmatprep.mubr.bf16.mxu0 0
    %4154 = vmatmul.mubr.bf16.gmra.mxu0 %v3807
    %v4155 = vpop.f32.mrf.mxu0
    %v4156 = vadd.f32 0.0, %v4155
    %v4157 = vpop.f32.mrf.mxu0
    %v4158 = vpop.f32.mrf.mxu0
    %v4159 = vadd.f32 0.0, %v4158
    %v4160 = vpop.f32.mrf.mxu0
    %4161 = vdwg.mxu0
    %v4162 = vadd.f32 %v3648, %v3908
    %v4163 = vadd.f32 %v3649, %v3911
    %v4164 = vadd.f32 %v3650, %v3916
    %v4165 = vadd.f32 %v3651, %v3919
    %v4166 = vadd.f32 %v3652, %v3924
    %v4167 = vadd.f32 %v3653, %v3927
    %v4168 = vadd.f32 %v3654, %v3932
    %v4169 = vadd.f32 %v3655, %v3935
    %v4170 = vadd.f32 %v3656, %v3940
    %v4171 = vadd.f32 %v3657, %v3943
    %v4172 = vadd.f32 %v3658, %v3948
    %v4173 = vadd.f32 %v3659, %v3951
    %v4174 = vadd.f32 %v3660, %v3956
    %v4175 = vadd.f32 %v3661, %v3959
    %v4176 = vadd.f32 %v3662, %v3964
    %v4177 = vadd.f32 %v3663, %v3967
    %v4178 = vadd.f32 %v3664, %v3972
    %v4179 = vadd.f32 %v3665, %v3975
    %v4180 = vadd.f32 %v3666, %v3980
    %v4181 = vadd.f32 %v3667, %v3983
    %v4182 = vadd.f32 %v3668, %v3988
    %v4183 = vadd.f32 %v3669, %v3991
    %v4184 = vadd.f32 %v3670, %v3996
    %v4185 = vadd.f32 %v3671, %v3999
    %v4186 = vadd.f32 %v3672, %v4004
    %v4187 = vadd.f32 %v3673, %v4007
    %v4188 = vadd.f32 %v3674, %v4012
    %v4189 = vadd.f32 %v3675, %v4015
    %v4190 = vadd.f32 %v3676, %v4020
    %v4191 = vadd.f32 %v3677, %v4023
    %v4192 = vadd.f32 %v3678, %v4028
    %v4193 = vadd.f32 %v3679, %v4031
    %v4194 = vadd.f32 %v3680, %v4036
    %v4195 = vadd.f32 %v3681, %v4039
    %v4196 = vadd.f32 %v3682, %v4044
    %v4197 = vadd.f32 %v3683, %v4047
    %v4198 = vadd.f32 %v3684, %v4052
    %v4199 = vadd.f32 %v3685, %v4055
    %v4200 = vadd.f32 %v3686, %v4060
    %v4201 = vadd.f32 %v3687, %v4063
    %v4202 = vadd.f32 %v3688, %v4068
    %v4203 = vadd.f32 %v3689, %v4071
    %v4204 = vadd.f32 %v3690, %v4076
    %v4205 = vadd.f32 %v3691, %v4079
    %v4206 = vadd.f32 %v3692, %v4084
    %v4207 = vadd.f32 %v3693, %v4087
    %v4208 = vadd.f32 %v3694, %v4092
    %v4209 = vadd.f32 %v3695, %v4095
    %v4210 = vadd.f32 %v3696, %v4100
    %v4211 = vadd.f32 %v3697, %v4103
    %v4212 = vadd.f32 %v3698, %v4108
    %v4213 = vadd.f32 %v3699, %v4111
    %v4214 = vadd.f32 %v3700, %v4116
    %v4215 = vadd.f32 %v3701, %v4119
    %v4216 = vadd.f32 %v3702, %v4124
    %v4217 = vadd.f32 %v3703, %v4127
    %v4218 = vadd.f32 %v3704, %v4132
    %v4219 = vadd.f32 %v3705, %v4135
    %v4220 = vadd.f32 %v3706, %v4140
    %v4221 = vadd.f32 %v3707, %v4143
    %v4222 = vadd.f32 %v3708, %v4148
    %v4223 = vadd.f32 %v3709, %v4151
    %v4224 = vadd.f32 %v3710, %v4156
    %v4225 = vadd.f32 %v3711, %v4159
    %v4226 = vld [vmem:[%s3197 + $0x2] sm:$0xff]
    %v4227 = vld [vmem:[%s3197 + $0xa] sm:$0xff]
    %v4228 = vld [vmem:[%s3197 + $0x1a] sm:$0xff]
    %v4229 = vld [vmem:[%s3197 + $0x22] sm:$0xff]
    %v4230 = vld [vmem:[%s3197 + $0x32] sm:$0xff]
    %v4231 = vld [vmem:[%s3197 + $0x3a] sm:$0xff]
    %v4232 = vld [vmem:[%s3197 + $0x4a] sm:$0xff]
    %v4233 = vld [vmem:[%s3197 + $0x52] sm:$0xff]
    %v4234 = vld [vmem:[%s3197 + $0x62] sm:$0xff]
    %v4235 = vld [vmem:[%s3197 + $0x6a] sm:$0xff]
    %v4236 = vld [vmem:[%s3197 + $0x7a] sm:$0xff]
    %v4237 = vld [vmem:[%s3197 + $0x82] sm:$0xff]
    %v4238 = vld [vmem:[%s3197 + $0x92] sm:$0xff]
    %v4239 = vld [vmem:[%s3197 + $0x9a] sm:$0xff]
    %v4240 = vld [vmem:[%s3197 + $0xaa] sm:$0xff]
    %v4241 = vld [vmem:[%s3197 + $0xb2] sm:$0xff]
    %v4242 = vld [vmem:[%s3197 + $0xc2] sm:$0xff]
    %v4243 = vld [vmem:[%s3197 + $0xca] sm:$0xff]
    %v4244 = vld [vmem:[%s3197 + $0xda] sm:$0xff]
    %v4245 = vld [vmem:[%s3197 + $0xe2] sm:$0xff]
    %v4246 = vld [vmem:[%s3197 + $0xf2] sm:$0xff]
    %v4247 = vld [vmem:[%s3197 + $0xfa] sm:$0xff]
    %v4248 = vld [vmem:[%s3197 + $0x10a] sm:$0xff]
    %v4249 = vld [vmem:[%s3197 + $0x112] sm:$0xff]
    %v4250 = vld [vmem:[%s3197 + $0x122] sm:$0xff]
    %v4251 = vld [vmem:[%s3197 + $0x12a] sm:$0xff]
    %v4252 = vld [vmem:[%s3197 + $0x13a] sm:$0xff]
    %v4253 = vld [vmem:[%s3197 + $0x142] sm:$0xff]
    %v4254 = vld [vmem:[%s3197 + $0x152] sm:$0xff]
    %v4255 = vld [vmem:[%s3197 + $0x15a] sm:$0xff]
    %v4256 = vld [vmem:[%s3197 + $0x16a] sm:$0xff]
    %v4257 = vld [vmem:[%s3197 + $0x172] sm:$0xff]
    %v4258 = vld [vmem:[%s3197 + $0x1b2] sm:$0xff]
    %v4259 = vld [vmem:[%s3197 + $0x1ba] sm:$0xff]
    %v4260 = vld [vmem:[%s3197 + $0x1ca] sm:$0xff]
    %v4261 = vld [vmem:[%s3197 + $0x1d2] sm:$0xff]
    %v4262 = vld [vmem:[%s3197 + $0x1e2] sm:$0xff]
    %v4263 = vld [vmem:[%s3197 + $0x1ea] sm:$0xff]
    %v4264 = vld [vmem:[%s3197 + $0x1fa] sm:$0xff]
    %v4265 = vld [vmem:[%s3197 + $0x202] sm:$0xff]
    %v4266 = vld [vmem:[%s3197 + $0x212] sm:$0xff]
    %v4267 = vld [vmem:[%s3197 + $0x21a] sm:$0xff]
    %v4268 = vld [vmem:[%s3197 + $0x22a] sm:$0xff]
    %v4269 = vld [vmem:[%s3197 + $0x232] sm:$0xff]
    %v4270 = vld [vmem:[%s3197 + $0x242] sm:$0xff]
    %v4271 = vld [vmem:[%s3197 + $0x24a] sm:$0xff]
    %v4272 = vld [vmem:[%s3197 + $0x25a] sm:$0xff]
    %v4273 = vld [vmem:[%s3197 + $0x262] sm:$0xff]
    %v4274 = vld [vmem:[%s3197 + $0x272] sm:$0xff]
    %v4275 = vld [vmem:[%s3197 + $0x27a] sm:$0xff]
    %v4276 = vld [vmem:[%s3197 + $0x28a] sm:$0xff]
    %v4277 = vld [vmem:[%s3197 + $0x292] sm:$0xff]
    %v4278 = vld [vmem:[%s3197 + $0x2a2] sm:$0xff]
    %v4279 = vld [vmem:[%s3197 + $0x2aa] sm:$0xff]
    %v4280 = vld [vmem:[%s3197 + $0x2ba] sm:$0xff]
    %v4281 = vld [vmem:[%s3197 + $0x2c2] sm:$0xff]
    %v4282 = vld [vmem:[%s3197 + $0x2d2] sm:$0xff]
    %v4283 = vld [vmem:[%s3197 + $0x2da] sm:$0xff]
    %v4284 = vld [vmem:[%s3197 + $0x2ea] sm:$0xff]
    %v4285 = vld [vmem:[%s3197 + $0x2f2] sm:$0xff]
    %v4286 = vld [vmem:[%s3197 + $0x302] sm:$0xff]
    %v4287 = vld [vmem:[%s3197 + $0x30a] sm:$0xff]
    %v4288 = vld [vmem:[%s3197 + $0x31a] sm:$0xff]
    %v4289 = vld [vmem:[%s3197 + $0x322] sm:$0xff]
    %v4290 = vpack.c.bf16 %v4227, %v4226
    %v4291 = vpack.c.bf16 %v4229, %v4228
    %v4292 = vpack.c.bf16 %v4231, %v4230
    %v4293 = vpack.c.bf16 %v4233, %v4232
    %v4294 = vpack.c.bf16 %v4235, %v4234
    %v4295 = vpack.c.bf16 %v4237, %v4236
    %v4296 = vpack.c.bf16 %v4239, %v4238
    %v4297 = vpack.c.bf16 %v4241, %v4240
    %v4298 = vpack.c.bf16 %v4243, %v4242
    %v4299 = vpack.c.bf16 %v4245, %v4244
    %v4300 = vpack.c.bf16 %v4247, %v4246
    %v4301 = vpack.c.bf16 %v4249, %v4248
    %v4302 = vpack.c.bf16 %v4251, %v4250
    %v4303 = vpack.c.bf16 %v4253, %v4252
    %v4304 = vpack.c.bf16 %v4255, %v4254
    %v4305 = vpack.c.bf16 %v4257, %v4256
    %v4306 = vpack.c.bf16 %v4259, %v4258
    %v4307 = vpack.c.bf16 %v4261, %v4260
    %v4308 = vpack.c.bf16 %v4263, %v4262
    %v4309 = vpack.c.bf16 %v4265, %v4264
    %v4310 = vpack.c.bf16 %v4267, %v4266
    %v4311 = vpack.c.bf16 %v4269, %v4268
    %v4312 = vpack.c.bf16 %v4271, %v4270
    %v4313 = vpack.c.bf16 %v4273, %v4272
    %v4314 = vpack.c.bf16 %v4275, %v4274
    %v4315 = vpack.c.bf16 %v4277, %v4276
    %v4316 = vpack.c.bf16 %v4279, %v4278
    %v4317 = vpack.c.bf16 %v4281, %v4280
    %v4318 = vpack.c.bf16 %v4283, %v4282
    %v4319 = vpack.c.bf16 %v4285, %v4284
    %v4320 = vpack.c.bf16 %v4287, %v4286
    %v4321 = vpack.c.bf16 %v4289, %v4288
    %s4322 = scalar_lea.vmem %s1, 512
    %v4323 = vld [vmem:[%s4322] sm:$0xf]
    %v4324 = vld [vmem:[%s4322 + $0x4] sm:$0xf]
    %v4325 = vld [vmem:[%s4322 + $0x8] sm:$0xf]
    %v4326 = vld [vmem:[%s4322 + $0xc] sm:$0xf]
    %v4327 = vld [vmem:[%s4322 + $0x10] sm:$0xf]
    %v4328 = vld [vmem:[%s4322 + $0x14] sm:$0xf]
    %v4329 = vld [vmem:[%s4322 + $0x18] sm:$0xf]
    %v4330 = vld [vmem:[%s4322 + $0x1c] sm:$0xf]
    %v4331 = vld [vmem:[%s4322 + $0x20] sm:$0xf]
    %v4332 = vld [vmem:[%s4322 + $0x24] sm:$0xf]
    %v4333 = vld [vmem:[%s4322 + $0x28] sm:$0xf]
    %v4334 = vld [vmem:[%s4322 + $0x2c] sm:$0xf]
    %v4335 = vld [vmem:[%s4322 + $0x30] sm:$0xf]
    %v4336 = vld [vmem:[%s4322 + $0x34] sm:$0xf]
    %v4337 = vld [vmem:[%s4322 + $0x38] sm:$0xf]
    %v4338 = vld [vmem:[%s4322 + $0x3c] sm:$0xf]
    %v4355 = vunpack.c.l.b16 %v4323
    %v4356 = vunpack.c.l.b16 %v4324
    %v4357 = vunpack.c.l.b16 %v4325
    %v4358 = vunpack.c.l.b16 %v4326
    %v4359 = vunpack.c.l.b16 %v4327
    %v4360 = vunpack.c.l.b16 %v4328
    %v4361 = vunpack.c.l.b16 %v4329
    %v4362 = vunpack.c.l.b16 %v4330
    %v4363 = vunpack.c.l.b16 %v4331
    %v4364 = vunpack.c.l.b16 %v4332
    %v4365 = vunpack.c.l.b16 %v4333
    %v4366 = vunpack.c.l.b16 %v4334
    %v4367 = vunpack.c.l.b16 %v4335
    %v4368 = vunpack.c.l.b16 %v4336
    %v4369 = vunpack.c.l.b16 %v4337
    %v4370 = vunpack.c.l.b16 %v4338
    %v4371 = vpack.c.b16 %v4356, %v4355
    %v4372 = vpack.c.b16 %v4358, %v4357
    %v4373 = vpack.c.b16 %v4360, %v4359
    %v4374 = vpack.c.b16 %v4362, %v4361
    %v4375 = vpack.c.b16 %v4364, %v4363
    %v4376 = vpack.c.b16 %v4366, %v4365
    %v4377 = vpack.c.b16 %v4368, %v4367
    %v4378 = vpack.c.b16 %v4370, %v4369
    %4387 = vmatprep.subr.bf16.mxu0 0
    %4388 = vmatpush1.bf16.msra.mxu0 %v4378
    %4389 = vmatprep.subr.bf16.mxu0 0
    %4390 = vmatpush1.bf16.msra.mxu0 %v4377
    %4391 = vmatprep.subr.bf16.mxu0 0
    %4392 = vmatpush1.bf16.msra.mxu0 %v4376
    %4393 = vmatprep.subr.bf16.mxu0 0
    %4394 = vmatpush1.bf16.msra.mxu0 %v4375
    %4395 = vmatprep.subr.bf16.mxu0 0
    %4396 = vmatpush1.bf16.msra.mxu0 %v4374
    %4397 = vmatprep.subr.bf16.mxu0 0
    %4398 = vmatpush1.bf16.msra.mxu0 %v4373
    %4399 = vmatprep.subr.bf16.mxu0 0
    %4400 = vmatpush1.bf16.msra.mxu0 %v4372
    %4401 = vmatprep.subr.bf16.mxu0 0
    %4402 = vmatpush1.bf16.msra.mxu0 %v4371
    %4403 = vmatprep.subr.bf16.mxu0 0
    %4404 = vmatpush2.bf16.msra.mxu0 0
    %4405 = vmatprep.subr.bf16.mxu0 0
    %4406 = vmatpush2.bf16.msra.mxu0 0
    %4407 = vmatprep.subr.bf16.mxu0 0
    %4408 = vmatpush2.bf16.msra.mxu0 0
    %4409 = vmatprep.subr.bf16.mxu0 0
    %4410 = vmatpush2.bf16.msra.mxu0 0
    %4411 = vmatprep.subr.bf16.mxu0 0
    %4412 = vmatpush2.bf16.msra.mxu0 0
    %4413 = vmatprep.subr.bf16.mxu0 0
    %4414 = vmatpush2.bf16.msra.mxu0 0
    %4415 = vmatprep.subr.bf16.mxu0 0
    %4416 = vmatpush2.bf16.msra.mxu0 0
    %4417 = vmatprep.subr.bf16.mxu0 0
    %4418 = vmatpush2.bf16.msra.mxu0 0
    %4419 = vmatprep.mubr.bf16.mxu0 0
    %4420 = vmatmul.mubr.bf16.gmra.mxu0 %v4290
    %v4421 = vpop.f32.mrf.mxu0
    %v4422 = vadd.f32 0.0, %v4421
    %v4423 = vpop.f32.mrf.mxu0
    %v4424 = vpop.f32.mrf.mxu0
    %v4425 = vadd.f32 0.0, %v4424
    %v4426 = vpop.f32.mrf.mxu0
    %4427 = vmatprep.mubr.bf16.mxu0 0
    %4428 = vmatmul.mubr.bf16.gmra.mxu0 %v4291
    %v4429 = vpop.f32.mrf.mxu0
    %v4430 = vadd.f32 0.0, %v4429
    %v4431 = vpop.f32.mrf.mxu0
    %v4432 = vpop.f32.mrf.mxu0
    %v4433 = vadd.f32 0.0, %v4432
    %v4434 = vpop.f32.mrf.mxu0
    %4435 = vmatprep.mubr.bf16.mxu0 0
    %4436 = vmatmul.mubr.bf16.gmra.mxu0 %v4292
    %v4437 = vpop.f32.mrf.mxu0
    %v4438 = vadd.f32 0.0, %v4437
    %v4439 = vpop.f32.mrf.mxu0
    %v4440 = vpop.f32.mrf.mxu0
    %v4441 = vadd.f32 0.0, %v4440
    %v4442 = vpop.f32.mrf.mxu0
    %4443 = vmatprep.mubr.bf16.mxu0 0
    %4444 = vmatmul.mubr.bf16.gmra.mxu0 %v4293
    %v4445 = vpop.f32.mrf.mxu0
    %v4446 = vadd.f32 0.0, %v4445
    %v4447 = vpop.f32.mrf.mxu0
    %v4448 = vpop.f32.mrf.mxu0
    %v4449 = vadd.f32 0.0, %v4448
    %v4450 = vpop.f32.mrf.mxu0
    %4451 = vmatprep.mubr.bf16.mxu0 0
    %4452 = vmatmul.mubr.bf16.gmra.mxu0 %v4294
    %v4453 = vpop.f32.mrf.mxu0
    %v4454 = vadd.f32 0.0, %v4453
    %v4455 = vpop.f32.mrf.mxu0
    %v4456 = vpop.f32.mrf.mxu0
    %v4457 = vadd.f32 0.0, %v4456
    %v4458 = vpop.f32.mrf.mxu0
    %4459 = vmatprep.mubr.bf16.mxu0 0
    %4460 = vmatmul.mubr.bf16.gmra.mxu0 %v4295
    %v4461 = vpop.f32.mrf.mxu0
    %v4462 = vadd.f32 0.0, %v4461
    %v4463 = vpop.f32.mrf.mxu0
    %v4464 = vpop.f32.mrf.mxu0
    %v4465 = vadd.f32 0.0, %v4464
    %v4466 = vpop.f32.mrf.mxu0
    %4467 = vmatprep.mubr.bf16.mxu0 0
    %4468 = vmatmul.mubr.bf16.gmra.mxu0 %v4296
    %v4469 = vpop.f32.mrf.mxu0
    %v4470 = vadd.f32 0.0, %v4469
    %v4471 = vpop.f32.mrf.mxu0
    %v4472 = vpop.f32.mrf.mxu0
    %v4473 = vadd.f32 0.0, %v4472
    %v4474 = vpop.f32.mrf.mxu0
    %4475 = vmatprep.mubr.bf16.mxu0 0
    %4476 = vmatmul.mubr.bf16.gmra.mxu0 %v4297
    %v4477 = vpop.f32.mrf.mxu0
    %v4478 = vadd.f32 0.0, %v4477
    %v4479 = vpop.f32.mrf.mxu0
    %v4480 = vpop.f32.mrf.mxu0
    %v4481 = vadd.f32 0.0, %v4480
    %v4482 = vpop.f32.mrf.mxu0
    %4483 = vmatprep.mubr.bf16.mxu0 0
    %4484 = vmatmul.mubr.bf16.gmra.mxu0 %v4298
    %v4485 = vpop.f32.mrf.mxu0
    %v4486 = vadd.f32 0.0, %v4485
    %v4487 = vpop.f32.mrf.mxu0
    %v4488 = vpop.f32.mrf.mxu0
    %v4489 = vadd.f32 0.0, %v4488
    %v4490 = vpop.f32.mrf.mxu0
    %4491 = vmatprep.mubr.bf16.mxu0 0
    %4492 = vmatmul.mubr.bf16.gmra.mxu0 %v4299
    %v4493 = vpop.f32.mrf.mxu0
    %v4494 = vadd.f32 0.0, %v4493
    %v4495 = vpop.f32.mrf.mxu0
    %v4496 = vpop.f32.mrf.mxu0
    %v4497 = vadd.f32 0.0, %v4496
    %v4498 = vpop.f32.mrf.mxu0
    %4499 = vmatprep.mubr.bf16.mxu0 0
    %4500 = vmatmul.mubr.bf16.gmra.mxu0 %v4300
    %v4501 = vpop.f32.mrf.mxu0
    %v4502 = vadd.f32 0.0, %v4501
    %v4503 = vpop.f32.mrf.mxu0
    %v4504 = vpop.f32.mrf.mxu0
    %v4505 = vadd.f32 0.0, %v4504
    %v4506 = vpop.f32.mrf.mxu0
    %4507 = vmatprep.mubr.bf16.mxu0 0
    %4508 = vmatmul.mubr.bf16.gmra.mxu0 %v4301
    %v4509 = vpop.f32.mrf.mxu0
    %v4510 = vadd.f32 0.0, %v4509
    %v4511 = vpop.f32.mrf.mxu0
    %v4512 = vpop.f32.mrf.mxu0
    %v4513 = vadd.f32 0.0, %v4512
    %v4514 = vpop.f32.mrf.mxu0
    %4515 = vmatprep.mubr.bf16.mxu0 0
    %4516 = vmatmul.mubr.bf16.gmra.mxu0 %v4302
    %v4517 = vpop.f32.mrf.mxu0
    %v4518 = vadd.f32 0.0, %v4517
    %v4519 = vpop.f32.mrf.mxu0
    %v4520 = vpop.f32.mrf.mxu0
    %v4521 = vadd.f32 0.0, %v4520
    %v4522 = vpop.f32.mrf.mxu0
    %4523 = vmatprep.mubr.bf16.mxu0 0
    %4524 = vmatmul.mubr.bf16.gmra.mxu0 %v4303
    %v4525 = vpop.f32.mrf.mxu0
    %v4526 = vadd.f32 0.0, %v4525
    %v4527 = vpop.f32.mrf.mxu0
    %v4528 = vpop.f32.mrf.mxu0
    %v4529 = vadd.f32 0.0, %v4528
    %v4530 = vpop.f32.mrf.mxu0
    %4531 = vmatprep.mubr.bf16.mxu0 0
    %4532 = vmatmul.mubr.bf16.gmra.mxu0 %v4304
    %v4533 = vpop.f32.mrf.mxu0
    %v4534 = vadd.f32 0.0, %v4533
    %v4535 = vpop.f32.mrf.mxu0
    %v4536 = vpop.f32.mrf.mxu0
    %v4537 = vadd.f32 0.0, %v4536
    %v4538 = vpop.f32.mrf.mxu0
    %4539 = vmatprep.mubr.bf16.mxu0 0
    %4540 = vmatmul.mubr.bf16.gmra.mxu0 %v4305
    %v4541 = vpop.f32.mrf.mxu0
    %v4542 = vadd.f32 0.0, %v4541
    %v4543 = vpop.f32.mrf.mxu0
    %v4544 = vpop.f32.mrf.mxu0
    %v4545 = vadd.f32 0.0, %v4544
    %v4546 = vpop.f32.mrf.mxu0
    %4547 = vmatprep.mubr.bf16.mxu0 0
    %4548 = vmatmul.mubr.bf16.gmra.mxu0 %v4306
    %v4549 = vpop.f32.mrf.mxu0
    %v4550 = vadd.f32 0.0, %v4549
    %v4551 = vpop.f32.mrf.mxu0
    %v4552 = vpop.f32.mrf.mxu0
    %v4553 = vadd.f32 0.0, %v4552
    %v4554 = vpop.f32.mrf.mxu0
    %4555 = vmatprep.mubr.bf16.mxu0 0
    %4556 = vmatmul.mubr.bf16.gmra.mxu0 %v4307
    %v4557 = vpop.f32.mrf.mxu0
    %v4558 = vadd.f32 0.0, %v4557
    %v4559 = vpop.f32.mrf.mxu0
    %v4560 = vpop.f32.mrf.mxu0
    %v4561 = vadd.f32 0.0, %v4560
    %v4562 = vpop.f32.mrf.mxu0
    %4563 = vmatprep.mubr.bf16.mxu0 0
    %4564 = vmatmul.mubr.bf16.gmra.mxu0 %v4308
    %v4565 = vpop.f32.mrf.mxu0
    %v4566 = vadd.f32 0.0, %v4565
    %v4567 = vpop.f32.mrf.mxu0
    %v4568 = vpop.f32.mrf.mxu0
    %v4569 = vadd.f32 0.0, %v4568
    %v4570 = vpop.f32.mrf.mxu0
    %4571 = vmatprep.mubr.bf16.mxu0 0
    %4572 = vmatmul.mubr.bf16.gmra.mxu0 %v4309
    %v4573 = vpop.f32.mrf.mxu0
    %v4574 = vadd.f32 0.0, %v4573
    %v4575 = vpop.f32.mrf.mxu0
    %v4576 = vpop.f32.mrf.mxu0
    %v4577 = vadd.f32 0.0, %v4576
    %v4578 = vpop.f32.mrf.mxu0
    %4579 = vmatprep.mubr.bf16.mxu0 0
    %4580 = vmatmul.mubr.bf16.gmra.mxu0 %v4310
    %v4581 = vpop.f32.mrf.mxu0
    %v4582 = vadd.f32 0.0, %v4581
    %v4583 = vpop.f32.mrf.mxu0
    %v4584 = vpop.f32.mrf.mxu0
    %v4585 = vadd.f32 0.0, %v4584
    %v4586 = vpop.f32.mrf.mxu0
    %4587 = vmatprep.mubr.bf16.mxu0 0
    %4588 = vmatmul.mubr.bf16.gmra.mxu0 %v4311
    %v4589 = vpop.f32.mrf.mxu0
    %v4590 = vadd.f32 0.0, %v4589
    %v4591 = vpop.f32.mrf.mxu0
    %v4592 = vpop.f32.mrf.mxu0
    %v4593 = vadd.f32 0.0, %v4592
    %v4594 = vpop.f32.mrf.mxu0
    %4595 = vmatprep.mubr.bf16.mxu0 0
    %4596 = vmatmul.mubr.bf16.gmra.mxu0 %v4312
    %v4597 = vpop.f32.mrf.mxu0
    %v4598 = vadd.f32 0.0, %v4597
    %v4599 = vpop.f32.mrf.mxu0
    %v4600 = vpop.f32.mrf.mxu0
    %v4601 = vadd.f32 0.0, %v4600
    %v4602 = vpop.f32.mrf.mxu0
    %4603 = vmatprep.mubr.bf16.mxu0 0
    %4604 = vmatmul.mubr.bf16.gmra.mxu0 %v4313
    %v4605 = vpop.f32.mrf.mxu0
    %v4606 = vadd.f32 0.0, %v4605
    %v4607 = vpop.f32.mrf.mxu0
    %v4608 = vpop.f32.mrf.mxu0
    %v4609 = vadd.f32 0.0, %v4608
    %v4610 = vpop.f32.mrf.mxu0
    %4611 = vmatprep.mubr.bf16.mxu0 0
    %4612 = vmatmul.mubr.bf16.gmra.mxu0 %v4314
    %v4613 = vpop.f32.mrf.mxu0
    %v4614 = vadd.f32 0.0, %v4613
    %v4615 = vpop.f32.mrf.mxu0
    %v4616 = vpop.f32.mrf.mxu0
    %v4617 = vadd.f32 0.0, %v4616
    %v4618 = vpop.f32.mrf.mxu0
    %4619 = vmatprep.mubr.bf16.mxu0 0
    %4620 = vmatmul.mubr.bf16.gmra.mxu0 %v4315
    %v4621 = vpop.f32.mrf.mxu0
    %v4622 = vadd.f32 0.0, %v4621
    %v4623 = vpop.f32.mrf.mxu0
    %v4624 = vpop.f32.mrf.mxu0
    %v4625 = vadd.f32 0.0, %v4624
    %v4626 = vpop.f32.mrf.mxu0
    %4627 = vmatprep.mubr.bf16.mxu0 0
    %4628 = vmatmul.mubr.bf16.gmra.mxu0 %v4316
    %v4629 = vpop.f32.mrf.mxu0
    %v4630 = vadd.f32 0.0, %v4629
    %v4631 = vpop.f32.mrf.mxu0
    %v4632 = vpop.f32.mrf.mxu0
    %v4633 = vadd.f32 0.0, %v4632
    %v4634 = vpop.f32.mrf.mxu0
    %4635 = vmatprep.mubr.bf16.mxu0 0
    %4636 = vmatmul.mubr.bf16.gmra.mxu0 %v4317
    %v4637 = vpop.f32.mrf.mxu0
    %v4638 = vadd.f32 0.0, %v4637
    %v4639 = vpop.f32.mrf.mxu0
    %v4640 = vpop.f32.mrf.mxu0
    %v4641 = vadd.f32 0.0, %v4640
    %v4642 = vpop.f32.mrf.mxu0
    %4643 = vmatprep.mubr.bf16.mxu0 0
    %4644 = vmatmul.mubr.bf16.gmra.mxu0 %v4318
    %v4645 = vpop.f32.mrf.mxu0
    %v4646 = vadd.f32 0.0, %v4645
    %v4647 = vpop.f32.mrf.mxu0
    %v4648 = vpop.f32.mrf.mxu0
    %v4649 = vadd.f32 0.0, %v4648
    %v4650 = vpop.f32.mrf.mxu0
    %4651 = vmatprep.mubr.bf16.mxu0 0
    %4652 = vmatmul.mubr.bf16.gmra.mxu0 %v4319
    %v4653 = vpop.f32.mrf.mxu0
    %v4654 = vadd.f32 0.0, %v4653
    %v4655 = vpop.f32.mrf.mxu0
    %v4656 = vpop.f32.mrf.mxu0
    %v4657 = vadd.f32 0.0, %v4656
    %v4658 = vpop.f32.mrf.mxu0
    %4659 = vmatprep.mubr.bf16.mxu0 0
    %4660 = vmatmul.mubr.bf16.gmra.mxu0 %v4320
    %v4661 = vpop.f32.mrf.mxu0
    %v4662 = vadd.f32 0.0, %v4661
    %v4663 = vpop.f32.mrf.mxu0
    %v4664 = vpop.f32.mrf.mxu0
    %v4665 = vadd.f32 0.0, %v4664
    %v4666 = vpop.f32.mrf.mxu0
    %4667 = vmatprep.mubr.bf16.mxu0 0
    %4668 = vmatmul.mubr.bf16.gmra.mxu0 %v4321
    %v4669 = vpop.f32.mrf.mxu0
    %v4670 = vadd.f32 0.0, %v4669
    %v4671 = vpop.f32.mrf.mxu0
    %v4672 = vpop.f32.mrf.mxu0
    %v4673 = vadd.f32 0.0, %v4672
    %v4674 = vpop.f32.mrf.mxu0
    %4675 = vdwg.mxu0
    %v4676 = vadd.f32 %v4162, %v4422
    %v4677 = vadd.f32 %v4163, %v4425
    %v4678 = vadd.f32 %v4164, %v4430
    %v4679 = vadd.f32 %v4165, %v4433
    %v4680 = vadd.f32 %v4166, %v4438
    %v4681 = vadd.f32 %v4167, %v4441
    %v4682 = vadd.f32 %v4168, %v4446
    %v4683 = vadd.f32 %v4169, %v4449
    %v4684 = vadd.f32 %v4170, %v4454
    %v4685 = vadd.f32 %v4171, %v4457
    %v4686 = vadd.f32 %v4172, %v4462
    %v4687 = vadd.f32 %v4173, %v4465
    %v4688 = vadd.f32 %v4174, %v4470
    %v4689 = vadd.f32 %v4175, %v4473
    %v4690 = vadd.f32 %v4176, %v4478
    %v4691 = vadd.f32 %v4177, %v4481
    %v4692 = vadd.f32 %v4178, %v4486
    %v4693 = vadd.f32 %v4179, %v4489
    %v4694 = vadd.f32 %v4180, %v4494
    %v4695 = vadd.f32 %v4181, %v4497
    %v4696 = vadd.f32 %v4182, %v4502
    %v4697 = vadd.f32 %v4183, %v4505
    %v4698 = vadd.f32 %v4184, %v4510
    %v4699 = vadd.f32 %v4185, %v4513
    %v4700 = vadd.f32 %v4186, %v4518
    %v4701 = vadd.f32 %v4187, %v4521
    %v4702 = vadd.f32 %v4188, %v4526
    %v4703 = vadd.f32 %v4189, %v4529
    %v4704 = vadd.f32 %v4190, %v4534
    %v4705 = vadd.f32 %v4191, %v4537
    %v4706 = vadd.f32 %v4192, %v4542
    %v4707 = vadd.f32 %v4193, %v4545
    %v4708 = vadd.f32 %v4194, %v4550
    %v4709 = vadd.f32 %v4195, %v4553
    %v4710 = vadd.f32 %v4196, %v4558
    %v4711 = vadd.f32 %v4197, %v4561
    %v4712 = vadd.f32 %v4198, %v4566
    %v4713 = vadd.f32 %v4199, %v4569
    %v4714 = vadd.f32 %v4200, %v4574
    %v4715 = vadd.f32 %v4201, %v4577
    %v4716 = vadd.f32 %v4202, %v4582
    %v4717 = vadd.f32 %v4203, %v4585
    %v4718 = vadd.f32 %v4204, %v4590
    %v4719 = vadd.f32 %v4205, %v4593
    %v4720 = vadd.f32 %v4206, %v4598
    %v4721 = vadd.f32 %v4207, %v4601
    %v4722 = vadd.f32 %v4208, %v4606
    %v4723 = vadd.f32 %v4209, %v4609
    %v4724 = vadd.f32 %v4210, %v4614
    %v4725 = vadd.f32 %v4211, %v4617
    %v4726 = vadd.f32 %v4212, %v4622
    %v4727 = vadd.f32 %v4213, %v4625
    %v4728 = vadd.f32 %v4214, %v4630
    %v4729 = vadd.f32 %v4215, %v4633
    %v4730 = vadd.f32 %v4216, %v4638
    %v4731 = vadd.f32 %v4217, %v4641
    %v4732 = vadd.f32 %v4218, %v4646
    %v4733 = vadd.f32 %v4219, %v4649
    %v4734 = vadd.f32 %v4220, %v4654
    %v4735 = vadd.f32 %v4221, %v4657
    %v4736 = vadd.f32 %v4222, %v4662
    %v4737 = vadd.f32 %v4223, %v4665
    %v4738 = vadd.f32 %v4224, %v4670
    %v4739 = vadd.f32 %v4225, %v4673
    %v4740 = vld [vmem:[%s2] sm:$0x1]
    %v4741 = vld [vmem:[%s3] sm:$0x1]
    %v4742 = vadd.f32 %v4676, %v4677
    %v4743 = vadd.f32 %v4742, %v4678
    %v4744 = vadd.f32 %v4743, %v4679
    %v4745 = vadd.f32 %v4744, %v4680
    %v4746 = vadd.f32 %v4745, %v4681
    %v4747 = vadd.f32 %v4746, %v4682
    %v4748 = vadd.f32 %v4747, %v4683
    %v4749 = vadd.f32 %v4748, %v4684
    %v4750 = vadd.f32 %v4749, %v4685
    %v4751 = vadd.f32 %v4750, %v4686
    %v4752 = vadd.f32 %v4751, %v4687
    %v4753 = vadd.f32 %v4752, %v4688
    %v4754 = vadd.f32 %v4753, %v4689
    %v4755 = vadd.f32 %v4754, %v4690
    %v4756 = vadd.f32 %v4755, %v4691
    %v4757 = vadd.f32 %v4756, %v4692
    %v4758 = vadd.f32 %v4757, %v4693
    %v4759 = vadd.f32 %v4758, %v4694
    %v4760 = vadd.f32 %v4759, %v4695
    %v4761 = vadd.f32 %v4760, %v4696
    %v4762 = vadd.f32 %v4761, %v4697
    %v4763 = vadd.f32 %v4762, %v4698
    %v4764 = vadd.f32 %v4763, %v4699
    %v4765 = vadd.f32 %v4764, %v4700
    %v4766 = vadd.f32 %v4765, %v4701
    %v4767 = vadd.f32 %v4766, %v4702
    %v4768 = vadd.f32 %v4767, %v4703
    %v4769 = vadd.f32 %v4768, %v4704
    %v4770 = vadd.f32 %v4769, %v4705
    %v4771 = vadd.f32 %v4770, %v4706
    %v4772 = vadd.f32 %v4771, %v4707
    %v4773 = vadd.f32 %v4772, %v4708
    %v4774 = vadd.f32 %v4773, %v4709
    %v4775 = vadd.f32 %v4774, %v4710
    %v4776 = vadd.f32 %v4775, %v4711
    %v4777 = vadd.f32 %v4776, %v4712
    %v4778 = vadd.f32 %v4777, %v4713
    %v4779 = vadd.f32 %v4778, %v4714
    %v4780 = vadd.f32 %v4779, %v4715
    %v4781 = vadd.f32 %v4780, %v4716
    %v4782 = vadd.f32 %v4781, %v4717
    %v4783 = vadd.f32 %v4782, %v4718
    %v4784 = vadd.f32 %v4783, %v4719
    %v4785 = vadd.f32 %v4784, %v4720
    %v4786 = vadd.f32 %v4785, %v4721
    %v4787 = vadd.f32 %v4786, %v4722
    %v4788 = vadd.f32 %v4787, %v4723
    %v4789 = vadd.f32 %v4788, %v4724
    %v4790 = vadd.f32 %v4789, %v4725
    %v4791 = vadd.f32 %v4790, %v4726
    %v4792 = vadd.f32 %v4791, %v4727
    %v4793 = vadd.f32 %v4792, %v4728
    %v4794 = vadd.f32 %v4793, %v4729
    %v4795 = vadd.f32 %v4794, %v4730
    %v4796 = vadd.f32 %v4795, %v4731
    %v4797 = vadd.f32 %v4796, %v4732
    %v4798 = vadd.f32 %v4797, %v4733
    %v4799 = vadd.f32 %v4798, %v4734
    %v4800 = vadd.f32 %v4799, %v4735
    %v4801 = vadd.f32 %v4800, %v4736
    %v4802 = vadd.f32 %v4801, %v4737
    %v4803 = vadd.f32 %v4802, %v4738
    %v4804 = vadd.f32 %v4803, %v4739
    %v4805 = vrot.slane %v4804, 4
    %v4806 = vadd.f32 %v4804, %v4805
    %v4807 = vrot.slane %v4806, 2
    %v4808 = vadd.f32 %v4806, %v4807
    %v4809 = vrot.slane %v4808, 1
    %v4810 = vadd.f32 %v4808, %v4809
    %v4811 = vmul.f32 %v4810, 0.001953125
    %v4812 = vmul.f32 %v4676, %v4676
    %v4813 = vmul.f32 %v4677, %v4677
    %v4814 = vmul.f32 %v4678, %v4678
    %v4815 = vmul.f32 %v4679, %v4679
    %v4816 = vmul.f32 %v4680, %v4680
    %v4817 = vmul.f32 %v4681, %v4681
    %v4818 = vmul.f32 %v4682, %v4682
    %v4819 = vmul.f32 %v4683, %v4683
    %v4820 = vmul.f32 %v4684, %v4684
    %v4821 = vmul.f32 %v4685, %v4685
    %v4822 = vmul.f32 %v4686, %v4686
    %v4823 = vmul.f32 %v4687, %v4687
    %v4824 = vmul.f32 %v4688, %v4688
    %v4825 = vmul.f32 %v4689, %v4689
    %v4826 = vmul.f32 %v4690, %v4690
    %v4827 = vmul.f32 %v4691, %v4691
    %v4828 = vmul.f32 %v4692, %v4692
    %v4829 = vmul.f32 %v4693, %v4693
    %v4830 = vmul.f32 %v4694, %v4694
    %v4831 = vmul.f32 %v4695, %v4695
    %v4832 = vmul.f32 %v4696, %v4696
    %v4833 = vmul.f32 %v4697, %v4697
    %v4834 = vmul.f32 %v4698, %v4698
    %v4835 = vmul.f32 %v4699, %v4699
    %v4836 = vmul.f32 %v4700, %v4700
    %v4837 = vmul.f32 %v4701, %v4701
    %v4838 = vmul.f32 %v4702, %v4702
    %v4839 = vmul.f32 %v4703, %v4703
    %v4840 = vmul.f32 %v4704, %v4704
    %v4841 = vmul.f32 %v4705, %v4705
    %v4842 = vmul.f32 %v4706, %v4706
    %v4843 = vmul.f32 %v4707, %v4707
    %v4844 = vmul.f32 %v4708, %v4708
    %v4845 = vmul.f32 %v4709, %v4709
    %v4846 = vmul.f32 %v4710, %v4710
    %v4847 = vmul.f32 %v4711, %v4711
    %v4848 = vmul.f32 %v4712, %v4712
    %v4849 = vmul.f32 %v4713, %v4713
    %v4850 = vmul.f32 %v4714, %v4714
    %v4851 = vmul.f32 %v4715, %v4715
    %v4852 = vmul.f32 %v4716, %v4716
    %v4853 = vmul.f32 %v4717, %v4717
    %v4854 = vmul.f32 %v4718, %v4718
    %v4855 = vmul.f32 %v4719, %v4719
    %v4856 = vmul.f32 %v4720, %v4720
    %v4857 = vmul.f32 %v4721, %v4721
    %v4858 = vmul.f32 %v4722, %v4722
    %v4859 = vmul.f32 %v4723, %v4723
    %v4860 = vmul.f32 %v4724, %v4724
    %v4861 = vmul.f32 %v4725, %v4725
    %v4862 = vmul.f32 %v4726, %v4726
    %v4863 = vmul.f32 %v4727, %v4727
    %v4864 = vmul.f32 %v4728, %v4728
    %v4865 = vmul.f32 %v4729, %v4729
    %v4866 = vmul.f32 %v4730, %v4730
    %v4867 = vmul.f32 %v4731, %v4731
    %v4868 = vmul.f32 %v4732, %v4732
    %v4869 = vmul.f32 %v4733, %v4733
    %v4870 = vmul.f32 %v4734, %v4734
    %v4871 = vmul.f32 %v4735, %v4735
    %v4872 = vmul.f32 %v4736, %v4736
    %v4873 = vmul.f32 %v4737, %v4737
    %v4874 = vmul.f32 %v4738, %v4738
    %v4875 = vmul.f32 %v4739, %v4739
    %v4876 = vadd.f32 %v4812, %v4813
    %v4877 = vadd.f32 %v4876, %v4814
    %v4878 = vadd.f32 %v4877, %v4815
    %v4879 = vadd.f32 %v4878, %v4816
    %v4880 = vadd.f32 %v4879, %v4817
    %v4881 = vadd.f32 %v4880, %v4818
    %v4882 = vadd.f32 %v4881, %v4819
    %v4883 = vadd.f32 %v4882, %v4820
    %v4884 = vadd.f32 %v4883, %v4821
    %v4885 = vadd.f32 %v4884, %v4822
    %v4886 = vadd.f32 %v4885, %v4823
    %v4887 = vadd.f32 %v4886, %v4824
    %v4888 = vadd.f32 %v4887, %v4825
    %v4889 = vadd.f32 %v4888, %v4826
    %v4890 = vadd.f32 %v4889, %v4827
    %v4891 = vadd.f32 %v4890, %v4828
    %v4892 = vadd.f32 %v4891, %v4829
    %v4893 = vadd.f32 %v4892, %v4830
    %v4894 = vadd.f32 %v4893, %v4831
    %v4895 = vadd.f32 %v4894, %v4832
    %v4896 = vadd.f32 %v4895, %v4833
    %v4897 = vadd.f32 %v4896, %v4834
    %v4898 = vadd.f32 %v4897, %v4835
    %v4899 = vadd.f32 %v4898, %v4836
    %v4900 = vadd.f32 %v4899, %v4837
    %v4901 = vadd.f32 %v4900, %v4838
    %v4902 = vadd.f32 %v4901, %v4839
    %v4903 = vadd.f32 %v4902, %v4840
    %v4904 = vadd.f32 %v4903, %v4841
    %v4905 = vadd.f32 %v4904, %v4842
    %v4906 = vadd.f32 %v4905, %v4843
    %v4907 = vadd.f32 %v4906, %v4844
    %v4908 = vadd.f32 %v4907, %v4845
    %v4909 = vadd.f32 %v4908, %v4846
    %v4910 = vadd.f32 %v4909, %v4847
    %v4911 = vadd.f32 %v4910, %v4848
    %v4912 = vadd.f32 %v4911, %v4849
    %v4913 = vadd.f32 %v4912, %v4850
    %v4914 = vadd.f32 %v4913, %v4851
    %v4915 = vadd.f32 %v4914, %v4852
    %v4916 = vadd.f32 %v4915, %v4853
    %v4917 = vadd.f32 %v4916, %v4854
    %v4918 = vadd.f32 %v4917, %v4855
    %v4919 = vadd.f32 %v4918, %v4856
    %v4920 = vadd.f32 %v4919, %v4857
    %v4921 = vadd.f32 %v4920, %v4858
    %v4922 = vadd.f32 %v4921, %v4859
    %v4923 = vadd.f32 %v4922, %v4860
    %v4924 = vadd.f32 %v4923, %v4861
    %v4925 = vadd.f32 %v4924, %v4862
    %v4926 = vadd.f32 %v4925, %v4863
    %v4927 = vadd.f32 %v4926, %v4864
    %v4928 = vadd.f32 %v4927, %v4865
    %v4929 = vadd.f32 %v4928, %v4866
    %v4930 = vadd.f32 %v4929, %v4867
    %v4931 = vadd.f32 %v4930, %v4868
    %v4932 = vadd.f32 %v4931, %v4869
    %v4933 = vadd.f32 %v4932, %v4870
    %v4934 = vadd.f32 %v4933, %v4871
    %v4935 = vadd.f32 %v4934, %v4872
    %v4936 = vadd.f32 %v4935, %v4873
    %v4937 = vadd.f32 %v4936, %v4874
    %v4938 = vadd.f32 %v4937, %v4875
    %v4939 = vrot.slane %v4938, 4
    %v4940 = vadd.f32 %v4938, %v4939
    %v4941 = vrot.slane %v4940, 2
    %v4942 = vadd.f32 %v4940, %v4941
    %v4943 = vrot.slane %v4942, 1
    %v4944 = vadd.f32 %v4942, %v4943
    %v4945 = vmul.f32 %v4944, 0.001953125
    %v4946 = vmul.f32 %v4811, %v4811
    %v4947 = vsub.f32 %v4945, %v4946
    %v4948 = vadd.f32 %v4947, 1e-05
    %v4949 = vrsqrt.pop %v4948
    %v4950 = vmul.f32 %v4740, %v4949
    %v4951 = vmul.f32 %v4811, %v4950
    %v4952 = vsub.f32 %v4741, %v4951
    %v4954 = vlaneseq
    %v4955 = vshrl.u32 %v4954, 7
    %v4956 = vsub.s32 0, %v4955
    %v4957 = vrot.slane %v4950, %v4956
    %v4959 = vmul.f32 %v4676, %v4957
    %v4960 = vmul.f32 %v4677, %v4957
    %v4961 = vmul.f32 %v4678, %v4957
    %v4962 = vmul.f32 %v4679, %v4957
    %v4963 = vmul.f32 %v4680, %v4957
    %v4964 = vmul.f32 %v4681, %v4957
    %v4965 = vmul.f32 %v4682, %v4957
    %v4966 = vmul.f32 %v4683, %v4957
    %v4967 = vmul.f32 %v4684, %v4957
    %v4968 = vmul.f32 %v4685, %v4957
    %v4969 = vmul.f32 %v4686, %v4957
    %v4970 = vmul.f32 %v4687, %v4957
    %v4971 = vmul.f32 %v4688, %v4957
    %v4972 = vmul.f32 %v4689, %v4957
    %v4973 = vmul.f32 %v4690, %v4957
    %v4974 = vmul.f32 %v4691, %v4957
    %v4975 = vmul.f32 %v4692, %v4957
    %v4976 = vmul.f32 %v4693, %v4957
    %v4977 = vmul.f32 %v4694, %v4957
    %v4978 = vmul.f32 %v4695, %v4957
    %v4979 = vmul.f32 %v4696, %v4957
    %v4980 = vmul.f32 %v4697, %v4957
    %v4981 = vmul.f32 %v4698, %v4957
    %v4982 = vmul.f32 %v4699, %v4957
    %v4983 = vmul.f32 %v4700, %v4957
    %v4984 = vmul.f32 %v4701, %v4957
    %v4985 = vmul.f32 %v4702, %v4957
    %v4986 = vmul.f32 %v4703, %v4957
    %v4987 = vmul.f32 %v4704, %v4957
    %v4988 = vmul.f32 %v4705, %v4957
    %v4989 = vmul.f32 %v4706, %v4957
    %v4990 = vmul.f32 %v4707, %v4957
    %v4991 = vmul.f32 %v4708, %v4957
    %v4992 = vmul.f32 %v4709, %v4957
    %v4993 = vmul.f32 %v4710, %v4957
    %v4994 = vmul.f32 %v4711, %v4957
    %v4995 = vmul.f32 %v4712, %v4957
    %v4996 = vmul.f32 %v4713, %v4957
    %v4997 = vmul.f32 %v4714, %v4957
    %v4998 = vmul.f32 %v4715, %v4957
    %v4999 = vmul.f32 %v4716, %v4957
    %v5000 = vmul.f32 %v4717, %v4957
    %v5001 = vmul.f32 %v4718, %v4957
    %v5002 = vmul.f32 %v4719, %v4957
    %v5003 = vmul.f32 %v4720, %v4957
    %v5004 = vmul.f32 %v4721, %v4957
    %v5005 = vmul.f32 %v4722, %v4957
    %v5006 = vmul.f32 %v4723, %v4957
    %v5007 = vmul.f32 %v4724, %v4957
    %v5008 = vmul.f32 %v4725, %v4957
    %v5009 = vmul.f32 %v4726, %v4957
    %v5010 = vmul.f32 %v4727, %v4957
    %v5011 = vmul.f32 %v4728, %v4957
    %v5012 = vmul.f32 %v4729, %v4957
    %v5013 = vmul.f32 %v4730, %v4957
    %v5014 = vmul.f32 %v4731, %v4957
    %v5015 = vmul.f32 %v4732, %v4957
    %v5016 = vmul.f32 %v4733, %v4957
    %v5017 = vmul.f32 %v4734, %v4957
    %v5018 = vmul.f32 %v4735, %v4957
    %v5019 = vmul.f32 %v4736, %v4957
    %v5020 = vmul.f32 %v4737, %v4957
    %v5021 = vmul.f32 %v4738, %v4957
    %v5022 = vmul.f32 %v4739, %v4957
    %v5024 = vlaneseq
    %v5025 = vshrl.u32 %v5024, 7
    %v5026 = vsub.s32 0, %v5025
    %v5027 = vrot.slane %v4952, %v5026
    %v5029 = vadd.f32 %v4959, %v5027
    %v5030 = vadd.f32 %v4960, %v5027
    %v5031 = vadd.f32 %v4961, %v5027
    %v5032 = vadd.f32 %v4962, %v5027
    %v5033 = vadd.f32 %v4963, %v5027
    %v5034 = vadd.f32 %v4964, %v5027
    %v5035 = vadd.f32 %v4965, %v5027
    %v5036 = vadd.f32 %v4966, %v5027
    %v5037 = vadd.f32 %v4967, %v5027
    %v5038 = vadd.f32 %v4968, %v5027
    %v5039 = vadd.f32 %v4969, %v5027
    %v5040 = vadd.f32 %v4970, %v5027
    %v5041 = vadd.f32 %v4971, %v5027
    %v5042 = vadd.f32 %v4972, %v5027
    %v5043 = vadd.f32 %v4973, %v5027
    %v5044 = vadd.f32 %v4974, %v5027
    %v5045 = vadd.f32 %v4975, %v5027
    %v5046 = vadd.f32 %v4976, %v5027
    %v5047 = vadd.f32 %v4977, %v5027
    %v5048 = vadd.f32 %v4978, %v5027
    %v5049 = vadd.f32 %v4979, %v5027
    %v5050 = vadd.f32 %v4980, %v5027
    %v5051 = vadd.f32 %v4981, %v5027
    %v5052 = vadd.f32 %v4982, %v5027
    %v5053 = vadd.f32 %v4983, %v5027
    %v5054 = vadd.f32 %v4984, %v5027
    %v5055 = vadd.f32 %v4985, %v5027
    %v5056 = vadd.f32 %v4986, %v5027
    %v5057 = vadd.f32 %v4987, %v5027
    %v5058 = vadd.f32 %v4988, %v5027
    %v5059 = vadd.f32 %v4989, %v5027
    %v5060 = vadd.f32 %v4990, %v5027
    %v5061 = vadd.f32 %v4991, %v5027
    %v5062 = vadd.f32 %v4992, %v5027
    %v5063 = vadd.f32 %v4993, %v5027
    %v5064 = vadd.f32 %v4994, %v5027
    %v5065 = vadd.f32 %v4995, %v5027
    %v5066 = vadd.f32 %v4996, %v5027
    %v5067 = vadd.f32 %v4997, %v5027
    %v5068 = vadd.f32 %v4998, %v5027
    %v5069 = vadd.f32 %v4999, %v5027
    %v5070 = vadd.f32 %v5000, %v5027
    %v5071 = vadd.f32 %v5001, %v5027
    %v5072 = vadd.f32 %v5002, %v5027
    %v5073 = vadd.f32 %v5003, %v5027
    %v5074 = vadd.f32 %v5004, %v5027
    %v5075 = vadd.f32 %v5005, %v5027
    %v5076 = vadd.f32 %v5006, %v5027
    %v5077 = vadd.f32 %v5007, %v5027
    %v5078 = vadd.f32 %v5008, %v5027
    %v5079 = vadd.f32 %v5009, %v5027
    %v5080 = vadd.f32 %v5010, %v5027
    %v5081 = vadd.f32 %v5011, %v5027
    %v5082 = vadd.f32 %v5012, %v5027
    %v5083 = vadd.f32 %v5013, %v5027
    %v5084 = vadd.f32 %v5014, %v5027
    %v5085 = vadd.f32 %v5015, %v5027
    %v5086 = vadd.f32 %v5016, %v5027
    %v5087 = vadd.f32 %v5017, %v5027
    %v5088 = vadd.f32 %v5018, %v5027
    %v5089 = vadd.f32 %v5019, %v5027
    %v5090 = vadd.f32 %v5020, %v5027
    %v5091 = vadd.f32 %v5021, %v5027
    %v5092 = vadd.f32 %v5022, %v5027
    %v5093 = vmax.f32 %v5029, 0.0
    %v5094 = vmax.f32 %v5030, 0.0
    %v5095 = vmax.f32 %v5031, 0.0
    %v5096 = vmax.f32 %v5032, 0.0
    %v5097 = vmax.f32 %v5033, 0.0
    %v5098 = vmax.f32 %v5034, 0.0
    %v5099 = vmax.f32 %v5035, 0.0
    %v5100 = vmax.f32 %v5036, 0.0
    %v5101 = vmax.f32 %v5037, 0.0
    %v5102 = vmax.f32 %v5038, 0.0
    %v5103 = vmax.f32 %v5039, 0.0
    %v5104 = vmax.f32 %v5040, 0.0
    %v5105 = vmax.f32 %v5041, 0.0
    %v5106 = vmax.f32 %v5042, 0.0
    %v5107 = vmax.f32 %v5043, 0.0
    %v5108 = vmax.f32 %v5044, 0.0
    %v5109 = vmax.f32 %v5045, 0.0
    %v5110 = vmax.f32 %v5046, 0.0
    %v5111 = vmax.f32 %v5047, 0.0
    %v5112 = vmax.f32 %v5048, 0.0
    %v5113 = vmax.f32 %v5049, 0.0
    %v5114 = vmax.f32 %v5050, 0.0
    %v5115 = vmax.f32 %v5051, 0.0
    %v5116 = vmax.f32 %v5052, 0.0
    %v5117 = vmax.f32 %v5053, 0.0
    %v5118 = vmax.f32 %v5054, 0.0
    %v5119 = vmax.f32 %v5055, 0.0
    %v5120 = vmax.f32 %v5056, 0.0
    %v5121 = vmax.f32 %v5057, 0.0
    %v5122 = vmax.f32 %v5058, 0.0
    %v5123 = vmax.f32 %v5059, 0.0
    %v5124 = vmax.f32 %v5060, 0.0
    %v5125 = vmax.f32 %v5061, 0.0
    %v5126 = vmax.f32 %v5062, 0.0
    %v5127 = vmax.f32 %v5063, 0.0
    %v5128 = vmax.f32 %v5064, 0.0
    %v5129 = vmax.f32 %v5065, 0.0
    %v5130 = vmax.f32 %v5066, 0.0
    %v5131 = vmax.f32 %v5067, 0.0
    %v5132 = vmax.f32 %v5068, 0.0
    %v5133 = vmax.f32 %v5069, 0.0
    %v5134 = vmax.f32 %v5070, 0.0
    %v5135 = vmax.f32 %v5071, 0.0
    %v5136 = vmax.f32 %v5072, 0.0
    %v5137 = vmax.f32 %v5073, 0.0
    %v5138 = vmax.f32 %v5074, 0.0
    %v5139 = vmax.f32 %v5075, 0.0
    %v5140 = vmax.f32 %v5076, 0.0
    %v5141 = vmax.f32 %v5077, 0.0
    %v5142 = vmax.f32 %v5078, 0.0
    %v5143 = vmax.f32 %v5079, 0.0
    %v5144 = vmax.f32 %v5080, 0.0
    %v5145 = vmax.f32 %v5081, 0.0
    %v5146 = vmax.f32 %v5082, 0.0
    %v5147 = vmax.f32 %v5083, 0.0
    %v5148 = vmax.f32 %v5084, 0.0
    %v5149 = vmax.f32 %v5085, 0.0
    %v5150 = vmax.f32 %v5086, 0.0
    %v5151 = vmax.f32 %v5087, 0.0
    %v5152 = vmax.f32 %v5088, 0.0
    %v5153 = vmax.f32 %v5089, 0.0
    %v5154 = vmax.f32 %v5090, 0.0
    %v5155 = vmax.f32 %v5091, 0.0
    %v5156 = vmax.f32 %v5092, 0.0
    %5157 = vst [vmem:[#allocation3] sm:$0xff] 0.0
    %5158 = vst [vmem:[#allocation3 + $0x8] sm:$0xff] 0.0
    %5159 = vst [vmem:[#allocation3 + $0x10] sm:$0x3] 0.0
    %5160 = vst [vmem:[#allocation3 + $0x1b0] sm:$0xff] 0.0
    %5161 = vst [vmem:[#allocation3 + $0x1b8] sm:$0xff] 0.0
    %5162 = vst [vmem:[#allocation3 + $0x1c0] sm:$0x3] 0.0
    %s5163 = scalar_lea.vmem [#allocation3], 408
    %5164 = vst [vmem:[%s5163] sm:$0xff] 0.0
    %5165 = vst [vmem:[%s5163 + $0x8] sm:$0xff] 0.0
    %5166 = vst [vmem:[%s5163 + $0x10] sm:$0x3] 0.0
    %5167 = vst [vmem:[%s5163 + $0x1b0] sm:$0xff] 0.0
    %5168 = vst [vmem:[%s5163 + $0x1b8] sm:$0xff] 0.0
    %5169 = vst [vmem:[%s5163 + $0x1c0] sm:$0x3] 0.0
    %5170 = vst [vmem:[#allocation3] sm:$0x1] 0.0
    %5171 = vst [vmem:[#allocation3 + $0x18] sm:$0x1] 0.0
    %5172 = vst [vmem:[#allocation3 + $0x30] sm:$0x1] 0.0
    %5173 = vst [vmem:[#allocation3 + $0x48] sm:$0x1] 0.0
    %5174 = vst [vmem:[#allocation3 + $0x60] sm:$0x1] 0.0
    %5175 = vst [vmem:[#allocation3 + $0x78] sm:$0x1] 0.0
    %5176 = vst [vmem:[#allocation3 + $0x90] sm:$0x1] 0.0
    %5177 = vst [vmem:[#allocation3 + $0xa8] sm:$0x1] 0.0
    %5178 = vst [vmem:[#allocation3 + $0xc0] sm:$0x1] 0.0
    %5179 = vst [vmem:[#allocation3 + $0xd8] sm:$0x1] 0.0
    %5180 = vst [vmem:[#allocation3 + $0xf0] sm:$0x1] 0.0
    %5181 = vst [vmem:[#allocation3 + $0x108] sm:$0x1] 0.0
    %5182 = vst [vmem:[#allocation3 + $0x120] sm:$0x1] 0.0
    %5183 = vst [vmem:[#allocation3 + $0x138] sm:$0x1] 0.0
    %5184 = vst [vmem:[#allocation3 + $0x150] sm:$0x1] 0.0
    %5185 = vst [vmem:[#allocation3 + $0x168] sm:$0x1] 0.0
    %5186 = vst [vmem:[#allocation3 + $0x180] sm:$0x1] 0.0
    %5187 = vst [vmem:[#allocation3 + $0x198] sm:$0x1] 0.0
    %5188 = vst [vmem:[#allocation3 + $0x1b0] sm:$0x1] 0.0
    %5189 = vst [vmem:[#allocation3 + $0x1c8] sm:$0x1] 0.0
    %5190 = vst [vmem:[#allocation3 + $0x1e0] sm:$0x1] 0.0
    %5191 = vst [vmem:[#allocation3 + $0x1f8] sm:$0x1] 0.0
    %5192 = vst [vmem:[#allocation3 + $0x210] sm:$0x1] 0.0
    %5193 = vst [vmem:[#allocation3 + $0x228] sm:$0x1] 0.0
    %5194 = vst [vmem:[#allocation3 + $0x240] sm:$0x1] 0.0
    %5195 = vst [vmem:[#allocation3 + $0x258] sm:$0x1] 0.0
    %5196 = vst [vmem:[#allocation3 + $0x270] sm:$0x1] 0.0
    %5197 = vst [vmem:[#allocation3 + $0x288] sm:$0x1] 0.0
    %5198 = vst [vmem:[#allocation3 + $0x2a0] sm:$0x1] 0.0
    %5199 = vst [vmem:[#allocation3 + $0x2b8] sm:$0x1] 0.0
    %5200 = vst [vmem:[#allocation3 + $0x2d0] sm:$0x1] 0.0
    %5201 = vst [vmem:[#allocation3 + $0x2e8] sm:$0x1] 0.0
    %5202 = vst [vmem:[#allocation3 + $0x300] sm:$0x1] 0.0
    %5203 = vst [vmem:[#allocation3 + $0x318] sm:$0x1] 0.0
    %5204 = vst [vmem:[#allocation3 + $0x330] sm:$0x1] 0.0
    %5205 = vst [vmem:[#allocation3 + $0x348] sm:$0x1] 0.0
    %5206 = vst [vmem:[#allocation3 + $0x11] sm:$0x1] 0.0
    %5207 = vst [vmem:[#allocation3 + $0x29] sm:$0x1] 0.0
    %5208 = vst [vmem:[#allocation3 + $0x41] sm:$0x1] 0.0
    %5209 = vst [vmem:[#allocation3 + $0x59] sm:$0x1] 0.0
    %5210 = vst [vmem:[#allocation3 + $0x71] sm:$0x1] 0.0
    %5211 = vst [vmem:[#allocation3 + $0x89] sm:$0x1] 0.0
    %5212 = vst [vmem:[#allocation3 + $0xa1] sm:$0x1] 0.0
    %5213 = vst [vmem:[#allocation3 + $0xb9] sm:$0x1] 0.0
    %5214 = vst [vmem:[#allocation3 + $0xd1] sm:$0x1] 0.0
    %5215 = vst [vmem:[#allocation3 + $0xe9] sm:$0x1] 0.0
    %5216 = vst [vmem:[#allocation3 + $0x101] sm:$0x1] 0.0
    %5217 = vst [vmem:[#allocation3 + $0x119] sm:$0x1] 0.0
    %5218 = vst [vmem:[#allocation3 + $0x131] sm:$0x1] 0.0
    %5219 = vst [vmem:[#allocation3 + $0x149] sm:$0x1] 0.0
    %5220 = vst [vmem:[#allocation3 + $0x161] sm:$0x1] 0.0
    %5221 = vst [vmem:[#allocation3 + $0x179] sm:$0x1] 0.0
    %5222 = vst [vmem:[#allocation3 + $0x191] sm:$0x1] 0.0
    %5223 = vst [vmem:[#allocation3 + $0x1a9] sm:$0x1] 0.0
    %5224 = vst [vmem:[#allocation3 + $0x1c1] sm:$0x1] 0.0
    %5225 = vst [vmem:[#allocation3 + $0x1d9] sm:$0x1] 0.0
    %5226 = vst [vmem:[#allocation3 + $0x1f1] sm:$0x1] 0.0
    %5227 = vst [vmem:[#allocation3 + $0x209] sm:$0x1] 0.0
    %5228 = vst [vmem:[#allocation3 + $0x221] sm:$0x1] 0.0
    %5229 = vst [vmem:[#allocation3 + $0x239] sm:$0x1] 0.0
    %5230 = vst [vmem:[#allocation3 + $0x251] sm:$0x1] 0.0
    %5231 = vst [vmem:[#allocation3 + $0x269] sm:$0x1] 0.0
    %5232 = vst [vmem:[#allocation3 + $0x281] sm:$0x1] 0.0
    %5233 = vst [vmem:[#allocation3 + $0x299] sm:$0x1] 0.0
    %5234 = vst [vmem:[#allocation3 + $0x2b1] sm:$0x1] 0.0
    %5235 = vst [vmem:[#allocation3 + $0x2c9] sm:$0x1] 0.0
    %5236 = vst [vmem:[#allocation3 + $0x2e1] sm:$0x1] 0.0
    %5237 = vst [vmem:[#allocation3 + $0x2f9] sm:$0x1] 0.0
    %5238 = vst [vmem:[#allocation3 + $0x311] sm:$0x1] 0.0
    %5239 = vst [vmem:[#allocation3 + $0x329] sm:$0x1] 0.0
    %5240 = vst [vmem:[#allocation3 + $0x341] sm:$0x1] 0.0
    %5241 = vst [vmem:[#allocation3 + $0x359] sm:$0x1] 0.0
    %s5242 = scalar_lea.vmem [#allocation3], 24
    %5243 = vst [vmem:[%s5242 + $0x1] sm:$0xff] %v5093
    %5244 = vst [vmem:[%s5242 + $0x9] sm:$0xff] %v5094
    %5245 = vst [vmem:[%s5242 + $0x19] sm:$0xff] %v5095
    %5246 = vst [vmem:[%s5242 + $0x21] sm:$0xff] %v5096
    %5247 = vst [vmem:[%s5242 + $0x31] sm:$0xff] %v5097
    %5248 = vst [vmem:[%s5242 + $0x39] sm:$0xff] %v5098
    %5249 = vst [vmem:[%s5242 + $0x49] sm:$0xff] %v5099
    %5250 = vst [vmem:[%s5242 + $0x51] sm:$0xff] %v5100
    %5251 = vst [vmem:[%s5242 + $0x61] sm:$0xff] %v5101
    %5252 = vst [vmem:[%s5242 + $0x69] sm:$0xff] %v5102
    %5253 = vst [vmem:[%s5242 + $0x79] sm:$0xff] %v5103
    %5254 = vst [vmem:[%s5242 + $0x81] sm:$0xff] %v5104
    %5255 = vst [vmem:[%s5242 + $0x91] sm:$0xff] %v5105
    %5256 = vst [vmem:[%s5242 + $0x99] sm:$0xff] %v5106
    %5257 = vst [vmem:[%s5242 + $0xa9] sm:$0xff] %v5107
    %5258 = vst [vmem:[%s5242 + $0xb1] sm:$0xff] %v5108
    %5259 = vst [vmem:[%s5242 + $0xc1] sm:$0xff] %v5109
    %5260 = vst [vmem:[%s5242 + $0xc9] sm:$0xff] %v5110
    %5261 = vst [vmem:[%s5242 + $0xd9] sm:$0xff] %v5111
    %5262 = vst [vmem:[%s5242 + $0xe1] sm:$0xff] %v5112
    %5263 = vst [vmem:[%s5242 + $0xf1] sm:$0xff] %v5113
    %5264 = vst [vmem:[%s5242 + $0xf9] sm:$0xff] %v5114
    %5265 = vst [vmem:[%s5242 + $0x109] sm:$0xff] %v5115
    %5266 = vst [vmem:[%s5242 + $0x111] sm:$0xff] %v5116
    %5267 = vst [vmem:[%s5242 + $0x121] sm:$0xff] %v5117
    %5268 = vst [vmem:[%s5242 + $0x129] sm:$0xff] %v5118
    %5269 = vst [vmem:[%s5242 + $0x139] sm:$0xff] %v5119
    %5270 = vst [vmem:[%s5242 + $0x141] sm:$0xff] %v5120
    %5271 = vst [vmem:[%s5242 + $0x151] sm:$0xff] %v5121
    %5272 = vst [vmem:[%s5242 + $0x159] sm:$0xff] %v5122
    %5273 = vst [vmem:[%s5242 + $0x169] sm:$0xff] %v5123
    %5274 = vst [vmem:[%s5242 + $0x171] sm:$0xff] %v5124
    %5275 = vst [vmem:[%s5242 + $0x1b1] sm:$0xff] %v5125
    %5276 = vst [vmem:[%s5242 + $0x1b9] sm:$0xff] %v5126
    %5277 = vst [vmem:[%s5242 + $0x1c9] sm:$0xff] %v5127
    %5278 = vst [vmem:[%s5242 + $0x1d1] sm:$0xff] %v5128
    %5279 = vst [vmem:[%s5242 + $0x1e1] sm:$0xff] %v5129
    %5280 = vst [vmem:[%s5242 + $0x1e9] sm:$0xff] %v5130
    %5281 = vst [vmem:[%s5242 + $0x1f9] sm:$0xff] %v5131
    %5282 = vst [vmem:[%s5242 + $0x201] sm:$0xff] %v5132
    %5283 = vst [vmem:[%s5242 + $0x211] sm:$0xff] %v5133
    %5284 = vst [vmem:[%s5242 + $0x219] sm:$0xff] %v5134
    %5285 = vst [vmem:[%s5242 + $0x229] sm:$0xff] %v5135
    %5286 = vst [vmem:[%s5242 + $0x231] sm:$0xff] %v5136
    %5287 = vst [vmem:[%s5242 + $0x241] sm:$0xff] %v5137
    %5288 = vst [vmem:[%s5242 + $0x249] sm:$0xff] %v5138
    %5289 = vst [vmem:[%s5242 + $0x259] sm:$0xff] %v5139
    %5290 = vst [vmem:[%s5242 + $0x261] sm:$0xff] %v5140
    %5291 = vst [vmem:[%s5242 + $0x271] sm:$0xff] %v5141
    %5292 = vst [vmem:[%s5242 + $0x279] sm:$0xff] %v5142
    %5293 = vst [vmem:[%s5242 + $0x289] sm:$0xff] %v5143
    %5294 = vst [vmem:[%s5242 + $0x291] sm:$0xff] %v5144
    %5295 = vst [vmem:[%s5242 + $0x2a1] sm:$0xff] %v5145
    %5296 = vst [vmem:[%s5242 + $0x2a9] sm:$0xff] %v5146
    %5297 = vst [vmem:[%s5242 + $0x2b9] sm:$0xff] %v5147
    %5298 = vst [vmem:[%s5242 + $0x2c1] sm:$0xff] %v5148
    %5299 = vst [vmem:[%s5242 + $0x2d1] sm:$0xff] %v5149
    %5300 = vst [vmem:[%s5242 + $0x2d9] sm:$0xff] %v5150
    %5301 = vst [vmem:[%s5242 + $0x2e9] sm:$0xff] %v5151
    %5302 = vst [vmem:[%s5242 + $0x2f1] sm:$0xff] %v5152
    %5303 = vst [vmem:[%s5242 + $0x301] sm:$0xff] %v5153
    %5304 = vst [vmem:[%s5242 + $0x309] sm:$0xff] %v5154
    %5305 = vst [vmem:[%s5242 + $0x319] sm:$0xff] %v5155
    %5306 = vst [vmem:[%s5242 + $0x321] sm:$0xff] %v5156
    %v5307 = vld [vmem:[#allocation3] sm:$0xff]
    %v5308 = vld [vmem:[#allocation3 + $0x8] sm:$0xff]
    %v5309 = vld [vmem:[#allocation3 + $0x18] sm:$0xff]
    %v5310 = vld [vmem:[#allocation3 + $0x20] sm:$0xff]
    %v5311 = vld [vmem:[#allocation3 + $0x30] sm:$0xff]
    %v5312 = vld [vmem:[#allocation3 + $0x38] sm:$0xff]
    %v5313 = vld [vmem:[#allocation3 + $0x48] sm:$0xff]
    %v5314 = vld [vmem:[#allocation3 + $0x50] sm:$0xff]
    %v5315 = vld [vmem:[#allocation3 + $0x60] sm:$0xff]
    %v5316 = vld [vmem:[#allocation3 + $0x68] sm:$0xff]
    %v5317 = vld [vmem:[#allocation3 + $0x78] sm:$0xff]
    %v5318 = vld [vmem:[#allocation3 + $0x80] sm:$0xff]
    %v5319 = vld [vmem:[#allocation3 + $0x90] sm:$0xff]
    %v5320 = vld [vmem:[#allocation3 + $0x98] sm:$0xff]
    %v5321 = vld [vmem:[#allocation3 + $0xa8] sm:$0xff]
    %v5322 = vld [vmem:[#allocation3 + $0xb0] sm:$0xff]
    %v5323 = vld [vmem:[#allocation3 + $0xc0] sm:$0xff]
    %v5324 = vld [vmem:[#allocation3 + $0xc8] sm:$0xff]
    %v5325 = vld [vmem:[#allocation3 + $0xd8] sm:$0xff]
    %v5326 = vld [vmem:[#allocation3 + $0xe0] sm:$0xff]
    %v5327 = vld [vmem:[#allocation3 + $0xf0] sm:$0xff]
    %v5328 = vld [vmem:[#allocation3 + $0xf8] sm:$0xff]
    %v5329 = vld [vmem:[#allocation3 + $0x108] sm:$0xff]
    %v5330 = vld [vmem:[#allocation3 + $0x110] sm:$0xff]
    %v5331 = vld [vmem:[#allocation3 + $0x120] sm:$0xff]
    %v5332 = vld [vmem:[#allocation3 + $0x128] sm:$0xff]
    %v5333 = vld [vmem:[#allocation3 + $0x138] sm:$0xff]
    %v5334 = vld [vmem:[#allocation3 + $0x140] sm:$0xff]
    %v5335 = vld [vmem:[#allocation3 + $0x150] sm:$0xff]
    %v5336 = vld [vmem:[#allocation3 + $0x158] sm:$0xff]
    %v5337 = vld [vmem:[#allocation3 + $0x168] sm:$0xff]
    %v5338 = vld [vmem:[#allocation3 + $0x170] sm:$0xff]
    %v5339 = vld [vmem:[#allocation3 + $0x1b0] sm:$0xff]
    %v5340 = vld [vmem:[#allocation3 + $0x1b8] sm:$0xff]
    %v5341 = vld [vmem:[#allocation3 + $0x1c8] sm:$0xff]
    %v5342 = vld [vmem:[#allocation3 + $0x1d0] sm:$0xff]
    %v5343 = vld [vmem:[#allocation3 + $0x1e0] sm:$0xff]
    %v5344 = vld [vmem:[#allocation3 + $0x1e8] sm:$0xff]
    %v5345 = vld [vmem:[#allocation3 + $0x1f8] sm:$0xff]
    %v5346 = vld [vmem:[#allocation3 + $0x200] sm:$0xff]
    %v5347 = vld [vmem:[#allocation3 + $0x210] sm:$0xff]
    %v5348 = vld [vmem:[#allocation3 + $0x218] sm:$0xff]
    %v5349 = vld [vmem:[#allocation3 + $0x228] sm:$0xff]
    %v5350 = vld [vmem:[#allocation3 + $0x230] sm:$0xff]
    %v5351 = vld [vmem:[#allocation3 + $0x240] sm:$0xff]
    %v5352 = vld [vmem:[#allocation3 + $0x248] sm:$0xff]
    %v5353 = vld [vmem:[#allocation3 + $0x258] sm:$0xff]
    %v5354 = vld [vmem:[#allocation3 + $0x260] sm:$0xff]
    %v5355 = vld [vmem:[#allocation3 + $0x270] sm:$0xff]
    %v5356 = vld [vmem:[#allocation3 + $0x278] sm:$0xff]
    %v5357 = vld [vmem:[#allocation3 + $0x288] sm:$0xff]
    %v5358 = vld [vmem:[#allocation3 + $0x290] sm:$0xff]
    %v5359 = vld [vmem:[#allocation3 + $0x2a0] sm:$0xff]
    %v5360 = vld [vmem:[#allocation3 + $0x2a8] sm:$0xff]
    %v5361 = vld [vmem:[#allocation3 + $0x2b8] sm:$0xff]
    %v5362 = vld [vmem:[#allocation3 + $0x2c0] sm:$0xff]
    %v5363 = vld [vmem:[#allocation3 + $0x2d0] sm:$0xff]
    %v5364 = vld [vmem:[#allocation3 + $0x2d8] sm:$0xff]
    %v5365 = vld [vmem:[#allocation3 + $0x2e8] sm:$0xff]
    %v5366 = vld [vmem:[#allocation3 + $0x2f0] sm:$0xff]
    %v5367 = vld [vmem:[#allocation3 + $0x300] sm:$0xff]
    %v5368 = vld [vmem:[#allocation3 + $0x308] sm:$0xff]
    %v5369 = vld [vmem:[#allocation3 + $0x318] sm:$0xff]
    %v5370 = vld [vmem:[#allocation3 + $0x320] sm:$0xff]
    %v5371 = vpack.c.bf16 %v5308, %v5307
    %v5372 = vpack.c.bf16 %v5310, %v5309
    %v5373 = vpack.c.bf16 %v5312, %v5311
    %v5374 = vpack.c.bf16 %v5314, %v5313
    %v5375 = vpack.c.bf16 %v5316, %v5315
    %v5376 = vpack.c.bf16 %v5318, %v5317
    %v5377 = vpack.c.bf16 %v5320, %v5319
    %v5378 = vpack.c.bf16 %v5322, %v5321
    %v5379 = vpack.c.bf16 %v5324, %v5323
    %v5380 = vpack.c.bf16 %v5326, %v5325
    %v5381 = vpack.c.bf16 %v5328, %v5327
    %v5382 = vpack.c.bf16 %v5330, %v5329
    %v5383 = vpack.c.bf16 %v5332, %v5331
    %v5384 = vpack.c.bf16 %v5334, %v5333
    %v5385 = vpack.c.bf16 %v5336, %v5335
    %v5386 = vpack.c.bf16 %v5338, %v5337
    %v5387 = vpack.c.bf16 %v5340, %v5339
    %v5388 = vpack.c.bf16 %v5342, %v5341
    %v5389 = vpack.c.bf16 %v5344, %v5343
    %v5390 = vpack.c.bf16 %v5346, %v5345
    %v5391 = vpack.c.bf16 %v5348, %v5347
    %v5392 = vpack.c.bf16 %v5350, %v5349
    %v5393 = vpack.c.bf16 %v5352, %v5351
    %v5394 = vpack.c.bf16 %v5354, %v5353
    %v5395 = vpack.c.bf16 %v5356, %v5355
    %v5396 = vpack.c.bf16 %v5358, %v5357
    %v5397 = vpack.c.bf16 %v5360, %v5359
    %v5398 = vpack.c.bf16 %v5362, %v5361
    %v5399 = vpack.c.bf16 %v5364, %v5363
    %v5400 = vpack.c.bf16 %v5366, %v5365
    %v5401 = vpack.c.bf16 %v5368, %v5367
    %v5402 = vpack.c.bf16 %v5370, %v5369
    %v5403 = vld [vmem:[%s4] sm:$0xf]
    %v5404 = vld [vmem:[%s4 + $0x4] sm:$0xf]
    %v5405 = vld [vmem:[%s4 + $0x8] sm:$0xf]
    %v5406 = vld [vmem:[%s4 + $0xc] sm:$0xf]
    %v5407 = vld [vmem:[%s4 + $0x10] sm:$0xf]
    %v5408 = vld [vmem:[%s4 + $0x14] sm:$0xf]
    %v5409 = vld [vmem:[%s4 + $0x18] sm:$0xf]
    %v5410 = vld [vmem:[%s4 + $0x1c] sm:$0xf]
    %v5411 = vld [vmem:[%s4 + $0x20] sm:$0xf]
    %v5412 = vld [vmem:[%s4 + $0x24] sm:$0xf]
    %v5413 = vld [vmem:[%s4 + $0x28] sm:$0xf]
    %v5414 = vld [vmem:[%s4 + $0x2c] sm:$0xf]
    %v5415 = vld [vmem:[%s4 + $0x30] sm:$0xf]
    %v5416 = vld [vmem:[%s4 + $0x34] sm:$0xf]
    %v5417 = vld [vmem:[%s4 + $0x38] sm:$0xf]
    %v5418 = vld [vmem:[%s4 + $0x3c] sm:$0xf]
    %v5419 = vld [vmem:[#allocation3 + $0x1] sm:$0xff]
    %v5420 = vld [vmem:[#allocation3 + $0x9] sm:$0xff]
    %v5421 = vld [vmem:[#allocation3 + $0x19] sm:$0xff]
    %v5422 = vld [vmem:[#allocation3 + $0x21] sm:$0xff]
    %v5423 = vld [vmem:[#allocation3 + $0x31] sm:$0xff]
    %v5424 = vld [vmem:[#allocation3 + $0x39] sm:$0xff]
    %v5425 = vld [vmem:[#allocation3 + $0x49] sm:$0xff]
    %v5426 = vld [vmem:[#allocation3 + $0x51] sm:$0xff]
    %v5427 = vld [vmem:[#allocation3 + $0x61] sm:$0xff]
    %v5428 = vld [vmem:[#allocation3 + $0x69] sm:$0xff]
    %v5429 = vld [vmem:[#allocation3 + $0x79] sm:$0xff]
    %v5430 = vld [vmem:[#allocation3 + $0x81] sm:$0xff]
    %v5431 = vld [vmem:[#allocation3 + $0x91] sm:$0xff]
    %v5432 = vld [vmem:[#allocation3 + $0x99] sm:$0xff]
    %v5433 = vld [vmem:[#allocation3 + $0xa9] sm:$0xff]
    %v5434 = vld [vmem:[#allocation3 + $0xb1] sm:$0xff]
    %v5435 = vld [vmem:[#allocation3 + $0xc1] sm:$0xff]
    %v5436 = vld [vmem:[#allocation3 + $0xc9] sm:$0xff]
    %v5437 = vld [vmem:[#allocation3 + $0xd9] sm:$0xff]
    %v5438 = vld [vmem:[#allocation3 + $0xe1] sm:$0xff]
    %v5439 = vld [vmem:[#allocation3 + $0xf1] sm:$0xff]
    %v5440 = vld [vmem:[#allocation3 + $0xf9] sm:$0xff]
    %v5441 = vld [vmem:[#allocation3 + $0x109] sm:$0xff]
    %v5442 = vld [vmem:[#allocation3 + $0x111] sm:$0xff]
    %v5443 = vld [vmem:[#allocation3 + $0x121] sm:$0xff]
    %v5444 = vld [vmem:[#allocation3 + $0x129] sm:$0xff]
    %v5445 = vld [vmem:[#allocation3 + $0x139] sm:$0xff]
    %v5446 = vld [vmem:[#allocation3 + $0x141] sm:$0xff]
    %v5447 = vld [vmem:[#allocation3 + $0x151] sm:$0xff]
    %v5448 = vld [vmem:[#allocation3 + $0x159] sm:$0xff]
    %v5449 = vld [vmem:[#allocation3 + $0x169] sm:$0xff]
    %v5450 = vld [vmem:[#allocation3 + $0x171] sm:$0xff]
    %v5451 = vld [vmem:[#allocation3 + $0x1b1] sm:$0xff]
    %v5452 = vld [vmem:[#allocation3 + $0x1b9] sm:$0xff]
    %v5453 = vld [vmem:[#allocation3 + $0x1c9] sm:$0xff]
    %v5454 = vld [vmem:[#allocation3 + $0x1d1] sm:$0xff]
    %v5455 = vld [vmem:[#allocation3 + $0x1e1] sm:$0xff]
    %v5456 = vld [vmem:[#allocation3 + $0x1e9] sm:$0xff]
    %v5457 = vld [vmem:[#allocation3 + $0x1f9] sm:$0xff]
    %v5458 = vld [vmem:[#allocation3 + $0x201] sm:$0xff]
    %v5459 = vld [vmem:[#allocation3 + $0x211] sm:$0xff]
    %v5460 = vld [vmem:[#allocation3 + $0x219] sm:$0xff]
    %v5461 = vld [vmem:[#allocation3 + $0x229] sm:$0xff]
    %v5462 = vld [vmem:[#allocation3 + $0x231] sm:$0xff]
    %v5463 = vld [vmem:[#allocation3 + $0x241] sm:$0xff]
    %v5464 = vld [vmem:[#allocation3 + $0x249] sm:$0xff]
    %v5465 = vld [vmem:[#allocation3 + $0x259] sm:$0xff]
    %v5466 = vld [vmem:[#allocation3 + $0x261] sm:$0xff]
    %v5467 = vld [vmem:[#allocation3 + $0x271] sm:$0xff]
    %v5468 = vld [vmem:[#allocation3 + $0x279] sm:$0xff]
    %v5469 = vld [vmem:[#allocation3 + $0x289] sm:$0xff]
    %v5470 = vld [vmem:[#allocation3 + $0x291] sm:$0xff]
    %v5471 = vld [vmem:[#allocation3 + $0x2a1] sm:$0xff]
    %v5472 = vld [vmem:[#allocation3 + $0x2a9] sm:$0xff]
    %v5473 = vld [vmem:[#allocation3 + $0x2b9] sm:$0xff]
    %v5474 = vld [vmem:[#allocation3 + $0x2c1] sm:$0xff]
    %v5475 = vld [vmem:[#allocation3 + $0x2d1] sm:$0xff]
    %v5476 = vld [vmem:[#allocation3 + $0x2d9] sm:$0xff]
    %v5477 = vld [vmem:[#allocation3 + $0x2e9] sm:$0xff]
    %v5478 = vld [vmem:[#allocation3 + $0x2f1] sm:$0xff]
    %v5479 = vld [vmem:[#allocation3 + $0x301] sm:$0xff]
    %v5480 = vld [vmem:[#allocation3 + $0x309] sm:$0xff]
    %v5481 = vld [vmem:[#allocation3 + $0x319] sm:$0xff]
    %v5482 = vld [vmem:[#allocation3 + $0x321] sm:$0xff]
    %v5483 = vpack.c.bf16 %v5420, %v5419
    %v5484 = vpack.c.bf16 %v5422, %v5421
    %v5485 = vpack.c.bf16 %v5424, %v5423
    %v5486 = vpack.c.bf16 %v5426, %v5425
    %v5487 = vpack.c.bf16 %v5428, %v5427
    %v5488 = vpack.c.bf16 %v5430, %v5429
    %v5489 = vpack.c.bf16 %v5432, %v5431
    %v5490 = vpack.c.bf16 %v5434, %v5433
    %v5491 = vpack.c.bf16 %v5436, %v5435
    %v5492 = vpack.c.bf16 %v5438, %v5437
    %v5493 = vpack.c.bf16 %v5440, %v5439
    %v5494 = vpack.c.bf16 %v5442, %v5441
    %v5495 = vpack.c.bf16 %v5444, %v5443
    %v5496 = vpack.c.bf16 %v5446, %v5445
    %v5497 = vpack.c.bf16 %v5448, %v5447
    %v5498 = vpack.c.bf16 %v5450, %v5449
    %v5499 = vpack.c.bf16 %v5452, %v5451
    %v5500 = vpack.c.bf16 %v5454, %v5453
    %v5501 = vpack.c.bf16 %v5456, %v5455
    %v5502 = vpack.c.bf16 %v5458, %v5457
    %v5503 = vpack.c.bf16 %v5460, %v5459
    %v5504 = vpack.c.bf16 %v5462, %v5461
    %v5505 = vpack.c.bf16 %v5464, %v5463
    %v5506 = vpack.c.bf16 %v5466, %v5465
    %v5507 = vpack.c.bf16 %v5468, %v5467
    %v5508 = vpack.c.bf16 %v5470, %v5469
    %v5509 = vpack.c.bf16 %v5472, %v5471
    %v5510 = vpack.c.bf16 %v5474, %v5473
    %v5511 = vpack.c.bf16 %v5476, %v5475
    %v5512 = vpack.c.bf16 %v5478, %v5477
    %v5513 = vpack.c.bf16 %v5480, %v5479
    %v5514 = vpack.c.bf16 %v5482, %v5481
    %s5515 = scalar_lea.vmem %s4, 64
    %v5516 = vld [vmem:[%s5515] sm:$0xf]
    %v5517 = vld [vmem:[%s5515 + $0x4] sm:$0xf]
    %v5518 = vld [vmem:[%s5515 + $0x8] sm:$0xf]
    %v5519 = vld [vmem:[%s5515 + $0xc] sm:$0xf]
    %v5520 = vld [vmem:[%s5515 + $0x10] sm:$0xf]
    %v5521 = vld [vmem:[%s5515 + $0x14] sm:$0xf]
    %v5522 = vld [vmem:[%s5515 + $0x18] sm:$0xf]
    %v5523 = vld [vmem:[%s5515 + $0x1c] sm:$0xf]
    %v5524 = vld [vmem:[%s5515 + $0x20] sm:$0xf]
    %v5525 = vld [vmem:[%s5515 + $0x24] sm:$0xf]
    %v5526 = vld [vmem:[%s5515 + $0x28] sm:$0xf]
    %v5527 = vld [vmem:[%s5515 + $0x2c] sm:$0xf]
    %v5528 = vld [vmem:[%s5515 + $0x30] sm:$0xf]
    %v5529 = vld [vmem:[%s5515 + $0x34] sm:$0xf]
    %v5530 = vld [vmem:[%s5515 + $0x38] sm:$0xf]
    %v5531 = vld [vmem:[%s5515 + $0x3c] sm:$0xf]
    %v5548 = vunpack.c.l.b16 %v5516
    %v5549 = vunpack.c.l.b16 %v5517
    %v5550 = vunpack.c.l.b16 %v5518
    %v5551 = vunpack.c.l.b16 %v5519
    %v5552 = vunpack.c.l.b16 %v5520
    %v5553 = vunpack.c.l.b16 %v5521
    %v5554 = vunpack.c.l.b16 %v5522
    %v5555 = vunpack.c.l.b16 %v5523
    %v5556 = vunpack.c.l.b16 %v5524
    %v5557 = vunpack.c.l.b16 %v5525
    %v5558 = vunpack.c.l.b16 %v5526
    %v5559 = vunpack.c.l.b16 %v5527
    %v5560 = vunpack.c.l.b16 %v5528
    %v5561 = vunpack.c.l.b16 %v5529
    %v5562 = vunpack.c.l.b16 %v5530
    %v5563 = vunpack.c.l.b16 %v5531
    %v5564 = vpack.c.b16 %v5549, %v5548
    %v5565 = vpack.c.b16 %v5551, %v5550
    %v5566 = vpack.c.b16 %v5553, %v5552
    %v5567 = vpack.c.b16 %v5555, %v5554
    %v5568 = vpack.c.b16 %v5557, %v5556
    %v5569 = vpack.c.b16 %v5559, %v5558
    %v5570 = vpack.c.b16 %v5561, %v5560
    %v5571 = vpack.c.b16 %v5563, %v5562
    %5580 = vmatprep.subr.bf16.mxu0 0
    %5581 = vmatpush1.bf16.msra.mxu0 %v5571
    %5582 = vmatprep.subr.bf16.mxu0 0
    %5583 = vmatpush1.bf16.msra.mxu0 %v5570
    %5584 = vmatprep.subr.bf16.mxu0 0
    %5585 = vmatpush1.bf16.msra.mxu0 %v5569
    %5586 = vmatprep.subr.bf16.mxu0 0
    %5587 = vmatpush1.bf16.msra.mxu0 %v5568
    %5588 = vmatprep.subr.bf16.mxu0 0
    %5589 = vmatpush1.bf16.msra.mxu0 %v5567
    %5590 = vmatprep.subr.bf16.mxu0 0
    %5591 = vmatpush1.bf16.msra.mxu0 %v5566
    %5592 = vmatprep.subr.bf16.mxu0 0
    %5593 = vmatpush1.bf16.msra.mxu0 %v5565
    %5594 = vmatprep.subr.bf16.mxu0 0
    %5595 = vmatpush1.bf16.msra.mxu0 %v5564
    %5596 = vmatprep.subr.bf16.mxu0 0
    %5597 = vmatpush2.bf16.msra.mxu0 0
    %5598 = vmatprep.subr.bf16.mxu0 0
    %5599 = vmatpush2.bf16.msra.mxu0 0
    %5600 = vmatprep.subr.bf16.mxu0 0
    %5601 = vmatpush2.bf16.msra.mxu0 0
    %5602 = vmatprep.subr.bf16.mxu0 0
    %5603 = vmatpush2.bf16.msra.mxu0 0
    %5604 = vmatprep.subr.bf16.mxu0 0
    %5605 = vmatpush2.bf16.msra.mxu0 0
    %5606 = vmatprep.subr.bf16.mxu0 0
    %5607 = vmatpush2.bf16.msra.mxu0 0
    %5608 = vmatprep.subr.bf16.mxu0 0
    %5609 = vmatpush2.bf16.msra.mxu0 0
    %5610 = vmatprep.subr.bf16.mxu0 0
    %5611 = vmatpush2.bf16.msra.mxu0 0
    %5612 = vmatprep.mubr.bf16.mxu0 0
    %5613 = vmatmul.mubr.bf16.gmra.mxu0 %v5483
    %v5614 = vpop.f32.mrf.mxu0
    %v5615 = vadd.f32 0.0, %v5614
    %v5616 = vpop.f32.mrf.mxu0
    %v5617 = vpop.f32.mrf.mxu0
    %v5618 = vadd.f32 0.0, %v5617
    %v5619 = vpop.f32.mrf.mxu0
    %5620 = vmatprep.mubr.bf16.mxu0 0
    %5621 = vmatmul.mubr.bf16.gmra.mxu0 %v5484
    %v5622 = vpop.f32.mrf.mxu0
    %v5623 = vadd.f32 0.0, %v5622
    %v5624 = vpop.f32.mrf.mxu0
    %v5625 = vpop.f32.mrf.mxu0
    %v5626 = vadd.f32 0.0, %v5625
    %v5627 = vpop.f32.mrf.mxu0
    %5628 = vmatprep.mubr.bf16.mxu0 0
    %5629 = vmatmul.mubr.bf16.gmra.mxu0 %v5485
    %v5630 = vpop.f32.mrf.mxu0
    %v5631 = vadd.f32 0.0, %v5630
    %v5632 = vpop.f32.mrf.mxu0
    %v5633 = vpop.f32.mrf.mxu0
    %v5634 = vadd.f32 0.0, %v5633
    %v5635 = vpop.f32.mrf.mxu0
    %5636 = vmatprep.mubr.bf16.mxu0 0
    %5637 = vmatmul.mubr.bf16.gmra.mxu0 %v5486
    %v5638 = vpop.f32.mrf.mxu0
    %v5639 = vadd.f32 0.0, %v5638
    %v5640 = vpop.f32.mrf.mxu0
    %v5641 = vpop.f32.mrf.mxu0
    %v5642 = vadd.f32 0.0, %v5641
    %v5643 = vpop.f32.mrf.mxu0
    %5644 = vmatprep.mubr.bf16.mxu0 0
    %5645 = vmatmul.mubr.bf16.gmra.mxu0 %v5487
    %v5646 = vpop.f32.mrf.mxu0
    %v5647 = vadd.f32 0.0, %v5646
    %v5648 = vpop.f32.mrf.mxu0
    %v5649 = vpop.f32.mrf.mxu0
    %v5650 = vadd.f32 0.0, %v5649
    %v5651 = vpop.f32.mrf.mxu0
    %5652 = vmatprep.mubr.bf16.mxu0 0
    %5653 = vmatmul.mubr.bf16.gmra.mxu0 %v5488
    %v5654 = vpop.f32.mrf.mxu0
    %v5655 = vadd.f32 0.0, %v5654
    %v5656 = vpop.f32.mrf.mxu0
    %v5657 = vpop.f32.mrf.mxu0
    %v5658 = vadd.f32 0.0, %v5657
    %v5659 = vpop.f32.mrf.mxu0
    %5660 = vmatprep.mubr.bf16.mxu0 0
    %5661 = vmatmul.mubr.bf16.gmra.mxu0 %v5489
    %v5662 = vpop.f32.mrf.mxu0
    %v5663 = vadd.f32 0.0, %v5662
    %v5664 = vpop.f32.mrf.mxu0
    %v5665 = vpop.f32.mrf.mxu0
    %v5666 = vadd.f32 0.0, %v5665
    %v5667 = vpop.f32.mrf.mxu0
    %5668 = vmatprep.mubr.bf16.mxu0 0
    %5669 = vmatmul.mubr.bf16.gmra.mxu0 %v5490
    %v5670 = vpop.f32.mrf.mxu0
    %v5671 = vadd.f32 0.0, %v5670
    %v5672 = vpop.f32.mrf.mxu0
    %v5673 = vpop.f32.mrf.mxu0
    %v5674 = vadd.f32 0.0, %v5673
    %v5675 = vpop.f32.mrf.mxu0
    %5676 = vmatprep.mubr.bf16.mxu0 0
    %5677 = vmatmul.mubr.bf16.gmra.mxu0 %v5491
    %v5678 = vpop.f32.mrf.mxu0
    %v5679 = vadd.f32 0.0, %v5678
    %v5680 = vpop.f32.mrf.mxu0
    %v5681 = vpop.f32.mrf.mxu0
    %v5682 = vadd.f32 0.0, %v5681
    %v5683 = vpop.f32.mrf.mxu0
    %5684 = vmatprep.mubr.bf16.mxu0 0
    %5685 = vmatmul.mubr.bf16.gmra.mxu0 %v5492
    %v5686 = vpop.f32.mrf.mxu0
    %v5687 = vadd.f32 0.0, %v5686
    %v5688 = vpop.f32.mrf.mxu0
    %v5689 = vpop.f32.mrf.mxu0
    %v5690 = vadd.f32 0.0, %v5689
    %v5691 = vpop.f32.mrf.mxu0
    %5692 = vmatprep.mubr.bf16.mxu0 0
    %5693 = vmatmul.mubr.bf16.gmra.mxu0 %v5493
    %v5694 = vpop.f32.mrf.mxu0
    %v5695 = vadd.f32 0.0, %v5694
    %v5696 = vpop.f32.mrf.mxu0
    %v5697 = vpop.f32.mrf.mxu0
    %v5698 = vadd.f32 0.0, %v5697
    %v5699 = vpop.f32.mrf.mxu0
    %5700 = vmatprep.mubr.bf16.mxu0 0
    %5701 = vmatmul.mubr.bf16.gmra.mxu0 %v5494
    %v5702 = vpop.f32.mrf.mxu0
    %v5703 = vadd.f32 0.0, %v5702
    %v5704 = vpop.f32.mrf.mxu0
    %v5705 = vpop.f32.mrf.mxu0
    %v5706 = vadd.f32 0.0, %v5705
    %v5707 = vpop.f32.mrf.mxu0
    %5708 = vmatprep.mubr.bf16.mxu0 0
    %5709 = vmatmul.mubr.bf16.gmra.mxu0 %v5495
    %v5710 = vpop.f32.mrf.mxu0
    %v5711 = vadd.f32 0.0, %v5710
    %v5712 = vpop.f32.mrf.mxu0
    %v5713 = vpop.f32.mrf.mxu0
    %v5714 = vadd.f32 0.0, %v5713
    %v5715 = vpop.f32.mrf.mxu0
    %5716 = vmatprep.mubr.bf16.mxu0 0
    %5717 = vmatmul.mubr.bf16.gmra.mxu0 %v5496
    %v5718 = vpop.f32.mrf.mxu0
    %v5719 = vadd.f32 0.0, %v5718
    %v5720 = vpop.f32.mrf.mxu0
    %v5721 = vpop.f32.mrf.mxu0
    %v5722 = vadd.f32 0.0, %v5721
    %v5723 = vpop.f32.mrf.mxu0
    %5724 = vmatprep.mubr.bf16.mxu0 0
    %5725 = vmatmul.mubr.bf16.gmra.mxu0 %v5497
    %v5726 = vpop.f32.mrf.mxu0
    %v5727 = vadd.f32 0.0, %v5726
    %v5728 = vpop.f32.mrf.mxu0
    %v5729 = vpop.f32.mrf.mxu0
    %v5730 = vadd.f32 0.0, %v5729
    %v5731 = vpop.f32.mrf.mxu0
    %5732 = vmatprep.mubr.bf16.mxu0 0
    %5733 = vmatmul.mubr.bf16.gmra.mxu0 %v5498
    %v5734 = vpop.f32.mrf.mxu0
    %v5735 = vadd.f32 0.0, %v5734
    %v5736 = vpop.f32.mrf.mxu0
    %v5737 = vpop.f32.mrf.mxu0
    %v5738 = vadd.f32 0.0, %v5737
    %v5739 = vpop.f32.mrf.mxu0
    %5740 = vmatprep.mubr.bf16.mxu0 0
    %5741 = vmatmul.mubr.bf16.gmra.mxu0 %v5499
    %v5742 = vpop.f32.mrf.mxu0
    %v5743 = vadd.f32 0.0, %v5742
    %v5744 = vpop.f32.mrf.mxu0
    %v5745 = vpop.f32.mrf.mxu0
    %v5746 = vadd.f32 0.0, %v5745
    %v5747 = vpop.f32.mrf.mxu0
    %5748 = vmatprep.mubr.bf16.mxu0 0
    %5749 = vmatmul.mubr.bf16.gmra.mxu0 %v5500
    %v5750 = vpop.f32.mrf.mxu0
    %v5751 = vadd.f32 0.0, %v5750
    %v5752 = vpop.f32.mrf.mxu0
    %v5753 = vpop.f32.mrf.mxu0
    %v5754 = vadd.f32 0.0, %v5753
    %v5755 = vpop.f32.mrf.mxu0
    %5756 = vmatprep.mubr.bf16.mxu0 0
    %5757 = vmatmul.mubr.bf16.gmra.mxu0 %v5501
    %v5758 = vpop.f32.mrf.mxu0
    %v5759 = vadd.f32 0.0, %v5758
    %v5760 = vpop.f32.mrf.mxu0
    %v5761 = vpop.f32.mrf.mxu0
    %v5762 = vadd.f32 0.0, %v5761
    %v5763 = vpop.f32.mrf.mxu0
    %5764 = vmatprep.mubr.bf16.mxu0 0
    %5765 = vmatmul.mubr.bf16.gmra.mxu0 %v5502
    %v5766 = vpop.f32.mrf.mxu0
    %v5767 = vadd.f32 0.0, %v5766
    %v5768 = vpop.f32.mrf.mxu0
    %v5769 = vpop.f32.mrf.mxu0
    %v5770 = vadd.f32 0.0, %v5769
    %v5771 = vpop.f32.mrf.mxu0
    %5772 = vmatprep.mubr.bf16.mxu0 0
    %5773 = vmatmul.mubr.bf16.gmra.mxu0 %v5503
    %v5774 = vpop.f32.mrf.mxu0
    %v5775 = vadd.f32 0.0, %v5774
    %v5776 = vpop.f32.mrf.mxu0
    %v5777 = vpop.f32.mrf.mxu0
    %v5778 = vadd.f32 0.0, %v5777
    %v5779 = vpop.f32.mrf.mxu0
    %5780 = vmatprep.mubr.bf16.mxu0 0
    %5781 = vmatmul.mubr.bf16.gmra.mxu0 %v5504
    %v5782 = vpop.f32.mrf.mxu0
    %v5783 = vadd.f32 0.0, %v5782
    %v5784 = vpop.f32.mrf.mxu0
    %v5785 = vpop.f32.mrf.mxu0
    %v5786 = vadd.f32 0.0, %v5785
    %v5787 = vpop.f32.mrf.mxu0
    %5788 = vmatprep.mubr.bf16.mxu0 0
    %5789 = vmatmul.mubr.bf16.gmra.mxu0 %v5505
    %v5790 = vpop.f32.mrf.mxu0
    %v5791 = vadd.f32 0.0, %v5790
    %v5792 = vpop.f32.mrf.mxu0
    %v5793 = vpop.f32.mrf.mxu0
    %v5794 = vadd.f32 0.0, %v5793
    %v5795 = vpop.f32.mrf.mxu0
    %5796 = vmatprep.mubr.bf16.mxu0 0
    %5797 = vmatmul.mubr.bf16.gmra.mxu0 %v5506
    %v5798 = vpop.f32.mrf.mxu0
    %v5799 = vadd.f32 0.0, %v5798
    %v5800 = vpop.f32.mrf.mxu0
    %v5801 = vpop.f32.mrf.mxu0
    %v5802 = vadd.f32 0.0, %v5801
    %v5803 = vpop.f32.mrf.mxu0
    %5804 = vmatprep.mubr.bf16.mxu0 0
    %5805 = vmatmul.mubr.bf16.gmra.mxu0 %v5507
    %v5806 = vpop.f32.mrf.mxu0
    %v5807 = vadd.f32 0.0, %v5806
    %v5808 = vpop.f32.mrf.mxu0
    %v5809 = vpop.f32.mrf.mxu0
    %v5810 = vadd.f32 0.0, %v5809
    %v5811 = vpop.f32.mrf.mxu0
    %5812 = vmatprep.mubr.bf16.mxu0 0
    %5813 = vmatmul.mubr.bf16.gmra.mxu0 %v5508
    %v5814 = vpop.f32.mrf.mxu0
    %v5815 = vadd.f32 0.0, %v5814
    %v5816 = vpop.f32.mrf.mxu0
    %v5817 = vpop.f32.mrf.mxu0
    %v5818 = vadd.f32 0.0, %v5817
    %v5819 = vpop.f32.mrf.mxu0
    %5820 = vmatprep.mubr.bf16.mxu0 0
    %5821 = vmatmul.mubr.bf16.gmra.mxu0 %v5509
    %v5822 = vpop.f32.mrf.mxu0
    %v5823 = vadd.f32 0.0, %v5822
    %v5824 = vpop.f32.mrf.mxu0
    %v5825 = vpop.f32.mrf.mxu0
    %v5826 = vadd.f32 0.0, %v5825
    %v5827 = vpop.f32.mrf.mxu0
    %5828 = vmatprep.mubr.bf16.mxu0 0
    %5829 = vmatmul.mubr.bf16.gmra.mxu0 %v5510
    %v5830 = vpop.f32.mrf.mxu0
    %v5831 = vadd.f32 0.0, %v5830
    %v5832 = vpop.f32.mrf.mxu0
    %v5833 = vpop.f32.mrf.mxu0
    %v5834 = vadd.f32 0.0, %v5833
    %v5835 = vpop.f32.mrf.mxu0
    %5836 = vmatprep.mubr.bf16.mxu0 0
    %5837 = vmatmul.mubr.bf16.gmra.mxu0 %v5511
    %v5838 = vpop.f32.mrf.mxu0
    %v5839 = vadd.f32 0.0, %v5838
    %v5840 = vpop.f32.mrf.mxu0
    %v5841 = vpop.f32.mrf.mxu0
    %v5842 = vadd.f32 0.0, %v5841
    %v5843 = vpop.f32.mrf.mxu0
    %5844 = vmatprep.mubr.bf16.mxu0 0
    %5845 = vmatmul.mubr.bf16.gmra.mxu0 %v5512
    %v5846 = vpop.f32.mrf.mxu0
    %v5847 = vadd.f32 0.0, %v5846
    %v5848 = vpop.f32.mrf.mxu0
    %v5849 = vpop.f32.mrf.mxu0
    %v5850 = vadd.f32 0.0, %v5849
    %v5851 = vpop.f32.mrf.mxu0
    %5852 = vmatprep.mubr.bf16.mxu0 0
    %5853 = vmatmul.mubr.bf16.gmra.mxu0 %v5513
    %v5854 = vpop.f32.mrf.mxu0
    %v5855 = vadd.f32 0.0, %v5854
    %v5856 = vpop.f32.mrf.mxu0
    %v5857 = vpop.f32.mrf.mxu0
    %v5858 = vadd.f32 0.0, %v5857
    %v5859 = vpop.f32.mrf.mxu0
    %5860 = vmatprep.mubr.bf16.mxu0 0
    %5861 = vmatmul.mubr.bf16.gmra.mxu0 %v5514
    %v5862 = vpop.f32.mrf.mxu0
    %v5863 = vadd.f32 0.0, %v5862
    %v5864 = vpop.f32.mrf.mxu0
    %v5865 = vpop.f32.mrf.mxu0
    %v5866 = vadd.f32 0.0, %v5865
    %v5867 = vpop.f32.mrf.mxu0
    %5868 = vdwg.mxu0
    %v5885 = vunpack.c.l.b16 %v5403
    %v5886 = vunpack.c.l.b16 %v5404
    %v5887 = vunpack.c.l.b16 %v5405
    %v5888 = vunpack.c.l.b16 %v5406
    %v5889 = vunpack.c.l.b16 %v5407
    %v5890 = vunpack.c.l.b16 %v5408
    %v5891 = vunpack.c.l.b16 %v5409
    %v5892 = vunpack.c.l.b16 %v5410
    %v5893 = vunpack.c.l.b16 %v5411
    %v5894 = vunpack.c.l.b16 %v5412
    %v5895 = vunpack.c.l.b16 %v5413
    %v5896 = vunpack.c.l.b16 %v5414
    %v5897 = vunpack.c.l.b16 %v5415
    %v5898 = vunpack.c.l.b16 %v5416
    %v5899 = vunpack.c.l.b16 %v5417
    %v5900 = vunpack.c.l.b16 %v5418
    %v5901 = vpack.c.b16 %v5886, %v5885
    %v5902 = vpack.c.b16 %v5888, %v5887
    %v5903 = vpack.c.b16 %v5890, %v5889
    %v5904 = vpack.c.b16 %v5892, %v5891
    %v5905 = vpack.c.b16 %v5894, %v5893
    %v5906 = vpack.c.b16 %v5896, %v5895
    %v5907 = vpack.c.b16 %v5898, %v5897
    %v5908 = vpack.c.b16 %v5900, %v5899
    %5917 = vmatprep.subr.bf16.mxu0 0
    %5918 = vmatpush1.bf16.msra.mxu0 %v5908
    %5919 = vmatprep.subr.bf16.mxu0 0
    %5920 = vmatpush1.bf16.msra.mxu0 %v5907
    %5921 = vmatprep.subr.bf16.mxu0 0
    %5922 = vmatpush1.bf16.msra.mxu0 %v5906
    %5923 = vmatprep.subr.bf16.mxu0 0
    %5924 = vmatpush1.bf16.msra.mxu0 %v5905
    %5925 = vmatprep.subr.bf16.mxu0 0
    %5926 = vmatpush1.bf16.msra.mxu0 %v5904
    %5927 = vmatprep.subr.bf16.mxu0 0
    %5928 = vmatpush1.bf16.msra.mxu0 %v5903
    %5929 = vmatprep.subr.bf16.mxu0 0
    %5930 = vmatpush1.bf16.msra.mxu0 %v5902
    %5931 = vmatprep.subr.bf16.mxu0 0
    %5932 = vmatpush1.bf16.msra.mxu0 %v5901
    %5933 = vmatprep.subr.bf16.mxu0 0
    %5934 = vmatpush2.bf16.msra.mxu0 0
    %5935 = vmatprep.subr.bf16.mxu0 0
    %5936 = vmatpush2.bf16.msra.mxu0 0
    %5937 = vmatprep.subr.bf16.mxu0 0
    %5938 = vmatpush2.bf16.msra.mxu0 0
    %5939 = vmatprep.subr.bf16.mxu0 0
    %5940 = vmatpush2.bf16.msra.mxu0 0
    %5941 = vmatprep.subr.bf16.mxu0 0
    %5942 = vmatpush2.bf16.msra.mxu0 0
    %5943 = vmatprep.subr.bf16.mxu0 0
    %5944 = vmatpush2.bf16.msra.mxu0 0
    %5945 = vmatprep.subr.bf16.mxu0 0
    %5946 = vmatpush2.bf16.msra.mxu0 0
    %5947 = vmatprep.subr.bf16.mxu0 0
    %5948 = vmatpush2.bf16.msra.mxu0 0
    %5949 = vmatprep.mubr.bf16.mxu0 0
    %5950 = vmatmul.mubr.bf16.gmra.mxu0 %v5371
    %v5951 = vpop.f32.mrf.mxu0
    %v5952 = vadd.f32 %v5615, %v5951
    %v5953 = vpop.f32.mrf.mxu0
    %v5954 = vpop.f32.mrf.mxu0
    %v5955 = vadd.f32 %v5618, %v5954
    %v5956 = vpop.f32.mrf.mxu0
    %5957 = vmatprep.mubr.bf16.mxu0 0
    %5958 = vmatmul.mubr.bf16.gmra.mxu0 %v5372
    %v5959 = vpop.f32.mrf.mxu0
    %v5960 = vadd.f32 %v5623, %v5959
    %v5961 = vpop.f32.mrf.mxu0
    %v5962 = vpop.f32.mrf.mxu0
    %v5963 = vadd.f32 %v5626, %v5962
    %v5964 = vpop.f32.mrf.mxu0
    %5965 = vmatprep.mubr.bf16.mxu0 0
    %5966 = vmatmul.mubr.bf16.gmra.mxu0 %v5373
    %v5967 = vpop.f32.mrf.mxu0
    %v5968 = vadd.f32 %v5631, %v5967
    %v5969 = vpop.f32.mrf.mxu0
    %v5970 = vpop.f32.mrf.mxu0
    %v5971 = vadd.f32 %v5634, %v5970
    %v5972 = vpop.f32.mrf.mxu0
    %5973 = vmatprep.mubr.bf16.mxu0 0
    %5974 = vmatmul.mubr.bf16.gmra.mxu0 %v5374
    %v5975 = vpop.f32.mrf.mxu0
    %v5976 = vadd.f32 %v5639, %v5975
    %v5977 = vpop.f32.mrf.mxu0
    %v5978 = vpop.f32.mrf.mxu0
    %v5979 = vadd.f32 %v5642, %v5978
    %v5980 = vpop.f32.mrf.mxu0
    %5981 = vmatprep.mubr.bf16.mxu0 0
    %5982 = vmatmul.mubr.bf16.gmra.mxu0 %v5375
    %v5983 = vpop.f32.mrf.mxu0
    %v5984 = vadd.f32 %v5647, %v5983
    %v5985 = vpop.f32.mrf.mxu0
    %v5986 = vpop.f32.mrf.mxu0
    %v5987 = vadd.f32 %v5650, %v5986
    %v5988 = vpop.f32.mrf.mxu0
    %5989 = vmatprep.mubr.bf16.mxu0 0
    %5990 = vmatmul.mubr.bf16.gmra.mxu0 %v5376
    %v5991 = vpop.f32.mrf.mxu0
    %v5992 = vadd.f32 %v5655, %v5991
    %v5993 = vpop.f32.mrf.mxu0
    %v5994 = vpop.f32.mrf.mxu0
    %v5995 = vadd.f32 %v5658, %v5994
    %v5996 = vpop.f32.mrf.mxu0
    %5997 = vmatprep.mubr.bf16.mxu0 0
    %5998 = vmatmul.mubr.bf16.gmra.mxu0 %v5377
    %v5999 = vpop.f32.mrf.mxu0
    %v6000 = vadd.f32 %v5663, %v5999
    %v6001 = vpop.f32.mrf.mxu0
    %v6002 = vpop.f32.mrf.mxu0
    %v6003 = vadd.f32 %v5666, %v6002
    %v6004 = vpop.f32.mrf.mxu0
    %6005 = vmatprep.mubr.bf16.mxu0 0
    %6006 = vmatmul.mubr.bf16.gmra.mxu0 %v5378
    %v6007 = vpop.f32.mrf.mxu0
    %v6008 = vadd.f32 %v5671, %v6007
    %v6009 = vpop.f32.mrf.mxu0
    %v6010 = vpop.f32.mrf.mxu0
    %v6011 = vadd.f32 %v5674, %v6010
    %v6012 = vpop.f32.mrf.mxu0
    %6013 = vmatprep.mubr.bf16.mxu0 0
    %6014 = vmatmul.mubr.bf16.gmra.mxu0 %v5379
    %v6015 = vpop.f32.mrf.mxu0
    %v6016 = vadd.f32 %v5679, %v6015
    %v6017 = vpop.f32.mrf.mxu0
    %v6018 = vpop.f32.mrf.mxu0
    %v6019 = vadd.f32 %v5682, %v6018
    %v6020 = vpop.f32.mrf.mxu0
    %6021 = vmatprep.mubr.bf16.mxu0 0
    %6022 = vmatmul.mubr.bf16.gmra.mxu0 %v5380
    %v6023 = vpop.f32.mrf.mxu0
    %v6024 = vadd.f32 %v5687, %v6023
    %v6025 = vpop.f32.mrf.mxu0
    %v6026 = vpop.f32.mrf.mxu0
    %v6027 = vadd.f32 %v5690, %v6026
    %v6028 = vpop.f32.mrf.mxu0
    %6029 = vmatprep.mubr.bf16.mxu0 0
    %6030 = vmatmul.mubr.bf16.gmra.mxu0 %v5381
    %v6031 = vpop.f32.mrf.mxu0
    %v6032 = vadd.f32 %v5695, %v6031
    %v6033 = vpop.f32.mrf.mxu0
    %v6034 = vpop.f32.mrf.mxu0
    %v6035 = vadd.f32 %v5698, %v6034
    %v6036 = vpop.f32.mrf.mxu0
    %6037 = vmatprep.mubr.bf16.mxu0 0
    %6038 = vmatmul.mubr.bf16.gmra.mxu0 %v5382
    %v6039 = vpop.f32.mrf.mxu0
    %v6040 = vadd.f32 %v5703, %v6039
    %v6041 = vpop.f32.mrf.mxu0
    %v6042 = vpop.f32.mrf.mxu0
    %v6043 = vadd.f32 %v5706, %v6042
    %v6044 = vpop.f32.mrf.mxu0
    %6045 = vmatprep.mubr.bf16.mxu0 0
    %6046 = vmatmul.mubr.bf16.gmra.mxu0 %v5383
    %v6047 = vpop.f32.mrf.mxu0
    %v6048 = vadd.f32 %v5711, %v6047
    %v6049 = vpop.f32.mrf.mxu0
    %v6050 = vpop.f32.mrf.mxu0
    %v6051 = vadd.f32 %v5714, %v6050
    %v6052 = vpop.f32.mrf.mxu0
    %6053 = vmatprep.mubr.bf16.mxu0 0
    %6054 = vmatmul.mubr.bf16.gmra.mxu0 %v5384
    %v6055 = vpop.f32.mrf.mxu0
    %v6056 = vadd.f32 %v5719, %v6055
    %v6057 = vpop.f32.mrf.mxu0
    %v6058 = vpop.f32.mrf.mxu0
    %v6059 = vadd.f32 %v5722, %v6058
    %v6060 = vpop.f32.mrf.mxu0
    %6061 = vmatprep.mubr.bf16.mxu0 0
    %6062 = vmatmul.mubr.bf16.gmra.mxu0 %v5385
    %v6063 = vpop.f32.mrf.mxu0
    %v6064 = vadd.f32 %v5727, %v6063
    %v6065 = vpop.f32.mrf.mxu0
    %v6066 = vpop.f32.mrf.mxu0
    %v6067 = vadd.f32 %v5730, %v6066
    %v6068 = vpop.f32.mrf.mxu0
    %6069 = vmatprep.mubr.bf16.mxu0 0
    %6070 = vmatmul.mubr.bf16.gmra.mxu0 %v5386
    %v6071 = vpop.f32.mrf.mxu0
    %v6072 = vadd.f32 %v5735, %v6071
    %v6073 = vpop.f32.mrf.mxu0
    %v6074 = vpop.f32.mrf.mxu0
    %v6075 = vadd.f32 %v5738, %v6074
    %v6076 = vpop.f32.mrf.mxu0
    %6077 = vmatprep.mubr.bf16.mxu0 0
    %6078 = vmatmul.mubr.bf16.gmra.mxu0 %v5387
    %v6079 = vpop.f32.mrf.mxu0
    %v6080 = vadd.f32 %v5743, %v6079
    %v6081 = vpop.f32.mrf.mxu0
    %v6082 = vpop.f32.mrf.mxu0
    %v6083 = vadd.f32 %v5746, %v6082
    %v6084 = vpop.f32.mrf.mxu0
    %6085 = vmatprep.mubr.bf16.mxu0 0
    %6086 = vmatmul.mubr.bf16.gmra.mxu0 %v5388
    %v6087 = vpop.f32.mrf.mxu0
    %v6088 = vadd.f32 %v5751, %v6087
    %v6089 = vpop.f32.mrf.mxu0
    %v6090 = vpop.f32.mrf.mxu0
    %v6091 = vadd.f32 %v5754, %v6090
    %v6092 = vpop.f32.mrf.mxu0
    %6093 = vmatprep.mubr.bf16.mxu0 0
    %6094 = vmatmul.mubr.bf16.gmra.mxu0 %v5389
    %v6095 = vpop.f32.mrf.mxu0
    %v6096 = vadd.f32 %v5759, %v6095
    %v6097 = vpop.f32.mrf.mxu0
    %v6098 = vpop.f32.mrf.mxu0
    %v6099 = vadd.f32 %v5762, %v6098
    %v6100 = vpop.f32.mrf.mxu0
    %6101 = vmatprep.mubr.bf16.mxu0 0
    %6102 = vmatmul.mubr.bf16.gmra.mxu0 %v5390
    %v6103 = vpop.f32.mrf.mxu0
    %v6104 = vadd.f32 %v5767, %v6103
    %v6105 = vpop.f32.mrf.mxu0
    %v6106 = vpop.f32.mrf.mxu0
    %v6107 = vadd.f32 %v5770, %v6106
    %v6108 = vpop.f32.mrf.mxu0
    %6109 = vmatprep.mubr.bf16.mxu0 0
    %6110 = vmatmul.mubr.bf16.gmra.mxu0 %v5391
    %v6111 = vpop.f32.mrf.mxu0
    %v6112 = vadd.f32 %v5775, %v6111
    %v6113 = vpop.f32.mrf.mxu0
    %v6114 = vpop.f32.mrf.mxu0
    %v6115 = vadd.f32 %v5778, %v6114
    %v6116 = vpop.f32.mrf.mxu0
    %6117 = vmatprep.mubr.bf16.mxu0 0
    %6118 = vmatmul.mubr.bf16.gmra.mxu0 %v5392
    %v6119 = vpop.f32.mrf.mxu0
    %v6120 = vadd.f32 %v5783, %v6119
    %v6121 = vpop.f32.mrf.mxu0
    %v6122 = vpop.f32.mrf.mxu0
    %v6123 = vadd.f32 %v5786, %v6122
    %v6124 = vpop.f32.mrf.mxu0
    %6125 = vmatprep.mubr.bf16.mxu0 0
    %6126 = vmatmul.mubr.bf16.gmra.mxu0 %v5393
    %v6127 = vpop.f32.mrf.mxu0
    %v6128 = vadd.f32 %v5791, %v6127
    %v6129 = vpop.f32.mrf.mxu0
    %v6130 = vpop.f32.mrf.mxu0
    %v6131 = vadd.f32 %v5794, %v6130
    %v6132 = vpop.f32.mrf.mxu0
    %6133 = vmatprep.mubr.bf16.mxu0 0
    %6134 = vmatmul.mubr.bf16.gmra.mxu0 %v5394
    %v6135 = vpop.f32.mrf.mxu0
    %v6136 = vadd.f32 %v5799, %v6135
    %v6137 = vpop.f32.mrf.mxu0
    %v6138 = vpop.f32.mrf.mxu0
    %v6139 = vadd.f32 %v5802, %v6138
    %v6140 = vpop.f32.mrf.mxu0
    %6141 = vmatprep.mubr.bf16.mxu0 0
    %6142 = vmatmul.mubr.bf16.gmra.mxu0 %v5395
    %v6143 = vpop.f32.mrf.mxu0
    %v6144 = vadd.f32 %v5807, %v6143
    %v6145 = vpop.f32.mrf.mxu0
    %v6146 = vpop.f32.mrf.mxu0
    %v6147 = vadd.f32 %v5810, %v6146
    %v6148 = vpop.f32.mrf.mxu0
    %6149 = vmatprep.mubr.bf16.mxu0 0
    %6150 = vmatmul.mubr.bf16.gmra.mxu0 %v5396
    %v6151 = vpop.f32.mrf.mxu0
    %v6152 = vadd.f32 %v5815, %v6151
    %v6153 = vpop.f32.mrf.mxu0
    %v6154 = vpop.f32.mrf.mxu0
    %v6155 = vadd.f32 %v5818, %v6154
    %v6156 = vpop.f32.mrf.mxu0
    %6157 = vmatprep.mubr.bf16.mxu0 0
    %6158 = vmatmul.mubr.bf16.gmra.mxu0 %v5397
    %v6159 = vpop.f32.mrf.mxu0
    %v6160 = vadd.f32 %v5823, %v6159
    %v6161 = vpop.f32.mrf.mxu0
    %v6162 = vpop.f32.mrf.mxu0
    %v6163 = vadd.f32 %v5826, %v6162
    %v6164 = vpop.f32.mrf.mxu0
    %6165 = vmatprep.mubr.bf16.mxu0 0
    %6166 = vmatmul.mubr.bf16.gmra.mxu0 %v5398
    %v6167 = vpop.f32.mrf.mxu0
    %v6168 = vadd.f32 %v5831, %v6167
    %v6169 = vpop.f32.mrf.mxu0
    %v6170 = vpop.f32.mrf.mxu0
    %v6171 = vadd.f32 %v5834, %v6170
    %v6172 = vpop.f32.mrf.mxu0
    %6173 = vmatprep.mubr.bf16.mxu0 0
    %6174 = vmatmul.mubr.bf16.gmra.mxu0 %v5399
    %v6175 = vpop.f32.mrf.mxu0
    %v6176 = vadd.f32 %v5839, %v6175
    %v6177 = vpop.f32.mrf.mxu0
    %v6178 = vpop.f32.mrf.mxu0
    %v6179 = vadd.f32 %v5842, %v6178
    %v6180 = vpop.f32.mrf.mxu0
    %6181 = vmatprep.mubr.bf16.mxu0 0
    %6182 = vmatmul.mubr.bf16.gmra.mxu0 %v5400
    %v6183 = vpop.f32.mrf.mxu0
    %v6184 = vadd.f32 %v5847, %v6183
    %v6185 = vpop.f32.mrf.mxu0
    %v6186 = vpop.f32.mrf.mxu0
    %v6187 = vadd.f32 %v5850, %v6186
    %v6188 = vpop.f32.mrf.mxu0
    %6189 = vmatprep.mubr.bf16.mxu0 0
    %6190 = vmatmul.mubr.bf16.gmra.mxu0 %v5401
    %v6191 = vpop.f32.mrf.mxu0
    %v6192 = vadd.f32 %v5855, %v6191
    %v6193 = vpop.f32.mrf.mxu0
    %v6194 = vpop.f32.mrf.mxu0
    %v6195 = vadd.f32 %v5858, %v6194
    %v6196 = vpop.f32.mrf.mxu0
    %6197 = vmatprep.mubr.bf16.mxu0 0
    %6198 = vmatmul.mubr.bf16.gmra.mxu0 %v5402
    %v6199 = vpop.f32.mrf.mxu0
    %v6200 = vadd.f32 %v5863, %v6199
    %v6201 = vpop.f32.mrf.mxu0
    %v6202 = vpop.f32.mrf.mxu0
    %v6203 = vadd.f32 %v5866, %v6202
    %v6204 = vpop.f32.mrf.mxu0
    %6205 = vdwg.mxu0
    %v6206 = vld [vmem:[#allocation3 + $0x2] sm:$0xff]
    %v6207 = vld [vmem:[#allocation3 + $0xa] sm:$0xff]
    %v6208 = vld [vmem:[#allocation3 + $0x1a] sm:$0xff]
    %v6209 = vld [vmem:[#allocation3 + $0x22] sm:$0xff]
    %v6210 = vld [vmem:[#allocation3 + $0x32] sm:$0xff]
    %v6211 = vld [vmem:[#allocation3 + $0x3a] sm:$0xff]
    %v6212 = vld [vmem:[#allocation3 + $0x4a] sm:$0xff]
    %v6213 = vld [vmem:[#allocation3 + $0x52] sm:$0xff]
    %v6214 = vld [vmem:[#allocation3 + $0x62] sm:$0xff]
    %v6215 = vld [vmem:[#allocation3 + $0x6a] sm:$0xff]
    %v6216 = vld [vmem:[#allocation3 + $0x7a] sm:$0xff]
    %v6217 = vld [vmem:[#allocation3 + $0x82] sm:$0xff]
    %v6218 = vld [vmem:[#allocation3 + $0x92] sm:$0xff]
    %v6219 = vld [vmem:[#allocation3 + $0x9a] sm:$0xff]
    %v6220 = vld [vmem:[#allocation3 + $0xaa] sm:$0xff]
    %v6221 = vld [vmem:[#allocation3 + $0xb2] sm:$0xff]
    %v6222 = vld [vmem:[#allocation3 + $0xc2] sm:$0xff]
    %v6223 = vld [vmem:[#allocation3 + $0xca] sm:$0xff]
    %v6224 = vld [vmem:[#allocation3 + $0xda] sm:$0xff]
    %v6225 = vld [vmem:[#allocation3 + $0xe2] sm:$0xff]
    %v6226 = vld [vmem:[#allocation3 + $0xf2] sm:$0xff]
    %v6227 = vld [vmem:[#allocation3 + $0xfa] sm:$0xff]
    %v6228 = vld [vmem:[#allocation3 + $0x10a] sm:$0xff]
    %v6229 = vld [vmem:[#allocation3 + $0x112] sm:$0xff]
    %v6230 = vld [vmem:[#allocation3 + $0x122] sm:$0xff]
    %v6231 = vld [vmem:[#allocation3 + $0x12a] sm:$0xff]
    %v6232 = vld [vmem:[#allocation3 + $0x13a] sm:$0xff]
    %v6233 = vld [vmem:[#allocation3 + $0x142] sm:$0xff]
    %v6234 = vld [vmem:[#allocation3 + $0x152] sm:$0xff]
    %v6235 = vld [vmem:[#allocation3 + $0x15a] sm:$0xff]
    %v6236 = vld [vmem:[#allocation3 + $0x16a] sm:$0xff]
    %v6237 = vld [vmem:[#allocation3 + $0x172] sm:$0xff]
    %v6238 = vld [vmem:[#allocation3 + $0x1b2] sm:$0xff]
    %v6239 = vld [vmem:[#allocation3 + $0x1ba] sm:$0xff]
    %v6240 = vld [vmem:[#allocation3 + $0x1ca] sm:$0xff]
    %v6241 = vld [vmem:[#allocation3 + $0x1d2] sm:$0xff]
    %v6242 = vld [vmem:[#allocation3 + $0x1e2] sm:$0xff]
    %v6243 = vld [vmem:[#allocation3 + $0x1ea] sm:$0xff]
    %v6244 = vld [vmem:[#allocation3 + $0x1fa] sm:$0xff]
    %v6245 = vld [vmem:[#allocation3 + $0x202] sm:$0xff]
    %v6246 = vld [vmem:[#allocation3 + $0x212] sm:$0xff]
    %v6247 = vld [vmem:[#allocation3 + $0x21a] sm:$0xff]
    %v6248 = vld [vmem:[#allocation3 + $0x22a] sm:$0xff]
    %v6249 = vld [vmem:[#allocation3 + $0x232] sm:$0xff]
    %v6250 = vld [vmem:[#allocation3 + $0x242] sm:$0xff]
    %v6251 = vld [vmem:[#allocation3 + $0x24a] sm:$0xff]
    %v6252 = vld [vmem:[#allocation3 + $0x25a] sm:$0xff]
    %v6253 = vld [vmem:[#allocation3 + $0x262] sm:$0xff]
    %v6254 = vld [vmem:[#allocation3 + $0x272] sm:$0xff]
    %v6255 = vld [vmem:[#allocation3 + $0x27a] sm:$0xff]
    %v6256 = vld [vmem:[#allocation3 + $0x28a] sm:$0xff]
    %v6257 = vld [vmem:[#allocation3 + $0x292] sm:$0xff]
    %v6258 = vld [vmem:[#allocation3 + $0x2a2] sm:$0xff]
    %v6259 = vld [vmem:[#allocation3 + $0x2aa] sm:$0xff]
    %v6260 = vld [vmem:[#allocation3 + $0x2ba] sm:$0xff]
    %v6261 = vld [vmem:[#allocation3 + $0x2c2] sm:$0xff]
    %v6262 = vld [vmem:[#allocation3 + $0x2d2] sm:$0xff]
    %v6263 = vld [vmem:[#allocation3 + $0x2da] sm:$0xff]
    %v6264 = vld [vmem:[#allocation3 + $0x2ea] sm:$0xff]
    %v6265 = vld [vmem:[#allocation3 + $0x2f2] sm:$0xff]
    %v6266 = vld [vmem:[#allocation3 + $0x302] sm:$0xff]
    %v6267 = vld [vmem:[#allocation3 + $0x30a] sm:$0xff]
    %v6268 = vld [vmem:[#allocation3 + $0x31a] sm:$0xff]
    %v6269 = vld [vmem:[#allocation3 + $0x322] sm:$0xff]
    %v6270 = vpack.c.bf16 %v6207, %v6206
    %v6271 = vpack.c.bf16 %v6209, %v6208
    %v6272 = vpack.c.bf16 %v6211, %v6210
    %v6273 = vpack.c.bf16 %v6213, %v6212
    %v6274 = vpack.c.bf16 %v6215, %v6214
    %v6275 = vpack.c.bf16 %v6217, %v6216
    %v6276 = vpack.c.bf16 %v6219, %v6218
    %v6277 = vpack.c.bf16 %v6221, %v6220
    %v6278 = vpack.c.bf16 %v6223, %v6222
    %v6279 = vpack.c.bf16 %v6225, %v6224
    %v6280 = vpack.c.bf16 %v6227, %v6226
    %v6281 = vpack.c.bf16 %v6229, %v6228
    %v6282 = vpack.c.bf16 %v6231, %v6230
    %v6283 = vpack.c.bf16 %v6233, %v6232
    %v6284 = vpack.c.bf16 %v6235, %v6234
    %v6285 = vpack.c.bf16 %v6237, %v6236
    %v6286 = vpack.c.bf16 %v6239, %v6238
    %v6287 = vpack.c.bf16 %v6241, %v6240
    %v6288 = vpack.c.bf16 %v6243, %v6242
    %v6289 = vpack.c.bf16 %v6245, %v6244
    %v6290 = vpack.c.bf16 %v6247, %v6246
    %v6291 = vpack.c.bf16 %v6249, %v6248
    %v6292 = vpack.c.bf16 %v6251, %v6250
    %v6293 = vpack.c.bf16 %v6253, %v6252
    %v6294 = vpack.c.bf16 %v6255, %v6254
    %v6295 = vpack.c.bf16 %v6257, %v6256
    %v6296 = vpack.c.bf16 %v6259, %v6258
    %v6297 = vpack.c.bf16 %v6261, %v6260
    %v6298 = vpack.c.bf16 %v6263, %v6262
    %v6299 = vpack.c.bf16 %v6265, %v6264
    %v6300 = vpack.c.bf16 %v6267, %v6266
    %v6301 = vpack.c.bf16 %v6269, %v6268
    %s6302 = scalar_lea.vmem %s4, 128
    %v6303 = vld [vmem:[%s6302] sm:$0xf]
    %v6304 = vld [vmem:[%s6302 + $0x4] sm:$0xf]
    %v6305 = vld [vmem:[%s6302 + $0x8] sm:$0xf]
    %v6306 = vld [vmem:[%s6302 + $0xc] sm:$0xf]
    %v6307 = vld [vmem:[%s6302 + $0x10] sm:$0xf]
    %v6308 = vld [vmem:[%s6302 + $0x14] sm:$0xf]
    %v6309 = vld [vmem:[%s6302 + $0x18] sm:$0xf]
    %v6310 = vld [vmem:[%s6302 + $0x1c] sm:$0xf]
    %v6311 = vld [vmem:[%s6302 + $0x20] sm:$0xf]
    %v6312 = vld [vmem:[%s6302 + $0x24] sm:$0xf]
    %v6313 = vld [vmem:[%s6302 + $0x28] sm:$0xf]
    %v6314 = vld [vmem:[%s6302 + $0x2c] sm:$0xf]
    %v6315 = vld [vmem:[%s6302 + $0x30] sm:$0xf]
    %v6316 = vld [vmem:[%s6302 + $0x34] sm:$0xf]
    %v6317 = vld [vmem:[%s6302 + $0x38] sm:$0xf]
    %v6318 = vld [vmem:[%s6302 + $0x3c] sm:$0xf]
    %v6335 = vunpack.c.l.b16 %v6303
    %v6336 = vunpack.c.l.b16 %v6304
    %v6337 = vunpack.c.l.b16 %v6305
    %v6338 = vunpack.c.l.b16 %v6306
    %v6339 = vunpack.c.l.b16 %v6307
    %v6340 = vunpack.c.l.b16 %v6308
    %v6341 = vunpack.c.l.b16 %v6309
    %v6342 = vunpack.c.l.b16 %v6310
    %v6343 = vunpack.c.l.b16 %v6311
    %v6344 = vunpack.c.l.b16 %v6312
    %v6345 = vunpack.c.l.b16 %v6313
    %v6346 = vunpack.c.l.b16 %v6314
    %v6347 = vunpack.c.l.b16 %v6315
    %v6348 = vunpack.c.l.b16 %v6316
    %v6349 = vunpack.c.l.b16 %v6317
    %v6350 = vunpack.c.l.b16 %v6318
    %v6351 = vpack.c.b16 %v6336, %v6335
    %v6352 = vpack.c.b16 %v6338, %v6337
    %v6353 = vpack.c.b16 %v6340, %v6339
    %v6354 = vpack.c.b16 %v6342, %v6341
    %v6355 = vpack.c.b16 %v6344, %v6343
    %v6356 = vpack.c.b16 %v6346, %v6345
    %v6357 = vpack.c.b16 %v6348, %v6347
    %v6358 = vpack.c.b16 %v6350, %v6349
    %6367 = vmatprep.subr.bf16.mxu0 0
    %6368 = vmatpush1.bf16.msra.mxu0 %v6358
    %6369 = vmatprep.subr.bf16.mxu0 0
    %6370 = vmatpush1.bf16.msra.mxu0 %v6357
    %6371 = vmatprep.subr.bf16.mxu0 0
    %6372 = vmatpush1.bf16.msra.mxu0 %v6356
    %6373 = vmatprep.subr.bf16.mxu0 0
    %6374 = vmatpush1.bf16.msra.mxu0 %v6355
    %6375 = vmatprep.subr.bf16.mxu0 0
    %6376 = vmatpush1.bf16.msra.mxu0 %v6354
    %6377 = vmatprep.subr.bf16.mxu0 0
    %6378 = vmatpush1.bf16.msra.mxu0 %v6353
    %6379 = vmatprep.subr.bf16.mxu0 0
    %6380 = vmatpush1.bf16.msra.mxu0 %v6352
    %6381 = vmatprep.subr.bf16.mxu0 0
    %6382 = vmatpush1.bf16.msra.mxu0 %v6351
    %6383 = vmatprep.subr.bf16.mxu0 0
    %6384 = vmatpush2.bf16.msra.mxu0 0
    %6385 = vmatprep.subr.bf16.mxu0 0
    %6386 = vmatpush2.bf16.msra.mxu0 0
    %6387 = vmatprep.subr.bf16.mxu0 0
    %6388 = vmatpush2.bf16.msra.mxu0 0
    %6389 = vmatprep.subr.bf16.mxu0 0
    %6390 = vmatpush2.bf16.msra.mxu0 0
    %6391 = vmatprep.subr.bf16.mxu0 0
    %6392 = vmatpush2.bf16.msra.mxu0 0
    %6393 = vmatprep.subr.bf16.mxu0 0
    %6394 = vmatpush2.bf16.msra.mxu0 0
    %6395 = vmatprep.subr.bf16.mxu0 0
    %6396 = vmatpush2.bf16.msra.mxu0 0
    %6397 = vmatprep.subr.bf16.mxu0 0
    %6398 = vmatpush2.bf16.msra.mxu0 0
    %6399 = vmatprep.mubr.bf16.mxu0 0
    %6400 = vmatmul.mubr.bf16.gmra.mxu0 %v6270
    %v6401 = vpop.f32.mrf.mxu0
    %v6402 = vadd.f32 0.0, %v6401
    %v6403 = vpop.f32.mrf.mxu0
    %v6404 = vpop.f32.mrf.mxu0
    %v6405 = vadd.f32 0.0, %v6404
    %v6406 = vpop.f32.mrf.mxu0
    %6407 = vmatprep.mubr.bf16.mxu0 0
    %6408 = vmatmul.mubr.bf16.gmra.mxu0 %v6271
    %v6409 = vpop.f32.mrf.mxu0
    %v6410 = vadd.f32 0.0, %v6409
    %v6411 = vpop.f32.mrf.mxu0
    %v6412 = vpop.f32.mrf.mxu0
    %v6413 = vadd.f32 0.0, %v6412
    %v6414 = vpop.f32.mrf.mxu0
    %6415 = vmatprep.mubr.bf16.mxu0 0
    %6416 = vmatmul.mubr.bf16.gmra.mxu0 %v6272
    %v6417 = vpop.f32.mrf.mxu0
    %v6418 = vadd.f32 0.0, %v6417
    %v6419 = vpop.f32.mrf.mxu0
    %v6420 = vpop.f32.mrf.mxu0
    %v6421 = vadd.f32 0.0, %v6420
    %v6422 = vpop.f32.mrf.mxu0
    %6423 = vmatprep.mubr.bf16.mxu0 0
    %6424 = vmatmul.mubr.bf16.gmra.mxu0 %v6273
    %v6425 = vpop.f32.mrf.mxu0
    %v6426 = vadd.f32 0.0, %v6425
    %v6427 = vpop.f32.mrf.mxu0
    %v6428 = vpop.f32.mrf.mxu0
    %v6429 = vadd.f32 0.0, %v6428
    %v6430 = vpop.f32.mrf.mxu0
    %6431 = vmatprep.mubr.bf16.mxu0 0
    %6432 = vmatmul.mubr.bf16.gmra.mxu0 %v6274
    %v6433 = vpop.f32.mrf.mxu0
    %v6434 = vadd.f32 0.0, %v6433
    %v6435 = vpop.f32.mrf.mxu0
    %v6436 = vpop.f32.mrf.mxu0
    %v6437 = vadd.f32 0.0, %v6436
    %v6438 = vpop.f32.mrf.mxu0
    %6439 = vmatprep.mubr.bf16.mxu0 0
    %6440 = vmatmul.mubr.bf16.gmra.mxu0 %v6275
    %v6441 = vpop.f32.mrf.mxu0
    %v6442 = vadd.f32 0.0, %v6441
    %v6443 = vpop.f32.mrf.mxu0
    %v6444 = vpop.f32.mrf.mxu0
    %v6445 = vadd.f32 0.0, %v6444
    %v6446 = vpop.f32.mrf.mxu0
    %6447 = vmatprep.mubr.bf16.mxu0 0
    %6448 = vmatmul.mubr.bf16.gmra.mxu0 %v6276
    %v6449 = vpop.f32.mrf.mxu0
    %v6450 = vadd.f32 0.0, %v6449
    %v6451 = vpop.f32.mrf.mxu0
    %v6452 = vpop.f32.mrf.mxu0
    %v6453 = vadd.f32 0.0, %v6452
    %v6454 = vpop.f32.mrf.mxu0
    %6455 = vmatprep.mubr.bf16.mxu0 0
    %6456 = vmatmul.mubr.bf16.gmra.mxu0 %v6277
    %v6457 = vpop.f32.mrf.mxu0
    %v6458 = vadd.f32 0.0, %v6457
    %v6459 = vpop.f32.mrf.mxu0
    %v6460 = vpop.f32.mrf.mxu0
    %v6461 = vadd.f32 0.0, %v6460
    %v6462 = vpop.f32.mrf.mxu0
    %6463 = vmatprep.mubr.bf16.mxu0 0
    %6464 = vmatmul.mubr.bf16.gmra.mxu0 %v6278
    %v6465 = vpop.f32.mrf.mxu0
    %v6466 = vadd.f32 0.0, %v6465
    %v6467 = vpop.f32.mrf.mxu0
    %v6468 = vpop.f32.mrf.mxu0
    %v6469 = vadd.f32 0.0, %v6468
    %v6470 = vpop.f32.mrf.mxu0
    %6471 = vmatprep.mubr.bf16.mxu0 0
    %6472 = vmatmul.mubr.bf16.gmra.mxu0 %v6279
    %v6473 = vpop.f32.mrf.mxu0
    %v6474 = vadd.f32 0.0, %v6473
    %v6475 = vpop.f32.mrf.mxu0
    %v6476 = vpop.f32.mrf.mxu0
    %v6477 = vadd.f32 0.0, %v6476
    %v6478 = vpop.f32.mrf.mxu0
    %6479 = vmatprep.mubr.bf16.mxu0 0
    %6480 = vmatmul.mubr.bf16.gmra.mxu0 %v6280
    %v6481 = vpop.f32.mrf.mxu0
    %v6482 = vadd.f32 0.0, %v6481
    %v6483 = vpop.f32.mrf.mxu0
    %v6484 = vpop.f32.mrf.mxu0
    %v6485 = vadd.f32 0.0, %v6484
    %v6486 = vpop.f32.mrf.mxu0
    %6487 = vmatprep.mubr.bf16.mxu0 0
    %6488 = vmatmul.mubr.bf16.gmra.mxu0 %v6281
    %v6489 = vpop.f32.mrf.mxu0
    %v6490 = vadd.f32 0.0, %v6489
    %v6491 = vpop.f32.mrf.mxu0
    %v6492 = vpop.f32.mrf.mxu0
    %v6493 = vadd.f32 0.0, %v6492
    %v6494 = vpop.f32.mrf.mxu0
    %6495 = vmatprep.mubr.bf16.mxu0 0
    %6496 = vmatmul.mubr.bf16.gmra.mxu0 %v6282
    %v6497 = vpop.f32.mrf.mxu0
    %v6498 = vadd.f32 0.0, %v6497
    %v6499 = vpop.f32.mrf.mxu0
    %v6500 = vpop.f32.mrf.mxu0
    %v6501 = vadd.f32 0.0, %v6500
    %v6502 = vpop.f32.mrf.mxu0
    %6503 = vmatprep.mubr.bf16.mxu0 0
    %6504 = vmatmul.mubr.bf16.gmra.mxu0 %v6283
    %v6505 = vpop.f32.mrf.mxu0
    %v6506 = vadd.f32 0.0, %v6505
    %v6507 = vpop.f32.mrf.mxu0
    %v6508 = vpop.f32.mrf.mxu0
    %v6509 = vadd.f32 0.0, %v6508
    %v6510 = vpop.f32.mrf.mxu0
    %6511 = vmatprep.mubr.bf16.mxu0 0
    %6512 = vmatmul.mubr.bf16.gmra.mxu0 %v6284
    %v6513 = vpop.f32.mrf.mxu0
    %v6514 = vadd.f32 0.0, %v6513
    %v6515 = vpop.f32.mrf.mxu0
    %v6516 = vpop.f32.mrf.mxu0
    %v6517 = vadd.f32 0.0, %v6516
    %v6518 = vpop.f32.mrf.mxu0
    %6519 = vmatprep.mubr.bf16.mxu0 0
    %6520 = vmatmul.mubr.bf16.gmra.mxu0 %v6285
    %v6521 = vpop.f32.mrf.mxu0
    %v6522 = vadd.f32 0.0, %v6521
    %v6523 = vpop.f32.mrf.mxu0
    %v6524 = vpop.f32.mrf.mxu0
    %v6525 = vadd.f32 0.0, %v6524
    %v6526 = vpop.f32.mrf.mxu0
    %6527 = vmatprep.mubr.bf16.mxu0 0
    %6528 = vmatmul.mubr.bf16.gmra.mxu0 %v6286
    %v6529 = vpop.f32.mrf.mxu0
    %v6530 = vadd.f32 0.0, %v6529
    %v6531 = vpop.f32.mrf.mxu0
    %v6532 = vpop.f32.mrf.mxu0
    %v6533 = vadd.f32 0.0, %v6532
    %v6534 = vpop.f32.mrf.mxu0
    %6535 = vmatprep.mubr.bf16.mxu0 0
    %6536 = vmatmul.mubr.bf16.gmra.mxu0 %v6287
    %v6537 = vpop.f32.mrf.mxu0
    %v6538 = vadd.f32 0.0, %v6537
    %v6539 = vpop.f32.mrf.mxu0
    %v6540 = vpop.f32.mrf.mxu0
    %v6541 = vadd.f32 0.0, %v6540
    %v6542 = vpop.f32.mrf.mxu0
    %6543 = vmatprep.mubr.bf16.mxu0 0
    %6544 = vmatmul.mubr.bf16.gmra.mxu0 %v6288
    %v6545 = vpop.f32.mrf.mxu0
    %v6546 = vadd.f32 0.0, %v6545
    %v6547 = vpop.f32.mrf.mxu0
    %v6548 = vpop.f32.mrf.mxu0
    %v6549 = vadd.f32 0.0, %v6548
    %v6550 = vpop.f32.mrf.mxu0
    %6551 = vmatprep.mubr.bf16.mxu0 0
    %6552 = vmatmul.mubr.bf16.gmra.mxu0 %v6289
    %v6553 = vpop.f32.mrf.mxu0
    %v6554 = vadd.f32 0.0, %v6553
    %v6555 = vpop.f32.mrf.mxu0
    %v6556 = vpop.f32.mrf.mxu0
    %v6557 = vadd.f32 0.0, %v6556
    %v6558 = vpop.f32.mrf.mxu0
    %6559 = vmatprep.mubr.bf16.mxu0 0
    %6560 = vmatmul.mubr.bf16.gmra.mxu0 %v6290
    %v6561 = vpop.f32.mrf.mxu0
    %v6562 = vadd.f32 0.0, %v6561
    %v6563 = vpop.f32.mrf.mxu0
    %v6564 = vpop.f32.mrf.mxu0
    %v6565 = vadd.f32 0.0, %v6564
    %v6566 = vpop.f32.mrf.mxu0
    %6567 = vmatprep.mubr.bf16.mxu0 0
    %6568 = vmatmul.mubr.bf16.gmra.mxu0 %v6291
    %v6569 = vpop.f32.mrf.mxu0
    %v6570 = vadd.f32 0.0, %v6569
    %v6571 = vpop.f32.mrf.mxu0
    %v6572 = vpop.f32.mrf.mxu0
    %v6573 = vadd.f32 0.0, %v6572
    %v6574 = vpop.f32.mrf.mxu0
    %6575 = vmatprep.mubr.bf16.mxu0 0
    %6576 = vmatmul.mubr.bf16.gmra.mxu0 %v6292
    %v6577 = vpop.f32.mrf.mxu0
    %v6578 = vadd.f32 0.0, %v6577
    %v6579 = vpop.f32.mrf.mxu0
    %v6580 = vpop.f32.mrf.mxu0
    %v6581 = vadd.f32 0.0, %v6580
    %v6582 = vpop.f32.mrf.mxu0
    %6583 = vmatprep.mubr.bf16.mxu0 0
    %6584 = vmatmul.mubr.bf16.gmra.mxu0 %v6293
    %v6585 = vpop.f32.mrf.mxu0
    %v6586 = vadd.f32 0.0, %v6585
    %v6587 = vpop.f32.mrf.mxu0
    %v6588 = vpop.f32.mrf.mxu0
    %v6589 = vadd.f32 0.0, %v6588
    %v6590 = vpop.f32.mrf.mxu0
    %6591 = vmatprep.mubr.bf16.mxu0 0
    %6592 = vmatmul.mubr.bf16.gmra.mxu0 %v6294
    %v6593 = vpop.f32.mrf.mxu0
    %v6594 = vadd.f32 0.0, %v6593
    %v6595 = vpop.f32.mrf.mxu0
    %v6596 = vpop.f32.mrf.mxu0
    %v6597 = vadd.f32 0.0, %v6596
    %v6598 = vpop.f32.mrf.mxu0
    %6599 = vmatprep.mubr.bf16.mxu0 0
    %6600 = vmatmul.mubr.bf16.gmra.mxu0 %v6295
    %v6601 = vpop.f32.mrf.mxu0
    %v6602 = vadd.f32 0.0, %v6601
    %v6603 = vpop.f32.mrf.mxu0
    %v6604 = vpop.f32.mrf.mxu0
    %v6605 = vadd.f32 0.0, %v6604
    %v6606 = vpop.f32.mrf.mxu0
    %6607 = vmatprep.mubr.bf16.mxu0 0
    %6608 = vmatmul.mubr.bf16.gmra.mxu0 %v6296
    %v6609 = vpop.f32.mrf.mxu0
    %v6610 = vadd.f32 0.0, %v6609
    %v6611 = vpop.f32.mrf.mxu0
    %v6612 = vpop.f32.mrf.mxu0
    %v6613 = vadd.f32 0.0, %v6612
    %v6614 = vpop.f32.mrf.mxu0
    %6615 = vmatprep.mubr.bf16.mxu0 0
    %6616 = vmatmul.mubr.bf16.gmra.mxu0 %v6297
    %v6617 = vpop.f32.mrf.mxu0
    %v6618 = vadd.f32 0.0, %v6617
    %v6619 = vpop.f32.mrf.mxu0
    %v6620 = vpop.f32.mrf.mxu0
    %v6621 = vadd.f32 0.0, %v6620
    %v6622 = vpop.f32.mrf.mxu0
    %6623 = vmatprep.mubr.bf16.mxu0 0
    %6624 = vmatmul.mubr.bf16.gmra.mxu0 %v6298
    %v6625 = vpop.f32.mrf.mxu0
    %v6626 = vadd.f32 0.0, %v6625
    %v6627 = vpop.f32.mrf.mxu0
    %v6628 = vpop.f32.mrf.mxu0
    %v6629 = vadd.f32 0.0, %v6628
    %v6630 = vpop.f32.mrf.mxu0
    %6631 = vmatprep.mubr.bf16.mxu0 0
    %6632 = vmatmul.mubr.bf16.gmra.mxu0 %v6299
    %v6633 = vpop.f32.mrf.mxu0
    %v6634 = vadd.f32 0.0, %v6633
    %v6635 = vpop.f32.mrf.mxu0
    %v6636 = vpop.f32.mrf.mxu0
    %v6637 = vadd.f32 0.0, %v6636
    %v6638 = vpop.f32.mrf.mxu0
    %6639 = vmatprep.mubr.bf16.mxu0 0
    %6640 = vmatmul.mubr.bf16.gmra.mxu0 %v6300
    %v6641 = vpop.f32.mrf.mxu0
    %v6642 = vadd.f32 0.0, %v6641
    %v6643 = vpop.f32.mrf.mxu0
    %v6644 = vpop.f32.mrf.mxu0
    %v6645 = vadd.f32 0.0, %v6644
    %v6646 = vpop.f32.mrf.mxu0
    %6647 = vmatprep.mubr.bf16.mxu0 0
    %6648 = vmatmul.mubr.bf16.gmra.mxu0 %v6301
    %v6649 = vpop.f32.mrf.mxu0
    %v6650 = vadd.f32 0.0, %v6649
    %v6651 = vpop.f32.mrf.mxu0
    %v6652 = vpop.f32.mrf.mxu0
    %v6653 = vadd.f32 0.0, %v6652
    %v6654 = vpop.f32.mrf.mxu0
    %6655 = vdwg.mxu0
    %v6656 = vadd.f32 %v5952, %v6402
    %v6657 = vadd.f32 %v5955, %v6405
    %v6658 = vadd.f32 %v5960, %v6410
    %v6659 = vadd.f32 %v5963, %v6413
    %v6660 = vadd.f32 %v5968, %v6418
    %v6661 = vadd.f32 %v5971, %v6421
    %v6662 = vadd.f32 %v5976, %v6426
    %v6663 = vadd.f32 %v5979, %v6429
    %v6664 = vadd.f32 %v5984, %v6434
    %v6665 = vadd.f32 %v5987, %v6437
    %v6666 = vadd.f32 %v5992, %v6442
    %v6667 = vadd.f32 %v5995, %v6445
    %v6668 = vadd.f32 %v6000, %v6450
    %v6669 = vadd.f32 %v6003, %v6453
    %v6670 = vadd.f32 %v6008, %v6458
    %v6671 = vadd.f32 %v6011, %v6461
    %v6672 = vadd.f32 %v6016, %v6466
    %v6673 = vadd.f32 %v6019, %v6469
    %v6674 = vadd.f32 %v6024, %v6474
    %v6675 = vadd.f32 %v6027, %v6477
    %v6676 = vadd.f32 %v6032, %v6482
    %v6677 = vadd.f32 %v6035, %v6485
    %v6678 = vadd.f32 %v6040, %v6490
    %v6679 = vadd.f32 %v6043, %v6493
    %v6680 = vadd.f32 %v6048, %v6498
    %v6681 = vadd.f32 %v6051, %v6501
    %v6682 = vadd.f32 %v6056, %v6506
    %v6683 = vadd.f32 %v6059, %v6509
    %v6684 = vadd.f32 %v6064, %v6514
    %v6685 = vadd.f32 %v6067, %v6517
    %v6686 = vadd.f32 %v6072, %v6522
    %v6687 = vadd.f32 %v6075, %v6525
    %v6688 = vadd.f32 %v6080, %v6530
    %v6689 = vadd.f32 %v6083, %v6533
    %v6690 = vadd.f32 %v6088, %v6538
    %v6691 = vadd.f32 %v6091, %v6541
    %v6692 = vadd.f32 %v6096, %v6546
    %v6693 = vadd.f32 %v6099, %v6549
    %v6694 = vadd.f32 %v6104, %v6554
    %v6695 = vadd.f32 %v6107, %v6557
    %v6696 = vadd.f32 %v6112, %v6562
    %v6697 = vadd.f32 %v6115, %v6565
    %v6698 = vadd.f32 %v6120, %v6570
    %v6699 = vadd.f32 %v6123, %v6573
    %v6700 = vadd.f32 %v6128, %v6578
    %v6701 = vadd.f32 %v6131, %v6581
    %v6702 = vadd.f32 %v6136, %v6586
    %v6703 = vadd.f32 %v6139, %v6589
    %v6704 = vadd.f32 %v6144, %v6594
    %v6705 = vadd.f32 %v6147, %v6597
    %v6706 = vadd.f32 %v6152, %v6602
    %v6707 = vadd.f32 %v6155, %v6605
    %v6708 = vadd.f32 %v6160, %v6610
    %v6709 = vadd.f32 %v6163, %v6613
    %v6710 = vadd.f32 %v6168, %v6618
    %v6711 = vadd.f32 %v6171, %v6621
    %v6712 = vadd.f32 %v6176, %v6626
    %v6713 = vadd.f32 %v6179, %v6629
    %v6714 = vadd.f32 %v6184, %v6634
    %v6715 = vadd.f32 %v6187, %v6637
    %v6716 = vadd.f32 %v6192, %v6642
    %v6717 = vadd.f32 %v6195, %v6645
    %v6718 = vadd.f32 %v6200, %v6650
    %v6719 = vadd.f32 %v6203, %v6653
    %v6720 = vld [vmem:[%s5242] sm:$0xff]
    %v6721 = vld [vmem:[%s5242 + $0x8] sm:$0xff]
    %v6722 = vld [vmem:[%s5242 + $0x18] sm:$0xff]
    %v6723 = vld [vmem:[%s5242 + $0x20] sm:$0xff]
    %v6724 = vld [vmem:[%s5242 + $0x30] sm:$0xff]
    %v6725 = vld [vmem:[%s5242 + $0x38] sm:$0xff]
    %v6726 = vld [vmem:[%s5242 + $0x48] sm:$0xff]
    %v6727 = vld [vmem:[%s5242 + $0x50] sm:$0xff]
    %v6728 = vld [vmem:[%s5242 + $0x60] sm:$0xff]
    %v6729 = vld [vmem:[%s5242 + $0x68] sm:$0xff]
    %v6730 = vld [vmem:[%s5242 + $0x78] sm:$0xff]
    %v6731 = vld [vmem:[%s5242 + $0x80] sm:$0xff]
    %v6732 = vld [vmem:[%s5242 + $0x90] sm:$0xff]
    %v6733 = vld [vmem:[%s5242 + $0x98] sm:$0xff]
    %v6734 = vld [vmem:[%s5242 + $0xa8] sm:$0xff]
    %v6735 = vld [vmem:[%s5242 + $0xb0] sm:$0xff]
    %v6736 = vld [vmem:[%s5242 + $0xc0] sm:$0xff]
    %v6737 = vld [vmem:[%s5242 + $0xc8] sm:$0xff]
    %v6738 = vld [vmem:[%s5242 + $0xd8] sm:$0xff]
    %v6739 = vld [vmem:[%s5242 + $0xe0] sm:$0xff]
    %v6740 = vld [vmem:[%s5242 + $0xf0] sm:$0xff]
    %v6741 = vld [vmem:[%s5242 + $0xf8] sm:$0xff]
    %v6742 = vld [vmem:[%s5242 + $0x108] sm:$0xff]
    %v6743 = vld [vmem:[%s5242 + $0x110] sm:$0xff]
    %v6744 = vld [vmem:[%s5242 + $0x120] sm:$0xff]
    %v6745 = vld [vmem:[%s5242 + $0x128] sm:$0xff]
    %v6746 = vld [vmem:[%s5242 + $0x138] sm:$0xff]
    %v6747 = vld [vmem:[%s5242 + $0x140] sm:$0xff]
    %v6748 = vld [vmem:[%s5242 + $0x150] sm:$0xff]
    %v6749 = vld [vmem:[%s5242 + $0x158] sm:$0xff]
    %v6750 = vld [vmem:[%s5242 + $0x168] sm:$0xff]
    %v6751 = vld [vmem:[%s5242 + $0x170] sm:$0xff]
    %v6752 = vld [vmem:[%s5242 + $0x1b0] sm:$0xff]
    %v6753 = vld [vmem:[%s5242 + $0x1b8] sm:$0xff]
    %v6754 = vld [vmem:[%s5242 + $0x1c8] sm:$0xff]
    %v6755 = vld [vmem:[%s5242 + $0x1d0] sm:$0xff]
    %v6756 = vld [vmem:[%s5242 + $0x1e0] sm:$0xff]
    %v6757 = vld [vmem:[%s5242 + $0x1e8] sm:$0xff]
    %v6758 = vld [vmem:[%s5242 + $0x1f8] sm:$0xff]
    %v6759 = vld [vmem:[%s5242 + $0x200] sm:$0xff]
    %v6760 = vld [vmem:[%s5242 + $0x210] sm:$0xff]
    %v6761 = vld [vmem:[%s5242 + $0x218] sm:$0xff]
    %v6762 = vld [vmem:[%s5242 + $0x228] sm:$0xff]
    %v6763 = vld [vmem:[%s5242 + $0x230] sm:$0xff]
    %v6764 = vld [vmem:[%s5242 + $0x240] sm:$0xff]
    %v6765 = vld [vmem:[%s5242 + $0x248] sm:$0xff]
    %v6766 = vld [vmem:[%s5242 + $0x258] sm:$0xff]
    %v6767 = vld [vmem:[%s5242 + $0x260] sm:$0xff]
    %v6768 = vld [vmem:[%s5242 + $0x270] sm:$0xff]
    %v6769 = vld [vmem:[%s5242 + $0x278] sm:$0xff]
    %v6770 = vld [vmem:[%s5242 + $0x288] sm:$0xff]
    %v6771 = vld [vmem:[%s5242 + $0x290] sm:$0xff]
    %v6772 = vld [vmem:[%s5242 + $0x2a0] sm:$0xff]
    %v6773 = vld [vmem:[%s5242 + $0x2a8] sm:$0xff]
    %v6774 = vld [vmem:[%s5242 + $0x2b8] sm:$0xff]
    %v6775 = vld [vmem:[%s5242 + $0x2c0] sm:$0xff]
    %v6776 = vld [vmem:[%s5242 + $0x2d0] sm:$0xff]
    %v6777 = vld [vmem:[%s5242 + $0x2d8] sm:$0xff]
    %v6778 = vld [vmem:[%s5242 + $0x2e8] sm:$0xff]
    %v6779 = vld [vmem:[%s5242 + $0x2f0] sm:$0xff]
    %v6780 = vld [vmem:[%s5242 + $0x300] sm:$0xff]
    %v6781 = vld [vmem:[%s5242 + $0x308] sm:$0xff]
    %v6782 = vld [vmem:[%s5242 + $0x318] sm:$0xff]
    %v6783 = vld [vmem:[%s5242 + $0x320] sm:$0xff]
    %v6784 = vpack.c.bf16 %v6721, %v6720
    %v6785 = vpack.c.bf16 %v6723, %v6722
    %v6786 = vpack.c.bf16 %v6725, %v6724
    %v6787 = vpack.c.bf16 %v6727, %v6726
    %v6788 = vpack.c.bf16 %v6729, %v6728
    %v6789 = vpack.c.bf16 %v6731, %v6730
    %v6790 = vpack.c.bf16 %v6733, %v6732
    %v6791 = vpack.c.bf16 %v6735, %v6734
    %v6792 = vpack.c.bf16 %v6737, %v6736
    %v6793 = vpack.c.bf16 %v6739, %v6738
    %v6794 = vpack.c.bf16 %v6741, %v6740
    %v6795 = vpack.c.bf16 %v6743, %v6742
    %v6796 = vpack.c.bf16 %v6745, %v6744
    %v6797 = vpack.c.bf16 %v6747, %v6746
    %v6798 = vpack.c.bf16 %v6749, %v6748
    %v6799 = vpack.c.bf16 %v6751, %v6750
    %v6800 = vpack.c.bf16 %v6753, %v6752
    %v6801 = vpack.c.bf16 %v6755, %v6754
    %v6802 = vpack.c.bf16 %v6757, %v6756
    %v6803 = vpack.c.bf16 %v6759, %v6758
    %v6804 = vpack.c.bf16 %v6761, %v6760
    %v6805 = vpack.c.bf16 %v6763, %v6762
    %v6806 = vpack.c.bf16 %v6765, %v6764
    %v6807 = vpack.c.bf16 %v6767, %v6766
    %v6808 = vpack.c.bf16 %v6769, %v6768
    %v6809 = vpack.c.bf16 %v6771, %v6770
    %v6810 = vpack.c.bf16 %v6773, %v6772
    %v6811 = vpack.c.bf16 %v6775, %v6774
    %v6812 = vpack.c.bf16 %v6777, %v6776
    %v6813 = vpack.c.bf16 %v6779, %v6778
    %v6814 = vpack.c.bf16 %v6781, %v6780
    %v6815 = vpack.c.bf16 %v6783, %v6782
    %s6816 = scalar_lea.vmem %s4, 192
    %v6817 = vld [vmem:[%s6816] sm:$0xf]
    %v6818 = vld [vmem:[%s6816 + $0x4] sm:$0xf]
    %v6819 = vld [vmem:[%s6816 + $0x8] sm:$0xf]
    %v6820 = vld [vmem:[%s6816 + $0xc] sm:$0xf]
    %v6821 = vld [vmem:[%s6816 + $0x10] sm:$0xf]
    %v6822 = vld [vmem:[%s6816 + $0x14] sm:$0xf]
    %v6823 = vld [vmem:[%s6816 + $0x18] sm:$0xf]
    %v6824 = vld [vmem:[%s6816 + $0x1c] sm:$0xf]
    %v6825 = vld [vmem:[%s6816 + $0x20] sm:$0xf]
    %v6826 = vld [vmem:[%s6816 + $0x24] sm:$0xf]
    %v6827 = vld [vmem:[%s6816 + $0x28] sm:$0xf]
    %v6828 = vld [vmem:[%s6816 + $0x2c] sm:$0xf]
    %v6829 = vld [vmem:[%s6816 + $0x30] sm:$0xf]
    %v6830 = vld [vmem:[%s6816 + $0x34] sm:$0xf]
    %v6831 = vld [vmem:[%s6816 + $0x38] sm:$0xf]
    %v6832 = vld [vmem:[%s6816 + $0x3c] sm:$0xf]
    %v6849 = vunpack.c.l.b16 %v6817
    %v6850 = vunpack.c.l.b16 %v6818
    %v6851 = vunpack.c.l.b16 %v6819
    %v6852 = vunpack.c.l.b16 %v6820
    %v6853 = vunpack.c.l.b16 %v6821
    %v6854 = vunpack.c.l.b16 %v6822
    %v6855 = vunpack.c.l.b16 %v6823
    %v6856 = vunpack.c.l.b16 %v6824
    %v6857 = vunpack.c.l.b16 %v6825
    %v6858 = vunpack.c.l.b16 %v6826
    %v6859 = vunpack.c.l.b16 %v6827
    %v6860 = vunpack.c.l.b16 %v6828
    %v6861 = vunpack.c.l.b16 %v6829
    %v6862 = vunpack.c.l.b16 %v6830
    %v6863 = vunpack.c.l.b16 %v6831
    %v6864 = vunpack.c.l.b16 %v6832
    %v6865 = vpack.c.b16 %v6850, %v6849
    %v6866 = vpack.c.b16 %v6852, %v6851
    %v6867 = vpack.c.b16 %v6854, %v6853
    %v6868 = vpack.c.b16 %v6856, %v6855
    %v6869 = vpack.c.b16 %v6858, %v6857
    %v6870 = vpack.c.b16 %v6860, %v6859
    %v6871 = vpack.c.b16 %v6862, %v6861
    %v6872 = vpack.c.b16 %v6864, %v6863
    %6881 = vmatprep.subr.bf16.mxu0 0
    %6882 = vmatpush1.bf16.msra.mxu0 %v6872
    %6883 = vmatprep.subr.bf16.mxu0 0
    %6884 = vmatpush1.bf16.msra.mxu0 %v6871
    %6885 = vmatprep.subr.bf16.mxu0 0
    %6886 = vmatpush1.bf16.msra.mxu0 %v6870
    %6887 = vmatprep.subr.bf16.mxu0 0
    %6888 = vmatpush1.bf16.msra.mxu0 %v6869
    %6889 = vmatprep.subr.bf16.mxu0 0
    %6890 = vmatpush1.bf16.msra.mxu0 %v6868
    %6891 = vmatprep.subr.bf16.mxu0 0
    %6892 = vmatpush1.bf16.msra.mxu0 %v6867
    %6893 = vmatprep.subr.bf16.mxu0 0
    %6894 = vmatpush1.bf16.msra.mxu0 %v6866
    %6895 = vmatprep.subr.bf16.mxu0 0
    %6896 = vmatpush1.bf16.msra.mxu0 %v6865
    %6897 = vmatprep.subr.bf16.mxu0 0
    %6898 = vmatpush2.bf16.msra.mxu0 0
    %6899 = vmatprep.subr.bf16.mxu0 0
    %6900 = vmatpush2.bf16.msra.mxu0 0
    %6901 = vmatprep.subr.bf16.mxu0 0
    %6902 = vmatpush2.bf16.msra.mxu0 0
    %6903 = vmatprep.subr.bf16.mxu0 0
    %6904 = vmatpush2.bf16.msra.mxu0 0
    %6905 = vmatprep.subr.bf16.mxu0 0
    %6906 = vmatpush2.bf16.msra.mxu0 0
    %6907 = vmatprep.subr.bf16.mxu0 0
    %6908 = vmatpush2.bf16.msra.mxu0 0
    %6909 = vmatprep.subr.bf16.mxu0 0
    %6910 = vmatpush2.bf16.msra.mxu0 0
    %6911 = vmatprep.subr.bf16.mxu0 0
    %6912 = vmatpush2.bf16.msra.mxu0 0
    %6913 = vmatprep.mubr.bf16.mxu0 0
    %6914 = vmatmul.mubr.bf16.gmra.mxu0 %v6784
    %v6915 = vpop.f32.mrf.mxu0
    %v6916 = vadd.f32 0.0, %v6915
    %v6917 = vpop.f32.mrf.mxu0
    %v6918 = vpop.f32.mrf.mxu0
    %v6919 = vadd.f32 0.0, %v6918
    %v6920 = vpop.f32.mrf.mxu0
    %6921 = vmatprep.mubr.bf16.mxu0 0
    %6922 = vmatmul.mubr.bf16.gmra.mxu0 %v6785
    %v6923 = vpop.f32.mrf.mxu0
    %v6924 = vadd.f32 0.0, %v6923
    %v6925 = vpop.f32.mrf.mxu0
    %v6926 = vpop.f32.mrf.mxu0
    %v6927 = vadd.f32 0.0, %v6926
    %v6928 = vpop.f32.mrf.mxu0
    %6929 = vmatprep.mubr.bf16.mxu0 0
    %6930 = vmatmul.mubr.bf16.gmra.mxu0 %v6786
    %v6931 = vpop.f32.mrf.mxu0
    %v6932 = vadd.f32 0.0, %v6931
    %v6933 = vpop.f32.mrf.mxu0
    %v6934 = vpop.f32.mrf.mxu0
    %v6935 = vadd.f32 0.0, %v6934
    %v6936 = vpop.f32.mrf.mxu0
    %6937 = vmatprep.mubr.bf16.mxu0 0
    %6938 = vmatmul.mubr.bf16.gmra.mxu0 %v6787
    %v6939 = vpop.f32.mrf.mxu0
    %v6940 = vadd.f32 0.0, %v6939
    %v6941 = vpop.f32.mrf.mxu0
    %v6942 = vpop.f32.mrf.mxu0
    %v6943 = vadd.f32 0.0, %v6942
    %v6944 = vpop.f32.mrf.mxu0
    %6945 = vmatprep.mubr.bf16.mxu0 0
    %6946 = vmatmul.mubr.bf16.gmra.mxu0 %v6788
    %v6947 = vpop.f32.mrf.mxu0
    %v6948 = vadd.f32 0.0, %v6947
    %v6949 = vpop.f32.mrf.mxu0
    %v6950 = vpop.f32.mrf.mxu0
    %v6951 = vadd.f32 0.0, %v6950
    %v6952 = vpop.f32.mrf.mxu0
    %6953 = vmatprep.mubr.bf16.mxu0 0
    %6954 = vmatmul.mubr.bf16.gmra.mxu0 %v6789
    %v6955 = vpop.f32.mrf.mxu0
    %v6956 = vadd.f32 0.0, %v6955
    %v6957 = vpop.f32.mrf.mxu0
    %v6958 = vpop.f32.mrf.mxu0
    %v6959 = vadd.f32 0.0, %v6958
    %v6960 = vpop.f32.mrf.mxu0
    %6961 = vmatprep.mubr.bf16.mxu0 0
    %6962 = vmatmul.mubr.bf16.gmra.mxu0 %v6790
    %v6963 = vpop.f32.mrf.mxu0
    %v6964 = vadd.f32 0.0, %v6963
    %v6965 = vpop.f32.mrf.mxu0
    %v6966 = vpop.f32.mrf.mxu0
    %v6967 = vadd.f32 0.0, %v6966
    %v6968 = vpop.f32.mrf.mxu0
    %6969 = vmatprep.mubr.bf16.mxu0 0
    %6970 = vmatmul.mubr.bf16.gmra.mxu0 %v6791
    %v6971 = vpop.f32.mrf.mxu0
    %v6972 = vadd.f32 0.0, %v6971
    %v6973 = vpop.f32.mrf.mxu0
    %v6974 = vpop.f32.mrf.mxu0
    %v6975 = vadd.f32 0.0, %v6974
    %v6976 = vpop.f32.mrf.mxu0
    %6977 = vmatprep.mubr.bf16.mxu0 0
    %6978 = vmatmul.mubr.bf16.gmra.mxu0 %v6792
    %v6979 = vpop.f32.mrf.mxu0
    %v6980 = vadd.f32 0.0, %v6979
    %v6981 = vpop.f32.mrf.mxu0
    %v6982 = vpop.f32.mrf.mxu0
    %v6983 = vadd.f32 0.0, %v6982
    %v6984 = vpop.f32.mrf.mxu0
    %6985 = vmatprep.mubr.bf16.mxu0 0
    %6986 = vmatmul.mubr.bf16.gmra.mxu0 %v6793
    %v6987 = vpop.f32.mrf.mxu0
    %v6988 = vadd.f32 0.0, %v6987
    %v6989 = vpop.f32.mrf.mxu0
    %v6990 = vpop.f32.mrf.mxu0
    %v6991 = vadd.f32 0.0, %v6990
    %v6992 = vpop.f32.mrf.mxu0
    %6993 = vmatprep.mubr.bf16.mxu0 0
    %6994 = vmatmul.mubr.bf16.gmra.mxu0 %v6794
    %v6995 = vpop.f32.mrf.mxu0
    %v6996 = vadd.f32 0.0, %v6995
    %v6997 = vpop.f32.mrf.mxu0
    %v6998 = vpop.f32.mrf.mxu0
    %v6999 = vadd.f32 0.0, %v6998
    %v7000 = vpop.f32.mrf.mxu0
    %7001 = vmatprep.mubr.bf16.mxu0 0
    %7002 = vmatmul.mubr.bf16.gmra.mxu0 %v6795
    %v7003 = vpop.f32.mrf.mxu0
    %v7004 = vadd.f32 0.0, %v7003
    %v7005 = vpop.f32.mrf.mxu0
    %v7006 = vpop.f32.mrf.mxu0
    %v7007 = vadd.f32 0.0, %v7006
    %v7008 = vpop.f32.mrf.mxu0
    %7009 = vmatprep.mubr.bf16.mxu0 0
    %7010 = vmatmul.mubr.bf16.gmra.mxu0 %v6796
    %v7011 = vpop.f32.mrf.mxu0
    %v7012 = vadd.f32 0.0, %v7011
    %v7013 = vpop.f32.mrf.mxu0
    %v7014 = vpop.f32.mrf.mxu0
    %v7015 = vadd.f32 0.0, %v7014
    %v7016 = vpop.f32.mrf.mxu0
    %7017 = vmatprep.mubr.bf16.mxu0 0
    %7018 = vmatmul.mubr.bf16.gmra.mxu0 %v6797
    %v7019 = vpop.f32.mrf.mxu0
    %v7020 = vadd.f32 0.0, %v7019
    %v7021 = vpop.f32.mrf.mxu0
    %v7022 = vpop.f32.mrf.mxu0
    %v7023 = vadd.f32 0.0, %v7022
    %v7024 = vpop.f32.mrf.mxu0
    %7025 = vmatprep.mubr.bf16.mxu0 0
    %7026 = vmatmul.mubr.bf16.gmra.mxu0 %v6798
    %v7027 = vpop.f32.mrf.mxu0
    %v7028 = vadd.f32 0.0, %v7027
    %v7029 = vpop.f32.mrf.mxu0
    %v7030 = vpop.f32.mrf.mxu0
    %v7031 = vadd.f32 0.0, %v7030
    %v7032 = vpop.f32.mrf.mxu0
    %7033 = vmatprep.mubr.bf16.mxu0 0
    %7034 = vmatmul.mubr.bf16.gmra.mxu0 %v6799
    %v7035 = vpop.f32.mrf.mxu0
    %v7036 = vadd.f32 0.0, %v7035
    %v7037 = vpop.f32.mrf.mxu0
    %v7038 = vpop.f32.mrf.mxu0
    %v7039 = vadd.f32 0.0, %v7038
    %v7040 = vpop.f32.mrf.mxu0
    %7041 = vmatprep.mubr.bf16.mxu0 0
    %7042 = vmatmul.mubr.bf16.gmra.mxu0 %v6800
    %v7043 = vpop.f32.mrf.mxu0
    %v7044 = vadd.f32 0.0, %v7043
    %v7045 = vpop.f32.mrf.mxu0
    %v7046 = vpop.f32.mrf.mxu0
    %v7047 = vadd.f32 0.0, %v7046
    %v7048 = vpop.f32.mrf.mxu0
    %7049 = vmatprep.mubr.bf16.mxu0 0
    %7050 = vmatmul.mubr.bf16.gmra.mxu0 %v6801
    %v7051 = vpop.f32.mrf.mxu0
    %v7052 = vadd.f32 0.0, %v7051
    %v7053 = vpop.f32.mrf.mxu0
    %v7054 = vpop.f32.mrf.mxu0
    %v7055 = vadd.f32 0.0, %v7054
    %v7056 = vpop.f32.mrf.mxu0
    %7057 = vmatprep.mubr.bf16.mxu0 0
    %7058 = vmatmul.mubr.bf16.gmra.mxu0 %v6802
    %v7059 = vpop.f32.mrf.mxu0
    %v7060 = vadd.f32 0.0, %v7059
    %v7061 = vpop.f32.mrf.mxu0
    %v7062 = vpop.f32.mrf.mxu0
    %v7063 = vadd.f32 0.0, %v7062
    %v7064 = vpop.f32.mrf.mxu0
    %7065 = vmatprep.mubr.bf16.mxu0 0
    %7066 = vmatmul.mubr.bf16.gmra.mxu0 %v6803
    %v7067 = vpop.f32.mrf.mxu0
    %v7068 = vadd.f32 0.0, %v7067
    %v7069 = vpop.f32.mrf.mxu0
    %v7070 = vpop.f32.mrf.mxu0
    %v7071 = vadd.f32 0.0, %v7070
    %v7072 = vpop.f32.mrf.mxu0
    %7073 = vmatprep.mubr.bf16.mxu0 0
    %7074 = vmatmul.mubr.bf16.gmra.mxu0 %v6804
    %v7075 = vpop.f32.mrf.mxu0
    %v7076 = vadd.f32 0.0, %v7075
    %v7077 = vpop.f32.mrf.mxu0
    %v7078 = vpop.f32.mrf.mxu0
    %v7079 = vadd.f32 0.0, %v7078
    %v7080 = vpop.f32.mrf.mxu0
    %7081 = vmatprep.mubr.bf16.mxu0 0
    %7082 = vmatmul.mubr.bf16.gmra.mxu0 %v6805
    %v7083 = vpop.f32.mrf.mxu0
    %v7084 = vadd.f32 0.0, %v7083
    %v7085 = vpop.f32.mrf.mxu0
    %v7086 = vpop.f32.mrf.mxu0
    %v7087 = vadd.f32 0.0, %v7086
    %v7088 = vpop.f32.mrf.mxu0
    %7089 = vmatprep.mubr.bf16.mxu0 0
    %7090 = vmatmul.mubr.bf16.gmra.mxu0 %v6806
    %v7091 = vpop.f32.mrf.mxu0
    %v7092 = vadd.f32 0.0, %v7091
    %v7093 = vpop.f32.mrf.mxu0
    %v7094 = vpop.f32.mrf.mxu0
    %v7095 = vadd.f32 0.0, %v7094
    %v7096 = vpop.f32.mrf.mxu0
    %7097 = vmatprep.mubr.bf16.mxu0 0
    %7098 = vmatmul.mubr.bf16.gmra.mxu0 %v6807
    %v7099 = vpop.f32.mrf.mxu0
    %v7100 = vadd.f32 0.0, %v7099
    %v7101 = vpop.f32.mrf.mxu0
    %v7102 = vpop.f32.mrf.mxu0
    %v7103 = vadd.f32 0.0, %v7102
    %v7104 = vpop.f32.mrf.mxu0
    %7105 = vmatprep.mubr.bf16.mxu0 0
    %7106 = vmatmul.mubr.bf16.gmra.mxu0 %v6808
    %v7107 = vpop.f32.mrf.mxu0
    %v7108 = vadd.f32 0.0, %v7107
    %v7109 = vpop.f32.mrf.mxu0
    %v7110 = vpop.f32.mrf.mxu0
    %v7111 = vadd.f32 0.0, %v7110
    %v7112 = vpop.f32.mrf.mxu0
    %7113 = vmatprep.mubr.bf16.mxu0 0
    %7114 = vmatmul.mubr.bf16.gmra.mxu0 %v6809
    %v7115 = vpop.f32.mrf.mxu0
    %v7116 = vadd.f32 0.0, %v7115
    %v7117 = vpop.f32.mrf.mxu0
    %v7118 = vpop.f32.mrf.mxu0
    %v7119 = vadd.f32 0.0, %v7118
    %v7120 = vpop.f32.mrf.mxu0
    %7121 = vmatprep.mubr.bf16.mxu0 0
    %7122 = vmatmul.mubr.bf16.gmra.mxu0 %v6810
    %v7123 = vpop.f32.mrf.mxu0
    %v7124 = vadd.f32 0.0, %v7123
    %v7125 = vpop.f32.mrf.mxu0
    %v7126 = vpop.f32.mrf.mxu0
    %v7127 = vadd.f32 0.0, %v7126
    %v7128 = vpop.f32.mrf.mxu0
    %7129 = vmatprep.mubr.bf16.mxu0 0
    %7130 = vmatmul.mubr.bf16.gmra.mxu0 %v6811
    %v7131 = vpop.f32.mrf.mxu0
    %v7132 = vadd.f32 0.0, %v7131
    %v7133 = vpop.f32.mrf.mxu0
    %v7134 = vpop.f32.mrf.mxu0
    %v7135 = vadd.f32 0.0, %v7134
    %v7136 = vpop.f32.mrf.mxu0
    %7137 = vmatprep.mubr.bf16.mxu0 0
    %7138 = vmatmul.mubr.bf16.gmra.mxu0 %v6812
    %v7139 = vpop.f32.mrf.mxu0
    %v7140 = vadd.f32 0.0, %v7139
    %v7141 = vpop.f32.mrf.mxu0
    %v7142 = vpop.f32.mrf.mxu0
    %v7143 = vadd.f32 0.0, %v7142
    %v7144 = vpop.f32.mrf.mxu0
    %7145 = vmatprep.mubr.bf16.mxu0 0
    %7146 = vmatmul.mubr.bf16.gmra.mxu0 %v6813
    %v7147 = vpop.f32.mrf.mxu0
    %v7148 = vadd.f32 0.0, %v7147
    %v7149 = vpop.f32.mrf.mxu0
    %v7150 = vpop.f32.mrf.mxu0
    %v7151 = vadd.f32 0.0, %v7150
    %v7152 = vpop.f32.mrf.mxu0
    %7153 = vmatprep.mubr.bf16.mxu0 0
    %7154 = vmatmul.mubr.bf16.gmra.mxu0 %v6814
    %v7155 = vpop.f32.mrf.mxu0
    %v7156 = vadd.f32 0.0, %v7155
    %v7157 = vpop.f32.mrf.mxu0
    %v7158 = vpop.f32.mrf.mxu0
    %v7159 = vadd.f32 0.0, %v7158
    %v7160 = vpop.f32.mrf.mxu0
    %7161 = vmatprep.mubr.bf16.mxu0 0
    %7162 = vmatmul.mubr.bf16.gmra.mxu0 %v6815
    %v7163 = vpop.f32.mrf.mxu0
    %v7164 = vadd.f32 0.0, %v7163
    %v7165 = vpop.f32.mrf.mxu0
    %v7166 = vpop.f32.mrf.mxu0
    %v7167 = vadd.f32 0.0, %v7166
    %v7168 = vpop.f32.mrf.mxu0
    %7169 = vdwg.mxu0
    %v7170 = vadd.f32 %v6656, %v6916
    %v7171 = vadd.f32 %v6657, %v6919
    %v7172 = vadd.f32 %v6658, %v6924
    %v7173 = vadd.f32 %v6659, %v6927
    %v7174 = vadd.f32 %v6660, %v6932
    %v7175 = vadd.f32 %v6661, %v6935
    %v7176 = vadd.f32 %v6662, %v6940
    %v7177 = vadd.f32 %v6663, %v6943
    %v7178 = vadd.f32 %v6664, %v6948
    %v7179 = vadd.f32 %v6665, %v6951
    %v7180 = vadd.f32 %v6666, %v6956
    %v7181 = vadd.f32 %v6667, %v6959
    %v7182 = vadd.f32 %v6668, %v6964
    %v7183 = vadd.f32 %v6669, %v6967
    %v7184 = vadd.f32 %v6670, %v6972
    %v7185 = vadd.f32 %v6671, %v6975
    %v7186 = vadd.f32 %v6672, %v6980
    %v7187 = vadd.f32 %v6673, %v6983
    %v7188 = vadd.f32 %v6674, %v6988
    %v7189 = vadd.f32 %v6675, %v6991
    %v7190 = vadd.f32 %v6676, %v6996
    %v7191 = vadd.f32 %v6677, %v6999
    %v7192 = vadd.f32 %v6678, %v7004
    %v7193 = vadd.f32 %v6679, %v7007
    %v7194 = vadd.f32 %v6680, %v7012
    %v7195 = vadd.f32 %v6681, %v7015
    %v7196 = vadd.f32 %v6682, %v7020
    %v7197 = vadd.f32 %v6683, %v7023
    %v7198 = vadd.f32 %v6684, %v7028
    %v7199 = vadd.f32 %v6685, %v7031
    %v7200 = vadd.f32 %v6686, %v7036
    %v7201 = vadd.f32 %v6687, %v7039
    %v7202 = vadd.f32 %v6688, %v7044
    %v7203 = vadd.f32 %v6689, %v7047
    %v7204 = vadd.f32 %v6690, %v7052
    %v7205 = vadd.f32 %v6691, %v7055
    %v7206 = vadd.f32 %v6692, %v7060
    %v7207 = vadd.f32 %v6693, %v7063
    %v7208 = vadd.f32 %v6694, %v7068
    %v7209 = vadd.f32 %v6695, %v7071
    %v7210 = vadd.f32 %v6696, %v7076
    %v7211 = vadd.f32 %v6697, %v7079
    %v7212 = vadd.f32 %v6698, %v7084
    %v7213 = vadd.f32 %v6699, %v7087
    %v7214 = vadd.f32 %v6700, %v7092
    %v7215 = vadd.f32 %v6701, %v7095
    %v7216 = vadd.f32 %v6702, %v7100
    %v7217 = vadd.f32 %v6703, %v7103
    %v7218 = vadd.f32 %v6704, %v7108
    %v7219 = vadd.f32 %v6705, %v7111
    %v7220 = vadd.f32 %v6706, %v7116
    %v7221 = vadd.f32 %v6707, %v7119
    %v7222 = vadd.f32 %v6708, %v7124
    %v7223 = vadd.f32 %v6709, %v7127
    %v7224 = vadd.f32 %v6710, %v7132
    %v7225 = vadd.f32 %v6711, %v7135
    %v7226 = vadd.f32 %v6712, %v7140
    %v7227 = vadd.f32 %v6713, %v7143
    %v7228 = vadd.f32 %v6714, %v7148
    %v7229 = vadd.f32 %v6715, %v7151
    %v7230 = vadd.f32 %v6716, %v7156
    %v7231 = vadd.f32 %v6717, %v7159
    %v7232 = vadd.f32 %v6718, %v7164
    %v7233 = vadd.f32 %v6719, %v7167
    %v7234 = vld [vmem:[%s5242 + $0x1] sm:$0xff]
    %v7235 = vld [vmem:[%s5242 + $0x9] sm:$0xff]
    %v7236 = vld [vmem:[%s5242 + $0x19] sm:$0xff]
    %v7237 = vld [vmem:[%s5242 + $0x21] sm:$0xff]
    %v7238 = vld [vmem:[%s5242 + $0x31] sm:$0xff]
    %v7239 = vld [vmem:[%s5242 + $0x39] sm:$0xff]
    %v7240 = vld [vmem:[%s5242 + $0x49] sm:$0xff]
    %v7241 = vld [vmem:[%s5242 + $0x51] sm:$0xff]
    %v7242 = vld [vmem:[%s5242 + $0x61] sm:$0xff]
    %v7243 = vld [vmem:[%s5242 + $0x69] sm:$0xff]
    %v7244 = vld [vmem:[%s5242 + $0x79] sm:$0xff]
    %v7245 = vld [vmem:[%s5242 + $0x81] sm:$0xff]
    %v7246 = vld [vmem:[%s5242 + $0x91] sm:$0xff]
    %v7247 = vld [vmem:[%s5242 + $0x99] sm:$0xff]
    %v7248 = vld [vmem:[%s5242 + $0xa9] sm:$0xff]
    %v7249 = vld [vmem:[%s5242 + $0xb1] sm:$0xff]
    %v7250 = vld [vmem:[%s5242 + $0xc1] sm:$0xff]
    %v7251 = vld [vmem:[%s5242 + $0xc9] sm:$0xff]
    %v7252 = vld [vmem:[%s5242 + $0xd9] sm:$0xff]
    %v7253 = vld [vmem:[%s5242 + $0xe1] sm:$0xff]
    %v7254 = vld [vmem:[%s5242 + $0xf1] sm:$0xff]
    %v7255 = vld [vmem:[%s5242 + $0xf9] sm:$0xff]
    %v7256 = vld [vmem:[%s5242 + $0x109] sm:$0xff]
    %v7257 = vld [vmem:[%s5242 + $0x111] sm:$0xff]
    %v7258 = vld [vmem:[%s5242 + $0x121] sm:$0xff]
    %v7259 = vld [vmem:[%s5242 + $0x129] sm:$0xff]
    %v7260 = vld [vmem:[%s5242 + $0x139] sm:$0xff]
    %v7261 = vld [vmem:[%s5242 + $0x141] sm:$0xff]
    %v7262 = vld [vmem:[%s5242 + $0x151] sm:$0xff]
    %v7263 = vld [vmem:[%s5242 + $0x159] sm:$0xff]
    %v7264 = vld [vmem:[%s5242 + $0x169] sm:$0xff]
    %v7265 = vld [vmem:[%s5242 + $0x171] sm:$0xff]
    %v7266 = vld [vmem:[%s5242 + $0x1b1] sm:$0xff]
    %v7267 = vld [vmem:[%s5242 + $0x1b9] sm:$0xff]
    %v7268 = vld [vmem:[%s5242 + $0x1c9] sm:$0xff]
    %v7269 = vld [vmem:[%s5242 + $0x1d1] sm:$0xff]
    %v7270 = vld [vmem:[%s5242 + $0x1e1] sm:$0xff]
    %v7271 = vld [vmem:[%s5242 + $0x1e9] sm:$0xff]
    %v7272 = vld [vmem:[%s5242 + $0x1f9] sm:$0xff]
    %v7273 = vld [vmem:[%s5242 + $0x201] sm:$0xff]
    %v7274 = vld [vmem:[%s5242 + $0x211] sm:$0xff]
    %v7275 = vld [vmem:[%s5242 + $0x219] sm:$0xff]
    %v7276 = vld [vmem:[%s5242 + $0x229] sm:$0xff]
    %v7277 = vld [vmem:[%s5242 + $0x231] sm:$0xff]
    %v7278 = vld [vmem:[%s5242 + $0x241] sm:$0xff]
    %v7279 = vld [vmem:[%s5242 + $0x249] sm:$0xff]
    %v7280 = vld [vmem:[%s5242 + $0x259] sm:$0xff]
    %v7281 = vld [vmem:[%s5242 + $0x261] sm:$0xff]
    %v7282 = vld [vmem:[%s5242 + $0x271] sm:$0xff]
    %v7283 = vld [vmem:[%s5242 + $0x279] sm:$0xff]
    %v7284 = vld [vmem:[%s5242 + $0x289] sm:$0xff]
    %v7285 = vld [vmem:[%s5242 + $0x291] sm:$0xff]
    %v7286 = vld [vmem:[%s5242 + $0x2a1] sm:$0xff]
    %v7287 = vld [vmem:[%s5242 + $0x2a9] sm:$0xff]
    %v7288 = vld [vmem:[%s5242 + $0x2b9] sm:$0xff]
    %v7289 = vld [vmem:[%s5242 + $0x2c1] sm:$0xff]
    %v7290 = vld [vmem:[%s5242 + $0x2d1] sm:$0xff]
    %v7291 = vld [vmem:[%s5242 + $0x2d9] sm:$0xff]
    %v7292 = vld [vmem:[%s5242 + $0x2e9] sm:$0xff]
    %v7293 = vld [vmem:[%s5242 + $0x2f1] sm:$0xff]
    %v7294 = vld [vmem:[%s5242 + $0x301] sm:$0xff]
    %v7295 = vld [vmem:[%s5242 + $0x309] sm:$0xff]
    %v7296 = vld [vmem:[%s5242 + $0x319] sm:$0xff]
    %v7297 = vld [vmem:[%s5242 + $0x321] sm:$0xff]
    %v7298 = vpack.c.bf16 %v7235, %v7234
    %v7299 = vpack.c.bf16 %v7237, %v7236
    %v7300 = vpack.c.bf16 %v7239, %v7238
    %v7301 = vpack.c.bf16 %v7241, %v7240
    %v7302 = vpack.c.bf16 %v7243, %v7242
    %v7303 = vpack.c.bf16 %v7245, %v7244
    %v7304 = vpack.c.bf16 %v7247, %v7246
    %v7305 = vpack.c.bf16 %v7249, %v7248
    %v7306 = vpack.c.bf16 %v7251, %v7250
    %v7307 = vpack.c.bf16 %v7253, %v7252
    %v7308 = vpack.c.bf16 %v7255, %v7254
    %v7309 = vpack.c.bf16 %v7257, %v7256
    %v7310 = vpack.c.bf16 %v7259, %v7258
    %v7311 = vpack.c.bf16 %v7261, %v7260
    %v7312 = vpack.c.bf16 %v7263, %v7262
    %v7313 = vpack.c.bf16 %v7265, %v7264
    %v7314 = vpack.c.bf16 %v7267, %v7266
    %v7315 = vpack.c.bf16 %v7269, %v7268
    %v7316 = vpack.c.bf16 %v7271, %v7270
    %v7317 = vpack.c.bf16 %v7273, %v7272
    %v7318 = vpack.c.bf16 %v7275, %v7274
    %v7319 = vpack.c.bf16 %v7277, %v7276
    %v7320 = vpack.c.bf16 %v7279, %v7278
    %v7321 = vpack.c.bf16 %v7281, %v7280
    %v7322 = vpack.c.bf16 %v7283, %v7282
    %v7323 = vpack.c.bf16 %v7285, %v7284
    %v7324 = vpack.c.bf16 %v7287, %v7286
    %v7325 = vpack.c.bf16 %v7289, %v7288
    %v7326 = vpack.c.bf16 %v7291, %v7290
    %v7327 = vpack.c.bf16 %v7293, %v7292
    %v7328 = vpack.c.bf16 %v7295, %v7294
    %v7329 = vpack.c.bf16 %v7297, %v7296
    %s7330 = scalar_lea.vmem %s4, 256
    %v7331 = vld [vmem:[%s7330] sm:$0xf]
    %v7332 = vld [vmem:[%s7330 + $0x4] sm:$0xf]
    %v7333 = vld [vmem:[%s7330 + $0x8] sm:$0xf]
    %v7334 = vld [vmem:[%s7330 + $0xc] sm:$0xf]
    %v7335 = vld [vmem:[%s7330 + $0x10] sm:$0xf]
    %v7336 = vld [vmem:[%s7330 + $0x14] sm:$0xf]
    %v7337 = vld [vmem:[%s7330 + $0x18] sm:$0xf]
    %v7338 = vld [vmem:[%s7330 + $0x1c] sm:$0xf]
    %v7339 = vld [vmem:[%s7330 + $0x20] sm:$0xf]
    %v7340 = vld [vmem:[%s7330 + $0x24] sm:$0xf]
    %v7341 = vld [vmem:[%s7330 + $0x28] sm:$0xf]
    %v7342 = vld [vmem:[%s7330 + $0x2c] sm:$0xf]
    %v7343 = vld [vmem:[%s7330 + $0x30] sm:$0xf]
    %v7344 = vld [vmem:[%s7330 + $0x34] sm:$0xf]
    %v7345 = vld [vmem:[%s7330 + $0x38] sm:$0xf]
    %v7346 = vld [vmem:[%s7330 + $0x3c] sm:$0xf]
    %v7363 = vunpack.c.l.b16 %v7331
    %v7364 = vunpack.c.l.b16 %v7332
    %v7365 = vunpack.c.l.b16 %v7333
    %v7366 = vunpack.c.l.b16 %v7334
    %v7367 = vunpack.c.l.b16 %v7335
    %v7368 = vunpack.c.l.b16 %v7336
    %v7369 = vunpack.c.l.b16 %v7337
    %v7370 = vunpack.c.l.b16 %v7338
    %v7371 = vunpack.c.l.b16 %v7339
    %v7372 = vunpack.c.l.b16 %v7340
    %v7373 = vunpack.c.l.b16 %v7341
    %v7374 = vunpack.c.l.b16 %v7342
    %v7375 = vunpack.c.l.b16 %v7343
    %v7376 = vunpack.c.l.b16 %v7344
    %v7377 = vunpack.c.l.b16 %v7345
    %v7378 = vunpack.c.l.b16 %v7346
    %v7379 = vpack.c.b16 %v7364, %v7363
    %v7380 = vpack.c.b16 %v7366, %v7365
    %v7381 = vpack.c.b16 %v7368, %v7367
    %v7382 = vpack.c.b16 %v7370, %v7369
    %v7383 = vpack.c.b16 %v7372, %v7371
    %v7384 = vpack.c.b16 %v7374, %v7373
    %v7385 = vpack.c.b16 %v7376, %v7375
    %v7386 = vpack.c.b16 %v7378, %v7377
    %7395 = vmatprep.subr.bf16.mxu0 0
    %7396 = vmatpush1.bf16.msra.mxu0 %v7386
    %7397 = vmatprep.subr.bf16.mxu0 0
    %7398 = vmatpush1.bf16.msra.mxu0 %v7385
    %7399 = vmatprep.subr.bf16.mxu0 0
    %7400 = vmatpush1.bf16.msra.mxu0 %v7384
    %7401 = vmatprep.subr.bf16.mxu0 0
    %7402 = vmatpush1.bf16.msra.mxu0 %v7383
    %7403 = vmatprep.subr.bf16.mxu0 0
    %7404 = vmatpush1.bf16.msra.mxu0 %v7382
    %7405 = vmatprep.subr.bf16.mxu0 0
    %7406 = vmatpush1.bf16.msra.mxu0 %v7381
    %7407 = vmatprep.subr.bf16.mxu0 0
    %7408 = vmatpush1.bf16.msra.mxu0 %v7380
    %7409 = vmatprep.subr.bf16.mxu0 0
    %7410 = vmatpush1.bf16.msra.mxu0 %v7379
    %7411 = vmatprep.subr.bf16.mxu0 0
    %7412 = vmatpush2.bf16.msra.mxu0 0
    %7413 = vmatprep.subr.bf16.mxu0 0
    %7414 = vmatpush2.bf16.msra.mxu0 0
    %7415 = vmatprep.subr.bf16.mxu0 0
    %7416 = vmatpush2.bf16.msra.mxu0 0
    %7417 = vmatprep.subr.bf16.mxu0 0
    %7418 = vmatpush2.bf16.msra.mxu0 0
    %7419 = vmatprep.subr.bf16.mxu0 0
    %7420 = vmatpush2.bf16.msra.mxu0 0
    %7421 = vmatprep.subr.bf16.mxu0 0
    %7422 = vmatpush2.bf16.msra.mxu0 0
    %7423 = vmatprep.subr.bf16.mxu0 0
    %7424 = vmatpush2.bf16.msra.mxu0 0
    %7425 = vmatprep.subr.bf16.mxu0 0
    %7426 = vmatpush2.bf16.msra.mxu0 0
    %7427 = vmatprep.mubr.bf16.mxu0 0
    %7428 = vmatmul.mubr.bf16.gmra.mxu0 %v7298
    %v7429 = vpop.f32.mrf.mxu0
    %v7430 = vadd.f32 0.0, %v7429
    %v7431 = vpop.f32.mrf.mxu0
    %v7432 = vpop.f32.mrf.mxu0
    %v7433 = vadd.f32 0.0, %v7432
    %v7434 = vpop.f32.mrf.mxu0
    %7435 = vmatprep.mubr.bf16.mxu0 0
    %7436 = vmatmul.mubr.bf16.gmra.mxu0 %v7299
    %v7437 = vpop.f32.mrf.mxu0
    %v7438 = vadd.f32 0.0, %v7437
    %v7439 = vpop.f32.mrf.mxu0
    %v7440 = vpop.f32.mrf.mxu0
    %v7441 = vadd.f32 0.0, %v7440
    %v7442 = vpop.f32.mrf.mxu0
    %7443 = vmatprep.mubr.bf16.mxu0 0
    %7444 = vmatmul.mubr.bf16.gmra.mxu0 %v7300
    %v7445 = vpop.f32.mrf.mxu0
    %v7446 = vadd.f32 0.0, %v7445
    %v7447 = vpop.f32.mrf.mxu0
    %v7448 = vpop.f32.mrf.mxu0
    %v7449 = vadd.f32 0.0, %v7448
    %v7450 = vpop.f32.mrf.mxu0
    %7451 = vmatprep.mubr.bf16.mxu0 0
    %7452 = vmatmul.mubr.bf16.gmra.mxu0 %v7301
    %v7453 = vpop.f32.mrf.mxu0
    %v7454 = vadd.f32 0.0, %v7453
    %v7455 = vpop.f32.mrf.mxu0
    %v7456 = vpop.f32.mrf.mxu0
    %v7457 = vadd.f32 0.0, %v7456
    %v7458 = vpop.f32.mrf.mxu0
    %7459 = vmatprep.mubr.bf16.mxu0 0
    %7460 = vmatmul.mubr.bf16.gmra.mxu0 %v7302
    %v7461 = vpop.f32.mrf.mxu0
    %v7462 = vadd.f32 0.0, %v7461
    %v7463 = vpop.f32.mrf.mxu0
    %v7464 = vpop.f32.mrf.mxu0
    %v7465 = vadd.f32 0.0, %v7464
    %v7466 = vpop.f32.mrf.mxu0
    %7467 = vmatprep.mubr.bf16.mxu0 0
    %7468 = vmatmul.mubr.bf16.gmra.mxu0 %v7303
    %v7469 = vpop.f32.mrf.mxu0
    %v7470 = vadd.f32 0.0, %v7469
    %v7471 = vpop.f32.mrf.mxu0
    %v7472 = vpop.f32.mrf.mxu0
    %v7473 = vadd.f32 0.0, %v7472
    %v7474 = vpop.f32.mrf.mxu0
    %7475 = vmatprep.mubr.bf16.mxu0 0
    %7476 = vmatmul.mubr.bf16.gmra.mxu0 %v7304
    %v7477 = vpop.f32.mrf.mxu0
    %v7478 = vadd.f32 0.0, %v7477
    %v7479 = vpop.f32.mrf.mxu0
    %v7480 = vpop.f32.mrf.mxu0
    %v7481 = vadd.f32 0.0, %v7480
    %v7482 = vpop.f32.mrf.mxu0
    %7483 = vmatprep.mubr.bf16.mxu0 0
    %7484 = vmatmul.mubr.bf16.gmra.mxu0 %v7305
    %v7485 = vpop.f32.mrf.mxu0
    %v7486 = vadd.f32 0.0, %v7485
    %v7487 = vpop.f32.mrf.mxu0
    %v7488 = vpop.f32.mrf.mxu0
    %v7489 = vadd.f32 0.0, %v7488
    %v7490 = vpop.f32.mrf.mxu0
    %7491 = vmatprep.mubr.bf16.mxu0 0
    %7492 = vmatmul.mubr.bf16.gmra.mxu0 %v7306
    %v7493 = vpop.f32.mrf.mxu0
    %v7494 = vadd.f32 0.0, %v7493
    %v7495 = vpop.f32.mrf.mxu0
    %v7496 = vpop.f32.mrf.mxu0
    %v7497 = vadd.f32 0.0, %v7496
    %v7498 = vpop.f32.mrf.mxu0
    %7499 = vmatprep.mubr.bf16.mxu0 0
    %7500 = vmatmul.mubr.bf16.gmra.mxu0 %v7307
    %v7501 = vpop.f32.mrf.mxu0
    %v7502 = vadd.f32 0.0, %v7501
    %v7503 = vpop.f32.mrf.mxu0
    %v7504 = vpop.f32.mrf.mxu0
    %v7505 = vadd.f32 0.0, %v7504
    %v7506 = vpop.f32.mrf.mxu0
    %7507 = vmatprep.mubr.bf16.mxu0 0
    %7508 = vmatmul.mubr.bf16.gmra.mxu0 %v7308
    %v7509 = vpop.f32.mrf.mxu0
    %v7510 = vadd.f32 0.0, %v7509
    %v7511 = vpop.f32.mrf.mxu0
    %v7512 = vpop.f32.mrf.mxu0
    %v7513 = vadd.f32 0.0, %v7512
    %v7514 = vpop.f32.mrf.mxu0
    %7515 = vmatprep.mubr.bf16.mxu0 0
    %7516 = vmatmul.mubr.bf16.gmra.mxu0 %v7309
    %v7517 = vpop.f32.mrf.mxu0
    %v7518 = vadd.f32 0.0, %v7517
    %v7519 = vpop.f32.mrf.mxu0
    %v7520 = vpop.f32.mrf.mxu0
    %v7521 = vadd.f32 0.0, %v7520
    %v7522 = vpop.f32.mrf.mxu0
    %7523 = vmatprep.mubr.bf16.mxu0 0
    %7524 = vmatmul.mubr.bf16.gmra.mxu0 %v7310
    %v7525 = vpop.f32.mrf.mxu0
    %v7526 = vadd.f32 0.0, %v7525
    %v7527 = vpop.f32.mrf.mxu0
    %v7528 = vpop.f32.mrf.mxu0
    %v7529 = vadd.f32 0.0, %v7528
    %v7530 = vpop.f32.mrf.mxu0
    %7531 = vmatprep.mubr.bf16.mxu0 0
    %7532 = vmatmul.mubr.bf16.gmra.mxu0 %v7311
    %v7533 = vpop.f32.mrf.mxu0
    %v7534 = vadd.f32 0.0, %v7533
    %v7535 = vpop.f32.mrf.mxu0
    %v7536 = vpop.f32.mrf.mxu0
    %v7537 = vadd.f32 0.0, %v7536
    %v7538 = vpop.f32.mrf.mxu0
    %7539 = vmatprep.mubr.bf16.mxu0 0
    %7540 = vmatmul.mubr.bf16.gmra.mxu0 %v7312
    %v7541 = vpop.f32.mrf.mxu0
    %v7542 = vadd.f32 0.0, %v7541
    %v7543 = vpop.f32.mrf.mxu0
    %v7544 = vpop.f32.mrf.mxu0
    %v7545 = vadd.f32 0.0, %v7544
    %v7546 = vpop.f32.mrf.mxu0
    %7547 = vmatprep.mubr.bf16.mxu0 0
    %7548 = vmatmul.mubr.bf16.gmra.mxu0 %v7313
    %v7549 = vpop.f32.mrf.mxu0
    %v7550 = vadd.f32 0.0, %v7549
    %v7551 = vpop.f32.mrf.mxu0
    %v7552 = vpop.f32.mrf.mxu0
    %v7553 = vadd.f32 0.0, %v7552
    %v7554 = vpop.f32.mrf.mxu0
    %7555 = vmatprep.mubr.bf16.mxu0 0
    %7556 = vmatmul.mubr.bf16.gmra.mxu0 %v7314
    %v7557 = vpop.f32.mrf.mxu0
    %v7558 = vadd.f32 0.0, %v7557
    %v7559 = vpop.f32.mrf.mxu0
    %v7560 = vpop.f32.mrf.mxu0
    %v7561 = vadd.f32 0.0, %v7560
    %v7562 = vpop.f32.mrf.mxu0
    %7563 = vmatprep.mubr.bf16.mxu0 0
    %7564 = vmatmul.mubr.bf16.gmra.mxu0 %v7315
    %v7565 = vpop.f32.mrf.mxu0
    %v7566 = vadd.f32 0.0, %v7565
    %v7567 = vpop.f32.mrf.mxu0
    %v7568 = vpop.f32.mrf.mxu0
    %v7569 = vadd.f32 0.0, %v7568
    %v7570 = vpop.f32.mrf.mxu0
    %7571 = vmatprep.mubr.bf16.mxu0 0
    %7572 = vmatmul.mubr.bf16.gmra.mxu0 %v7316
    %v7573 = vpop.f32.mrf.mxu0
    %v7574 = vadd.f32 0.0, %v7573
    %v7575 = vpop.f32.mrf.mxu0
    %v7576 = vpop.f32.mrf.mxu0
    %v7577 = vadd.f32 0.0, %v7576
    %v7578 = vpop.f32.mrf.mxu0
    %7579 = vmatprep.mubr.bf16.mxu0 0
    %7580 = vmatmul.mubr.bf16.gmra.mxu0 %v7317
    %v7581 = vpop.f32.mrf.mxu0
    %v7582 = vadd.f32 0.0, %v7581
    %v7583 = vpop.f32.mrf.mxu0
    %v7584 = vpop.f32.mrf.mxu0
    %v7585 = vadd.f32 0.0, %v7584
    %v7586 = vpop.f32.mrf.mxu0
    %7587 = vmatprep.mubr.bf16.mxu0 0
    %7588 = vmatmul.mubr.bf16.gmra.mxu0 %v7318
    %v7589 = vpop.f32.mrf.mxu0
    %v7590 = vadd.f32 0.0, %v7589
    %v7591 = vpop.f32.mrf.mxu0
    %v7592 = vpop.f32.mrf.mxu0
    %v7593 = vadd.f32 0.0, %v7592
    %v7594 = vpop.f32.mrf.mxu0
    %7595 = vmatprep.mubr.bf16.mxu0 0
    %7596 = vmatmul.mubr.bf16.gmra.mxu0 %v7319
    %v7597 = vpop.f32.mrf.mxu0
    %v7598 = vadd.f32 0.0, %v7597
    %v7599 = vpop.f32.mrf.mxu0
    %v7600 = vpop.f32.mrf.mxu0
    %v7601 = vadd.f32 0.0, %v7600
    %v7602 = vpop.f32.mrf.mxu0
    %7603 = vmatprep.mubr.bf16.mxu0 0
    %7604 = vmatmul.mubr.bf16.gmra.mxu0 %v7320
    %v7605 = vpop.f32.mrf.mxu0
    %v7606 = vadd.f32 0.0, %v7605
    %v7607 = vpop.f32.mrf.mxu0
    %v7608 = vpop.f32.mrf.mxu0
    %v7609 = vadd.f32 0.0, %v7608
    %v7610 = vpop.f32.mrf.mxu0
    %7611 = vmatprep.mubr.bf16.mxu0 0
    %7612 = vmatmul.mubr.bf16.gmra.mxu0 %v7321
    %v7613 = vpop.f32.mrf.mxu0
    %v7614 = vadd.f32 0.0, %v7613
    %v7615 = vpop.f32.mrf.mxu0
    %v7616 = vpop.f32.mrf.mxu0
    %v7617 = vadd.f32 0.0, %v7616
    %v7618 = vpop.f32.mrf.mxu0
    %7619 = vmatprep.mubr.bf16.mxu0 0
    %7620 = vmatmul.mubr.bf16.gmra.mxu0 %v7322
    %v7621 = vpop.f32.mrf.mxu0
    %v7622 = vadd.f32 0.0, %v7621
    %v7623 = vpop.f32.mrf.mxu0
    %v7624 = vpop.f32.mrf.mxu0
    %v7625 = vadd.f32 0.0, %v7624
    %v7626 = vpop.f32.mrf.mxu0
    %7627 = vmatprep.mubr.bf16.mxu0 0
    %7628 = vmatmul.mubr.bf16.gmra.mxu0 %v7323
    %v7629 = vpop.f32.mrf.mxu0
    %v7630 = vadd.f32 0.0, %v7629
    %v7631 = vpop.f32.mrf.mxu0
    %v7632 = vpop.f32.mrf.mxu0
    %v7633 = vadd.f32 0.0, %v7632
    %v7634 = vpop.f32.mrf.mxu0
    %7635 = vmatprep.mubr.bf16.mxu0 0
    %7636 = vmatmul.mubr.bf16.gmra.mxu0 %v7324
    %v7637 = vpop.f32.mrf.mxu0
    %v7638 = vadd.f32 0.0, %v7637
    %v7639 = vpop.f32.mrf.mxu0
    %v7640 = vpop.f32.mrf.mxu0
    %v7641 = vadd.f32 0.0, %v7640
    %v7642 = vpop.f32.mrf.mxu0
    %7643 = vmatprep.mubr.bf16.mxu0 0
    %7644 = vmatmul.mubr.bf16.gmra.mxu0 %v7325
    %v7645 = vpop.f32.mrf.mxu0
    %v7646 = vadd.f32 0.0, %v7645
    %v7647 = vpop.f32.mrf.mxu0
    %v7648 = vpop.f32.mrf.mxu0
    %v7649 = vadd.f32 0.0, %v7648
    %v7650 = vpop.f32.mrf.mxu0
    %7651 = vmatprep.mubr.bf16.mxu0 0
    %7652 = vmatmul.mubr.bf16.gmra.mxu0 %v7326
    %v7653 = vpop.f32.mrf.mxu0
    %v7654 = vadd.f32 0.0, %v7653
    %v7655 = vpop.f32.mrf.mxu0
    %v7656 = vpop.f32.mrf.mxu0
    %v7657 = vadd.f32 0.0, %v7656
    %v7658 = vpop.f32.mrf.mxu0
    %7659 = vmatprep.mubr.bf16.mxu0 0
    %7660 = vmatmul.mubr.bf16.gmra.mxu0 %v7327
    %v7661 = vpop.f32.mrf.mxu0
    %v7662 = vadd.f32 0.0, %v7661
    %v7663 = vpop.f32.mrf.mxu0
    %v7664 = vpop.f32.mrf.mxu0
    %v7665 = vadd.f32 0.0, %v7664
    %v7666 = vpop.f32.mrf.mxu0
    %7667 = vmatprep.mubr.bf16.mxu0 0
    %7668 = vmatmul.mubr.bf16.gmra.mxu0 %v7328
    %v7669 = vpop.f32.mrf.mxu0
    %v7670 = vadd.f32 0.0, %v7669
    %v7671 = vpop.f32.mrf.mxu0
    %v7672 = vpop.f32.mrf.mxu0
    %v7673 = vadd.f32 0.0, %v7672
    %v7674 = vpop.f32.mrf.mxu0
    %7675 = vmatprep.mubr.bf16.mxu0 0
    %7676 = vmatmul.mubr.bf16.gmra.mxu0 %v7329
    %v7677 = vpop.f32.mrf.mxu0
    %v7678 = vadd.f32 0.0, %v7677
    %v7679 = vpop.f32.mrf.mxu0
    %v7680 = vpop.f32.mrf.mxu0
    %v7681 = vadd.f32 0.0, %v7680
    %v7682 = vpop.f32.mrf.mxu0
    %7683 = vdwg.mxu0
    %v7684 = vadd.f32 %v7170, %v7430
    %v7685 = vadd.f32 %v7171, %v7433
    %v7686 = vadd.f32 %v7172, %v7438
    %v7687 = vadd.f32 %v7173, %v7441
    %v7688 = vadd.f32 %v7174, %v7446
    %v7689 = vadd.f32 %v7175, %v7449
    %v7690 = vadd.f32 %v7176, %v7454
    %v7691 = vadd.f32 %v7177, %v7457
    %v7692 = vadd.f32 %v7178, %v7462
    %v7693 = vadd.f32 %v7179, %v7465
    %v7694 = vadd.f32 %v7180, %v7470
    %v7695 = vadd.f32 %v7181, %v7473
    %v7696 = vadd.f32 %v7182, %v7478
    %v7697 = vadd.f32 %v7183, %v7481
    %v7698 = vadd.f32 %v7184, %v7486
    %v7699 = vadd.f32 %v7185, %v7489
    %v7700 = vadd.f32 %v7186, %v7494
    %v7701 = vadd.f32 %v7187, %v7497
    %v7702 = vadd.f32 %v7188, %v7502
    %v7703 = vadd.f32 %v7189, %v7505
    %v7704 = vadd.f32 %v7190, %v7510
    %v7705 = vadd.f32 %v7191, %v7513
    %v7706 = vadd.f32 %v7192, %v7518
    %v7707 = vadd.f32 %v7193, %v7521
    %v7708 = vadd.f32 %v7194, %v7526
    %v7709 = vadd.f32 %v7195, %v7529
    %v7710 = vadd.f32 %v7196, %v7534
    %v7711 = vadd.f32 %v7197, %v7537
    %v7712 = vadd.f32 %v7198, %v7542
    %v7713 = vadd.f32 %v7199, %v7545
    %v7714 = vadd.f32 %v7200, %v7550
    %v7715 = vadd.f32 %v7201, %v7553
    %v7716 = vadd.f32 %v7202, %v7558
    %v7717 = vadd.f32 %v7203, %v7561
    %v7718 = vadd.f32 %v7204, %v7566
    %v7719 = vadd.f32 %v7205, %v7569
    %v7720 = vadd.f32 %v7206, %v7574
    %v7721 = vadd.f32 %v7207, %v7577
    %v7722 = vadd.f32 %v7208, %v7582
    %v7723 = vadd.f32 %v7209, %v7585
    %v7724 = vadd.f32 %v7210, %v7590
    %v7725 = vadd.f32 %v7211, %v7593
    %v7726 = vadd.f32 %v7212, %v7598
    %v7727 = vadd.f32 %v7213, %v7601
    %v7728 = vadd.f32 %v7214, %v7606
    %v7729 = vadd.f32 %v7215, %v7609
    %v7730 = vadd.f32 %v7216, %v7614
    %v7731 = vadd.f32 %v7217, %v7617
    %v7732 = vadd.f32 %v7218, %v7622
    %v7733 = vadd.f32 %v7219, %v7625
    %v7734 = vadd.f32 %v7220, %v7630
    %v7735 = vadd.f32 %v7221, %v7633
    %v7736 = vadd.f32 %v7222, %v7638
    %v7737 = vadd.f32 %v7223, %v7641
    %v7738 = vadd.f32 %v7224, %v7646
    %v7739 = vadd.f32 %v7225, %v7649
    %v7740 = vadd.f32 %v7226, %v7654
    %v7741 = vadd.f32 %v7227, %v7657
    %v7742 = vadd.f32 %v7228, %v7662
    %v7743 = vadd.f32 %v7229, %v7665
    %v7744 = vadd.f32 %v7230, %v7670
    %v7745 = vadd.f32 %v7231, %v7673
    %v7746 = vadd.f32 %v7232, %v7678
    %v7747 = vadd.f32 %v7233, %v7681
    %v7748 = vld [vmem:[%s5242 + $0x2] sm:$0xff]
    %v7749 = vld [vmem:[%s5242 + $0xa] sm:$0xff]
    %v7750 = vld [vmem:[%s5242 + $0x1a] sm:$0xff]
    %v7751 = vld [vmem:[%s5242 + $0x22] sm:$0xff]
    %v7752 = vld [vmem:[%s5242 + $0x32] sm:$0xff]
    %v7753 = vld [vmem:[%s5242 + $0x3a] sm:$0xff]
    %v7754 = vld [vmem:[%s5242 + $0x4a] sm:$0xff]
    %v7755 = vld [vmem:[%s5242 + $0x52] sm:$0xff]
    %v7756 = vld [vmem:[%s5242 + $0x62] sm:$0xff]
    %v7757 = vld [vmem:[%s5242 + $0x6a] sm:$0xff]
    %v7758 = vld [vmem:[%s5242 + $0x7a] sm:$0xff]
    %v7759 = vld [vmem:[%s5242 + $0x82] sm:$0xff]
    %v7760 = vld [vmem:[%s5242 + $0x92] sm:$0xff]
    %v7761 = vld [vmem:[%s5242 + $0x9a] sm:$0xff]
    %v7762 = vld [vmem:[%s5242 + $0xaa] sm:$0xff]
    %v7763 = vld [vmem:[%s5242 + $0xb2] sm:$0xff]
    %v7764 = vld [vmem:[%s5242 + $0xc2] sm:$0xff]
    %v7765 = vld [vmem:[%s5242 + $0xca] sm:$0xff]
    %v7766 = vld [vmem:[%s5242 + $0xda] sm:$0xff]
    %v7767 = vld [vmem:[%s5242 + $0xe2] sm:$0xff]
    %v7768 = vld [vmem:[%s5242 + $0xf2] sm:$0xff]
    %v7769 = vld [vmem:[%s5242 + $0xfa] sm:$0xff]
    %v7770 = vld [vmem:[%s5242 + $0x10a] sm:$0xff]
    %v7771 = vld [vmem:[%s5242 + $0x112] sm:$0xff]
    %v7772 = vld [vmem:[%s5242 + $0x122] sm:$0xff]
    %v7773 = vld [vmem:[%s5242 + $0x12a] sm:$0xff]
    %v7774 = vld [vmem:[%s5242 + $0x13a] sm:$0xff]
    %v7775 = vld [vmem:[%s5242 + $0x142] sm:$0xff]
    %v7776 = vld [vmem:[%s5242 + $0x152] sm:$0xff]
    %v7777 = vld [vmem:[%s5242 + $0x15a] sm:$0xff]
    %v7778 = vld [vmem:[%s5242 + $0x16a] sm:$0xff]
    %v7779 = vld [vmem:[%s5242 + $0x172] sm:$0xff]
    %v7780 = vld [vmem:[%s5242 + $0x1b2] sm:$0xff]
    %v7781 = vld [vmem:[%s5242 + $0x1ba] sm:$0xff]
    %v7782 = vld [vmem:[%s5242 + $0x1ca] sm:$0xff]
    %v7783 = vld [vmem:[%s5242 + $0x1d2] sm:$0xff]
    %v7784 = vld [vmem:[%s5242 + $0x1e2] sm:$0xff]
    %v7785 = vld [vmem:[%s5242 + $0x1ea] sm:$0xff]
    %v7786 = vld [vmem:[%s5242 + $0x1fa] sm:$0xff]
    %v7787 = vld [vmem:[%s5242 + $0x202] sm:$0xff]
    %v7788 = vld [vmem:[%s5242 + $0x212] sm:$0xff]
    %v7789 = vld [vmem:[%s5242 + $0x21a] sm:$0xff]
    %v7790 = vld [vmem:[%s5242 + $0x22a] sm:$0xff]
    %v7791 = vld [vmem:[%s5242 + $0x232] sm:$0xff]
    %v7792 = vld [vmem:[%s5242 + $0x242] sm:$0xff]
    %v7793 = vld [vmem:[%s5242 + $0x24a] sm:$0xff]
    %v7794 = vld [vmem:[%s5242 + $0x25a] sm:$0xff]
    %v7795 = vld [vmem:[%s5242 + $0x262] sm:$0xff]
    %v7796 = vld [vmem:[%s5242 + $0x272] sm:$0xff]
    %v7797 = vld [vmem:[%s5242 + $0x27a] sm:$0xff]
    %v7798 = vld [vmem:[%s5242 + $0x28a] sm:$0xff]
    %v7799 = vld [vmem:[%s5242 + $0x292] sm:$0xff]
    %v7800 = vld [vmem:[%s5242 + $0x2a2] sm:$0xff]
    %v7801 = vld [vmem:[%s5242 + $0x2aa] sm:$0xff]
    %v7802 = vld [vmem:[%s5242 + $0x2ba] sm:$0xff]
    %v7803 = vld [vmem:[%s5242 + $0x2c2] sm:$0xff]
    %v7804 = vld [vmem:[%s5242 + $0x2d2] sm:$0xff]
    %v7805 = vld [vmem:[%s5242 + $0x2da] sm:$0xff]
    %v7806 = vld [vmem:[%s5242 + $0x2ea] sm:$0xff]
    %v7807 = vld [vmem:[%s5242 + $0x2f2] sm:$0xff]
    %v7808 = vld [vmem:[%s5242 + $0x302] sm:$0xff]
    %v7809 = vld [vmem:[%s5242 + $0x30a] sm:$0xff]
    %v7810 = vld [vmem:[%s5242 + $0x31a] sm:$0xff]
    %v7811 = vld [vmem:[%s5242 + $0x322] sm:$0xff]
    %v7812 = vpack.c.bf16 %v7749, %v7748
    %v7813 = vpack.c.bf16 %v7751, %v7750
    %v7814 = vpack.c.bf16 %v7753, %v7752
    %v7815 = vpack.c.bf16 %v7755, %v7754
    %v7816 = vpack.c.bf16 %v7757, %v7756
    %v7817 = vpack.c.bf16 %v7759, %v7758
    %v7818 = vpack.c.bf16 %v7761, %v7760
    %v7819 = vpack.c.bf16 %v7763, %v7762
    %v7820 = vpack.c.bf16 %v7765, %v7764
    %v7821 = vpack.c.bf16 %v7767, %v7766
    %v7822 = vpack.c.bf16 %v7769, %v7768
    %v7823 = vpack.c.bf16 %v7771, %v7770
    %v7824 = vpack.c.bf16 %v7773, %v7772
    %v7825 = vpack.c.bf16 %v7775, %v7774
    %v7826 = vpack.c.bf16 %v7777, %v7776
    %v7827 = vpack.c.bf16 %v7779, %v7778
    %v7828 = vpack.c.bf16 %v7781, %v7780
    %v7829 = vpack.c.bf16 %v7783, %v7782
    %v7830 = vpack.c.bf16 %v7785, %v7784
    %v7831 = vpack.c.bf16 %v7787, %v7786
    %v7832 = vpack.c.bf16 %v7789, %v7788
    %v7833 = vpack.c.bf16 %v7791, %v7790
    %v7834 = vpack.c.bf16 %v7793, %v7792
    %v7835 = vpack.c.bf16 %v7795, %v7794
    %v7836 = vpack.c.bf16 %v7797, %v7796
    %v7837 = vpack.c.bf16 %v7799, %v7798
    %v7838 = vpack.c.bf16 %v7801, %v7800
    %v7839 = vpack.c.bf16 %v7803, %v7802
    %v7840 = vpack.c.bf16 %v7805, %v7804
    %v7841 = vpack.c.bf16 %v7807, %v7806
    %v7842 = vpack.c.bf16 %v7809, %v7808
    %v7843 = vpack.c.bf16 %v7811, %v7810
    %s7844 = scalar_lea.vmem %s4, 320
    %v7845 = vld [vmem:[%s7844] sm:$0xf]
    %v7846 = vld [vmem:[%s7844 + $0x4] sm:$0xf]
    %v7847 = vld [vmem:[%s7844 + $0x8] sm:$0xf]
    %v7848 = vld [vmem:[%s7844 + $0xc] sm:$0xf]
    %v7849 = vld [vmem:[%s7844 + $0x10] sm:$0xf]
    %v7850 = vld [vmem:[%s7844 + $0x14] sm:$0xf]
    %v7851 = vld [vmem:[%s7844 + $0x18] sm:$0xf]
    %v7852 = vld [vmem:[%s7844 + $0x1c] sm:$0xf]
    %v7853 = vld [vmem:[%s7844 + $0x20] sm:$0xf]
    %v7854 = vld [vmem:[%s7844 + $0x24] sm:$0xf]
    %v7855 = vld [vmem:[%s7844 + $0x28] sm:$0xf]
    %v7856 = vld [vmem:[%s7844 + $0x2c] sm:$0xf]
    %v7857 = vld [vmem:[%s7844 + $0x30] sm:$0xf]
    %v7858 = vld [vmem:[%s7844 + $0x34] sm:$0xf]
    %v7859 = vld [vmem:[%s7844 + $0x38] sm:$0xf]
    %v7860 = vld [vmem:[%s7844 + $0x3c] sm:$0xf]
    %v7877 = vunpack.c.l.b16 %v7845
    %v7878 = vunpack.c.l.b16 %v7846
    %v7879 = vunpack.c.l.b16 %v7847
    %v7880 = vunpack.c.l.b16 %v7848
    %v7881 = vunpack.c.l.b16 %v7849
    %v7882 = vunpack.c.l.b16 %v7850
    %v7883 = vunpack.c.l.b16 %v7851
    %v7884 = vunpack.c.l.b16 %v7852
    %v7885 = vunpack.c.l.b16 %v7853
    %v7886 = vunpack.c.l.b16 %v7854
    %v7887 = vunpack.c.l.b16 %v7855
    %v7888 = vunpack.c.l.b16 %v7856
    %v7889 = vunpack.c.l.b16 %v7857
    %v7890 = vunpack.c.l.b16 %v7858
    %v7891 = vunpack.c.l.b16 %v7859
    %v7892 = vunpack.c.l.b16 %v7860
    %v7893 = vpack.c.b16 %v7878, %v7877
    %v7894 = vpack.c.b16 %v7880, %v7879
    %v7895 = vpack.c.b16 %v7882, %v7881
    %v7896 = vpack.c.b16 %v7884, %v7883
    %v7897 = vpack.c.b16 %v7886, %v7885
    %v7898 = vpack.c.b16 %v7888, %v7887
    %v7899 = vpack.c.b16 %v7890, %v7889
    %v7900 = vpack.c.b16 %v7892, %v7891
    %7909 = vmatprep.subr.bf16.mxu0 0
    %7910 = vmatpush1.bf16.msra.mxu0 %v7900
    %7911 = vmatprep.subr.bf16.mxu0 0
    %7912 = vmatpush1.bf16.msra.mxu0 %v7899
    %7913 = vmatprep.subr.bf16.mxu0 0
    %7914 = vmatpush1.bf16.msra.mxu0 %v7898
    %7915 = vmatprep.subr.bf16.mxu0 0
    %7916 = vmatpush1.bf16.msra.mxu0 %v7897
    %7917 = vmatprep.subr.bf16.mxu0 0
    %7918 = vmatpush1.bf16.msra.mxu0 %v7896
    %7919 = vmatprep.subr.bf16.mxu0 0
    %7920 = vmatpush1.bf16.msra.mxu0 %v7895
    %7921 = vmatprep.subr.bf16.mxu0 0
    %7922 = vmatpush1.bf16.msra.mxu0 %v7894
    %7923 = vmatprep.subr.bf16.mxu0 0
    %7924 = vmatpush1.bf16.msra.mxu0 %v7893
    %7925 = vmatprep.subr.bf16.mxu0 0
    %7926 = vmatpush2.bf16.msra.mxu0 0
    %7927 = vmatprep.subr.bf16.mxu0 0
    %7928 = vmatpush2.bf16.msra.mxu0 0
    %7929 = vmatprep.subr.bf16.mxu0 0
    %7930 = vmatpush2.bf16.msra.mxu0 0
    %7931 = vmatprep.subr.bf16.mxu0 0
    %7932 = vmatpush2.bf16.msra.mxu0 0
    %7933 = vmatprep.subr.bf16.mxu0 0
    %7934 = vmatpush2.bf16.msra.mxu0 0
    %7935 = vmatprep.subr.bf16.mxu0 0
    %7936 = vmatpush2.bf16.msra.mxu0 0
    %7937 = vmatprep.subr.bf16.mxu0 0
    %7938 = vmatpush2.bf16.msra.mxu0 0
    %7939 = vmatprep.subr.bf16.mxu0 0
    %7940 = vmatpush2.bf16.msra.mxu0 0
    %7941 = vmatprep.mubr.bf16.mxu0 0
    %7942 = vmatmul.mubr.bf16.gmra.mxu0 %v7812
    %v7943 = vpop.f32.mrf.mxu0
    %v7944 = vadd.f32 0.0, %v7943
    %v7945 = vpop.f32.mrf.mxu0
    %v7946 = vpop.f32.mrf.mxu0
    %v7947 = vadd.f32 0.0, %v7946
    %v7948 = vpop.f32.mrf.mxu0
    %7949 = vmatprep.mubr.bf16.mxu0 0
    %7950 = vmatmul.mubr.bf16.gmra.mxu0 %v7813
    %v7951 = vpop.f32.mrf.mxu0
    %v7952 = vadd.f32 0.0, %v7951
    %v7953 = vpop.f32.mrf.mxu0
    %v7954 = vpop.f32.mrf.mxu0
    %v7955 = vadd.f32 0.0, %v7954
    %v7956 = vpop.f32.mrf.mxu0
    %7957 = vmatprep.mubr.bf16.mxu0 0
    %7958 = vmatmul.mubr.bf16.gmra.mxu0 %v7814
    %v7959 = vpop.f32.mrf.mxu0
    %v7960 = vadd.f32 0.0, %v7959
    %v7961 = vpop.f32.mrf.mxu0
    %v7962 = vpop.f32.mrf.mxu0
    %v7963 = vadd.f32 0.0, %v7962
    %v7964 = vpop.f32.mrf.mxu0
    %7965 = vmatprep.mubr.bf16.mxu0 0
    %7966 = vmatmul.mubr.bf16.gmra.mxu0 %v7815
    %v7967 = vpop.f32.mrf.mxu0
    %v7968 = vadd.f32 0.0, %v7967
    %v7969 = vpop.f32.mrf.mxu0
    %v7970 = vpop.f32.mrf.mxu0
    %v7971 = vadd.f32 0.0, %v7970
    %v7972 = vpop.f32.mrf.mxu0
    %7973 = vmatprep.mubr.bf16.mxu0 0
    %7974 = vmatmul.mubr.bf16.gmra.mxu0 %v7816
    %v7975 = vpop.f32.mrf.mxu0
    %v7976 = vadd.f32 0.0, %v7975
    %v7977 = vpop.f32.mrf.mxu0
    %v7978 = vpop.f32.mrf.mxu0
    %v7979 = vadd.f32 0.0, %v7978
    %v7980 = vpop.f32.mrf.mxu0
    %7981 = vmatprep.mubr.bf16.mxu0 0
    %7982 = vmatmul.mubr.bf16.gmra.mxu0 %v7817
    %v7983 = vpop.f32.mrf.mxu0
    %v7984 = vadd.f32 0.0, %v7983
    %v7985 = vpop.f32.mrf.mxu0
    %v7986 = vpop.f32.mrf.mxu0
    %v7987 = vadd.f32 0.0, %v7986
    %v7988 = vpop.f32.mrf.mxu0
    %7989 = vmatprep.mubr.bf16.mxu0 0
    %7990 = vmatmul.mubr.bf16.gmra.mxu0 %v7818
    %v7991 = vpop.f32.mrf.mxu0
    %v7992 = vadd.f32 0.0, %v7991
    %v7993 = vpop.f32.mrf.mxu0
    %v7994 = vpop.f32.mrf.mxu0
    %v7995 = vadd.f32 0.0, %v7994
    %v7996 = vpop.f32.mrf.mxu0
    %7997 = vmatprep.mubr.bf16.mxu0 0
    %7998 = vmatmul.mubr.bf16.gmra.mxu0 %v7819
    %v7999 = vpop.f32.mrf.mxu0
    %v8000 = vadd.f32 0.0, %v7999
    %v8001 = vpop.f32.mrf.mxu0
    %v8002 = vpop.f32.mrf.mxu0
    %v8003 = vadd.f32 0.0, %v8002
    %v8004 = vpop.f32.mrf.mxu0
    %8005 = vmatprep.mubr.bf16.mxu0 0
    %8006 = vmatmul.mubr.bf16.gmra.mxu0 %v7820
    %v8007 = vpop.f32.mrf.mxu0
    %v8008 = vadd.f32 0.0, %v8007
    %v8009 = vpop.f32.mrf.mxu0
    %v8010 = vpop.f32.mrf.mxu0
    %v8011 = vadd.f32 0.0, %v8010
    %v8012 = vpop.f32.mrf.mxu0
    %8013 = vmatprep.mubr.bf16.mxu0 0
    %8014 = vmatmul.mubr.bf16.gmra.mxu0 %v7821
    %v8015 = vpop.f32.mrf.mxu0
    %v8016 = vadd.f32 0.0, %v8015
    %v8017 = vpop.f32.mrf.mxu0
    %v8018 = vpop.f32.mrf.mxu0
    %v8019 = vadd.f32 0.0, %v8018
    %v8020 = vpop.f32.mrf.mxu0
    %8021 = vmatprep.mubr.bf16.mxu0 0
    %8022 = vmatmul.mubr.bf16.gmra.mxu0 %v7822
    %v8023 = vpop.f32.mrf.mxu0
    %v8024 = vadd.f32 0.0, %v8023
    %v8025 = vpop.f32.mrf.mxu0
    %v8026 = vpop.f32.mrf.mxu0
    %v8027 = vadd.f32 0.0, %v8026
    %v8028 = vpop.f32.mrf.mxu0
    %8029 = vmatprep.mubr.bf16.mxu0 0
    %8030 = vmatmul.mubr.bf16.gmra.mxu0 %v7823
    %v8031 = vpop.f32.mrf.mxu0
    %v8032 = vadd.f32 0.0, %v8031
    %v8033 = vpop.f32.mrf.mxu0
    %v8034 = vpop.f32.mrf.mxu0
    %v8035 = vadd.f32 0.0, %v8034
    %v8036 = vpop.f32.mrf.mxu0
    %8037 = vmatprep.mubr.bf16.mxu0 0
    %8038 = vmatmul.mubr.bf16.gmra.mxu0 %v7824
    %v8039 = vpop.f32.mrf.mxu0
    %v8040 = vadd.f32 0.0, %v8039
    %v8041 = vpop.f32.mrf.mxu0
    %v8042 = vpop.f32.mrf.mxu0
    %v8043 = vadd.f32 0.0, %v8042
    %v8044 = vpop.f32.mrf.mxu0
    %8045 = vmatprep.mubr.bf16.mxu0 0
    %8046 = vmatmul.mubr.bf16.gmra.mxu0 %v7825
    %v8047 = vpop.f32.mrf.mxu0
    %v8048 = vadd.f32 0.0, %v8047
    %v8049 = vpop.f32.mrf.mxu0
    %v8050 = vpop.f32.mrf.mxu0
    %v8051 = vadd.f32 0.0, %v8050
    %v8052 = vpop.f32.mrf.mxu0
    %8053 = vmatprep.mubr.bf16.mxu0 0
    %8054 = vmatmul.mubr.bf16.gmra.mxu0 %v7826
    %v8055 = vpop.f32.mrf.mxu0
    %v8056 = vadd.f32 0.0, %v8055
    %v8057 = vpop.f32.mrf.mxu0
    %v8058 = vpop.f32.mrf.mxu0
    %v8059 = vadd.f32 0.0, %v8058
    %v8060 = vpop.f32.mrf.mxu0
    %8061 = vmatprep.mubr.bf16.mxu0 0
    %8062 = vmatmul.mubr.bf16.gmra.mxu0 %v7827
    %v8063 = vpop.f32.mrf.mxu0
    %v8064 = vadd.f32 0.0, %v8063
    %v8065 = vpop.f32.mrf.mxu0
    %v8066 = vpop.f32.mrf.mxu0
    %v8067 = vadd.f32 0.0, %v8066
    %v8068 = vpop.f32.mrf.mxu0
    %8069 = vmatprep.mubr.bf16.mxu0 0
    %8070 = vmatmul.mubr.bf16.gmra.mxu0 %v7828
    %v8071 = vpop.f32.mrf.mxu0
    %v8072 = vadd.f32 0.0, %v8071
    %v8073 = vpop.f32.mrf.mxu0
    %v8074 = vpop.f32.mrf.mxu0
    %v8075 = vadd.f32 0.0, %v8074
    %v8076 = vpop.f32.mrf.mxu0
    %8077 = vmatprep.mubr.bf16.mxu0 0
    %8078 = vmatmul.mubr.bf16.gmra.mxu0 %v7829
    %v8079 = vpop.f32.mrf.mxu0
    %v8080 = vadd.f32 0.0, %v8079
    %v8081 = vpop.f32.mrf.mxu0
    %v8082 = vpop.f32.mrf.mxu0
    %v8083 = vadd.f32 0.0, %v8082
    %v8084 = vpop.f32.mrf.mxu0
    %8085 = vmatprep.mubr.bf16.mxu0 0
    %8086 = vmatmul.mubr.bf16.gmra.mxu0 %v7830
    %v8087 = vpop.f32.mrf.mxu0
    %v8088 = vadd.f32 0.0, %v8087
    %v8089 = vpop.f32.mrf.mxu0
    %v8090 = vpop.f32.mrf.mxu0
    %v8091 = vadd.f32 0.0, %v8090
    %v8092 = vpop.f32.mrf.mxu0
    %8093 = vmatprep.mubr.bf16.mxu0 0
    %8094 = vmatmul.mubr.bf16.gmra.mxu0 %v7831
    %v8095 = vpop.f32.mrf.mxu0
    %v8096 = vadd.f32 0.0, %v8095
    %v8097 = vpop.f32.mrf.mxu0
    %v8098 = vpop.f32.mrf.mxu0
    %v8099 = vadd.f32 0.0, %v8098
    %v8100 = vpop.f32.mrf.mxu0
    %8101 = vmatprep.mubr.bf16.mxu0 0
    %8102 = vmatmul.mubr.bf16.gmra.mxu0 %v7832
    %v8103 = vpop.f32.mrf.mxu0
    %v8104 = vadd.f32 0.0, %v8103
    %v8105 = vpop.f32.mrf.mxu0
    %v8106 = vpop.f32.mrf.mxu0
    %v8107 = vadd.f32 0.0, %v8106
    %v8108 = vpop.f32.mrf.mxu0
    %8109 = vmatprep.mubr.bf16.mxu0 0
    %8110 = vmatmul.mubr.bf16.gmra.mxu0 %v7833
    %v8111 = vpop.f32.mrf.mxu0
    %v8112 = vadd.f32 0.0, %v8111
    %v8113 = vpop.f32.mrf.mxu0
    %v8114 = vpop.f32.mrf.mxu0
    %v8115 = vadd.f32 0.0, %v8114
    %v8116 = vpop.f32.mrf.mxu0
    %8117 = vmatprep.mubr.bf16.mxu0 0
    %8118 = vmatmul.mubr.bf16.gmra.mxu0 %v7834
    %v8119 = vpop.f32.mrf.mxu0
    %v8120 = vadd.f32 0.0, %v8119
    %v8121 = vpop.f32.mrf.mxu0
    %v8122 = vpop.f32.mrf.mxu0
    %v8123 = vadd.f32 0.0, %v8122
    %v8124 = vpop.f32.mrf.mxu0
    %8125 = vmatprep.mubr.bf16.mxu0 0
    %8126 = vmatmul.mubr.bf16.gmra.mxu0 %v7835
    %v8127 = vpop.f32.mrf.mxu0
    %v8128 = vadd.f32 0.0, %v8127
    %v8129 = vpop.f32.mrf.mxu0
    %v8130 = vpop.f32.mrf.mxu0
    %v8131 = vadd.f32 0.0, %v8130
    %v8132 = vpop.f32.mrf.mxu0
    %8133 = vmatprep.mubr.bf16.mxu0 0
    %8134 = vmatmul.mubr.bf16.gmra.mxu0 %v7836
    %v8135 = vpop.f32.mrf.mxu0
    %v8136 = vadd.f32 0.0, %v8135
    %v8137 = vpop.f32.mrf.mxu0
    %v8138 = vpop.f32.mrf.mxu0
    %v8139 = vadd.f32 0.0, %v8138
    %v8140 = vpop.f32.mrf.mxu0
    %8141 = vmatprep.mubr.bf16.mxu0 0
    %8142 = vmatmul.mubr.bf16.gmra.mxu0 %v7837
    %v8143 = vpop.f32.mrf.mxu0
    %v8144 = vadd.f32 0.0, %v8143
    %v8145 = vpop.f32.mrf.mxu0
    %v8146 = vpop.f32.mrf.mxu0
    %v8147 = vadd.f32 0.0, %v8146
    %v8148 = vpop.f32.mrf.mxu0
    %8149 = vmatprep.mubr.bf16.mxu0 0
    %8150 = vmatmul.mubr.bf16.gmra.mxu0 %v7838
    %v8151 = vpop.f32.mrf.mxu0
    %v8152 = vadd.f32 0.0, %v8151
    %v8153 = vpop.f32.mrf.mxu0
    %v8154 = vpop.f32.mrf.mxu0
    %v8155 = vadd.f32 0.0, %v8154
    %v8156 = vpop.f32.mrf.mxu0
    %8157 = vmatprep.mubr.bf16.mxu0 0
    %8158 = vmatmul.mubr.bf16.gmra.mxu0 %v7839
    %v8159 = vpop.f32.mrf.mxu0
    %v8160 = vadd.f32 0.0, %v8159
    %v8161 = vpop.f32.mrf.mxu0
    %v8162 = vpop.f32.mrf.mxu0
    %v8163 = vadd.f32 0.0, %v8162
    %v8164 = vpop.f32.mrf.mxu0
    %8165 = vmatprep.mubr.bf16.mxu0 0
    %8166 = vmatmul.mubr.bf16.gmra.mxu0 %v7840
    %v8167 = vpop.f32.mrf.mxu0
    %v8168 = vadd.f32 0.0, %v8167
    %v8169 = vpop.f32.mrf.mxu0
    %v8170 = vpop.f32.mrf.mxu0
    %v8171 = vadd.f32 0.0, %v8170
    %v8172 = vpop.f32.mrf.mxu0
    %8173 = vmatprep.mubr.bf16.mxu0 0
    %8174 = vmatmul.mubr.bf16.gmra.mxu0 %v7841
    %v8175 = vpop.f32.mrf.mxu0
    %v8176 = vadd.f32 0.0, %v8175
    %v8177 = vpop.f32.mrf.mxu0
    %v8178 = vpop.f32.mrf.mxu0
    %v8179 = vadd.f32 0.0, %v8178
    %v8180 = vpop.f32.mrf.mxu0
    %8181 = vmatprep.mubr.bf16.mxu0 0
    %8182 = vmatmul.mubr.bf16.gmra.mxu0 %v7842
    %v8183 = vpop.f32.mrf.mxu0
    %v8184 = vadd.f32 0.0, %v8183
    %v8185 = vpop.f32.mrf.mxu0
    %v8186 = vpop.f32.mrf.mxu0
    %v8187 = vadd.f32 0.0, %v8186
    %v8188 = vpop.f32.mrf.mxu0
    %8189 = vmatprep.mubr.bf16.mxu0 0
    %8190 = vmatmul.mubr.bf16.gmra.mxu0 %v7843
    %v8191 = vpop.f32.mrf.mxu0
    %v8192 = vadd.f32 0.0, %v8191
    %v8193 = vpop.f32.mrf.mxu0
    %v8194 = vpop.f32.mrf.mxu0
    %v8195 = vadd.f32 0.0, %v8194
    %v8196 = vpop.f32.mrf.mxu0
    %8197 = vdwg.mxu0
    %v8198 = vadd.f32 %v7684, %v7944
    %v8199 = vadd.f32 %v7685, %v7947
    %v8200 = vadd.f32 %v7686, %v7952
    %v8201 = vadd.f32 %v7687, %v7955
    %v8202 = vadd.f32 %v7688, %v7960
    %v8203 = vadd.f32 %v7689, %v7963
    %v8204 = vadd.f32 %v7690, %v7968
    %v8205 = vadd.f32 %v7691, %v7971
    %v8206 = vadd.f32 %v7692, %v7976
    %v8207 = vadd.f32 %v7693, %v7979
    %v8208 = vadd.f32 %v7694, %v7984
    %v8209 = vadd.f32 %v7695, %v7987
    %v8210 = vadd.f32 %v7696, %v7992
    %v8211 = vadd.f32 %v7697, %v7995
    %v8212 = vadd.f32 %v7698, %v8000
    %v8213 = vadd.f32 %v7699, %v8003
    %v8214 = vadd.f32 %v7700, %v8008
    %v8215 = vadd.f32 %v7701, %v8011
    %v8216 = vadd.f32 %v7702, %v8016
    %v8217 = vadd.f32 %v7703, %v8019
    %v8218 = vadd.f32 %v7704, %v8024
    %v8219 = vadd.f32 %v7705, %v8027
    %v8220 = vadd.f32 %v7706, %v8032
    %v8221 = vadd.f32 %v7707, %v8035
    %v8222 = vadd.f32 %v7708, %v8040
    %v8223 = vadd.f32 %v7709, %v8043
    %v8224 = vadd.f32 %v7710, %v8048
    %v8225 = vadd.f32 %v7711, %v8051
    %v8226 = vadd.f32 %v7712, %v8056
    %v8227 = vadd.f32 %v7713, %v8059
    %v8228 = vadd.f32 %v7714, %v8064
    %v8229 = vadd.f32 %v7715, %v8067
    %v8230 = vadd.f32 %v7716, %v8072
    %v8231 = vadd.f32 %v7717, %v8075
    %v8232 = vadd.f32 %v7718, %v8080
    %v8233 = vadd.f32 %v7719, %v8083
    %v8234 = vadd.f32 %v7720, %v8088
    %v8235 = vadd.f32 %v7721, %v8091
    %v8236 = vadd.f32 %v7722, %v8096
    %v8237 = vadd.f32 %v7723, %v8099
    %v8238 = vadd.f32 %v7724, %v8104
    %v8239 = vadd.f32 %v7725, %v8107
    %v8240 = vadd.f32 %v7726, %v8112
    %v8241 = vadd.f32 %v7727, %v8115
    %v8242 = vadd.f32 %v7728, %v8120
    %v8243 = vadd.f32 %v7729, %v8123
    %v8244 = vadd.f32 %v7730, %v8128
    %v8245 = vadd.f32 %v7731, %v8131
    %v8246 = vadd.f32 %v7732, %v8136
    %v8247 = vadd.f32 %v7733, %v8139
    %v8248 = vadd.f32 %v7734, %v8144
    %v8249 = vadd.f32 %v7735, %v8147
    %v8250 = vadd.f32 %v7736, %v8152
    %v8251 = vadd.f32 %v7737, %v8155
    %v8252 = vadd.f32 %v7738, %v8160
    %v8253 = vadd.f32 %v7739, %v8163
    %v8254 = vadd.f32 %v7740, %v8168
    %v8255 = vadd.f32 %v7741, %v8171
    %v8256 = vadd.f32 %v7742, %v8176
    %v8257 = vadd.f32 %v7743, %v8179
    %v8258 = vadd.f32 %v7744, %v8184
    %v8259 = vadd.f32 %v7745, %v8187
    %v8260 = vadd.f32 %v7746, %v8192
    %v8261 = vadd.f32 %v7747, %v8195
    %s8262 = scalar_lea.vmem [#allocation3], 48
    %v8263 = vld [vmem:[%s8262] sm:$0xff]
    %v8264 = vld [vmem:[%s8262 + $0x8] sm:$0xff]
    %v8265 = vld [vmem:[%s8262 + $0x18] sm:$0xff]
    %v8266 = vld [vmem:[%s8262 + $0x20] sm:$0xff]
    %v8267 = vld [vmem:[%s8262 + $0x30] sm:$0xff]
    %v8268 = vld [vmem:[%s8262 + $0x38] sm:$0xff]
    %v8269 = vld [vmem:[%s8262 + $0x48] sm:$0xff]
    %v8270 = vld [vmem:[%s8262 + $0x50] sm:$0xff]
    %v8271 = vld [vmem:[%s8262 + $0x60] sm:$0xff]
    %v8272 = vld [vmem:[%s8262 + $0x68] sm:$0xff]
    %v8273 = vld [vmem:[%s8262 + $0x78] sm:$0xff]
    %v8274 = vld [vmem:[%s8262 + $0x80] sm:$0xff]
    %v8275 = vld [vmem:[%s8262 + $0x90] sm:$0xff]
    %v8276 = vld [vmem:[%s8262 + $0x98] sm:$0xff]
    %v8277 = vld [vmem:[%s8262 + $0xa8] sm:$0xff]
    %v8278 = vld [vmem:[%s8262 + $0xb0] sm:$0xff]
    %v8279 = vld [vmem:[%s8262 + $0xc0] sm:$0xff]
    %v8280 = vld [vmem:[%s8262 + $0xc8] sm:$0xff]
    %v8281 = vld [vmem:[%s8262 + $0xd8] sm:$0xff]
    %v8282 = vld [vmem:[%s8262 + $0xe0] sm:$0xff]
    %v8283 = vld [vmem:[%s8262 + $0xf0] sm:$0xff]
    %v8284 = vld [vmem:[%s8262 + $0xf8] sm:$0xff]
    %v8285 = vld [vmem:[%s8262 + $0x108] sm:$0xff]
    %v8286 = vld [vmem:[%s8262 + $0x110] sm:$0xff]
    %v8287 = vld [vmem:[%s8262 + $0x120] sm:$0xff]
    %v8288 = vld [vmem:[%s8262 + $0x128] sm:$0xff]
    %v8289 = vld [vmem:[%s8262 + $0x138] sm:$0xff]
    %v8290 = vld [vmem:[%s8262 + $0x140] sm:$0xff]
    %v8291 = vld [vmem:[%s8262 + $0x150] sm:$0xff]
    %v8292 = vld [vmem:[%s8262 + $0x158] sm:$0xff]
    %v8293 = vld [vmem:[%s8262 + $0x168] sm:$0xff]
    %v8294 = vld [vmem:[%s8262 + $0x170] sm:$0xff]
    %v8295 = vld [vmem:[%s8262 + $0x1b0] sm:$0xff]
    %v8296 = vld [vmem:[%s8262 + $0x1b8] sm:$0xff]
    %v8297 = vld [vmem:[%s8262 + $0x1c8] sm:$0xff]
    %v8298 = vld [vmem:[%s8262 + $0x1d0] sm:$0xff]
    %v8299 = vld [vmem:[%s8262 + $0x1e0] sm:$0xff]
    %v8300 = vld [vmem:[%s8262 + $0x1e8] sm:$0xff]
    %v8301 = vld [vmem:[%s8262 + $0x1f8] sm:$0xff]
    %v8302 = vld [vmem:[%s8262 + $0x200] sm:$0xff]
    %v8303 = vld [vmem:[%s8262 + $0x210] sm:$0xff]
    %v8304 = vld [vmem:[%s8262 + $0x218] sm:$0xff]
    %v8305 = vld [vmem:[%s8262 + $0x228] sm:$0xff]
    %v8306 = vld [vmem:[%s8262 + $0x230] sm:$0xff]
    %v8307 = vld [vmem:[%s8262 + $0x240] sm:$0xff]
    %v8308 = vld [vmem:[%s8262 + $0x248] sm:$0xff]
    %v8309 = vld [vmem:[%s8262 + $0x258] sm:$0xff]
    %v8310 = vld [vmem:[%s8262 + $0x260] sm:$0xff]
    %v8311 = vld [vmem:[%s8262 + $0x270] sm:$0xff]
    %v8312 = vld [vmem:[%s8262 + $0x278] sm:$0xff]
    %v8313 = vld [vmem:[%s8262 + $0x288] sm:$0xff]
    %v8314 = vld [vmem:[%s8262 + $0x290] sm:$0xff]
    %v8315 = vld [vmem:[%s8262 + $0x2a0] sm:$0xff]
    %v8316 = vld [vmem:[%s8262 + $0x2a8] sm:$0xff]
    %v8317 = vld [vmem:[%s8262 + $0x2b8] sm:$0xff]
    %v8318 = vld [vmem:[%s8262 + $0x2c0] sm:$0xff]
    %v8319 = vld [vmem:[%s8262 + $0x2d0] sm:$0xff]
    %v8320 = vld [vmem:[%s8262 + $0x2d8] sm:$0xff]
    %v8321 = vld [vmem:[%s8262 + $0x2e8] sm:$0xff]
    %v8322 = vld [vmem:[%s8262 + $0x2f0] sm:$0xff]
    %v8323 = vld [vmem:[%s8262 + $0x300] sm:$0xff]
    %v8324 = vld [vmem:[%s8262 + $0x308] sm:$0xff]
    %v8325 = vld [vmem:[%s8262 + $0x318] sm:$0xff]
    %v8326 = vld [vmem:[%s8262 + $0x320] sm:$0xff]
    %v8327 = vpack.c.bf16 %v8264, %v8263
    %v8328 = vpack.c.bf16 %v8266, %v8265
    %v8329 = vpack.c.bf16 %v8268, %v8267
    %v8330 = vpack.c.bf16 %v8270, %v8269
    %v8331 = vpack.c.bf16 %v8272, %v8271
    %v8332 = vpack.c.bf16 %v8274, %v8273
    %v8333 = vpack.c.bf16 %v8276, %v8275
    %v8334 = vpack.c.bf16 %v8278, %v8277
    %v8335 = vpack.c.bf16 %v8280, %v8279
    %v8336 = vpack.c.bf16 %v8282, %v8281
    %v8337 = vpack.c.bf16 %v8284, %v8283
    %v8338 = vpack.c.bf16 %v8286, %v8285
    %v8339 = vpack.c.bf16 %v8288, %v8287
    %v8340 = vpack.c.bf16 %v8290, %v8289
    %v8341 = vpack.c.bf16 %v8292, %v8291
    %v8342 = vpack.c.bf16 %v8294, %v8293
    %v8343 = vpack.c.bf16 %v8296, %v8295
    %v8344 = vpack.c.bf16 %v8298, %v8297
    %v8345 = vpack.c.bf16 %v8300, %v8299
    %v8346 = vpack.c.bf16 %v8302, %v8301
    %v8347 = vpack.c.bf16 %v8304, %v8303
    %v8348 = vpack.c.bf16 %v8306, %v8305
    %v8349 = vpack.c.bf16 %v8308, %v8307
    %v8350 = vpack.c.bf16 %v8310, %v8309
    %v8351 = vpack.c.bf16 %v8312, %v8311
    %v8352 = vpack.c.bf16 %v8314, %v8313
    %v8353 = vpack.c.bf16 %v8316, %v8315
    %v8354 = vpack.c.bf16 %v8318, %v8317
    %v8355 = vpack.c.bf16 %v8320, %v8319
    %v8356 = vpack.c.bf16 %v8322, %v8321
    %v8357 = vpack.c.bf16 %v8324, %v8323
    %v8358 = vpack.c.bf16 %v8326, %v8325
    %s8359 = scalar_lea.vmem %s4, 384
    %v8360 = vld [vmem:[%s8359] sm:$0xf]
    %v8361 = vld [vmem:[%s8359 + $0x4] sm:$0xf]
    %v8362 = vld [vmem:[%s8359 + $0x8] sm:$0xf]
    %v8363 = vld [vmem:[%s8359 + $0xc] sm:$0xf]
    %v8364 = vld [vmem:[%s8359 + $0x10] sm:$0xf]
    %v8365 = vld [vmem:[%s8359 + $0x14] sm:$0xf]
    %v8366 = vld [vmem:[%s8359 + $0x18] sm:$0xf]
    %v8367 = vld [vmem:[%s8359 + $0x1c] sm:$0xf]
    %v8368 = vld [vmem:[%s8359 + $0x20] sm:$0xf]
    %v8369 = vld [vmem:[%s8359 + $0x24] sm:$0xf]
    %v8370 = vld [vmem:[%s8359 + $0x28] sm:$0xf]
    %v8371 = vld [vmem:[%s8359 + $0x2c] sm:$0xf]
    %v8372 = vld [vmem:[%s8359 + $0x30] sm:$0xf]
    %v8373 = vld [vmem:[%s8359 + $0x34] sm:$0xf]
    %v8374 = vld [vmem:[%s8359 + $0x38] sm:$0xf]
    %v8375 = vld [vmem:[%s8359 + $0x3c] sm:$0xf]
    %v8392 = vunpack.c.l.b16 %v8360
    %v8393 = vunpack.c.l.b16 %v8361
    %v8394 = vunpack.c.l.b16 %v8362
    %v8395 = vunpack.c.l.b16 %v8363
    %v8396 = vunpack.c.l.b16 %v8364
    %v8397 = vunpack.c.l.b16 %v8365
    %v8398 = vunpack.c.l.b16 %v8366
    %v8399 = vunpack.c.l.b16 %v8367
    %v8400 = vunpack.c.l.b16 %v8368
    %v8401 = vunpack.c.l.b16 %v8369
    %v8402 = vunpack.c.l.b16 %v8370
    %v8403 = vunpack.c.l.b16 %v8371
    %v8404 = vunpack.c.l.b16 %v8372
    %v8405 = vunpack.c.l.b16 %v8373
    %v8406 = vunpack.c.l.b16 %v8374
    %v8407 = vunpack.c.l.b16 %v8375
    %v8408 = vpack.c.b16 %v8393, %v8392
    %v8409 = vpack.c.b16 %v8395, %v8394
    %v8410 = vpack.c.b16 %v8397, %v8396
    %v8411 = vpack.c.b16 %v8399, %v8398
    %v8412 = vpack.c.b16 %v8401, %v8400
    %v8413 = vpack.c.b16 %v8403, %v8402
    %v8414 = vpack.c.b16 %v8405, %v8404
    %v8415 = vpack.c.b16 %v8407, %v8406
    %8424 = vmatprep.subr.bf16.mxu0 0
    %8425 = vmatpush1.bf16.msra.mxu0 %v8415
    %8426 = vmatprep.subr.bf16.mxu0 0
    %8427 = vmatpush1.bf16.msra.mxu0 %v8414
    %8428 = vmatprep.subr.bf16.mxu0 0
    %8429 = vmatpush1.bf16.msra.mxu0 %v8413
    %8430 = vmatprep.subr.bf16.mxu0 0
    %8431 = vmatpush1.bf16.msra.mxu0 %v8412
    %8432 = vmatprep.subr.bf16.mxu0 0
    %8433 = vmatpush1.bf16.msra.mxu0 %v8411
    %8434 = vmatprep.subr.bf16.mxu0 0
    %8435 = vmatpush1.bf16.msra.mxu0 %v8410
    %8436 = vmatprep.subr.bf16.mxu0 0
    %8437 = vmatpush1.bf16.msra.mxu0 %v8409
    %8438 = vmatprep.subr.bf16.mxu0 0
    %8439 = vmatpush1.bf16.msra.mxu0 %v8408
    %8440 = vmatprep.subr.bf16.mxu0 0
    %8441 = vmatpush2.bf16.msra.mxu0 0
    %8442 = vmatprep.subr.bf16.mxu0 0
    %8443 = vmatpush2.bf16.msra.mxu0 0
    %8444 = vmatprep.subr.bf16.mxu0 0
    %8445 = vmatpush2.bf16.msra.mxu0 0
    %8446 = vmatprep.subr.bf16.mxu0 0
    %8447 = vmatpush2.bf16.msra.mxu0 0
    %8448 = vmatprep.subr.bf16.mxu0 0
    %8449 = vmatpush2.bf16.msra.mxu0 0
    %8450 = vmatprep.subr.bf16.mxu0 0
    %8451 = vmatpush2.bf16.msra.mxu0 0
    %8452 = vmatprep.subr.bf16.mxu0 0
    %8453 = vmatpush2.bf16.msra.mxu0 0
    %8454 = vmatprep.subr.bf16.mxu0 0
    %8455 = vmatpush2.bf16.msra.mxu0 0
    %8456 = vmatprep.mubr.bf16.mxu0 0
    %8457 = vmatmul.mubr.bf16.gmra.mxu0 %v8327
    %v8458 = vpop.f32.mrf.mxu0
    %v8459 = vadd.f32 0.0, %v8458
    %v8460 = vpop.f32.mrf.mxu0
    %v8461 = vpop.f32.mrf.mxu0
    %v8462 = vadd.f32 0.0, %v8461
    %v8463 = vpop.f32.mrf.mxu0
    %8464 = vmatprep.mubr.bf16.mxu0 0
    %8465 = vmatmul.mubr.bf16.gmra.mxu0 %v8328
    %v8466 = vpop.f32.mrf.mxu0
    %v8467 = vadd.f32 0.0, %v8466
    %v8468 = vpop.f32.mrf.mxu0
    %v8469 = vpop.f32.mrf.mxu0
    %v8470 = vadd.f32 0.0, %v8469
    %v8471 = vpop.f32.mrf.mxu0
    %8472 = vmatprep.mubr.bf16.mxu0 0
    %8473 = vmatmul.mubr.bf16.gmra.mxu0 %v8329
    %v8474 = vpop.f32.mrf.mxu0
    %v8475 = vadd.f32 0.0, %v8474
    %v8476 = vpop.f32.mrf.mxu0
    %v8477 = vpop.f32.mrf.mxu0
    %v8478 = vadd.f32 0.0, %v8477
    %v8479 = vpop.f32.mrf.mxu0
    %8480 = vmatprep.mubr.bf16.mxu0 0
    %8481 = vmatmul.mubr.bf16.gmra.mxu0 %v8330
    %v8482 = vpop.f32.mrf.mxu0
    %v8483 = vadd.f32 0.0, %v8482
    %v8484 = vpop.f32.mrf.mxu0
    %v8485 = vpop.f32.mrf.mxu0
    %v8486 = vadd.f32 0.0, %v8485
    %v8487 = vpop.f32.mrf.mxu0
    %8488 = vmatprep.mubr.bf16.mxu0 0
    %8489 = vmatmul.mubr.bf16.gmra.mxu0 %v8331
    %v8490 = vpop.f32.mrf.mxu0
    %v8491 = vadd.f32 0.0, %v8490
    %v8492 = vpop.f32.mrf.mxu0
    %v8493 = vpop.f32.mrf.mxu0
    %v8494 = vadd.f32 0.0, %v8493
    %v8495 = vpop.f32.mrf.mxu0
    %8496 = vmatprep.mubr.bf16.mxu0 0
    %8497 = vmatmul.mubr.bf16.gmra.mxu0 %v8332
    %v8498 = vpop.f32.mrf.mxu0
    %v8499 = vadd.f32 0.0, %v8498
    %v8500 = vpop.f32.mrf.mxu0
    %v8501 = vpop.f32.mrf.mxu0
    %v8502 = vadd.f32 0.0, %v8501
    %v8503 = vpop.f32.mrf.mxu0
    %8504 = vmatprep.mubr.bf16.mxu0 0
    %8505 = vmatmul.mubr.bf16.gmra.mxu0 %v8333
    %v8506 = vpop.f32.mrf.mxu0
    %v8507 = vadd.f32 0.0, %v8506
    %v8508 = vpop.f32.mrf.mxu0
    %v8509 = vpop.f32.mrf.mxu0
    %v8510 = vadd.f32 0.0, %v8509
    %v8511 = vpop.f32.mrf.mxu0
    %8512 = vmatprep.mubr.bf16.mxu0 0
    %8513 = vmatmul.mubr.bf16.gmra.mxu0 %v8334
    %v8514 = vpop.f32.mrf.mxu0
    %v8515 = vadd.f32 0.0, %v8514
    %v8516 = vpop.f32.mrf.mxu0
    %v8517 = vpop.f32.mrf.mxu0
    %v8518 = vadd.f32 0.0, %v8517
    %v8519 = vpop.f32.mrf.mxu0
    %8520 = vmatprep.mubr.bf16.mxu0 0
    %8521 = vmatmul.mubr.bf16.gmra.mxu0 %v8335
    %v8522 = vpop.f32.mrf.mxu0
    %v8523 = vadd.f32 0.0, %v8522
    %v8524 = vpop.f32.mrf.mxu0
    %v8525 = vpop.f32.mrf.mxu0
    %v8526 = vadd.f32 0.0, %v8525
    %v8527 = vpop.f32.mrf.mxu0
    %8528 = vmatprep.mubr.bf16.mxu0 0
    %8529 = vmatmul.mubr.bf16.gmra.mxu0 %v8336
    %v8530 = vpop.f32.mrf.mxu0
    %v8531 = vadd.f32 0.0, %v8530
    %v8532 = vpop.f32.mrf.mxu0
    %v8533 = vpop.f32.mrf.mxu0
    %v8534 = vadd.f32 0.0, %v8533
    %v8535 = vpop.f32.mrf.mxu0
    %8536 = vmatprep.mubr.bf16.mxu0 0
    %8537 = vmatmul.mubr.bf16.gmra.mxu0 %v8337
    %v8538 = vpop.f32.mrf.mxu0
    %v8539 = vadd.f32 0.0, %v8538
    %v8540 = vpop.f32.mrf.mxu0
    %v8541 = vpop.f32.mrf.mxu0
    %v8542 = vadd.f32 0.0, %v8541
    %v8543 = vpop.f32.mrf.mxu0
    %8544 = vmatprep.mubr.bf16.mxu0 0
    %8545 = vmatmul.mubr.bf16.gmra.mxu0 %v8338
    %v8546 = vpop.f32.mrf.mxu0
    %v8547 = vadd.f32 0.0, %v8546
    %v8548 = vpop.f32.mrf.mxu0
    %v8549 = vpop.f32.mrf.mxu0
    %v8550 = vadd.f32 0.0, %v8549
    %v8551 = vpop.f32.mrf.mxu0
    %8552 = vmatprep.mubr.bf16.mxu0 0
    %8553 = vmatmul.mubr.bf16.gmra.mxu0 %v8339
    %v8554 = vpop.f32.mrf.mxu0
    %v8555 = vadd.f32 0.0, %v8554
    %v8556 = vpop.f32.mrf.mxu0
    %v8557 = vpop.f32.mrf.mxu0
    %v8558 = vadd.f32 0.0, %v8557
    %v8559 = vpop.f32.mrf.mxu0
    %8560 = vmatprep.mubr.bf16.mxu0 0
    %8561 = vmatmul.mubr.bf16.gmra.mxu0 %v8340
    %v8562 = vpop.f32.mrf.mxu0
    %v8563 = vadd.f32 0.0, %v8562
    %v8564 = vpop.f32.mrf.mxu0
    %v8565 = vpop.f32.mrf.mxu0
    %v8566 = vadd.f32 0.0, %v8565
    %v8567 = vpop.f32.mrf.mxu0
    %8568 = vmatprep.mubr.bf16.mxu0 0
    %8569 = vmatmul.mubr.bf16.gmra.mxu0 %v8341
    %v8570 = vpop.f32.mrf.mxu0
    %v8571 = vadd.f32 0.0, %v8570
    %v8572 = vpop.f32.mrf.mxu0
    %v8573 = vpop.f32.mrf.mxu0
    %v8574 = vadd.f32 0.0, %v8573
    %v8575 = vpop.f32.mrf.mxu0
    %8576 = vmatprep.mubr.bf16.mxu0 0
    %8577 = vmatmul.mubr.bf16.gmra.mxu0 %v8342
    %v8578 = vpop.f32.mrf.mxu0
    %v8579 = vadd.f32 0.0, %v8578
    %v8580 = vpop.f32.mrf.mxu0
    %v8581 = vpop.f32.mrf.mxu0
    %v8582 = vadd.f32 0.0, %v8581
    %v8583 = vpop.f32.mrf.mxu0
    %8584 = vmatprep.mubr.bf16.mxu0 0
    %8585 = vmatmul.mubr.bf16.gmra.mxu0 %v8343
    %v8586 = vpop.f32.mrf.mxu0
    %v8587 = vadd.f32 0.0, %v8586
    %v8588 = vpop.f32.mrf.mxu0
    %v8589 = vpop.f32.mrf.mxu0
    %v8590 = vadd.f32 0.0, %v8589
    %v8591 = vpop.f32.mrf.mxu0
    %8592 = vmatprep.mubr.bf16.mxu0 0
    %8593 = vmatmul.mubr.bf16.gmra.mxu0 %v8344
    %v8594 = vpop.f32.mrf.mxu0
    %v8595 = vadd.f32 0.0, %v8594
    %v8596 = vpop.f32.mrf.mxu0
    %v8597 = vpop.f32.mrf.mxu0
    %v8598 = vadd.f32 0.0, %v8597
    %v8599 = vpop.f32.mrf.mxu0
    %8600 = vmatprep.mubr.bf16.mxu0 0
    %8601 = vmatmul.mubr.bf16.gmra.mxu0 %v8345
    %v8602 = vpop.f32.mrf.mxu0
    %v8603 = vadd.f32 0.0, %v8602
    %v8604 = vpop.f32.mrf.mxu0
    %v8605 = vpop.f32.mrf.mxu0
    %v8606 = vadd.f32 0.0, %v8605
    %v8607 = vpop.f32.mrf.mxu0
    %8608 = vmatprep.mubr.bf16.mxu0 0
    %8609 = vmatmul.mubr.bf16.gmra.mxu0 %v8346
    %v8610 = vpop.f32.mrf.mxu0
    %v8611 = vadd.f32 0.0, %v8610
    %v8612 = vpop.f32.mrf.mxu0
    %v8613 = vpop.f32.mrf.mxu0
    %v8614 = vadd.f32 0.0, %v8613
    %v8615 = vpop.f32.mrf.mxu0
    %8616 = vmatprep.mubr.bf16.mxu0 0
    %8617 = vmatmul.mubr.bf16.gmra.mxu0 %v8347
    %v8618 = vpop.f32.mrf.mxu0
    %v8619 = vadd.f32 0.0, %v8618
    %v8620 = vpop.f32.mrf.mxu0
    %v8621 = vpop.f32.mrf.mxu0
    %v8622 = vadd.f32 0.0, %v8621
    %v8623 = vpop.f32.mrf.mxu0
    %8624 = vmatprep.mubr.bf16.mxu0 0
    %8625 = vmatmul.mubr.bf16.gmra.mxu0 %v8348
    %v8626 = vpop.f32.mrf.mxu0
    %v8627 = vadd.f32 0.0, %v8626
    %v8628 = vpop.f32.mrf.mxu0
    %v8629 = vpop.f32.mrf.mxu0
    %v8630 = vadd.f32 0.0, %v8629
    %v8631 = vpop.f32.mrf.mxu0
    %8632 = vmatprep.mubr.bf16.mxu0 0
    %8633 = vmatmul.mubr.bf16.gmra.mxu0 %v8349
    %v8634 = vpop.f32.mrf.mxu0
    %v8635 = vadd.f32 0.0, %v8634
    %v8636 = vpop.f32.mrf.mxu0
    %v8637 = vpop.f32.mrf.mxu0
    %v8638 = vadd.f32 0.0, %v8637
    %v8639 = vpop.f32.mrf.mxu0
    %8640 = vmatprep.mubr.bf16.mxu0 0
    %8641 = vmatmul.mubr.bf16.gmra.mxu0 %v8350
    %v8642 = vpop.f32.mrf.mxu0
    %v8643 = vadd.f32 0.0, %v8642
    %v8644 = vpop.f32.mrf.mxu0
    %v8645 = vpop.f32.mrf.mxu0
    %v8646 = vadd.f32 0.0, %v8645
    %v8647 = vpop.f32.mrf.mxu0
    %8648 = vmatprep.mubr.bf16.mxu0 0
    %8649 = vmatmul.mubr.bf16.gmra.mxu0 %v8351
    %v8650 = vpop.f32.mrf.mxu0
    %v8651 = vadd.f32 0.0, %v8650
    %v8652 = vpop.f32.mrf.mxu0
    %v8653 = vpop.f32.mrf.mxu0
    %v8654 = vadd.f32 0.0, %v8653
    %v8655 = vpop.f32.mrf.mxu0
    %8656 = vmatprep.mubr.bf16.mxu0 0
    %8657 = vmatmul.mubr.bf16.gmra.mxu0 %v8352
    %v8658 = vpop.f32.mrf.mxu0
    %v8659 = vadd.f32 0.0, %v8658
    %v8660 = vpop.f32.mrf.mxu0
    %v8661 = vpop.f32.mrf.mxu0
    %v8662 = vadd.f32 0.0, %v8661
    %v8663 = vpop.f32.mrf.mxu0
    %8664 = vmatprep.mubr.bf16.mxu0 0
    %8665 = vmatmul.mubr.bf16.gmra.mxu0 %v8353
    %v8666 = vpop.f32.mrf.mxu0
    %v8667 = vadd.f32 0.0, %v8666
    %v8668 = vpop.f32.mrf.mxu0
    %v8669 = vpop.f32.mrf.mxu0
    %v8670 = vadd.f32 0.0, %v8669
    %v8671 = vpop.f32.mrf.mxu0
    %8672 = vmatprep.mubr.bf16.mxu0 0
    %8673 = vmatmul.mubr.bf16.gmra.mxu0 %v8354
    %v8674 = vpop.f32.mrf.mxu0
    %v8675 = vadd.f32 0.0, %v8674
    %v8676 = vpop.f32.mrf.mxu0
    %v8677 = vpop.f32.mrf.mxu0
    %v8678 = vadd.f32 0.0, %v8677
    %v8679 = vpop.f32.mrf.mxu0
    %8680 = vmatprep.mubr.bf16.mxu0 0
    %8681 = vmatmul.mubr.bf16.gmra.mxu0 %v8355
    %v8682 = vpop.f32.mrf.mxu0
    %v8683 = vadd.f32 0.0, %v8682
    %v8684 = vpop.f32.mrf.mxu0
    %v8685 = vpop.f32.mrf.mxu0
    %v8686 = vadd.f32 0.0, %v8685
    %v8687 = vpop.f32.mrf.mxu0
    %8688 = vmatprep.mubr.bf16.mxu0 0
    %8689 = vmatmul.mubr.bf16.gmra.mxu0 %v8356
    %v8690 = vpop.f32.mrf.mxu0
    %v8691 = vadd.f32 0.0, %v8690
    %v8692 = vpop.f32.mrf.mxu0
    %v8693 = vpop.f32.mrf.mxu0
    %v8694 = vadd.f32 0.0, %v8693
    %v8695 = vpop.f32.mrf.mxu0
    %8696 = vmatprep.mubr.bf16.mxu0 0
    %8697 = vmatmul.mubr.bf16.gmra.mxu0 %v8357
    %v8698 = vpop.f32.mrf.mxu0
    %v8699 = vadd.f32 0.0, %v8698
    %v8700 = vpop.f32.mrf.mxu0
    %v8701 = vpop.f32.mrf.mxu0
    %v8702 = vadd.f32 0.0, %v8701
    %v8703 = vpop.f32.mrf.mxu0
    %8704 = vmatprep.mubr.bf16.mxu0 0
    %8705 = vmatmul.mubr.bf16.gmra.mxu0 %v8358
    %v8706 = vpop.f32.mrf.mxu0
    %v8707 = vadd.f32 0.0, %v8706
    %v8708 = vpop.f32.mrf.mxu0
    %v8709 = vpop.f32.mrf.mxu0
    %v8710 = vadd.f32 0.0, %v8709
    %v8711 = vpop.f32.mrf.mxu0
    %8712 = vdwg.mxu0
    %v8713 = vadd.f32 %v8198, %v8459
    %v8714 = vadd.f32 %v8199, %v8462
    %v8715 = vadd.f32 %v8200, %v8467
    %v8716 = vadd.f32 %v8201, %v8470
    %v8717 = vadd.f32 %v8202, %v8475
    %v8718 = vadd.f32 %v8203, %v8478
    %v8719 = vadd.f32 %v8204, %v8483
    %v8720 = vadd.f32 %v8205, %v8486
    %v8721 = vadd.f32 %v8206, %v8491
    %v8722 = vadd.f32 %v8207, %v8494
    %v8723 = vadd.f32 %v8208, %v8499
    %v8724 = vadd.f32 %v8209, %v8502
    %v8725 = vadd.f32 %v8210, %v8507
    %v8726 = vadd.f32 %v8211, %v8510
    %v8727 = vadd.f32 %v8212, %v8515
    %v8728 = vadd.f32 %v8213, %v8518
    %v8729 = vadd.f32 %v8214, %v8523
    %v8730 = vadd.f32 %v8215, %v8526
    %v8731 = vadd.f32 %v8216, %v8531
    %v8732 = vadd.f32 %v8217, %v8534
    %v8733 = vadd.f32 %v8218, %v8539
    %v8734 = vadd.f32 %v8219, %v8542
    %v8735 = vadd.f32 %v8220, %v8547
    %v8736 = vadd.f32 %v8221, %v8550
    %v8737 = vadd.f32 %v8222, %v8555
    %v8738 = vadd.f32 %v8223, %v8558
    %v8739 = vadd.f32 %v8224, %v8563
    %v8740 = vadd.f32 %v8225, %v8566
    %v8741 = vadd.f32 %v8226, %v8571
    %v8742 = vadd.f32 %v8227, %v8574
    %v8743 = vadd.f32 %v8228, %v8579
    %v8744 = vadd.f32 %v8229, %v8582
    %v8745 = vadd.f32 %v8230, %v8587
    %v8746 = vadd.f32 %v8231, %v8590
    %v8747 = vadd.f32 %v8232, %v8595
    %v8748 = vadd.f32 %v8233, %v8598
    %v8749 = vadd.f32 %v8234, %v8603
    %v8750 = vadd.f32 %v8235, %v8606
    %v8751 = vadd.f32 %v8236, %v8611
    %v8752 = vadd.f32 %v8237, %v8614
    %v8753 = vadd.f32 %v8238, %v8619
    %v8754 = vadd.f32 %v8239, %v8622
    %v8755 = vadd.f32 %v8240, %v8627
    %v8756 = vadd.f32 %v8241, %v8630
    %v8757 = vadd.f32 %v8242, %v8635
    %v8758 = vadd.f32 %v8243, %v8638
    %v8759 = vadd.f32 %v8244, %v8643
    %v8760 = vadd.f32 %v8245, %v8646
    %v8761 = vadd.f32 %v8246, %v8651
    %v8762 = vadd.f32 %v8247, %v8654
    %v8763 = vadd.f32 %v8248, %v8659
    %v8764 = vadd.f32 %v8249, %v8662
    %v8765 = vadd.f32 %v8250, %v8667
    %v8766 = vadd.f32 %v8251, %v8670
    %v8767 = vadd.f32 %v8252, %v8675
    %v8768 = vadd.f32 %v8253, %v8678
    %v8769 = vadd.f32 %v8254, %v8683
    %v8770 = vadd.f32 %v8255, %v8686
    %v8771 = vadd.f32 %v8256, %v8691
    %v8772 = vadd.f32 %v8257, %v8694
    %v8773 = vadd.f32 %v8258, %v8699
    %v8774 = vadd.f32 %v8259, %v8702
    %v8775 = vadd.f32 %v8260, %v8707
    %v8776 = vadd.f32 %v8261, %v8710
    %v8777 = vld [vmem:[%s8262 + $0x1] sm:$0xff]
    %v8778 = vld [vmem:[%s8262 + $0x9] sm:$0xff]
    %v8779 = vld [vmem:[%s8262 + $0x19] sm:$0xff]
    %v8780 = vld [vmem:[%s8262 + $0x21] sm:$0xff]
    %v8781 = vld [vmem:[%s8262 + $0x31] sm:$0xff]
    %v8782 = vld [vmem:[%s8262 + $0x39] sm:$0xff]
    %v8783 = vld [vmem:[%s8262 + $0x49] sm:$0xff]
    %v8784 = vld [vmem:[%s8262 + $0x51] sm:$0xff]
    %v8785 = vld [vmem:[%s8262 + $0x61] sm:$0xff]
    %v8786 = vld [vmem:[%s8262 + $0x69] sm:$0xff]
    %v8787 = vld [vmem:[%s8262 + $0x79] sm:$0xff]
    %v8788 = vld [vmem:[%s8262 + $0x81] sm:$0xff]
    %v8789 = vld [vmem:[%s8262 + $0x91] sm:$0xff]
    %v8790 = vld [vmem:[%s8262 + $0x99] sm:$0xff]
    %v8791 = vld [vmem:[%s8262 + $0xa9] sm:$0xff]
    %v8792 = vld [vmem:[%s8262 + $0xb1] sm:$0xff]
    %v8793 = vld [vmem:[%s8262 + $0xc1] sm:$0xff]
    %v8794 = vld [vmem:[%s8262 + $0xc9] sm:$0xff]
    %v8795 = vld [vmem:[%s8262 + $0xd9] sm:$0xff]
    %v8796 = vld [vmem:[%s8262 + $0xe1] sm:$0xff]
    %v8797 = vld [vmem:[%s8262 + $0xf1] sm:$0xff]
    %v8798 = vld [vmem:[%s8262 + $0xf9] sm:$0xff]
    %v8799 = vld [vmem:[%s8262 + $0x109] sm:$0xff]
    %v8800 = vld [vmem:[%s8262 + $0x111] sm:$0xff]
    %v8801 = vld [vmem:[%s8262 + $0x121] sm:$0xff]
    %v8802 = vld [vmem:[%s8262 + $0x129] sm:$0xff]
    %v8803 = vld [vmem:[%s8262 + $0x139] sm:$0xff]
    %v8804 = vld [vmem:[%s8262 + $0x141] sm:$0xff]
    %v8805 = vld [vmem:[%s8262 + $0x151] sm:$0xff]
    %v8806 = vld [vmem:[%s8262 + $0x159] sm:$0xff]
    %v8807 = vld [vmem:[%s8262 + $0x169] sm:$0xff]
    %v8808 = vld [vmem:[%s8262 + $0x171] sm:$0xff]
    %v8809 = vld [vmem:[%s8262 + $0x1b1] sm:$0xff]
    %v8810 = vld [vmem:[%s8262 + $0x1b9] sm:$0xff]
    %v8811 = vld [vmem:[%s8262 + $0x1c9] sm:$0xff]
    %v8812 = vld [vmem:[%s8262 + $0x1d1] sm:$0xff]
    %v8813 = vld [vmem:[%s8262 + $0x1e1] sm:$0xff]
    %v8814 = vld [vmem:[%s8262 + $0x1e9] sm:$0xff]
    %v8815 = vld [vmem:[%s8262 + $0x1f9] sm:$0xff]
    %v8816 = vld [vmem:[%s8262 + $0x201] sm:$0xff]
    %v8817 = vld [vmem:[%s8262 + $0x211] sm:$0xff]
    %v8818 = vld [vmem:[%s8262 + $0x219] sm:$0xff]
    %v8819 = vld [vmem:[%s8262 + $0x229] sm:$0xff]
    %v8820 = vld [vmem:[%s8262 + $0x231] sm:$0xff]
    %v8821 = vld [vmem:[%s8262 + $0x241] sm:$0xff]
    %v8822 = vld [vmem:[%s8262 + $0x249] sm:$0xff]
    %v8823 = vld [vmem:[%s8262 + $0x259] sm:$0xff]
    %v8824 = vld [vmem:[%s8262 + $0x261] sm:$0xff]
    %v8825 = vld [vmem:[%s8262 + $0x271] sm:$0xff]
    %v8826 = vld [vmem:[%s8262 + $0x279] sm:$0xff]
    %v8827 = vld [vmem:[%s8262 + $0x289] sm:$0xff]
    %v8828 = vld [vmem:[%s8262 + $0x291] sm:$0xff]
    %v8829 = vld [vmem:[%s8262 + $0x2a1] sm:$0xff]
    %v8830 = vld [vmem:[%s8262 + $0x2a9] sm:$0xff]
    %v8831 = vld [vmem:[%s8262 + $0x2b9] sm:$0xff]
    %v8832 = vld [vmem:[%s8262 + $0x2c1] sm:$0xff]
    %v8833 = vld [vmem:[%s8262 + $0x2d1] sm:$0xff]
    %v8834 = vld [vmem:[%s8262 + $0x2d9] sm:$0xff]
    %v8835 = vld [vmem:[%s8262 + $0x2e9] sm:$0xff]
    %v8836 = vld [vmem:[%s8262 + $0x2f1] sm:$0xff]
    %v8837 = vld [vmem:[%s8262 + $0x301] sm:$0xff]
    %v8838 = vld [vmem:[%s8262 + $0x309] sm:$0xff]
    %v8839 = vld [vmem:[%s8262 + $0x319] sm:$0xff]
    %v8840 = vld [vmem:[%s8262 + $0x321] sm:$0xff]
    %v8841 = vpack.c.bf16 %v8778, %v8777
    %v8842 = vpack.c.bf16 %v8780, %v8779
    %v8843 = vpack.c.bf16 %v8782, %v8781
    %v8844 = vpack.c.bf16 %v8784, %v8783
    %v8845 = vpack.c.bf16 %v8786, %v8785
    %v8846 = vpack.c.bf16 %v8788, %v8787
    %v8847 = vpack.c.bf16 %v8790, %v8789
    %v8848 = vpack.c.bf16 %v8792, %v8791
    %v8849 = vpack.c.bf16 %v8794, %v8793
    %v8850 = vpack.c.bf16 %v8796, %v8795
    %v8851 = vpack.c.bf16 %v8798, %v8797
    %v8852 = vpack.c.bf16 %v8800, %v8799
    %v8853 = vpack.c.bf16 %v8802, %v8801
    %v8854 = vpack.c.bf16 %v8804, %v8803
    %v8855 = vpack.c.bf16 %v8806, %v8805
    %v8856 = vpack.c.bf16 %v8808, %v8807
    %v8857 = vpack.c.bf16 %v8810, %v8809
    %v8858 = vpack.c.bf16 %v8812, %v8811
    %v8859 = vpack.c.bf16 %v8814, %v8813
    %v8860 = vpack.c.bf16 %v8816, %v8815
    %v8861 = vpack.c.bf16 %v8818, %v8817
    %v8862 = vpack.c.bf16 %v8820, %v8819
    %v8863 = vpack.c.bf16 %v8822, %v8821
    %v8864 = vpack.c.bf16 %v8824, %v8823
    %v8865 = vpack.c.bf16 %v8826, %v8825
    %v8866 = vpack.c.bf16 %v8828, %v8827
    %v8867 = vpack.c.bf16 %v8830, %v8829
    %v8868 = vpack.c.bf16 %v8832, %v8831
    %v8869 = vpack.c.bf16 %v8834, %v8833
    %v8870 = vpack.c.bf16 %v8836, %v8835
    %v8871 = vpack.c.bf16 %v8838, %v8837
    %v8872 = vpack.c.bf16 %v8840, %v8839
    %s8873 = scalar_lea.vmem %s4, 448
    %v8874 = vld [vmem:[%s8873] sm:$0xf]
    %v8875 = vld [vmem:[%s8873 + $0x4] sm:$0xf]
    %v8876 = vld [vmem:[%s8873 + $0x8] sm:$0xf]
    %v8877 = vld [vmem:[%s8873 + $0xc] sm:$0xf]
    %v8878 = vld [vmem:[%s8873 + $0x10] sm:$0xf]
    %v8879 = vld [vmem:[%s8873 + $0x14] sm:$0xf]
    %v8880 = vld [vmem:[%s8873 + $0x18] sm:$0xf]
    %v8881 = vld [vmem:[%s8873 + $0x1c] sm:$0xf]
    %v8882 = vld [vmem:[%s8873 + $0x20] sm:$0xf]
    %v8883 = vld [vmem:[%s8873 + $0x24] sm:$0xf]
    %v8884 = vld [vmem:[%s8873 + $0x28] sm:$0xf]
    %v8885 = vld [vmem:[%s8873 + $0x2c] sm:$0xf]
    %v8886 = vld [vmem:[%s8873 + $0x30] sm:$0xf]
    %v8887 = vld [vmem:[%s8873 + $0x34] sm:$0xf]
    %v8888 = vld [vmem:[%s8873 + $0x38] sm:$0xf]
    %v8889 = vld [vmem:[%s8873 + $0x3c] sm:$0xf]
    %v8906 = vunpack.c.l.b16 %v8874
    %v8907 = vunpack.c.l.b16 %v8875
    %v8908 = vunpack.c.l.b16 %v8876
    %v8909 = vunpack.c.l.b16 %v8877
    %v8910 = vunpack.c.l.b16 %v8878
    %v8911 = vunpack.c.l.b16 %v8879
    %v8912 = vunpack.c.l.b16 %v8880
    %v8913 = vunpack.c.l.b16 %v8881
    %v8914 = vunpack.c.l.b16 %v8882
    %v8915 = vunpack.c.l.b16 %v8883
    %v8916 = vunpack.c.l.b16 %v8884
    %v8917 = vunpack.c.l.b16 %v8885
    %v8918 = vunpack.c.l.b16 %v8886
    %v8919 = vunpack.c.l.b16 %v8887
    %v8920 = vunpack.c.l.b16 %v8888
    %v8921 = vunpack.c.l.b16 %v8889
    %v8922 = vpack.c.b16 %v8907, %v8906
    %v8923 = vpack.c.b16 %v8909, %v8908
    %v8924 = vpack.c.b16 %v8911, %v8910
    %v8925 = vpack.c.b16 %v8913, %v8912
    %v8926 = vpack.c.b16 %v8915, %v8914
    %v8927 = vpack.c.b16 %v8917, %v8916
    %v8928 = vpack.c.b16 %v8919, %v8918
    %v8929 = vpack.c.b16 %v8921, %v8920
    %8938 = vmatprep.subr.bf16.mxu0 0
    %8939 = vmatpush1.bf16.msra.mxu0 %v8929
    %8940 = vmatprep.subr.bf16.mxu0 0
    %8941 = vmatpush1.bf16.msra.mxu0 %v8928
    %8942 = vmatprep.subr.bf16.mxu0 0
    %8943 = vmatpush1.bf16.msra.mxu0 %v8927
    %8944 = vmatprep.subr.bf16.mxu0 0
    %8945 = vmatpush1.bf16.msra.mxu0 %v8926
    %8946 = vmatprep.subr.bf16.mxu0 0
    %8947 = vmatpush1.bf16.msra.mxu0 %v8925
    %8948 = vmatprep.subr.bf16.mxu0 0
    %8949 = vmatpush1.bf16.msra.mxu0 %v8924
    %8950 = vmatprep.subr.bf16.mxu0 0
    %8951 = vmatpush1.bf16.msra.mxu0 %v8923
    %8952 = vmatprep.subr.bf16.mxu0 0
    %8953 = vmatpush1.bf16.msra.mxu0 %v8922
    %8954 = vmatprep.subr.bf16.mxu0 0
    %8955 = vmatpush2.bf16.msra.mxu0 0
    %8956 = vmatprep.subr.bf16.mxu0 0
    %8957 = vmatpush2.bf16.msra.mxu0 0
    %8958 = vmatprep.subr.bf16.mxu0 0
    %8959 = vmatpush2.bf16.msra.mxu0 0
    %8960 = vmatprep.subr.bf16.mxu0 0
    %8961 = vmatpush2.bf16.msra.mxu0 0
    %8962 = vmatprep.subr.bf16.mxu0 0
    %8963 = vmatpush2.bf16.msra.mxu0 0
    %8964 = vmatprep.subr.bf16.mxu0 0
    %8965 = vmatpush2.bf16.msra.mxu0 0
    %8966 = vmatprep.subr.bf16.mxu0 0
    %8967 = vmatpush2.bf16.msra.mxu0 0
    %8968 = vmatprep.subr.bf16.mxu0 0
    %8969 = vmatpush2.bf16.msra.mxu0 0
    %8970 = vmatprep.mubr.bf16.mxu0 0
    %8971 = vmatmul.mubr.bf16.gmra.mxu0 %v8841
    %v8972 = vpop.f32.mrf.mxu0
    %v8973 = vadd.f32 0.0, %v8972
    %v8974 = vpop.f32.mrf.mxu0
    %v8975 = vpop.f32.mrf.mxu0
    %v8976 = vadd.f32 0.0, %v8975
    %v8977 = vpop.f32.mrf.mxu0
    %8978 = vmatprep.mubr.bf16.mxu0 0
    %8979 = vmatmul.mubr.bf16.gmra.mxu0 %v8842
    %v8980 = vpop.f32.mrf.mxu0
    %v8981 = vadd.f32 0.0, %v8980
    %v8982 = vpop.f32.mrf.mxu0
    %v8983 = vpop.f32.mrf.mxu0
    %v8984 = vadd.f32 0.0, %v8983
    %v8985 = vpop.f32.mrf.mxu0
    %8986 = vmatprep.mubr.bf16.mxu0 0
    %8987 = vmatmul.mubr.bf16.gmra.mxu0 %v8843
    %v8988 = vpop.f32.mrf.mxu0
    %v8989 = vadd.f32 0.0, %v8988
    %v8990 = vpop.f32.mrf.mxu0
    %v8991 = vpop.f32.mrf.mxu0
    %v8992 = vadd.f32 0.0, %v8991
    %v8993 = vpop.f32.mrf.mxu0
    %8994 = vmatprep.mubr.bf16.mxu0 0
    %8995 = vmatmul.mubr.bf16.gmra.mxu0 %v8844
    %v8996 = vpop.f32.mrf.mxu0
    %v8997 = vadd.f32 0.0, %v8996
    %v8998 = vpop.f32.mrf.mxu0
    %v8999 = vpop.f32.mrf.mxu0
    %v9000 = vadd.f32 0.0, %v8999
    %v9001 = vpop.f32.mrf.mxu0
    %9002 = vmatprep.mubr.bf16.mxu0 0
    %9003 = vmatmul.mubr.bf16.gmra.mxu0 %v8845
    %v9004 = vpop.f32.mrf.mxu0
    %v9005 = vadd.f32 0.0, %v9004
    %v9006 = vpop.f32.mrf.mxu0
    %v9007 = vpop.f32.mrf.mxu0
    %v9008 = vadd.f32 0.0, %v9007
    %v9009 = vpop.f32.mrf.mxu0
    %9010 = vmatprep.mubr.bf16.mxu0 0
    %9011 = vmatmul.mubr.bf16.gmra.mxu0 %v8846
    %v9012 = vpop.f32.mrf.mxu0
    %v9013 = vadd.f32 0.0, %v9012
    %v9014 = vpop.f32.mrf.mxu0
    %v9015 = vpop.f32.mrf.mxu0
    %v9016 = vadd.f32 0.0, %v9015
    %v9017 = vpop.f32.mrf.mxu0
    %9018 = vmatprep.mubr.bf16.mxu0 0
    %9019 = vmatmul.mubr.bf16.gmra.mxu0 %v8847
    %v9020 = vpop.f32.mrf.mxu0
    %v9021 = vadd.f32 0.0, %v9020
    %v9022 = vpop.f32.mrf.mxu0
    %v9023 = vpop.f32.mrf.mxu0
    %v9024 = vadd.f32 0.0, %v9023
    %v9025 = vpop.f32.mrf.mxu0
    %9026 = vmatprep.mubr.bf16.mxu0 0
    %9027 = vmatmul.mubr.bf16.gmra.mxu0 %v8848
    %v9028 = vpop.f32.mrf.mxu0
    %v9029 = vadd.f32 0.0, %v9028
    %v9030 = vpop.f32.mrf.mxu0
    %v9031 = vpop.f32.mrf.mxu0
    %v9032 = vadd.f32 0.0, %v9031
    %v9033 = vpop.f32.mrf.mxu0
    %9034 = vmatprep.mubr.bf16.mxu0 0
    %9035 = vmatmul.mubr.bf16.gmra.mxu0 %v8849
    %v9036 = vpop.f32.mrf.mxu0
    %v9037 = vadd.f32 0.0, %v9036
    %v9038 = vpop.f32.mrf.mxu0
    %v9039 = vpop.f32.mrf.mxu0
    %v9040 = vadd.f32 0.0, %v9039
    %v9041 = vpop.f32.mrf.mxu0
    %9042 = vmatprep.mubr.bf16.mxu0 0
    %9043 = vmatmul.mubr.bf16.gmra.mxu0 %v8850
    %v9044 = vpop.f32.mrf.mxu0
    %v9045 = vadd.f32 0.0, %v9044
    %v9046 = vpop.f32.mrf.mxu0
    %v9047 = vpop.f32.mrf.mxu0
    %v9048 = vadd.f32 0.0, %v9047
    %v9049 = vpop.f32.mrf.mxu0
    %9050 = vmatprep.mubr.bf16.mxu0 0
    %9051 = vmatmul.mubr.bf16.gmra.mxu0 %v8851
    %v9052 = vpop.f32.mrf.mxu0
    %v9053 = vadd.f32 0.0, %v9052
    %v9054 = vpop.f32.mrf.mxu0
    %v9055 = vpop.f32.mrf.mxu0
    %v9056 = vadd.f32 0.0, %v9055
    %v9057 = vpop.f32.mrf.mxu0
    %9058 = vmatprep.mubr.bf16.mxu0 0
    %9059 = vmatmul.mubr.bf16.gmra.mxu0 %v8852
    %v9060 = vpop.f32.mrf.mxu0
    %v9061 = vadd.f32 0.0, %v9060
    %v9062 = vpop.f32.mrf.mxu0
    %v9063 = vpop.f32.mrf.mxu0
    %v9064 = vadd.f32 0.0, %v9063
    %v9065 = vpop.f32.mrf.mxu0
    %9066 = vmatprep.mubr.bf16.mxu0 0
    %9067 = vmatmul.mubr.bf16.gmra.mxu0 %v8853
    %v9068 = vpop.f32.mrf.mxu0
    %v9069 = vadd.f32 0.0, %v9068
    %v9070 = vpop.f32.mrf.mxu0
    %v9071 = vpop.f32.mrf.mxu0
    %v9072 = vadd.f32 0.0, %v9071
    %v9073 = vpop.f32.mrf.mxu0
    %9074 = vmatprep.mubr.bf16.mxu0 0
    %9075 = vmatmul.mubr.bf16.gmra.mxu0 %v8854
    %v9076 = vpop.f32.mrf.mxu0
    %v9077 = vadd.f32 0.0, %v9076
    %v9078 = vpop.f32.mrf.mxu0
    %v9079 = vpop.f32.mrf.mxu0
    %v9080 = vadd.f32 0.0, %v9079
    %v9081 = vpop.f32.mrf.mxu0
    %9082 = vmatprep.mubr.bf16.mxu0 0
    %9083 = vmatmul.mubr.bf16.gmra.mxu0 %v8855
    %v9084 = vpop.f32.mrf.mxu0
    %v9085 = vadd.f32 0.0, %v9084
    %v9086 = vpop.f32.mrf.mxu0
    %v9087 = vpop.f32.mrf.mxu0
    %v9088 = vadd.f32 0.0, %v9087
    %v9089 = vpop.f32.mrf.mxu0
    %9090 = vmatprep.mubr.bf16.mxu0 0
    %9091 = vmatmul.mubr.bf16.gmra.mxu0 %v8856
    %v9092 = vpop.f32.mrf.mxu0
    %v9093 = vadd.f32 0.0, %v9092
    %v9094 = vpop.f32.mrf.mxu0
    %v9095 = vpop.f32.mrf.mxu0
    %v9096 = vadd.f32 0.0, %v9095
    %v9097 = vpop.f32.mrf.mxu0
    %9098 = vmatprep.mubr.bf16.mxu0 0
    %9099 = vmatmul.mubr.bf16.gmra.mxu0 %v8857
    %v9100 = vpop.f32.mrf.mxu0
    %v9101 = vadd.f32 0.0, %v9100
    %v9102 = vpop.f32.mrf.mxu0
    %v9103 = vpop.f32.mrf.mxu0
    %v9104 = vadd.f32 0.0, %v9103
    %v9105 = vpop.f32.mrf.mxu0
    %9106 = vmatprep.mubr.bf16.mxu0 0
    %9107 = vmatmul.mubr.bf16.gmra.mxu0 %v8858
    %v9108 = vpop.f32.mrf.mxu0
    %v9109 = vadd.f32 0.0, %v9108
    %v9110 = vpop.f32.mrf.mxu0
    %v9111 = vpop.f32.mrf.mxu0
    %v9112 = vadd.f32 0.0, %v9111
    %v9113 = vpop.f32.mrf.mxu0
    %9114 = vmatprep.mubr.bf16.mxu0 0
    %9115 = vmatmul.mubr.bf16.gmra.mxu0 %v8859
    %v9116 = vpop.f32.mrf.mxu0
    %v9117 = vadd.f32 0.0, %v9116
    %v9118 = vpop.f32.mrf.mxu0
    %v9119 = vpop.f32.mrf.mxu0
    %v9120 = vadd.f32 0.0, %v9119
    %v9121 = vpop.f32.mrf.mxu0
    %9122 = vmatprep.mubr.bf16.mxu0 0
    %9123 = vmatmul.mubr.bf16.gmra.mxu0 %v8860
    %v9124 = vpop.f32.mrf.mxu0
    %v9125 = vadd.f32 0.0, %v9124
    %v9126 = vpop.f32.mrf.mxu0
    %v9127 = vpop.f32.mrf.mxu0
    %v9128 = vadd.f32 0.0, %v9127
    %v9129 = vpop.f32.mrf.mxu0
    %9130 = vmatprep.mubr.bf16.mxu0 0
    %9131 = vmatmul.mubr.bf16.gmra.mxu0 %v8861
    %v9132 = vpop.f32.mrf.mxu0
    %v9133 = vadd.f32 0.0, %v9132
    %v9134 = vpop.f32.mrf.mxu0
    %v9135 = vpop.f32.mrf.mxu0
    %v9136 = vadd.f32 0.0, %v9135
    %v9137 = vpop.f32.mrf.mxu0
    %9138 = vmatprep.mubr.bf16.mxu0 0
    %9139 = vmatmul.mubr.bf16.gmra.mxu0 %v8862
    %v9140 = vpop.f32.mrf.mxu0
    %v9141 = vadd.f32 0.0, %v9140
    %v9142 = vpop.f32.mrf.mxu0
    %v9143 = vpop.f32.mrf.mxu0
    %v9144 = vadd.f32 0.0, %v9143
    %v9145 = vpop.f32.mrf.mxu0
    %9146 = vmatprep.mubr.bf16.mxu0 0
    %9147 = vmatmul.mubr.bf16.gmra.mxu0 %v8863
    %v9148 = vpop.f32.mrf.mxu0
    %v9149 = vadd.f32 0.0, %v9148
    %v9150 = vpop.f32.mrf.mxu0
    %v9151 = vpop.f32.mrf.mxu0
    %v9152 = vadd.f32 0.0, %v9151
    %v9153 = vpop.f32.mrf.mxu0
    %9154 = vmatprep.mubr.bf16.mxu0 0
    %9155 = vmatmul.mubr.bf16.gmra.mxu0 %v8864
    %v9156 = vpop.f32.mrf.mxu0
    %v9157 = vadd.f32 0.0, %v9156
    %v9158 = vpop.f32.mrf.mxu0
    %v9159 = vpop.f32.mrf.mxu0
    %v9160 = vadd.f32 0.0, %v9159
    %v9161 = vpop.f32.mrf.mxu0
    %9162 = vmatprep.mubr.bf16.mxu0 0
    %9163 = vmatmul.mubr.bf16.gmra.mxu0 %v8865
    %v9164 = vpop.f32.mrf.mxu0
    %v9165 = vadd.f32 0.0, %v9164
    %v9166 = vpop.f32.mrf.mxu0
    %v9167 = vpop.f32.mrf.mxu0
    %v9168 = vadd.f32 0.0, %v9167
    %v9169 = vpop.f32.mrf.mxu0
    %9170 = vmatprep.mubr.bf16.mxu0 0
    %9171 = vmatmul.mubr.bf16.gmra.mxu0 %v8866
    %v9172 = vpop.f32.mrf.mxu0
    %v9173 = vadd.f32 0.0, %v9172
    %v9174 = vpop.f32.mrf.mxu0
    %v9175 = vpop.f32.mrf.mxu0
    %v9176 = vadd.f32 0.0, %v9175
    %v9177 = vpop.f32.mrf.mxu0
    %9178 = vmatprep.mubr.bf16.mxu0 0
    %9179 = vmatmul.mubr.bf16.gmra.mxu0 %v8867
    %v9180 = vpop.f32.mrf.mxu0
    %v9181 = vadd.f32 0.0, %v9180
    %v9182 = vpop.f32.mrf.mxu0
    %v9183 = vpop.f32.mrf.mxu0
    %v9184 = vadd.f32 0.0, %v9183
    %v9185 = vpop.f32.mrf.mxu0
    %9186 = vmatprep.mubr.bf16.mxu0 0
    %9187 = vmatmul.mubr.bf16.gmra.mxu0 %v8868
    %v9188 = vpop.f32.mrf.mxu0
    %v9189 = vadd.f32 0.0, %v9188
    %v9190 = vpop.f32.mrf.mxu0
    %v9191 = vpop.f32.mrf.mxu0
    %v9192 = vadd.f32 0.0, %v9191
    %v9193 = vpop.f32.mrf.mxu0
    %9194 = vmatprep.mubr.bf16.mxu0 0
    %9195 = vmatmul.mubr.bf16.gmra.mxu0 %v8869
    %v9196 = vpop.f32.mrf.mxu0
    %v9197 = vadd.f32 0.0, %v9196
    %v9198 = vpop.f32.mrf.mxu0
    %v9199 = vpop.f32.mrf.mxu0
    %v9200 = vadd.f32 0.0, %v9199
    %v9201 = vpop.f32.mrf.mxu0
    %9202 = vmatprep.mubr.bf16.mxu0 0
    %9203 = vmatmul.mubr.bf16.gmra.mxu0 %v8870
    %v9204 = vpop.f32.mrf.mxu0
    %v9205 = vadd.f32 0.0, %v9204
    %v9206 = vpop.f32.mrf.mxu0
    %v9207 = vpop.f32.mrf.mxu0
    %v9208 = vadd.f32 0.0, %v9207
    %v9209 = vpop.f32.mrf.mxu0
    %9210 = vmatprep.mubr.bf16.mxu0 0
    %9211 = vmatmul.mubr.bf16.gmra.mxu0 %v8871
    %v9212 = vpop.f32.mrf.mxu0
    %v9213 = vadd.f32 0.0, %v9212
    %v9214 = vpop.f32.mrf.mxu0
    %v9215 = vpop.f32.mrf.mxu0
    %v9216 = vadd.f32 0.0, %v9215
    %v9217 = vpop.f32.mrf.mxu0
    %9218 = vmatprep.mubr.bf16.mxu0 0
    %9219 = vmatmul.mubr.bf16.gmra.mxu0 %v8872
    %v9220 = vpop.f32.mrf.mxu0
    %v9221 = vadd.f32 0.0, %v9220
    %v9222 = vpop.f32.mrf.mxu0
    %v9223 = vpop.f32.mrf.mxu0
    %v9224 = vadd.f32 0.0, %v9223
    %v9225 = vpop.f32.mrf.mxu0
    %9226 = vdwg.mxu0
    %v9227 = vadd.f32 %v8713, %v8973
    %v9228 = vadd.f32 %v8714, %v8976
    %v9229 = vadd.f32 %v8715, %v8981
    %v9230 = vadd.f32 %v8716, %v8984
    %v9231 = vadd.f32 %v8717, %v8989
    %v9232 = vadd.f32 %v8718, %v8992
    %v9233 = vadd.f32 %v8719, %v8997
    %v9234 = vadd.f32 %v8720, %v9000
    %v9235 = vadd.f32 %v8721, %v9005
    %v9236 = vadd.f32 %v8722, %v9008
    %v9237 = vadd.f32 %v8723, %v9013
    %v9238 = vadd.f32 %v8724, %v9016
    %v9239 = vadd.f32 %v8725, %v9021
    %v9240 = vadd.f32 %v8726, %v9024
    %v9241 = vadd.f32 %v8727, %v9029
    %v9242 = vadd.f32 %v8728, %v9032
    %v9243 = vadd.f32 %v8729, %v9037
    %v9244 = vadd.f32 %v8730, %v9040
    %v9245 = vadd.f32 %v8731, %v9045
    %v9246 = vadd.f32 %v8732, %v9048
    %v9247 = vadd.f32 %v8733, %v9053
    %v9248 = vadd.f32 %v8734, %v9056
    %v9249 = vadd.f32 %v8735, %v9061
    %v9250 = vadd.f32 %v8736, %v9064
    %v9251 = vadd.f32 %v8737, %v9069
    %v9252 = vadd.f32 %v8738, %v9072
    %v9253 = vadd.f32 %v8739, %v9077
    %v9254 = vadd.f32 %v8740, %v9080
    %v9255 = vadd.f32 %v8741, %v9085
    %v9256 = vadd.f32 %v8742, %v9088
    %v9257 = vadd.f32 %v8743, %v9093
    %v9258 = vadd.f32 %v8744, %v9096
    %v9259 = vadd.f32 %v8745, %v9101
    %v9260 = vadd.f32 %v8746, %v9104
    %v9261 = vadd.f32 %v8747, %v9109
    %v9262 = vadd.f32 %v8748, %v9112
    %v9263 = vadd.f32 %v8749, %v9117
    %v9264 = vadd.f32 %v8750, %v9120
    %v9265 = vadd.f32 %v8751, %v9125
    %v9266 = vadd.f32 %v8752, %v9128
    %v9267 = vadd.f32 %v8753, %v9133
    %v9268 = vadd.f32 %v8754, %v9136
    %v9269 = vadd.f32 %v8755, %v9141
    %v9270 = vadd.f32 %v8756, %v9144
    %v9271 = vadd.f32 %v8757, %v9149
    %v9272 = vadd.f32 %v8758, %v9152
    %v9273 = vadd.f32 %v8759, %v9157
    %v9274 = vadd.f32 %v8760, %v9160
    %v9275 = vadd.f32 %v8761, %v9165
    %v9276 = vadd.f32 %v8762, %v9168
    %v9277 = vadd.f32 %v8763, %v9173
    %v9278 = vadd.f32 %v8764, %v9176
    %v9279 = vadd.f32 %v8765, %v9181
    %v9280 = vadd.f32 %v8766, %v9184
    %v9281 = vadd.f32 %v8767, %v9189
    %v9282 = vadd.f32 %v8768, %v9192
    %v9283 = vadd.f32 %v8769, %v9197
    %v9284 = vadd.f32 %v8770, %v9200
    %v9285 = vadd.f32 %v8771, %v9205
    %v9286 = vadd.f32 %v8772, %v9208
    %v9287 = vadd.f32 %v8773, %v9213
    %v9288 = vadd.f32 %v8774, %v9216
    %v9289 = vadd.f32 %v8775, %v9221
    %v9290 = vadd.f32 %v8776, %v9224
    %v9291 = vld [vmem:[%s8262 + $0x2] sm:$0xff]
    %v9292 = vld [vmem:[%s8262 + $0xa] sm:$0xff]
    %v9293 = vld [vmem:[%s8262 + $0x1a] sm:$0xff]
    %v9294 = vld [vmem:[%s8262 + $0x22] sm:$0xff]
    %v9295 = vld [vmem:[%s8262 + $0x32] sm:$0xff]
    %v9296 = vld [vmem:[%s8262 + $0x3a] sm:$0xff]
    %v9297 = vld [vmem:[%s8262 + $0x4a] sm:$0xff]
    %v9298 = vld [vmem:[%s8262 + $0x52] sm:$0xff]
    %v9299 = vld [vmem:[%s8262 + $0x62] sm:$0xff]
    %v9300 = vld [vmem:[%s8262 + $0x6a] sm:$0xff]
    %v9301 = vld [vmem:[%s8262 + $0x7a] sm:$0xff]
    %v9302 = vld [vmem:[%s8262 + $0x82] sm:$0xff]
    %v9303 = vld [vmem:[%s8262 + $0x92] sm:$0xff]
    %v9304 = vld [vmem:[%s8262 + $0x9a] sm:$0xff]
    %v9305 = vld [vmem:[%s8262 + $0xaa] sm:$0xff]
    %v9306 = vld [vmem:[%s8262 + $0xb2] sm:$0xff]
    %v9307 = vld [vmem:[%s8262 + $0xc2] sm:$0xff]
    %v9308 = vld [vmem:[%s8262 + $0xca] sm:$0xff]
    %v9309 = vld [vmem:[%s8262 + $0xda] sm:$0xff]
    %v9310 = vld [vmem:[%s8262 + $0xe2] sm:$0xff]
    %v9311 = vld [vmem:[%s8262 + $0xf2] sm:$0xff]
    %v9312 = vld [vmem:[%s8262 + $0xfa] sm:$0xff]
    %v9313 = vld [vmem:[%s8262 + $0x10a] sm:$0xff]
    %v9314 = vld [vmem:[%s8262 + $0x112] sm:$0xff]
    %v9315 = vld [vmem:[%s8262 + $0x122] sm:$0xff]
    %v9316 = vld [vmem:[%s8262 + $0x12a] sm:$0xff]
    %v9317 = vld [vmem:[%s8262 + $0x13a] sm:$0xff]
    %v9318 = vld [vmem:[%s8262 + $0x142] sm:$0xff]
    %v9319 = vld [vmem:[%s8262 + $0x152] sm:$0xff]
    %v9320 = vld [vmem:[%s8262 + $0x15a] sm:$0xff]
    %v9321 = vld [vmem:[%s8262 + $0x16a] sm:$0xff]
    %v9322 = vld [vmem:[%s8262 + $0x172] sm:$0xff]
    %v9323 = vld [vmem:[%s8262 + $0x1b2] sm:$0xff]
    %v9324 = vld [vmem:[%s8262 + $0x1ba] sm:$0xff]
    %v9325 = vld [vmem:[%s8262 + $0x1ca] sm:$0xff]
    %v9326 = vld [vmem:[%s8262 + $0x1d2] sm:$0xff]
    %v9327 = vld [vmem:[%s8262 + $0x1e2] sm:$0xff]
    %v9328 = vld [vmem:[%s8262 + $0x1ea] sm:$0xff]
    %v9329 = vld [vmem:[%s8262 + $0x1fa] sm:$0xff]
    %v9330 = vld [vmem:[%s8262 + $0x202] sm:$0xff]
    %v9331 = vld [vmem:[%s8262 + $0x212] sm:$0xff]
    %v9332 = vld [vmem:[%s8262 + $0x21a] sm:$0xff]
    %v9333 = vld [vmem:[%s8262 + $0x22a] sm:$0xff]
    %v9334 = vld [vmem:[%s8262 + $0x232] sm:$0xff]
    %v9335 = vld [vmem:[%s8262 + $0x242] sm:$0xff]
    %v9336 = vld [vmem:[%s8262 + $0x24a] sm:$0xff]
    %v9337 = vld [vmem:[%s8262 + $0x25a] sm:$0xff]
    %v9338 = vld [vmem:[%s8262 + $0x262] sm:$0xff]
    %v9339 = vld [vmem:[%s8262 + $0x272] sm:$0xff]
    %v9340 = vld [vmem:[%s8262 + $0x27a] sm:$0xff]
    %v9341 = vld [vmem:[%s8262 + $0x28a] sm:$0xff]
    %v9342 = vld [vmem:[%s8262 + $0x292] sm:$0xff]
    %v9343 = vld [vmem:[%s8262 + $0x2a2] sm:$0xff]
    %v9344 = vld [vmem:[%s8262 + $0x2aa] sm:$0xff]
    %v9345 = vld [vmem:[%s8262 + $0x2ba] sm:$0xff]
    %v9346 = vld [vmem:[%s8262 + $0x2c2] sm:$0xff]
    %v9347 = vld [vmem:[%s8262 + $0x2d2] sm:$0xff]
    %v9348 = vld [vmem:[%s8262 + $0x2da] sm:$0xff]
    %v9349 = vld [vmem:[%s8262 + $0x2ea] sm:$0xff]
    %v9350 = vld [vmem:[%s8262 + $0x2f2] sm:$0xff]
    %v9351 = vld [vmem:[%s8262 + $0x302] sm:$0xff]
    %v9352 = vld [vmem:[%s8262 + $0x30a] sm:$0xff]
    %v9353 = vld [vmem:[%s8262 + $0x31a] sm:$0xff]
    %v9354 = vld [vmem:[%s8262 + $0x322] sm:$0xff]
    %v9355 = vpack.c.bf16 %v9292, %v9291
    %v9356 = vpack.c.bf16 %v9294, %v9293
    %v9357 = vpack.c.bf16 %v9296, %v9295
    %v9358 = vpack.c.bf16 %v9298, %v9297
    %v9359 = vpack.c.bf16 %v9300, %v9299
    %v9360 = vpack.c.bf16 %v9302, %v9301
    %v9361 = vpack.c.bf16 %v9304, %v9303
    %v9362 = vpack.c.bf16 %v9306, %v9305
    %v9363 = vpack.c.bf16 %v9308, %v9307
    %v9364 = vpack.c.bf16 %v9310, %v9309
    %v9365 = vpack.c.bf16 %v9312, %v9311
    %v9366 = vpack.c.bf16 %v9314, %v9313
    %v9367 = vpack.c.bf16 %v9316, %v9315
    %v9368 = vpack.c.bf16 %v9318, %v9317
    %v9369 = vpack.c.bf16 %v9320, %v9319
    %v9370 = vpack.c.bf16 %v9322, %v9321
    %v9371 = vpack.c.bf16 %v9324, %v9323
    %v9372 = vpack.c.bf16 %v9326, %v9325
    %v9373 = vpack.c.bf16 %v9328, %v9327
    %v9374 = vpack.c.bf16 %v9330, %v9329
    %v9375 = vpack.c.bf16 %v9332, %v9331
    %v9376 = vpack.c.bf16 %v9334, %v9333
    %v9377 = vpack.c.bf16 %v9336, %v9335
    %v9378 = vpack.c.bf16 %v9338, %v9337
    %v9379 = vpack.c.bf16 %v9340, %v9339
    %v9380 = vpack.c.bf16 %v9342, %v9341
    %v9381 = vpack.c.bf16 %v9344, %v9343
    %v9382 = vpack.c.bf16 %v9346, %v9345
    %v9383 = vpack.c.bf16 %v9348, %v9347
    %v9384 = vpack.c.bf16 %v9350, %v9349
    %v9385 = vpack.c.bf16 %v9352, %v9351
    %v9386 = vpack.c.bf16 %v9354, %v9353
    %s9387 = scalar_lea.vmem %s4, 512
    %v9388 = vld [vmem:[%s9387] sm:$0xf]
    %v9389 = vld [vmem:[%s9387 + $0x4] sm:$0xf]
    %v9390 = vld [vmem:[%s9387 + $0x8] sm:$0xf]
    %v9391 = vld [vmem:[%s9387 + $0xc] sm:$0xf]
    %v9392 = vld [vmem:[%s9387 + $0x10] sm:$0xf]
    %v9393 = vld [vmem:[%s9387 + $0x14] sm:$0xf]
    %v9394 = vld [vmem:[%s9387 + $0x18] sm:$0xf]
    %v9395 = vld [vmem:[%s9387 + $0x1c] sm:$0xf]
    %v9396 = vld [vmem:[%s9387 + $0x20] sm:$0xf]
    %v9397 = vld [vmem:[%s9387 + $0x24] sm:$0xf]
    %v9398 = vld [vmem:[%s9387 + $0x28] sm:$0xf]
    %v9399 = vld [vmem:[%s9387 + $0x2c] sm:$0xf]
    %v9400 = vld [vmem:[%s9387 + $0x30] sm:$0xf]
    %v9401 = vld [vmem:[%s9387 + $0x34] sm:$0xf]
    %v9402 = vld [vmem:[%s9387 + $0x38] sm:$0xf]
    %v9403 = vld [vmem:[%s9387 + $0x3c] sm:$0xf]
    %v9420 = vunpack.c.l.b16 %v9388
    %v9421 = vunpack.c.l.b16 %v9389
    %v9422 = vunpack.c.l.b16 %v9390
    %v9423 = vunpack.c.l.b16 %v9391
    %v9424 = vunpack.c.l.b16 %v9392
    %v9425 = vunpack.c.l.b16 %v9393
    %v9426 = vunpack.c.l.b16 %v9394
    %v9427 = vunpack.c.l.b16 %v9395
    %v9428 = vunpack.c.l.b16 %v9396
    %v9429 = vunpack.c.l.b16 %v9397
    %v9430 = vunpack.c.l.b16 %v9398
    %v9431 = vunpack.c.l.b16 %v9399
    %v9432 = vunpack.c.l.b16 %v9400
    %v9433 = vunpack.c.l.b16 %v9401
    %v9434 = vunpack.c.l.b16 %v9402
    %v9435 = vunpack.c.l.b16 %v9403
    %v9436 = vpack.c.b16 %v9421, %v9420
    %v9437 = vpack.c.b16 %v9423, %v9422
    %v9438 = vpack.c.b16 %v9425, %v9424
    %v9439 = vpack.c.b16 %v9427, %v9426
    %v9440 = vpack.c.b16 %v9429, %v9428
    %v9441 = vpack.c.b16 %v9431, %v9430
    %v9442 = vpack.c.b16 %v9433, %v9432
    %v9443 = vpack.c.b16 %v9435, %v9434
    %9452 = vmatprep.subr.bf16.mxu0 0
    %9453 = vmatpush1.bf16.msra.mxu0 %v9443
    %9454 = vmatprep.subr.bf16.mxu0 0
    %9455 = vmatpush1.bf16.msra.mxu0 %v9442
    %9456 = vmatprep.subr.bf16.mxu0 0
    %9457 = vmatpush1.bf16.msra.mxu0 %v9441
    %9458 = vmatprep.subr.bf16.mxu0 0
    %9459 = vmatpush1.bf16.msra.mxu0 %v9440
    %9460 = vmatprep.subr.bf16.mxu0 0
    %9461 = vmatpush1.bf16.msra.mxu0 %v9439
    %9462 = vmatprep.subr.bf16.mxu0 0
    %9463 = vmatpush1.bf16.msra.mxu0 %v9438
    %9464 = vmatprep.subr.bf16.mxu0 0
    %9465 = vmatpush1.bf16.msra.mxu0 %v9437
    %9466 = vmatprep.subr.bf16.mxu0 0
    %9467 = vmatpush1.bf16.msra.mxu0 %v9436
    %9468 = vmatprep.subr.bf16.mxu0 0
    %9469 = vmatpush2.bf16.msra.mxu0 0
    %9470 = vmatprep.subr.bf16.mxu0 0
    %9471 = vmatpush2.bf16.msra.mxu0 0
    %9472 = vmatprep.subr.bf16.mxu0 0
    %9473 = vmatpush2.bf16.msra.mxu0 0
    %9474 = vmatprep.subr.bf16.mxu0 0
    %9475 = vmatpush2.bf16.msra.mxu0 0
    %9476 = vmatprep.subr.bf16.mxu0 0
    %9477 = vmatpush2.bf16.msra.mxu0 0
    %9478 = vmatprep.subr.bf16.mxu0 0
    %9479 = vmatpush2.bf16.msra.mxu0 0
    %9480 = vmatprep.subr.bf16.mxu0 0
    %9481 = vmatpush2.bf16.msra.mxu0 0
    %9482 = vmatprep.subr.bf16.mxu0 0
    %9483 = vmatpush2.bf16.msra.mxu0 0
    %9484 = vmatprep.mubr.bf16.mxu0 0
    %9485 = vmatmul.mubr.bf16.gmra.mxu0 %v9355
    %v9486 = vpop.f32.mrf.mxu0
    %v9487 = vadd.f32 0.0, %v9486
    %v9488 = vpop.f32.mrf.mxu0
    %v9489 = vpop.f32.mrf.mxu0
    %v9490 = vadd.f32 0.0, %v9489
    %v9491 = vpop.f32.mrf.mxu0
    %9492 = vmatprep.mubr.bf16.mxu0 0
    %9493 = vmatmul.mubr.bf16.gmra.mxu0 %v9356
    %v9494 = vpop.f32.mrf.mxu0
    %v9495 = vadd.f32 0.0, %v9494
    %v9496 = vpop.f32.mrf.mxu0
    %v9497 = vpop.f32.mrf.mxu0
    %v9498 = vadd.f32 0.0, %v9497
    %v9499 = vpop.f32.mrf.mxu0
    %9500 = vmatprep.mubr.bf16.mxu0 0
    %9501 = vmatmul.mubr.bf16.gmra.mxu0 %v9357
    %v9502 = vpop.f32.mrf.mxu0
    %v9503 = vadd.f32 0.0, %v9502
    %v9504 = vpop.f32.mrf.mxu0
    %v9505 = vpop.f32.mrf.mxu0
    %v9506 = vadd.f32 0.0, %v9505
    %v9507 = vpop.f32.mrf.mxu0
    %9508 = vmatprep.mubr.bf16.mxu0 0
    %9509 = vmatmul.mubr.bf16.gmra.mxu0 %v9358
    %v9510 = vpop.f32.mrf.mxu0
    %v9511 = vadd.f32 0.0, %v9510
    %v9512 = vpop.f32.mrf.mxu0
    %v9513 = vpop.f32.mrf.mxu0
    %v9514 = vadd.f32 0.0, %v9513
    %v9515 = vpop.f32.mrf.mxu0
    %9516 = vmatprep.mubr.bf16.mxu0 0
    %9517 = vmatmul.mubr.bf16.gmra.mxu0 %v9359
    %v9518 = vpop.f32.mrf.mxu0
    %v9519 = vadd.f32 0.0, %v9518
    %v9520 = vpop.f32.mrf.mxu0
    %v9521 = vpop.f32.mrf.mxu0
    %v9522 = vadd.f32 0.0, %v9521
    %v9523 = vpop.f32.mrf.mxu0
    %9524 = vmatprep.mubr.bf16.mxu0 0
    %9525 = vmatmul.mubr.bf16.gmra.mxu0 %v9360
    %v9526 = vpop.f32.mrf.mxu0
    %v9527 = vadd.f32 0.0, %v9526
    %v9528 = vpop.f32.mrf.mxu0
    %v9529 = vpop.f32.mrf.mxu0
    %v9530 = vadd.f32 0.0, %v9529
    %v9531 = vpop.f32.mrf.mxu0
    %9532 = vmatprep.mubr.bf16.mxu0 0
    %9533 = vmatmul.mubr.bf16.gmra.mxu0 %v9361
    %v9534 = vpop.f32.mrf.mxu0
    %v9535 = vadd.f32 0.0, %v9534
    %v9536 = vpop.f32.mrf.mxu0
    %v9537 = vpop.f32.mrf.mxu0
    %v9538 = vadd.f32 0.0, %v9537
    %v9539 = vpop.f32.mrf.mxu0
    %9540 = vmatprep.mubr.bf16.mxu0 0
    %9541 = vmatmul.mubr.bf16.gmra.mxu0 %v9362
    %v9542 = vpop.f32.mrf.mxu0
    %v9543 = vadd.f32 0.0, %v9542
    %v9544 = vpop.f32.mrf.mxu0
    %v9545 = vpop.f32.mrf.mxu0
    %v9546 = vadd.f32 0.0, %v9545
    %v9547 = vpop.f32.mrf.mxu0
    %9548 = vmatprep.mubr.bf16.mxu0 0
    %9549 = vmatmul.mubr.bf16.gmra.mxu0 %v9363
    %v9550 = vpop.f32.mrf.mxu0
    %v9551 = vadd.f32 0.0, %v9550
    %v9552 = vpop.f32.mrf.mxu0
    %v9553 = vpop.f32.mrf.mxu0
    %v9554 = vadd.f32 0.0, %v9553
    %v9555 = vpop.f32.mrf.mxu0
    %9556 = vmatprep.mubr.bf16.mxu0 0
    %9557 = vmatmul.mubr.bf16.gmra.mxu0 %v9364
    %v9558 = vpop.f32.mrf.mxu0
    %v9559 = vadd.f32 0.0, %v9558
    %v9560 = vpop.f32.mrf.mxu0
    %v9561 = vpop.f32.mrf.mxu0
    %v9562 = vadd.f32 0.0, %v9561
    %v9563 = vpop.f32.mrf.mxu0
    %9564 = vmatprep.mubr.bf16.mxu0 0
    %9565 = vmatmul.mubr.bf16.gmra.mxu0 %v9365
    %v9566 = vpop.f32.mrf.mxu0
    %v9567 = vadd.f32 0.0, %v9566
    %v9568 = vpop.f32.mrf.mxu0
    %v9569 = vpop.f32.mrf.mxu0
    %v9570 = vadd.f32 0.0, %v9569
    %v9571 = vpop.f32.mrf.mxu0
    %9572 = vmatprep.mubr.bf16.mxu0 0
    %9573 = vmatmul.mubr.bf16.gmra.mxu0 %v9366
    %v9574 = vpop.f32.mrf.mxu0
    %v9575 = vadd.f32 0.0, %v9574
    %v9576 = vpop.f32.mrf.mxu0
    %v9577 = vpop.f32.mrf.mxu0
    %v9578 = vadd.f32 0.0, %v9577
    %v9579 = vpop.f32.mrf.mxu0
    %9580 = vmatprep.mubr.bf16.mxu0 0
    %9581 = vmatmul.mubr.bf16.gmra.mxu0 %v9367
    %v9582 = vpop.f32.mrf.mxu0
    %v9583 = vadd.f32 0.0, %v9582
    %v9584 = vpop.f32.mrf.mxu0
    %v9585 = vpop.f32.mrf.mxu0
    %v9586 = vadd.f32 0.0, %v9585
    %v9587 = vpop.f32.mrf.mxu0
    %9588 = vmatprep.mubr.bf16.mxu0 0
    %9589 = vmatmul.mubr.bf16.gmra.mxu0 %v9368
    %v9590 = vpop.f32.mrf.mxu0
    %v9591 = vadd.f32 0.0, %v9590
    %v9592 = vpop.f32.mrf.mxu0
    %v9593 = vpop.f32.mrf.mxu0
    %v9594 = vadd.f32 0.0, %v9593
    %v9595 = vpop.f32.mrf.mxu0
    %9596 = vmatprep.mubr.bf16.mxu0 0
    %9597 = vmatmul.mubr.bf16.gmra.mxu0 %v9369
    %v9598 = vpop.f32.mrf.mxu0
    %v9599 = vadd.f32 0.0, %v9598
    %v9600 = vpop.f32.mrf.mxu0
    %v9601 = vpop.f32.mrf.mxu0
    %v9602 = vadd.f32 0.0, %v9601
    %v9603 = vpop.f32.mrf.mxu0
    %9604 = vmatprep.mubr.bf16.mxu0 0
    %9605 = vmatmul.mubr.bf16.gmra.mxu0 %v9370
    %v9606 = vpop.f32.mrf.mxu0
    %v9607 = vadd.f32 0.0, %v9606
    %v9608 = vpop.f32.mrf.mxu0
    %v9609 = vpop.f32.mrf.mxu0
    %v9610 = vadd.f32 0.0, %v9609
    %v9611 = vpop.f32.mrf.mxu0
    %9612 = vmatprep.mubr.bf16.mxu0 0
    %9613 = vmatmul.mubr.bf16.gmra.mxu0 %v9371
    %v9614 = vpop.f32.mrf.mxu0
    %v9615 = vadd.f32 0.0, %v9614
    %v9616 = vpop.f32.mrf.mxu0
    %v9617 = vpop.f32.mrf.mxu0
    %v9618 = vadd.f32 0.0, %v9617
    %v9619 = vpop.f32.mrf.mxu0
    %9620 = vmatprep.mubr.bf16.mxu0 0
    %9621 = vmatmul.mubr.bf16.gmra.mxu0 %v9372
    %v9622 = vpop.f32.mrf.mxu0
    %v9623 = vadd.f32 0.0, %v9622
    %v9624 = vpop.f32.mrf.mxu0
    %v9625 = vpop.f32.mrf.mxu0
    %v9626 = vadd.f32 0.0, %v9625
    %v9627 = vpop.f32.mrf.mxu0
    %9628 = vmatprep.mubr.bf16.mxu0 0
    %9629 = vmatmul.mubr.bf16.gmra.mxu0 %v9373
    %v9630 = vpop.f32.mrf.mxu0
    %v9631 = vadd.f32 0.0, %v9630
    %v9632 = vpop.f32.mrf.mxu0
    %v9633 = vpop.f32.mrf.mxu0
    %v9634 = vadd.f32 0.0, %v9633
    %v9635 = vpop.f32.mrf.mxu0
    %9636 = vmatprep.mubr.bf16.mxu0 0
    %9637 = vmatmul.mubr.bf16.gmra.mxu0 %v9374
    %v9638 = vpop.f32.mrf.mxu0
    %v9639 = vadd.f32 0.0, %v9638
    %v9640 = vpop.f32.mrf.mxu0
    %v9641 = vpop.f32.mrf.mxu0
    %v9642 = vadd.f32 0.0, %v9641
    %v9643 = vpop.f32.mrf.mxu0
    %9644 = vmatprep.mubr.bf16.mxu0 0
    %9645 = vmatmul.mubr.bf16.gmra.mxu0 %v9375
    %v9646 = vpop.f32.mrf.mxu0
    %v9647 = vadd.f32 0.0, %v9646
    %v9648 = vpop.f32.mrf.mxu0
    %v9649 = vpop.f32.mrf.mxu0
    %v9650 = vadd.f32 0.0, %v9649
    %v9651 = vpop.f32.mrf.mxu0
    %9652 = vmatprep.mubr.bf16.mxu0 0
    %9653 = vmatmul.mubr.bf16.gmra.mxu0 %v9376
    %v9654 = vpop.f32.mrf.mxu0
    %v9655 = vadd.f32 0.0, %v9654
    %v9656 = vpop.f32.mrf.mxu0
    %v9657 = vpop.f32.mrf.mxu0
    %v9658 = vadd.f32 0.0, %v9657
    %v9659 = vpop.f32.mrf.mxu0
    %9660 = vmatprep.mubr.bf16.mxu0 0
    %9661 = vmatmul.mubr.bf16.gmra.mxu0 %v9377
    %v9662 = vpop.f32.mrf.mxu0
    %v9663 = vadd.f32 0.0, %v9662
    %v9664 = vpop.f32.mrf.mxu0
    %v9665 = vpop.f32.mrf.mxu0
    %v9666 = vadd.f32 0.0, %v9665
    %v9667 = vpop.f32.mrf.mxu0
    %9668 = vmatprep.mubr.bf16.mxu0 0
    %9669 = vmatmul.mubr.bf16.gmra.mxu0 %v9378
    %v9670 = vpop.f32.mrf.mxu0
    %v9671 = vadd.f32 0.0, %v9670
    %v9672 = vpop.f32.mrf.mxu0
    %v9673 = vpop.f32.mrf.mxu0
    %v9674 = vadd.f32 0.0, %v9673
    %v9675 = vpop.f32.mrf.mxu0
    %9676 = vmatprep.mubr.bf16.mxu0 0
    %9677 = vmatmul.mubr.bf16.gmra.mxu0 %v9379
    %v9678 = vpop.f32.mrf.mxu0
    %v9679 = vadd.f32 0.0, %v9678
    %v9680 = vpop.f32.mrf.mxu0
    %v9681 = vpop.f32.mrf.mxu0
    %v9682 = vadd.f32 0.0, %v9681
    %v9683 = vpop.f32.mrf.mxu0
    %9684 = vmatprep.mubr.bf16.mxu0 0
    %9685 = vmatmul.mubr.bf16.gmra.mxu0 %v9380
    %v9686 = vpop.f32.mrf.mxu0
    %v9687 = vadd.f32 0.0, %v9686
    %v9688 = vpop.f32.mrf.mxu0
    %v9689 = vpop.f32.mrf.mxu0
    %v9690 = vadd.f32 0.0, %v9689
    %v9691 = vpop.f32.mrf.mxu0
    %9692 = vmatprep.mubr.bf16.mxu0 0
    %9693 = vmatmul.mubr.bf16.gmra.mxu0 %v9381
    %v9694 = vpop.f32.mrf.mxu0
    %v9695 = vadd.f32 0.0, %v9694
    %v9696 = vpop.f32.mrf.mxu0
    %v9697 = vpop.f32.mrf.mxu0
    %v9698 = vadd.f32 0.0, %v9697
    %v9699 = vpop.f32.mrf.mxu0
    %9700 = vmatprep.mubr.bf16.mxu0 0
    %9701 = vmatmul.mubr.bf16.gmra.mxu0 %v9382
    %v9702 = vpop.f32.mrf.mxu0
    %v9703 = vadd.f32 0.0, %v9702
    %v9704 = vpop.f32.mrf.mxu0
    %v9705 = vpop.f32.mrf.mxu0
    %v9706 = vadd.f32 0.0, %v9705
    %v9707 = vpop.f32.mrf.mxu0
    %9708 = vmatprep.mubr.bf16.mxu0 0
    %9709 = vmatmul.mubr.bf16.gmra.mxu0 %v9383
    %v9710 = vpop.f32.mrf.mxu0
    %v9711 = vadd.f32 0.0, %v9710
    %v9712 = vpop.f32.mrf.mxu0
    %v9713 = vpop.f32.mrf.mxu0
    %v9714 = vadd.f32 0.0, %v9713
    %v9715 = vpop.f32.mrf.mxu0
    %9716 = vmatprep.mubr.bf16.mxu0 0
    %9717 = vmatmul.mubr.bf16.gmra.mxu0 %v9384
    %v9718 = vpop.f32.mrf.mxu0
    %v9719 = vadd.f32 0.0, %v9718
    %v9720 = vpop.f32.mrf.mxu0
    %v9721 = vpop.f32.mrf.mxu0
    %v9722 = vadd.f32 0.0, %v9721
    %v9723 = vpop.f32.mrf.mxu0
    %9724 = vmatprep.mubr.bf16.mxu0 0
    %9725 = vmatmul.mubr.bf16.gmra.mxu0 %v9385
    %v9726 = vpop.f32.mrf.mxu0
    %v9727 = vadd.f32 0.0, %v9726
    %v9728 = vpop.f32.mrf.mxu0
    %v9729 = vpop.f32.mrf.mxu0
    %v9730 = vadd.f32 0.0, %v9729
    %v9731 = vpop.f32.mrf.mxu0
    %9732 = vmatprep.mubr.bf16.mxu0 0
    %9733 = vmatmul.mubr.bf16.gmra.mxu0 %v9386
    %v9734 = vpop.f32.mrf.mxu0
    %v9735 = vadd.f32 0.0, %v9734
    %v9736 = vpop.f32.mrf.mxu0
    %v9737 = vpop.f32.mrf.mxu0
    %v9738 = vadd.f32 0.0, %v9737
    %v9739 = vpop.f32.mrf.mxu0
    %9740 = vdwg.mxu0
    %v9741 = vadd.f32 %v9227, %v9487
    %v9742 = vadd.f32 %v9228, %v9490
    %v9743 = vadd.f32 %v9229, %v9495
    %v9744 = vadd.f32 %v9230, %v9498
    %v9745 = vadd.f32 %v9231, %v9503
    %v9746 = vadd.f32 %v9232, %v9506
    %v9747 = vadd.f32 %v9233, %v9511
    %v9748 = vadd.f32 %v9234, %v9514
    %v9749 = vadd.f32 %v9235, %v9519
    %v9750 = vadd.f32 %v9236, %v9522
    %v9751 = vadd.f32 %v9237, %v9527
    %v9752 = vadd.f32 %v9238, %v9530
    %v9753 = vadd.f32 %v9239, %v9535
    %v9754 = vadd.f32 %v9240, %v9538
    %v9755 = vadd.f32 %v9241, %v9543
    %v9756 = vadd.f32 %v9242, %v9546
    %v9757 = vadd.f32 %v9243, %v9551
    %v9758 = vadd.f32 %v9244, %v9554
    %v9759 = vadd.f32 %v9245, %v9559
    %v9760 = vadd.f32 %v9246, %v9562
    %v9761 = vadd.f32 %v9247, %v9567
    %v9762 = vadd.f32 %v9248, %v9570
    %v9763 = vadd.f32 %v9249, %v9575
    %v9764 = vadd.f32 %v9250, %v9578
    %v9765 = vadd.f32 %v9251, %v9583
    %v9766 = vadd.f32 %v9252, %v9586
    %v9767 = vadd.f32 %v9253, %v9591
    %v9768 = vadd.f32 %v9254, %v9594
    %v9769 = vadd.f32 %v9255, %v9599
    %v9770 = vadd.f32 %v9256, %v9602
    %v9771 = vadd.f32 %v9257, %v9607
    %v9772 = vadd.f32 %v9258, %v9610
    %v9773 = vadd.f32 %v9259, %v9615
    %v9774 = vadd.f32 %v9260, %v9618
    %v9775 = vadd.f32 %v9261, %v9623
    %v9776 = vadd.f32 %v9262, %v9626
    %v9777 = vadd.f32 %v9263, %v9631
    %v9778 = vadd.f32 %v9264, %v9634
    %v9779 = vadd.f32 %v9265, %v9639
    %v9780 = vadd.f32 %v9266, %v9642
    %v9781 = vadd.f32 %v9267, %v9647
    %v9782 = vadd.f32 %v9268, %v9650
    %v9783 = vadd.f32 %v9269, %v9655
    %v9784 = vadd.f32 %v9270, %v9658
    %v9785 = vadd.f32 %v9271, %v9663
    %v9786 = vadd.f32 %v9272, %v9666
    %v9787 = vadd.f32 %v9273, %v9671
    %v9788 = vadd.f32 %v9274, %v9674
    %v9789 = vadd.f32 %v9275, %v9679
    %v9790 = vadd.f32 %v9276, %v9682
    %v9791 = vadd.f32 %v9277, %v9687
    %v9792 = vadd.f32 %v9278, %v9690
    %v9793 = vadd.f32 %v9279, %v9695
    %v9794 = vadd.f32 %v9280, %v9698
    %v9795 = vadd.f32 %v9281, %v9703
    %v9796 = vadd.f32 %v9282, %v9706
    %v9797 = vadd.f32 %v9283, %v9711
    %v9798 = vadd.f32 %v9284, %v9714
    %v9799 = vadd.f32 %v9285, %v9719
    %v9800 = vadd.f32 %v9286, %v9722
    %v9801 = vadd.f32 %v9287, %v9727
    %v9802 = vadd.f32 %v9288, %v9730
    %v9803 = vadd.f32 %v9289, %v9735
    %v9804 = vadd.f32 %v9290, %v9738
    %v9805 = vld [vmem:[%s5] sm:$0x1]
    %v9806 = vld [vmem:[%s6] sm:$0x1]
    %v9807 = vadd.f32 %v9741, %v9742
    %v9808 = vadd.f32 %v9807, %v9743
    %v9809 = vadd.f32 %v9808, %v9744
    %v9810 = vadd.f32 %v9809, %v9745
    %v9811 = vadd.f32 %v9810, %v9746
    %v9812 = vadd.f32 %v9811, %v9747
    %v9813 = vadd.f32 %v9812, %v9748
    %v9814 = vadd.f32 %v9813, %v9749
    %v9815 = vadd.f32 %v9814, %v9750
    %v9816 = vadd.f32 %v9815, %v9751
    %v9817 = vadd.f32 %v9816, %v9752
    %v9818 = vadd.f32 %v9817, %v9753
    %v9819 = vadd.f32 %v9818, %v9754
    %v9820 = vadd.f32 %v9819, %v9755
    %v9821 = vadd.f32 %v9820, %v9756
    %v9822 = vadd.f32 %v9821, %v9757
    %v9823 = vadd.f32 %v9822, %v9758
    %v9824 = vadd.f32 %v9823, %v9759
    %v9825 = vadd.f32 %v9824, %v9760
    %v9826 = vadd.f32 %v9825, %v9761
    %v9827 = vadd.f32 %v9826, %v9762
    %v9828 = vadd.f32 %v9827, %v9763
    %v9829 = vadd.f32 %v9828, %v9764
    %v9830 = vadd.f32 %v9829, %v9765
    %v9831 = vadd.f32 %v9830, %v9766
    %v9832 = vadd.f32 %v9831, %v9767
    %v9833 = vadd.f32 %v9832, %v9768
    %v9834 = vadd.f32 %v9833, %v9769
    %v9835 = vadd.f32 %v9834, %v9770
    %v9836 = vadd.f32 %v9835, %v9771
    %v9837 = vadd.f32 %v9836, %v9772
    %v9838 = vadd.f32 %v9837, %v9773
    %v9839 = vadd.f32 %v9838, %v9774
    %v9840 = vadd.f32 %v9839, %v9775
    %v9841 = vadd.f32 %v9840, %v9776
    %v9842 = vadd.f32 %v9841, %v9777
    %v9843 = vadd.f32 %v9842, %v9778
    %v9844 = vadd.f32 %v9843, %v9779
    %v9845 = vadd.f32 %v9844, %v9780
    %v9846 = vadd.f32 %v9845, %v9781
    %v9847 = vadd.f32 %v9846, %v9782
    %v9848 = vadd.f32 %v9847, %v9783
    %v9849 = vadd.f32 %v9848, %v9784
    %v9850 = vadd.f32 %v9849, %v9785
    %v9851 = vadd.f32 %v9850, %v9786
    %v9852 = vadd.f32 %v9851, %v9787
    %v9853 = vadd.f32 %v9852, %v9788
    %v9854 = vadd.f32 %v9853, %v9789
    %v9855 = vadd.f32 %v9854, %v9790
    %v9856 = vadd.f32 %v9855, %v9791
    %v9857 = vadd.f32 %v9856, %v9792
    %v9858 = vadd.f32 %v9857, %v9793
    %v9859 = vadd.f32 %v9858, %v9794
    %v9860 = vadd.f32 %v9859, %v9795
    %v9861 = vadd.f32 %v9860, %v9796
    %v9862 = vadd.f32 %v9861, %v9797
    %v9863 = vadd.f32 %v9862, %v9798
    %v9864 = vadd.f32 %v9863, %v9799
    %v9865 = vadd.f32 %v9864, %v9800
    %v9866 = vadd.f32 %v9865, %v9801
    %v9867 = vadd.f32 %v9866, %v9802
    %v9868 = vadd.f32 %v9867, %v9803
    %v9869 = vadd.f32 %v9868, %v9804
    %v9870 = vrot.slane %v9869, 4
    %v9871 = vadd.f32 %v9869, %v9870
    %v9872 = vrot.slane %v9871, 2
    %v9873 = vadd.f32 %v9871, %v9872
    %v9874 = vrot.slane %v9873, 1
    %v9875 = vadd.f32 %v9873, %v9874
    %v9876 = vmul.f32 %v9875, 0.001953125
    %v9877 = vmul.f32 %v9741, %v9741
    %v9878 = vmul.f32 %v9742, %v9742
    %v9879 = vmul.f32 %v9743, %v9743
    %v9880 = vmul.f32 %v9744, %v9744
    %v9881 = vmul.f32 %v9745, %v9745
    %v9882 = vmul.f32 %v9746, %v9746
    %v9883 = vmul.f32 %v9747, %v9747
    %v9884 = vmul.f32 %v9748, %v9748
    %v9885 = vmul.f32 %v9749, %v9749
    %v9886 = vmul.f32 %v9750, %v9750
    %v9887 = vmul.f32 %v9751, %v9751
    %v9888 = vmul.f32 %v9752, %v9752
    %v9889 = vmul.f32 %v9753, %v9753
    %v9890 = vmul.f32 %v9754, %v9754
    %v9891 = vmul.f32 %v9755, %v9755
    %v9892 = vmul.f32 %v9756, %v9756
    %v9893 = vmul.f32 %v9757, %v9757
    %v9894 = vmul.f32 %v9758, %v9758
    %v9895 = vmul.f32 %v9759, %v9759
    %v9896 = vmul.f32 %v9760, %v9760
    %v9897 = vmul.f32 %v9761, %v9761
    %v9898 = vmul.f32 %v9762, %v9762
    %v9899 = vmul.f32 %v9763, %v9763
    %v9900 = vmul.f32 %v9764, %v9764
    %v9901 = vmul.f32 %v9765, %v9765
    %v9902 = vmul.f32 %v9766, %v9766
    %v9903 = vmul.f32 %v9767, %v9767
    %v9904 = vmul.f32 %v9768, %v9768
    %v9905 = vmul.f32 %v9769, %v9769
    %v9906 = vmul.f32 %v9770, %v9770
    %v9907 = vmul.f32 %v9771, %v9771
    %v9908 = vmul.f32 %v9772, %v9772
    %v9909 = vmul.f32 %v9773, %v9773
    %v9910 = vmul.f32 %v9774, %v9774
    %v9911 = vmul.f32 %v9775, %v9775
    %v9912 = vmul.f32 %v9776, %v9776
    %v9913 = vmul.f32 %v9777, %v9777
    %v9914 = vmul.f32 %v9778, %v9778
    %v9915 = vmul.f32 %v9779, %v9779
    %v9916 = vmul.f32 %v9780, %v9780
    %v9917 = vmul.f32 %v9781, %v9781
    %v9918 = vmul.f32 %v9782, %v9782
    %v9919 = vmul.f32 %v9783, %v9783
    %v9920 = vmul.f32 %v9784, %v9784
    %v9921 = vmul.f32 %v9785, %v9785
    %v9922 = vmul.f32 %v9786, %v9786
    %v9923 = vmul.f32 %v9787, %v9787
    %v9924 = vmul.f32 %v9788, %v9788
    %v9925 = vmul.f32 %v9789, %v9789
    %v9926 = vmul.f32 %v9790, %v9790
    %v9927 = vmul.f32 %v9791, %v9791
    %v9928 = vmul.f32 %v9792, %v9792
    %v9929 = vmul.f32 %v9793, %v9793
    %v9930 = vmul.f32 %v9794, %v9794
    %v9931 = vmul.f32 %v9795, %v9795
    %v9932 = vmul.f32 %v9796, %v9796
    %v9933 = vmul.f32 %v9797, %v9797
    %v9934 = vmul.f32 %v9798, %v9798
    %v9935 = vmul.f32 %v9799, %v9799
    %v9936 = vmul.f32 %v9800, %v9800
    %v9937 = vmul.f32 %v9801, %v9801
    %v9938 = vmul.f32 %v9802, %v9802
    %v9939 = vmul.f32 %v9803, %v9803
    %v9940 = vmul.f32 %v9804, %v9804
    %v9941 = vadd.f32 %v9877, %v9878
    %v9942 = vadd.f32 %v9941, %v9879
    %v9943 = vadd.f32 %v9942, %v9880
    %v9944 = vadd.f32 %v9943, %v9881
    %v9945 = vadd.f32 %v9944, %v9882
    %v9946 = vadd.f32 %v9945, %v9883
    %v9947 = vadd.f32 %v9946, %v9884
    %v9948 = vadd.f32 %v9947, %v9885
    %v9949 = vadd.f32 %v9948, %v9886
    %v9950 = vadd.f32 %v9949, %v9887
    %v9951 = vadd.f32 %v9950, %v9888
    %v9952 = vadd.f32 %v9951, %v9889
    %v9953 = vadd.f32 %v9952, %v9890
    %v9954 = vadd.f32 %v9953, %v9891
    %v9955 = vadd.f32 %v9954, %v9892
    %v9956 = vadd.f32 %v9955, %v9893
    %v9957 = vadd.f32 %v9956, %v9894
    %v9958 = vadd.f32 %v9957, %v9895
    %v9959 = vadd.f32 %v9958, %v9896
    %v9960 = vadd.f32 %v9959, %v9897
    %v9961 = vadd.f32 %v9960, %v9898
    %v9962 = vadd.f32 %v9961, %v9899
    %v9963 = vadd.f32 %v9962, %v9900
    %v9964 = vadd.f32 %v9963, %v9901
    %v9965 = vadd.f32 %v9964, %v9902
    %v9966 = vadd.f32 %v9965, %v9903
    %v9967 = vadd.f32 %v9966, %v9904
    %v9968 = vadd.f32 %v9967, %v9905
    %v9969 = vadd.f32 %v9968, %v9906
    %v9970 = vadd.f32 %v9969, %v9907
    %v9971 = vadd.f32 %v9970, %v9908
    %v9972 = vadd.f32 %v9971, %v9909
    %v9973 = vadd.f32 %v9972, %v9910
    %v9974 = vadd.f32 %v9973, %v9911
    %v9975 = vadd.f32 %v9974, %v9912
    %v9976 = vadd.f32 %v9975, %v9913
    %v9977 = vadd.f32 %v9976, %v9914
    %v9978 = vadd.f32 %v9977, %v9915
    %v9979 = vadd.f32 %v9978, %v9916
    %v9980 = vadd.f32 %v9979, %v9917
    %v9981 = vadd.f32 %v9980, %v9918
    %v9982 = vadd.f32 %v9981, %v9919
    %v9983 = vadd.f32 %v9982, %v9920
    %v9984 = vadd.f32 %v9983, %v9921
    %v9985 = vadd.f32 %v9984, %v9922
    %v9986 = vadd.f32 %v9985, %v9923
    %v9987 = vadd.f32 %v9986, %v9924
    %v9988 = vadd.f32 %v9987, %v9925
    %v9989 = vadd.f32 %v9988, %v9926
    %v9990 = vadd.f32 %v9989, %v9927
    %v9991 = vadd.f32 %v9990, %v9928
    %v9992 = vadd.f32 %v9991, %v9929
    %v9993 = vadd.f32 %v9992, %v9930
    %v9994 = vadd.f32 %v9993, %v9931
    %v9995 = vadd.f32 %v9994, %v9932
    %v9996 = vadd.f32 %v9995, %v9933
    %v9997 = vadd.f32 %v9996, %v9934
    %v9998 = vadd.f32 %v9997, %v9935
    %v9999 = vadd.f32 %v9998, %v9936
    %v10000 = vadd.f32 %v9999, %v9937
    %v10001 = vadd.f32 %v10000, %v9938
    %v10002 = vadd.f32 %v10001, %v9939
    %v10003 = vadd.f32 %v10002, %v9940
    %v10004 = vrot.slane %v10003, 4
    %v10005 = vadd.f32 %v10003, %v10004
    %v10006 = vrot.slane %v10005, 2
    %v10007 = vadd.f32 %v10005, %v10006
    %v10008 = vrot.slane %v10007, 1
    %v10009 = vadd.f32 %v10007, %v10008
    %v10010 = vmul.f32 %v10009, 0.001953125
    %v10011 = vmul.f32 %v9876, %v9876
    %v10012 = vsub.f32 %v10010, %v10011
    %v10013 = vadd.f32 %v10012, 1e-05
    %v10014 = vrsqrt.pop %v10013
    %v10015 = vmul.f32 %v9805, %v10014
    %v10016 = vmul.f32 %v9876, %v10015
    %v10017 = vsub.f32 %v9806, %v10016
    %v10019 = vlaneseq
    %v10020 = vshrl.u32 %v10019, 7
    %v10021 = vsub.s32 0, %v10020
    %v10022 = vrot.slane %v10015, %v10021
    %v10024 = vmul.f32 %v9741, %v10022
    %v10025 = vmul.f32 %v9742, %v10022
    %v10026 = vmul.f32 %v9743, %v10022
    %v10027 = vmul.f32 %v9744, %v10022
    %v10028 = vmul.f32 %v9745, %v10022
    %v10029 = vmul.f32 %v9746, %v10022
    %v10030 = vmul.f32 %v9747, %v10022
    %v10031 = vmul.f32 %v9748, %v10022
    %v10032 = vmul.f32 %v9749, %v10022
    %v10033 = vmul.f32 %v9750, %v10022
    %v10034 = vmul.f32 %v9751, %v10022
    %v10035 = vmul.f32 %v9752, %v10022
    %v10036 = vmul.f32 %v9753, %v10022
    %v10037 = vmul.f32 %v9754, %v10022
    %v10038 = vmul.f32 %v9755, %v10022
    %v10039 = vmul.f32 %v9756, %v10022
    %v10040 = vmul.f32 %v9757, %v10022
    %v10041 = vmul.f32 %v9758, %v10022
    %v10042 = vmul.f32 %v9759, %v10022
    %v10043 = vmul.f32 %v9760, %v10022
    %v10044 = vmul.f32 %v9761, %v10022
    %v10045 = vmul.f32 %v9762, %v10022
    %v10046 = vmul.f32 %v9763, %v10022
    %v10047 = vmul.f32 %v9764, %v10022
    %v10048 = vmul.f32 %v9765, %v10022
    %v10049 = vmul.f32 %v9766, %v10022
    %v10050 = vmul.f32 %v9767, %v10022
    %v10051 = vmul.f32 %v9768, %v10022
    %v10052 = vmul.f32 %v9769, %v10022
    %v10053 = vmul.f32 %v9770, %v10022
    %v10054 = vmul.f32 %v9771, %v10022
    %v10055 = vmul.f32 %v9772, %v10022
    %v10056 = vmul.f32 %v9773, %v10022
    %v10057 = vmul.f32 %v9774, %v10022
    %v10058 = vmul.f32 %v9775, %v10022
    %v10059 = vmul.f32 %v9776, %v10022
    %v10060 = vmul.f32 %v9777, %v10022
    %v10061 = vmul.f32 %v9778, %v10022
    %v10062 = vmul.f32 %v9779, %v10022
    %v10063 = vmul.f32 %v9780, %v10022
    %v10064 = vmul.f32 %v9781, %v10022
    %v10065 = vmul.f32 %v9782, %v10022
    %v10066 = vmul.f32 %v9783, %v10022
    %v10067 = vmul.f32 %v9784, %v10022
    %v10068 = vmul.f32 %v9785, %v10022
    %v10069 = vmul.f32 %v9786, %v10022
    %v10070 = vmul.f32 %v9787, %v10022
    %v10071 = vmul.f32 %v9788, %v10022
    %v10072 = vmul.f32 %v9789, %v10022
    %v10073 = vmul.f32 %v9790, %v10022
    %v10074 = vmul.f32 %v9791, %v10022
    %v10075 = vmul.f32 %v9792, %v10022
    %v10076 = vmul.f32 %v9793, %v10022
    %v10077 = vmul.f32 %v9794, %v10022
    %v10078 = vmul.f32 %v9795, %v10022
    %v10079 = vmul.f32 %v9796, %v10022
    %v10080 = vmul.f32 %v9797, %v10022
    %v10081 = vmul.f32 %v9798, %v10022
    %v10082 = vmul.f32 %v9799, %v10022
    %v10083 = vmul.f32 %v9800, %v10022
    %v10084 = vmul.f32 %v9801, %v10022
    %v10085 = vmul.f32 %v9802, %v10022
    %v10086 = vmul.f32 %v9803, %v10022
    %v10087 = vmul.f32 %v9804, %v10022
    %v10089 = vlaneseq
    %v10090 = vshrl.u32 %v10089, 7
    %v10091 = vsub.s32 0, %v10090
    %v10092 = vrot.slane %v10017, %v10091
    %v10094 = vadd.f32 %v10024, %v10092
    %v10095 = vadd.f32 %v10025, %v10092
    %v10096 = vadd.f32 %v10026, %v10092
    %v10097 = vadd.f32 %v10027, %v10092
    %v10098 = vadd.f32 %v10028, %v10092
    %v10099 = vadd.f32 %v10029, %v10092
    %v10100 = vadd.f32 %v10030, %v10092
    %v10101 = vadd.f32 %v10031, %v10092
    %v10102 = vadd.f32 %v10032, %v10092
    %v10103 = vadd.f32 %v10033, %v10092
    %v10104 = vadd.f32 %v10034, %v10092
    %v10105 = vadd.f32 %v10035, %v10092
    %v10106 = vadd.f32 %v10036, %v10092
    %v10107 = vadd.f32 %v10037, %v10092
    %v10108 = vadd.f32 %v10038, %v10092
    %v10109 = vadd.f32 %v10039, %v10092
    %v10110 = vadd.f32 %v10040, %v10092
    %v10111 = vadd.f32 %v10041, %v10092
    %v10112 = vadd.f32 %v10042, %v10092
    %v10113 = vadd.f32 %v10043, %v10092
    %v10114 = vadd.f32 %v10044, %v10092
    %v10115 = vadd.f32 %v10045, %v10092
    %v10116 = vadd.f32 %v10046, %v10092
    %v10117 = vadd.f32 %v10047, %v10092
    %v10118 = vadd.f32 %v10048, %v10092
    %v10119 = vadd.f32 %v10049, %v10092
    %v10120 = vadd.f32 %v10050, %v10092
    %v10121 = vadd.f32 %v10051, %v10092
    %v10122 = vadd.f32 %v10052, %v10092
    %v10123 = vadd.f32 %v10053, %v10092
    %v10124 = vadd.f32 %v10054, %v10092
    %v10125 = vadd.f32 %v10055, %v10092
    %v10126 = vadd.f32 %v10056, %v10092
    %v10127 = vadd.f32 %v10057, %v10092
    %v10128 = vadd.f32 %v10058, %v10092
    %v10129 = vadd.f32 %v10059, %v10092
    %v10130 = vadd.f32 %v10060, %v10092
    %v10131 = vadd.f32 %v10061, %v10092
    %v10132 = vadd.f32 %v10062, %v10092
    %v10133 = vadd.f32 %v10063, %v10092
    %v10134 = vadd.f32 %v10064, %v10092
    %v10135 = vadd.f32 %v10065, %v10092
    %v10136 = vadd.f32 %v10066, %v10092
    %v10137 = vadd.f32 %v10067, %v10092
    %v10138 = vadd.f32 %v10068, %v10092
    %v10139 = vadd.f32 %v10069, %v10092
    %v10140 = vadd.f32 %v10070, %v10092
    %v10141 = vadd.f32 %v10071, %v10092
    %v10142 = vadd.f32 %v10072, %v10092
    %v10143 = vadd.f32 %v10073, %v10092
    %v10144 = vadd.f32 %v10074, %v10092
    %v10145 = vadd.f32 %v10075, %v10092
    %v10146 = vadd.f32 %v10076, %v10092
    %v10147 = vadd.f32 %v10077, %v10092
    %v10148 = vadd.f32 %v10078, %v10092
    %v10149 = vadd.f32 %v10079, %v10092
    %v10150 = vadd.f32 %v10080, %v10092
    %v10151 = vadd.f32 %v10081, %v10092
    %v10152 = vadd.f32 %v10082, %v10092
    %v10153 = vadd.f32 %v10083, %v10092
    %v10154 = vadd.f32 %v10084, %v10092
    %v10155 = vadd.f32 %v10085, %v10092
    %v10156 = vadd.f32 %v10086, %v10092
    %v10157 = vadd.f32 %v10087, %v10092
    %v10158 = vadd.f32 %v10094, %v28
    %v10159 = vadd.f32 %v10095, %v29
    %v10160 = vadd.f32 %v10096, %v30
    %v10161 = vadd.f32 %v10097, %v31
    %v10162 = vadd.f32 %v10098, %v32
    %v10163 = vadd.f32 %v10099, %v33
    %v10164 = vadd.f32 %v10100, %v34
    %v10165 = vadd.f32 %v10101, %v35
    %v10166 = vadd.f32 %v10102, %v36
    %v10167 = vadd.f32 %v10103, %v37
    %v10168 = vadd.f32 %v10104, %v38
    %v10169 = vadd.f32 %v10105, %v39
    %v10170 = vadd.f32 %v10106, %v40
    %v10171 = vadd.f32 %v10107, %v41
    %v10172 = vadd.f32 %v10108, %v42
    %v10173 = vadd.f32 %v10109, %v43
    %v10174 = vadd.f32 %v10110, %v44
    %v10175 = vadd.f32 %v10111, %v45
    %v10176 = vadd.f32 %v10112, %v46
    %v10177 = vadd.f32 %v10113, %v47
    %v10178 = vadd.f32 %v10114, %v48
    %v10179 = vadd.f32 %v10115, %v49
    %v10180 = vadd.f32 %v10116, %v50
    %v10181 = vadd.f32 %v10117, %v51
    %v10182 = vadd.f32 %v10118, %v52
    %v10183 = vadd.f32 %v10119, %v53
    %v10184 = vadd.f32 %v10120, %v54
    %v10185 = vadd.f32 %v10121, %v55
    %v10186 = vadd.f32 %v10122, %v56
    %v10187 = vadd.f32 %v10123, %v57
    %v10188 = vadd.f32 %v10124, %v58
    %v10189 = vadd.f32 %v10125, %v59
    %v10190 = vadd.f32 %v10126, %v60
    %v10191 = vadd.f32 %v10127, %v61
    %v10192 = vadd.f32 %v10128, %v62
    %v10193 = vadd.f32 %v10129, %v63
    %v10194 = vadd.f32 %v10130, %v64
    %v10195 = vadd.f32 %v10131, %v65
    %v10196 = vadd.f32 %v10132, %v66
    %v10197 = vadd.f32 %v10133, %v67
    %v10198 = vadd.f32 %v10134, %v68
    %v10199 = vadd.f32 %v10135, %v69
    %v10200 = vadd.f32 %v10136, %v70
    %v10201 = vadd.f32 %v10137, %v71
    %v10202 = vadd.f32 %v10138, %v72
    %v10203 = vadd.f32 %v10139, %v73
    %v10204 = vadd.f32 %v10140, %v74
    %v10205 = vadd.f32 %v10141, %v75
    %v10206 = vadd.f32 %v10142, %v76
    %v10207 = vadd.f32 %v10143, %v77
    %v10208 = vadd.f32 %v10144, %v78
    %v10209 = vadd.f32 %v10145, %v79
    %v10210 = vadd.f32 %v10146, %v80
    %v10211 = vadd.f32 %v10147, %v81
    %v10212 = vadd.f32 %v10148, %v82
    %v10213 = vadd.f32 %v10149, %v83
    %v10214 = vadd.f32 %v10150, %v84
    %v10215 = vadd.f32 %v10151, %v85
    %v10216 = vadd.f32 %v10152, %v86
    %v10217 = vadd.f32 %v10153, %v87
    %v10218 = vadd.f32 %v10154, %v88
    %v10219 = vadd.f32 %v10155, %v89
    %v10220 = vadd.f32 %v10156, %v90
    %v10221 = vadd.f32 %v10157, %v91
    %v10222 = vmax.f32 %v10158, 0.0
    %v10223 = vmax.f32 %v10159, 0.0
    %v10224 = vmax.f32 %v10160, 0.0
    %v10225 = vmax.f32 %v10161, 0.0
    %v10226 = vmax.f32 %v10162, 0.0
    %v10227 = vmax.f32 %v10163, 0.0
    %v10228 = vmax.f32 %v10164, 0.0
    %v10229 = vmax.f32 %v10165, 0.0
    %v10230 = vmax.f32 %v10166, 0.0
    %v10231 = vmax.f32 %v10167, 0.0
    %v10232 = vmax.f32 %v10168, 0.0
    %v10233 = vmax.f32 %v10169, 0.0
    %v10234 = vmax.f32 %v10170, 0.0
    %v10235 = vmax.f32 %v10171, 0.0
    %v10236 = vmax.f32 %v10172, 0.0
    %v10237 = vmax.f32 %v10173, 0.0
    %v10238 = vmax.f32 %v10174, 0.0
    %v10239 = vmax.f32 %v10175, 0.0
    %v10240 = vmax.f32 %v10176, 0.0
    %v10241 = vmax.f32 %v10177, 0.0
    %v10242 = vmax.f32 %v10178, 0.0
    %v10243 = vmax.f32 %v10179, 0.0
    %v10244 = vmax.f32 %v10180, 0.0
    %v10245 = vmax.f32 %v10181, 0.0
    %v10246 = vmax.f32 %v10182, 0.0
    %v10247 = vmax.f32 %v10183, 0.0
    %v10248 = vmax.f32 %v10184, 0.0
    %v10249 = vmax.f32 %v10185, 0.0
    %v10250 = vmax.f32 %v10186, 0.0
    %v10251 = vmax.f32 %v10187, 0.0
    %v10252 = vmax.f32 %v10188, 0.0
    %v10253 = vmax.f32 %v10189, 0.0
    %v10254 = vmax.f32 %v10190, 0.0
    %v10255 = vmax.f32 %v10191, 0.0
    %v10256 = vmax.f32 %v10192, 0.0
    %v10257 = vmax.f32 %v10193, 0.0
    %v10258 = vmax.f32 %v10194, 0.0
    %v10259 = vmax.f32 %v10195, 0.0
    %v10260 = vmax.f32 %v10196, 0.0
    %v10261 = vmax.f32 %v10197, 0.0
    %v10262 = vmax.f32 %v10198, 0.0
    %v10263 = vmax.f32 %v10199, 0.0
    %v10264 = vmax.f32 %v10200, 0.0
    %v10265 = vmax.f32 %v10201, 0.0
    %v10266 = vmax.f32 %v10202, 0.0
    %v10267 = vmax.f32 %v10203, 0.0
    %v10268 = vmax.f32 %v10204, 0.0
    %v10269 = vmax.f32 %v10205, 0.0
    %v10270 = vmax.f32 %v10206, 0.0
    %v10271 = vmax.f32 %v10207, 0.0
    %v10272 = vmax.f32 %v10208, 0.0
    %v10273 = vmax.f32 %v10209, 0.0
    %v10274 = vmax.f32 %v10210, 0.0
    %v10275 = vmax.f32 %v10211, 0.0
    %v10276 = vmax.f32 %v10212, 0.0
    %v10277 = vmax.f32 %v10213, 0.0
    %v10278 = vmax.f32 %v10214, 0.0
    %v10279 = vmax.f32 %v10215, 0.0
    %v10280 = vmax.f32 %v10216, 0.0
    %v10281 = vmax.f32 %v10217, 0.0
    %v10282 = vmax.f32 %v10218, 0.0
    %v10283 = vmax.f32 %v10219, 0.0
    %v10284 = vmax.f32 %v10220, 0.0
    %v10285 = vmax.f32 %v10221, 0.0
    %10286 = vst [vmem:[#allocation4] sm:$0xff] %v10222
    %10287 = vst [vmem:[#allocation4 + $0x8] sm:$0xff] %v10223
    %10288 = vst [vmem:[#allocation4 + $0x10] sm:$0xff] %v10224
    %10289 = vst [vmem:[#allocation4 + $0x18] sm:$0xff] %v10225
    %10290 = vst [vmem:[#allocation4 + $0x20] sm:$0xff] %v10226
    %10291 = vst [vmem:[#allocation4 + $0x28] sm:$0xff] %v10227
    %10292 = vst [vmem:[#allocation4 + $0x30] sm:$0xff] %v10228
    %10293 = vst [vmem:[#allocation4 + $0x38] sm:$0xff] %v10229
    %10294 = vst [vmem:[#allocation4 + $0x40] sm:$0xff] %v10230
    %10295 = vst [vmem:[#allocation4 + $0x48] sm:$0xff] %v10231
    %10296 = vst [vmem:[#allocation4 + $0x50] sm:$0xff] %v10232
    %10297 = vst [vmem:[#allocation4 + $0x58] sm:$0xff] %v10233
    %10298 = vst [vmem:[#allocation4 + $0x60] sm:$0xff] %v10234
    %10299 = vst [vmem:[#allocation4 + $0x68] sm:$0xff] %v10235
    %10300 = vst [vmem:[#allocation4 + $0x70] sm:$0xff] %v10236
    %10301 = vst [vmem:[#allocation4 + $0x78] sm:$0xff] %v10237
    %10302 = vst [vmem:[#allocation4 + $0x80] sm:$0xff] %v10238
    %10303 = vst [vmem:[#allocation4 + $0x88] sm:$0xff] %v10239
    %10304 = vst [vmem:[#allocation4 + $0x90] sm:$0xff] %v10240
    %10305 = vst [vmem:[#allocation4 + $0x98] sm:$0xff] %v10241
    %10306 = vst [vmem:[#allocation4 + $0xa0] sm:$0xff] %v10242
    %10307 = vst [vmem:[#allocation4 + $0xa8] sm:$0xff] %v10243
    %10308 = vst [vmem:[#allocation4 + $0xb0] sm:$0xff] %v10244
    %10309 = vst [vmem:[#allocation4 + $0xb8] sm:$0xff] %v10245
    %10310 = vst [vmem:[#allocation4 + $0xc0] sm:$0xff] %v10246
    %10311 = vst [vmem:[#allocation4 + $0xc8] sm:$0xff] %v10247
    %10312 = vst [vmem:[#allocation4 + $0xd0] sm:$0xff] %v10248
    %10313 = vst [vmem:[#allocation4 + $0xd8] sm:$0xff] %v10249
    %10314 = vst [vmem:[#allocation4 + $0xe0] sm:$0xff] %v10250
    %10315 = vst [vmem:[#allocation4 + $0xe8] sm:$0xff] %v10251
    %10316 = vst [vmem:[#allocation4 + $0xf0] sm:$0xff] %v10252
    %10317 = vst [vmem:[#allocation4 + $0xf8] sm:$0xff] %v10253
    %10318 = vst [vmem:[#allocation4 + $0x100] sm:$0xff] %v10254
    %10319 = vst [vmem:[#allocation4 + $0x108] sm:$0xff] %v10255
    %10320 = vst [vmem:[#allocation4 + $0x110] sm:$0xff] %v10256
    %10321 = vst [vmem:[#allocation4 + $0x118] sm:$0xff] %v10257
    %10322 = vst [vmem:[#allocation4 + $0x120] sm:$0xff] %v10258
    %10323 = vst [vmem:[#allocation4 + $0x128] sm:$0xff] %v10259
    %10324 = vst [vmem:[#allocation4 + $0x130] sm:$0xff] %v10260
    %10325 = vst [vmem:[#allocation4 + $0x138] sm:$0xff] %v10261
    %10326 = vst [vmem:[#allocation4 + $0x140] sm:$0xff] %v10262
    %10327 = vst [vmem:[#allocation4 + $0x148] sm:$0xff] %v10263
    %10328 = vst [vmem:[#allocation4 + $0x150] sm:$0xff] %v10264
    %10329 = vst [vmem:[#allocation4 + $0x158] sm:$0xff] %v10265
    %10330 = vst [vmem:[#allocation4 + $0x160] sm:$0xff] %v10266
    %10331 = vst [vmem:[#allocation4 + $0x168] sm:$0xff] %v10267
    %10332 = vst [vmem:[#allocation4 + $0x170] sm:$0xff] %v10268
    %10333 = vst [vmem:[#allocation4 + $0x178] sm:$0xff] %v10269
    %10334 = vst [vmem:[#allocation4 + $0x180] sm:$0xff] %v10270
    %10335 = vst [vmem:[#allocation4 + $0x188] sm:$0xff] %v10271
    %10336 = vst [vmem:[#allocation4 + $0x190] sm:$0xff] %v10272
    %10337 = vst [vmem:[#allocation4 + $0x198] sm:$0xff] %v10273
    %10338 = vst [vmem:[#allocation4 + $0x1a0] sm:$0xff] %v10274
    %10339 = vst [vmem:[#allocation4 + $0x1a8] sm:$0xff] %v10275
    %10340 = vst [vmem:[#allocation4 + $0x1b0] sm:$0xff] %v10276
    %10341 = vst [vmem:[#allocation4 + $0x1b8] sm:$0xff] %v10277
    %10342 = vst [vmem:[#allocation4 + $0x1c0] sm:$0xff] %v10278
    %10343 = vst [vmem:[#allocation4 + $0x1c8] sm:$0xff] %v10279
    %10344 = vst [vmem:[#allocation4 + $0x1d0] sm:$0xff] %v10280
    %10345 = vst [vmem:[#allocation4 + $0x1d8] sm:$0xff] %v10281
    %10346 = vst [vmem:[#allocation4 + $0x1e0] sm:$0xff] %v10282
    %10347 = vst [vmem:[#allocation4 + $0x1e8] sm:$0xff] %v10283
    %10348 = vst [vmem:[#allocation4 + $0x1f0] sm:$0xff] %v10284
    %10349 = vst [vmem:[#allocation4 + $0x1f8] sm:$0xff] %v10285
    // Predicated region
    $region30: #{basic_block_forward.1} parent=1 // pred_check
      _
    $region31: #{basic_block_forward.1} parent=1 // pred_check_branch
      %10351 = sbr.rel (0) target = $region33
    $region32: #{basic_block_forward.1} parent=1 // pred_region
      %s10353 = ssub.s32 8192, 8192
      %10354 = vsyncadd [#allocation5], %s10353
      %s10355 = sshll.u32 [#allocation4], 4
      %s10356 = int_to_ptr.vmem [resolvable:$true] %s10355
      %10361 = dma.vmem_to_hbm [thread:$0]  %s10356, 8192, %s7, [#allocation5], 128, 128, 8
    $region33: #{basic_block_forward.1} parent=1 // pred_fallthru
      _
    // Predicated region
    $region34: #{basic_block_forward.1} parent=1 // pred_check
      _
    $region35: #{basic_block_forward.1} parent=1 // pred_check_branch
      %10363 = sbr.rel (0) target = $region37
    $region36: #{basic_block_forward.1} parent=1 // pred_region
      %10364 = dma.done [#allocation5], 8192
    $region37: #{basic_block_forward.1} parent=1 // pred_fallthru
      _
    %10365 = vsyncpa [#allocation5], 1

</llo_original>
